<compile_context>
chip_gen: v5e
topology: v5e:2x2
jax: 0.10.0
libtpu: 0.0.40
codegen_flags: <defaults>
</compile_context>

<pallas_src>
import functools

import jax
import jax.numpy as jnp
from jax.experimental import pallas as pl
from jax.experimental.pallas import tpu as pltpu

HIDDEN = 128
INPUT_SIZE = 8
NUM_LAYERS = 2
BP = 8  # padded batch rows per timestep (one sublane tile)


def _fused_lstm_kernel(x_ref,
                       wih0f_ref, wih0b_ref, whh0_ref, b0f_ref, b0b_ref,
                       wih1f_ref, whh1f_ref, b1f_ref,
                       wih1b_ref, b1b_ref,
                       fcw_ref, fcb_ref,
                       out_ref,
                       xz0f_ref, xz0b_ref, xz1f_ref, l0_ref,
                       *, T, H):
    """Whole model in one kernel.

    x_ref:      (T*BP, 8)      time-major input, batch padded to BP rows/step
    wih*/whh*:  bf16 weights, already transposed vs torch ((Din,4H)/(K,4H))
    whh0_ref:   (2H, 8H) bf16  block-diagonal [whh0f, 0; 0, whh0b]
    b*:         (1, 4H) f32    combined bias (b_ih + b_hh)
    fcw/fcb:    (2H, NP) bf16 / (1, NP) f32, classes padded to NP lanes
    out_ref:    (BP, NP) f32   logits (padded)
    scratch:    xz0f/xz0b/xz1f (T*BP, 4H) f32, l0 (T*BP, 2H) f32
    Gate order matches torch.nn.LSTM: i, f, g, o.
    """
    f32 = jnp.float32
    bf16 = jnp.bfloat16

    def cell(z, c_prev):
        # gate math kept in f32 (v5e VPU/EUP have no bf16 path)
        i = jax.nn.sigmoid(z[:, 0:H])
        f = jax.nn.sigmoid(z[:, H:2 * H])
        g = jnp.tanh(z[:, 2 * H:3 * H])
        o = jax.nn.sigmoid(z[:, 3 * H:4 * H])
        c = f * c_prev + i * g
        h = o * jnp.tanh(c)
        return h, c

    # ---- Layer 0: hoisted input projections, staged in aligned VMEM ---------
    x_bf = x_ref[...].astype(bf16)                                   # (T*BP, 8)
    xz0f_ref[...] = jnp.dot(x_bf, wih0f_ref[...],
                            preferred_element_type=f32) + b0f_ref[...]
    xz0b_ref[...] = jnp.dot(x_bf, wih0b_ref[...],
                            preferred_element_type=f32) + b0b_ref[...]

    zeros = jnp.zeros((BP, H), f32)
    h0f, c0f = zeros, zeros
    h0b, c0b = zeros, zeros
    h0b_last = zeros  # backward hidden at t = T-1 (first bwd step)

    # ---- Layer 0 recurrence: fwd+bwd fused via block-diagonal W_hh ----------
    for s in range(T):
        tf = s
        tb = T - 1 - s
        h01 = jnp.concatenate([h0f, h0b], axis=1).astype(bf16)      # (BP, 2H)
        zz = jnp.dot(h01, whh0_ref[...], preferred_element_type=f32)  # (BP, 8H)
        zf = xz0f_ref[tf * BP:(tf + 1) * BP, :] + zz[:, 0:4 * H]
        zb = xz0b_ref[tb * BP:(tb + 1) * BP, :] + zz[:, 4 * H:8 * H]
        h0f, c0f = cell(zf, c0f)
        h0b, c0b = cell(zb, c0b)
        l0_ref[tf * BP:(tf + 1) * BP, 0:H] = h0f
        l0_ref[tb * BP:(tb + 1) * BP, H:2 * H] = h0b
        if s == 0:
            h0b_last = h0b

    # h0f is now the layer-0 forward hidden at t = T-1.

    # ---- Layer 1 forward: hoisted projection, staged in scratch -------------
    l0_bf = l0_ref[...].astype(bf16)                                 # (T*BP, 2H)
    xz1f_ref[...] = jnp.dot(l0_bf, wih1f_ref[...],
                            preferred_element_type=f32) + b1f_ref[...]

    h1f, c1f = zeros, zeros
    for t in range(T):
        z = xz1f_ref[t * BP:(t + 1) * BP, :] + jnp.dot(
            h1f.astype(bf16), whh1f_ref[...], preferred_element_type=f32)
        h1f, c1f = cell(z, c1f)

    # ---- Layer 1 backward: only its first step (t = T-1) feeds fc(x[:,-1,:]).
    # h_prev = c_prev = 0, so the W_hh contribution is exactly zero -> skipped.
    l1_last = jnp.concatenate([h0f, h0b_last], axis=1).astype(bf16)  # (BP, 2H)
    zb1 = jnp.dot(l1_last, wih1b_ref[...],
                  preferred_element_type=f32) + b1b_ref[...]
    h1b, _ = cell(zb1, zeros)

    # ---- FC on concat(h1f, h1b); classes padded -> unmasked lane store ------
    hcat = jnp.concatenate([h1f, h1b], axis=1).astype(bf16)          # (BP, 2H)
    out_ref[...] = (jnp.dot(hcat, fcw_ref[...], preferred_element_type=f32)
                    + fcb_ref[...]).astype(out_ref.dtype)


def forward(params, x, lengths=None):
    """x: (B, C=8, T) like the PyTorch module.

    `lengths` is accepted and unused — the reference module's forward also
    ignores it.
    """
    del lengths
    B, C, T = x.shape
    H = HIDDEN
    assert B <= BP, "pad/shard batches of more than 8 sequences across calls"

    # Time-major, batch padded to BP=8 rows per step so every per-step slab in
    # the kernel starts on a sublane-tile boundary.  Padded rows never mix with
    # real rows (all per-row ops are row-independent).
    x_tm = jnp.transpose(x, (2, 0, 1)).astype(jnp.float32)            # (T, B, C)
    x_tm = jnp.pad(x_tm, ((0, 0), (0, BP - B), (0, 0)))
    x2d = x_tm.reshape(T * BP, C)

    # Block-diagonal fused fwd+bwd recurrence weight for layer 0: the RHS is
    # identical every step and K = 2H = 256 fills the v6e/v7x MXU.
    zpad = jnp.zeros((H, 4 * H), jnp.bfloat16)
    whh0 = jnp.concatenate(
        [jnp.concatenate([params["w_hh_0f"], zpad], axis=1),
         jnp.concatenate([zpad, params["w_hh_0b"]], axis=1)], axis=0)  # (2H, 8H)

    num_classes = params["fc_w"].shape[1]
    NP = ((num_classes + 127) // 128) * 128
    fcw = jnp.zeros((2 * H, NP), jnp.bfloat16).at[:, :num_classes].set(
        params["fc_w"].astype(jnp.bfloat16))
    fcb = jnp.zeros((1, NP), jnp.float32).at[:, :num_classes].set(params["fc_b"])

    args = (x2d,
            params["w_ih_0f"], params["w_ih_0b"], whh0,
            params["b_0f"], params["b_0b"],
            params["w_ih_1f"], params["w_hh_1f"], params["b_1f"],
            params["w_ih_1b"], params["b_1b"],
            fcw, fcb)

    kernel = functools.partial(_fused_lstm_kernel, T=T, H=H)
    out = pl.pallas_call(
        kernel,
        out_shape=jax.ShapeDtypeStruct((BP, NP), jnp.float32),
        scratch_shapes=[pltpu.VMEM((T * BP, 4 * H), jnp.float32),   # xz0f
                        pltpu.VMEM((T * BP, 4 * H), jnp.float32),   # xz0b
                        pltpu.VMEM((T * BP, 4 * H), jnp.float32),   # xz1f
                        pltpu.VMEM((T * BP, 2 * H), jnp.float32)],  # l0 output
    )(*args)
    return out[:B, :num_classes]


def init_params(key, num_classes):
    """Deterministic synthetic init matching torch.nn.LSTM shapes.

    LSTM weights are stored transposed vs torch and cast to bf16 (MXU native);
    biases stored combined (b_ih + b_hh) in f32.  w_hh of the last layer's
    backward direction is never needed in this forward pass (single step with
    h_prev = 0), so it is not created.
    """
    H = HIDDEN
    scale = 1.0 / jnp.sqrt(H)

    def u(k, shape, s):
        return jax.random.uniform(k, shape, jnp.float32, -s, s)

    params = {}
    din = INPUT_SIZE
    for layer in range(NUM_LAYERS):
        for d in ("f", "b"):
            key, k1, k2, k3, k4 = jax.random.split(key, 5)
            params[f"w_ih_{layer}{d}"] = u(k1, (din, 4 * H), scale).astype(jnp.bfloat16)
            params[f"w_hh_{layer}{d}"] = u(k2, (H, 4 * H), scale).astype(jnp.bfloat16)
            params[f"b_{layer}{d}"] = u(k3, (1, 4 * H), scale) + u(k4, (1, 4 * H), scale)
        din = 2 * H
    key, k1, k2 = jax.random.split(key, 3)
    fscale = 1.0 / jnp.sqrt(2 * H)
    params["fc_w"] = u(k1, (2 * H, num_classes), fscale)
    params["fc_b"] = u(k2, (1, num_classes), fscale)
    return params


if __name__ == "__main__":
    num_classes = 10
    key = jax.random.PRNGKey(0)
    kp, kx = jax.random.split(key)
    params = init_params(kp, num_classes)

    B, C, T = 2, INPUT_SIZE, 8
    x = jax.random.normal(kx, (B, C, T), jnp.float32)
    lengths = jnp.full((B,), T, jnp.int32)

    out = jax.jit(forward)(params, x, lengths)
    out = jax.block_until_ready(out)
    assert out.shape == (B, num_classes), out.shape
    print("KERNEL_OK")
</pallas_src>

<mosaic_0001>
module attributes {stable_mosaic.version = 11 : i64} {
  func.func @_fused_lstm_kernel(%arg0: memref<64x8xf32, #tpu.memory_space<vmem>>, %arg1: memref<8x512xbf16, #tpu.memory_space<vmem>>, %arg2: memref<8x512xbf16, #tpu.memory_space<vmem>>, %arg3: memref<256x1024xbf16, #tpu.memory_space<vmem>>, %arg4: memref<1x512xf32, #tpu.memory_space<vmem>>, %arg5: memref<1x512xf32, #tpu.memory_space<vmem>>, %arg6: memref<256x512xbf16, #tpu.memory_space<vmem>>, %arg7: memref<128x512xbf16, #tpu.memory_space<vmem>>, %arg8: memref<1x512xf32, #tpu.memory_space<vmem>>, %arg9: memref<256x512xbf16, #tpu.memory_space<vmem>>, %arg10: memref<1x512xf32, #tpu.memory_space<vmem>>, %arg11: memref<256x128xbf16, #tpu.memory_space<vmem>>, %arg12: memref<1x128xf32, #tpu.memory_space<vmem>>, %arg13: memref<8x128xf32, #tpu.memory_space<vmem>>, %arg14: memref<64x512xf32, #tpu.memory_space<vmem>>, %arg15: memref<64x512xf32, #tpu.memory_space<vmem>>, %arg16: memref<64x512xf32, #tpu.memory_space<vmem>>, %arg17: memref<64x256xf32, #tpu.memory_space<vmem>>) attributes {dimension_semantics = [], scalar_prefetch = 0 : i64, scratch_operands = 4 : i64, tpu.core_type = #tpu.core_type<tc>} {
    %c0 = arith.constant 0 : index
    %c0_0 = arith.constant 0 : index
    %0 = vector.load %arg0[%c0, %c0_0] : memref<64x8xf32, #tpu.memory_space<vmem>>, vector<64x8xf32>
    %1 = arith.truncf %0 : vector<64x8xf32> to vector<64x8xbf16>
    %c0_1 = arith.constant 0 : index
    %c0_2 = arith.constant 0 : index
    %2 = vector.load %arg1[%c0_1, %c0_2] : memref<8x512xbf16, #tpu.memory_space<vmem>>, vector<8x512xbf16>
    %cst = arith.constant dense<0.000000e+00> : vector<64x512xf32>
    %3 = tpu.matmul %1, %2, %cst {dimension_numbers = #tpu.dot_dimension_numbers<[1], [0], [0], [1], [0, 0, 1, 1], [], []>} : vector<64x8xbf16>, vector<8x512xbf16>, vector<64x512xf32> -> vector<64x512xf32>
    %c0_3 = arith.constant 0 : index
    %c0_4 = arith.constant 0 : index
    %4 = vector.load %arg4[%c0_3, %c0_4] : memref<1x512xf32, #tpu.memory_space<vmem>>, vector<1x512xf32>
    %5 = vector.broadcast %4 : vector<1x512xf32> to vector<64x512xf32>
    %6 = arith.addf %3, %5 : vector<64x512xf32>
    %c0_5 = arith.constant 0 : index
    %c0_6 = arith.constant 0 : index
    %7 = vector.load %arg14[%c0_5, %c0_6] : memref<64x512xf32, #tpu.memory_space<vmem>>, vector<64x512xf32>
    tpu.vector_store %arg14[%c0_5, %c0_6], %6 {strides = array<i32>} : memref<64x512xf32, #tpu.memory_space<vmem>>, vector<64x512xf32>,
    %c0_7 = arith.constant 0 : index
    %c0_8 = arith.constant 0 : index
    %8 = vector.load %arg2[%c0_7, %c0_8] : memref<8x512xbf16, #tpu.memory_space<vmem>>, vector<8x512xbf16>
    %cst_9 = arith.constant dense<0.000000e+00> : vector<64x512xf32>
    %9 = tpu.matmul %1, %8, %cst_9 {dimension_numbers = #tpu.dot_dimension_numbers<[1], [0], [0], [1], [0, 0, 1, 1], [], []>} : vector<64x8xbf16>, vector<8x512xbf16>, vector<64x512xf32> -> vector<64x512xf32>
    %c0_10 = arith.constant 0 : index
    %c0_11 = arith.constant 0 : index
    %10 = vector.load %arg5[%c0_10, %c0_11] : memref<1x512xf32, #tpu.memory_space<vmem>>, vector<1x512xf32>
    %11 = vector.broadcast %10 : vector<1x512xf32> to vector<64x512xf32>
    %12 = arith.addf %9, %11 : vector<64x512xf32>
    %c0_12 = arith.constant 0 : index
    %c0_13 = arith.constant 0 : index
    %13 = vector.load %arg15[%c0_12, %c0_13] : memref<64x512xf32, #tpu.memory_space<vmem>>, vector<64x512xf32>
    tpu.vector_store %arg15[%c0_12, %c0_13], %12 {strides = array<i32>} : memref<64x512xf32, #tpu.memory_space<vmem>>, vector<64x512xf32>,
    %cst_14 = arith.constant 0.000000e+00 : f32
    %14 = vector.broadcast %cst_14 : f32 to vector<8x128xf32>
    %15 = tpu.concatenate %14, %14 in 1 : vector<8x128xf32>, vector<8x128xf32> -> vector<8x256xf32>
    %16 = arith.truncf %15 : vector<8x256xf32> to vector<8x256xbf16>
    %c0_15 = arith.constant 0 : index
    %c0_16 = arith.constant 0 : index
    %17 = vector.load %arg3[%c0_15, %c0_16] : memref<256x1024xbf16, #tpu.memory_space<vmem>>, vector<256x1024xbf16>
    %cst_17 = arith.constant dense<0.000000e+00> : vector<8x1024xf32>
    %18 = tpu.matmul %16, %17, %cst_17 {dimension_numbers = #tpu.dot_dimension_numbers<[1], [0], [0], [1], [0, 0, 1, 1], [], []>} : vector<8x256xbf16>, vector<256x1024xbf16>, vector<8x1024xf32> -> vector<8x1024xf32>
    %c0_18 = arith.constant 0 : index
    %c0_19 = arith.constant 0 : index
    %19 = vector.load %arg14[%c0_18, %c0_19] : memref<64x512xf32, #tpu.memory_space<vmem>>, vector<8x512xf32>
    %20 = vector.extract_strided_slice %18 {offsets = [0, 0], sizes = [8, 512], strides = [1, 1]} : vector<8x1024xf32> to vector<8x512xf32>
    %21 = arith.addf %19, %20 : vector<8x512xf32>
    %c56 = arith.constant 56 : index
    %c0_20 = arith.constant 0 : index
    %22 = vector.load %arg15[%c56, %c0_20] : memref<64x512xf32, #tpu.memory_space<vmem>>, vector<8x512xf32>
    %23 = vector.extract_strided_slice %18 {offsets = [0, 512], sizes = [8, 512], strides = [1, 1]} : vector<8x1024xf32> to vector<8x512xf32>
    %24 = arith.addf %22, %23 : vector<8x512xf32>
    %25 = vector.extract_strided_slice %21 {offsets = [0, 0], sizes = [8, 128], strides = [1, 1]} : vector<8x512xf32> to vector<8x128xf32>
    %26 = arith.negf %25 : vector<8x128xf32>
    %27 = math.exp %26 : vector<8x128xf32>
    %cst_21 = arith.constant 1.000000e+00 : f32
    %28 = vector.broadcast %cst_21 : f32 to vector<8x128xf32>
    %29 = arith.addf %28, %27 : vector<8x128xf32>
    %30 = arith.divf %28, %29 : vector<8x128xf32>
    %31 = vector.extract_strided_slice %21 {offsets = [0, 128], sizes = [8, 128], strides = [1, 1]} : vector<8x512xf32> to vector<8x128xf32>
    %32 = arith.negf %31 : vector<8x128xf32>
    %33 = math.exp %32 : vector<8x128xf32>
    %cst_22 = arith.constant 1.000000e+00 : f32
    %34 = vector.broadcast %cst_22 : f32 to vector<8x128xf32>
    %35 = arith.addf %34, %33 : vector<8x128xf32>
    %36 = arith.divf %34, %35 : vector<8x128xf32>
    %37 = vector.extract_strided_slice %21 {offsets = [0, 256], sizes = [8, 128], strides = [1, 1]} : vector<8x512xf32> to vector<8x128xf32>
    %38 = math.tanh %37 : vector<8x128xf32>
    %39 = vector.extract_strided_slice %21 {offsets = [0, 384], sizes = [8, 128], strides = [1, 1]} : vector<8x512xf32> to vector<8x128xf32>
    %40 = arith.negf %39 : vector<8x128xf32>
    %41 = math.exp %40 : vector<8x128xf32>
    %cst_23 = arith.constant 1.000000e+00 : f32
    %42 = vector.broadcast %cst_23 : f32 to vector<8x128xf32>
    %43 = arith.addf %42, %41 : vector<8x128xf32>
    %44 = arith.divf %42, %43 : vector<8x128xf32>
    %45 = arith.mulf %36, %14 : vector<8x128xf32>
    %46 = arith.mulf %30, %38 : vector<8x128xf32>
    %47 = arith.addf %45, %46 : vector<8x128xf32>
    %48 = math.tanh %47 : vector<8x128xf32>
    %49 = arith.mulf %44, %48 : vector<8x128xf32>
    %50 = vector.extract_strided_slice %24 {offsets = [0, 0], sizes = [8, 128], strides = [1, 1]} : vector<8x512xf32> to vector<8x128xf32>
    %51 = arith.negf %50 : vector<8x128xf32>
    %52 = math.exp %51 : vector<8x128xf32>
    %cst_24 = arith.constant 1.000000e+00 : f32
    %53 = vector.broadcast %cst_24 : f32 to vector<8x128xf32>
    %54 = arith.addf %53, %52 : vector<8x128xf32>
    %55 = arith.divf %53, %54 : vector<8x128xf32>
    %56 = vector.extract_strided_slice %24 {offsets = [0, 128], sizes = [8, 128], strides = [1, 1]} : vector<8x512xf32> to vector<8x128xf32>
    %57 = arith.negf %56 : vector<8x128xf32>
    %58 = math.exp %57 : vector<8x128xf32>
    %cst_25 = arith.constant 1.000000e+00 : f32
    %59 = vector.broadcast %cst_25 : f32 to vector<8x128xf32>
    %60 = arith.addf %59, %58 : vector<8x128xf32>
    %61 = arith.divf %59, %60 : vector<8x128xf32>
    %62 = vector.extract_strided_slice %24 {offsets = [0, 256], sizes = [8, 128], strides = [1, 1]} : vector<8x512xf32> to vector<8x128xf32>
    %63 = math.tanh %62 : vector<8x128xf32>
    %64 = vector.extract_strided_slice %24 {offsets = [0, 384], sizes = [8, 128], strides = [1, 1]} : vector<8x512xf32> to vector<8x128xf32>
    %65 = arith.negf %64 : vector<8x128xf32>
    %66 = math.exp %65 : vector<8x128xf32>
    %cst_26 = arith.constant 1.000000e+00 : f32
    %67 = vector.broadcast %cst_26 : f32 to vector<8x128xf32>
    %68 = arith.addf %67, %66 : vector<8x128xf32>
    %69 = arith.divf %67, %68 : vector<8x128xf32>
    %70 = arith.mulf %61, %14 : vector<8x128xf32>
    %71 = arith.mulf %55, %63 : vector<8x128xf32>
    %72 = arith.addf %70, %71 : vector<8x128xf32>
    %73 = math.tanh %72 : vector<8x128xf32>
    %74 = arith.mulf %69, %73 : vector<8x128xf32>
    %c0_27 = arith.constant 0 : index
    %c0_28 = arith.constant 0 : index
    %75 = vector.load %arg17[%c0_27, %c0_28] : memref<64x256xf32, #tpu.memory_space<vmem>>, vector<8x128xf32>
    tpu.vector_store %arg17[%c0_27, %c0_28], %49 {strides = array<i32>} : memref<64x256xf32, #tpu.memory_space<vmem>>, vector<8x128xf32>,
    %c56_29 = arith.constant 56 : index
    %c128 = arith.constant 128 : index
    %76 = vector.load %arg17[%c56_29, %c128] : memref<64x256xf32, #tpu.memory_space<vmem>>, vector<8x128xf32>
    tpu.vector_store %arg17[%c56_29, %c128], %74 {strides = array<i32>} : memref<64x256xf32, #tpu.memory_space<vmem>>, vector<8x128xf32>,
    %77 = tpu.concatenate %49, %74 in 1 : vector<8x128xf32>, vector<8x128xf32> -> vector<8x256xf32>
    %78 = arith.truncf %77 : vector<8x256xf32> to vector<8x256xbf16>
    %c0_30 = arith.constant 0 : index
    %c0_31 = arith.constant 0 : index
    %79 = vector.load %arg3[%c0_30, %c0_31] : memref<256x1024xbf16, #tpu.memory_space<vmem>>, vector<256x1024xbf16>
    %cst_32 = arith.constant dense<0.000000e+00> : vector<8x1024xf32>
    %80 = tpu.matmul %78, %79, %cst_32 {dimension_numbers = #tpu.dot_dimension_numbers<[1], [0], [0], [1], [0, 0, 1, 1], [], []>} : vector<8x256xbf16>, vector<256x1024xbf16>, vector<8x1024xf32> -> vector<8x1024xf32>
    %c8 = arith.constant 8 : index
    %c0_33 = arith.constant 0 : index
    %81 = vector.load %arg14[%c8, %c0_33] : memref<64x512xf32, #tpu.memory_space<vmem>>, vector<8x512xf32>
    %82 = vector.extract_strided_slice %80 {offsets = [0, 0], sizes = [8, 512], strides = [1, 1]} : vector<8x1024xf32> to vector<8x512xf32>
    %83 = arith.addf %81, %82 : vector<8x512xf32>
    %c48 = arith.constant 48 : index
    %c0_34 = arith.constant 0 : index
    %84 = vector.load %arg15[%c48, %c0_34] : memref<64x512xf32, #tpu.memory_space<vmem>>, vector<8x512xf32>
    %85 = vector.extract_strided_slice %80 {offsets = [0, 512], sizes = [8, 512], strides = [1, 1]} : vector<8x1024xf32> to vector<8x512xf32>
    %86 = arith.addf %84, %85 : vector<8x512xf32>
    %87 = vector.extract_strided_slice %83 {offsets = [0, 0], sizes = [8, 128], strides = [1, 1]} : vector<8x512xf32> to vector<8x128xf32>
    %88 = arith.negf %87 : vector<8x128xf32>
    %89 = math.exp %88 : vector<8x128xf32>
    %cst_35 = arith.constant 1.000000e+00 : f32
    %90 = vector.broadcast %cst_35 : f32 to vector<8x128xf32>
    %91 = arith.addf %90, %89 : vector<8x128xf32>
    %92 = arith.divf %90, %91 : vector<8x128xf32>
    %93 = vector.extract_strided_slice %83 {offsets = [0, 128], sizes = [8, 128], strides = [1, 1]} : vector<8x512xf32> to vector<8x128xf32>
    %94 = arith.negf %93 : vector<8x128xf32>
    %95 = math.exp %94 : vector<8x128xf32>
    %cst_36 = arith.constant 1.000000e+00 : f32
    %96 = vector.broadcast %cst_36 : f32 to vector<8x128xf32>
    %97 = arith.addf %96, %95 : vector<8x128xf32>
    %98 = arith.divf %96, %97 : vector<8x128xf32>
    %99 = vector.extract_strided_slice %83 {offsets = [0, 256], sizes = [8, 128], strides = [1, 1]} : vector<8x512xf32> to vector<8x128xf32>
    %100 = math.tanh %99 : vector<8x128xf32>
    %101 = vector.extract_strided_slice %83 {offsets = [0, 384], sizes = [8, 128], strides = [1, 1]} : vector<8x512xf32> to vector<8x128xf32>
    %102 = arith.negf %101 : vector<8x128xf32>
    %103 = math.exp %102 : vector<8x128xf32>
    %cst_37 = arith.constant 1.000000e+00 : f32
    %104 = vector.broadcast %cst_37 : f32 to vector<8x128xf32>
    %105 = arith.addf %104, %103 : vector<8x128xf32>
    %106 = arith.divf %104, %105 : vector<8x128xf32>
    %107 = arith.mulf %98, %47 : vector<8x128xf32>
    %108 = arith.mulf %92, %100 : vector<8x128xf32>
    %109 = arith.addf %107, %108 : vector<8x128xf32>
    %110 = math.tanh %109 : vector<8x128xf32>
    %111 = arith.mulf %106, %110 : vector<8x128xf32>
    %112 = vector.extract_strided_slice %86 {offsets = [0, 0], sizes = [8, 128], strides = [1, 1]} : vector<8x512xf32> to vector<8x128xf32>
    %113 = arith.negf %112 : vector<8x128xf32>
    %114 = math.exp %113 : vector<8x128xf32>
    %cst_38 = arith.constant 1.000000e+00 : f32
    %115 = vector.broadcast %cst_38 : f32 to vector<8x128xf32>
    %116 = arith.addf %115, %114 : vector<8x128xf32>
    %117 = arith.divf %115, %116 : vector<8x128xf32>
    %118 = vector.extract_strided_slice %86 {offsets = [0, 128], sizes = [8, 128], strides = [1, 1]} : vector<8x512xf32> to vector<8x128xf32>
    %119 = arith.negf %118 : vector<8x128xf32>
    %120 = math.exp %119 : vector<8x128xf32>
    %cst_39 = arith.constant 1.000000e+00 : f32
    %121 = vector.broadcast %cst_39 : f32 to vector<8x128xf32>
    %122 = arith.addf %121, %120 : vector<8x128xf32>
    %123 = arith.divf %121, %122 : vector<8x128xf32>
    %124 = vector.extract_strided_slice %86 {offsets = [0, 256], sizes = [8, 128], strides = [1, 1]} : vector<8x512xf32> to vector<8x128xf32>
    %125 = math.tanh %124 : vector<8x128xf32>
    %126 = vector.extract_strided_slice %86 {offsets = [0, 384], sizes = [8, 128], strides = [1, 1]} : vector<8x512xf32> to vector<8x128xf32>
    %127 = arith.negf %126 : vector<8x128xf32>
    %128 = math.exp %127 : vector<8x128xf32>
    %cst_40 = arith.constant 1.000000e+00 : f32
    %129 = vector.broadcast %cst_40 : f32 to vector<8x128xf32>
    %130 = arith.addf %129, %128 : vector<8x128xf32>
    %131 = arith.divf %129, %130 : vector<8x128xf32>
    %132 = arith.mulf %123, %72 : vector<8x128xf32>
    %133 = arith.mulf %117, %125 : vector<8x128xf32>
    %134 = arith.addf %132, %133 : vector<8x128xf32>
    %135 = math.tanh %134 : vector<8x128xf32>
    %136 = arith.mulf %131, %135 : vector<8x128xf32>
    %c8_41 = arith.constant 8 : index
    %c0_42 = arith.constant 0 : index
    %137 = vector.load %arg17[%c8_41, %c0_42] : memref<64x256xf32, #tpu.memory_space<vmem>>, vector<8x128xf32>
    tpu.vector_store %arg17[%c8_41, %c0_42], %111 {strides = array<i32>} : memref<64x256xf32, #tpu.memory_space<vmem>>, vector<8x128xf32>,
    %c48_43 = arith.constant 48 : index
    %c128_44 = arith.constant 128 : index
    %138 = vector.load %arg17[%c48_43, %c128_44] : memref<64x256xf32, #tpu.memory_space<vmem>>, vector<8x128xf32>
    tpu.vector_store %arg17[%c48_43, %c128_44], %136 {strides = array<i32>} : memref<64x256xf32, #tpu.memory_space<vmem>>, vector<8x128xf32>,
    %139 = tpu.concatenate %111, %136 in 1 : vector<8x128xf32>, vector<8x128xf32> -> vector<8x256xf32>
    %140 = arith.truncf %139 : vector<8x256xf32> to vector<8x256xbf16>
    %c0_45 = arith.constant 0 : index
    %c0_46 = arith.constant 0 : index
    %141 = vector.load %arg3[%c0_45, %c0_46] : memref<256x1024xbf16, #tpu.memory_space<vmem>>, vector<256x1024xbf16>
    %cst_47 = arith.constant dense<0.000000e+00> : vector<8x1024xf32>
    %142 = tpu.matmul %140, %141, %cst_47 {dimension_numbers = #tpu.dot_dimension_numbers<[1], [0], [0], [1], [0, 0, 1, 1], [], []>} : vector<8x256xbf16>, vector<256x1024xbf16>, vector<8x1024xf32> -> vector<8x1024xf32>
    %c16 = arith.constant 16 : index
    %c0_48 = arith.constant 0 : index
    %143 = vector.load %arg14[%c16, %c0_48] : memref<64x512xf32, #tpu.memory_space<vmem>>, vector<8x512xf32>
    %144 = vector.extract_strided_slice %142 {offsets = [0, 0], sizes = [8, 512], strides = [1, 1]} : vector<8x1024xf32> to vector<8x512xf32>
    %145 = arith.addf %143, %144 : vector<8x512xf32>
    %c40 = arith.constant 40 : index
    %c0_49 = arith.constant 0 : index
    %146 = vector.load %arg15[%c40, %c0_49] : memref<64x512xf32, #tpu.memory_space<vmem>>, vector<8x512xf32>
    %147 = vector.extract_strided_slice %142 {offsets = [0, 512], sizes = [8, 512], strides = [1, 1]} : vector<8x1024xf32> to vector<8x512xf32>
    %148 = arith.addf %146, %147 : vector<8x512xf32>
    %149 = vector.extract_strided_slice %145 {offsets = [0, 0], sizes = [8, 128], strides = [1, 1]} : vector<8x512xf32> to vector<8x128xf32>
    %150 = arith.negf %149 : vector<8x128xf32>
    %151 = math.exp %150 : vector<8x128xf32>
    %cst_50 = arith.constant 1.000000e+00 : f32
    %152 = vector.broadcast %cst_50 : f32 to vector<8x128xf32>
    %153 = arith.addf %152, %151 : vector<8x128xf32>
    %154 = arith.divf %152, %153 : vector<8x128xf32>
    %155 = vector.extract_strided_slice %145 {offsets = [0, 128], sizes = [8, 128], strides = [1, 1]} : vector<8x512xf32> to vector<8x128xf32>
    %156 = arith.negf %155 : vector<8x128xf32>
    %157 = math.exp %156 : vector<8x128xf32>
    %cst_51 = arith.constant 1.000000e+00 : f32
    %158 = vector.broadcast %cst_51 : f32 to vector<8x128xf32>
    %159 = arith.addf %158, %157 : vector<8x128xf32>
    %160 = arith.divf %158, %159 : vector<8x128xf32>
    %161 = vector.extract_strided_slice %145 {offsets = [0, 256], sizes = [8, 128], strides = [1, 1]} : vector<8x512xf32> to vector<8x128xf32>
    %162 = math.tanh %161 : vector<8x128xf32>
    %163 = vector.extract_strided_slice %145 {offsets = [0, 384], sizes = [8, 128], strides = [1, 1]} : vector<8x512xf32> to vector<8x128xf32>
    %164 = arith.negf %163 : vector<8x128xf32>
    %165 = math.exp %164 : vector<8x128xf32>
    %cst_52 = arith.constant 1.000000e+00 : f32
    %166 = vector.broadcast %cst_52 : f32 to vector<8x128xf32>
    %167 = arith.addf %166, %165 : vector<8x128xf32>
    %168 = arith.divf %166, %167 : vector<8x128xf32>
    %169 = arith.mulf %160, %109 : vector<8x128xf32>
    %170 = arith.mulf %154, %162 : vector<8x128xf32>
    %171 = arith.addf %169, %170 : vector<8x128xf32>
    %172 = math.tanh %171 : vector<8x128xf32>
    %173 = arith.mulf %168, %172 : vector<8x128xf32>
    %174 = vector.extract_strided_slice %148 {offsets = [0, 0], sizes = [8, 128], strides = [1, 1]} : vector<8x512xf32> to vector<8x128xf32>
    %175 = arith.negf %174 : vector<8x128xf32>
    %176 = math.exp %175 : vector<8x128xf32>
    %cst_53 = arith.constant 1.000000e+00 : f32
    %177 = vector.broadcast %cst_53 : f32 to vector<8x128xf32>
    %178 = arith.addf %177, %176 : vector<8x128xf32>
    %179 = arith.divf %177, %178 : vector<8x128xf32>
    %180 = vector.extract_strided_slice %148 {offsets = [0, 128], sizes = [8, 128], strides = [1, 1]} : vector<8x512xf32> to vector<8x128xf32>
    %181 = arith.negf %180 : vector<8x128xf32>
    %182 = math.exp %181 : vector<8x128xf32>
    %cst_54 = arith.constant 1.000000e+00 : f32
    %183 = vector.broadcast %cst_54 : f32 to vector<8x128xf32>
    %184 = arith.addf %183, %182 : vector<8x128xf32>
    %185 = arith.divf %183, %184 : vector<8x128xf32>
    %186 = vector.extract_strided_slice %148 {offsets = [0, 256], sizes = [8, 128], strides = [1, 1]} : vector<8x512xf32> to vector<8x128xf32>
    %187 = math.tanh %186 : vector<8x128xf32>
    %188 = vector.extract_strided_slice %148 {offsets = [0, 384], sizes = [8, 128], strides = [1, 1]} : vector<8x512xf32> to vector<8x128xf32>
    %189 = arith.negf %188 : vector<8x128xf32>
    %190 = math.exp %189 : vector<8x128xf32>
    %cst_55 = arith.constant 1.000000e+00 : f32
    %191 = vector.broadcast %cst_55 : f32 to vector<8x128xf32>
    %192 = arith.addf %191, %190 : vector<8x128xf32>
    %193 = arith.divf %191, %192 : vector<8x128xf32>
    %194 = arith.mulf %185, %134 : vector<8x128xf32>
    %195 = arith.mulf %179, %187 : vector<8x128xf32>
    %196 = arith.addf %194, %195 : vector<8x128xf32>
    %197 = math.tanh %196 : vector<8x128xf32>
    %198 = arith.mulf %193, %197 : vector<8x128xf32>
    %c16_56 = arith.constant 16 : index
    %c0_57 = arith.constant 0 : index
    %199 = vector.load %arg17[%c16_56, %c0_57] : memref<64x256xf32, #tpu.memory_space<vmem>>, vector<8x128xf32>
    tpu.vector_store %arg17[%c16_56, %c0_57], %173 {strides = array<i32>} : memref<64x256xf32, #tpu.memory_space<vmem>>, vector<8x128xf32>,
    %c40_58 = arith.constant 40 : index
    %c128_59 = arith.constant 128 : index
    %200 = vector.load %arg17[%c40_58, %c128_59] : memref<64x256xf32, #tpu.memory_space<vmem>>, vector<8x128xf32>
    tpu.vector_store %arg17[%c40_58, %c128_59], %198 {strides = array<i32>} : memref<64x256xf32, #tpu.memory_space<vmem>>, vector<8x128xf32>,
    %201 = tpu.concatenate %173, %198 in 1 : vector<8x128xf32>, vector<8x128xf32> -> vector<8x256xf32>
    %202 = arith.truncf %201 : vector<8x256xf32> to vector<8x256xbf16>
    %c0_60 = arith.constant 0 : index
    %c0_61 = arith.constant 0 : index
    %203 = vector.load %arg3[%c0_60, %c0_61] : memref<256x1024xbf16, #tpu.memory_space<vmem>>, vector<256x1024xbf16>
    %cst_62 = arith.constant dense<0.000000e+00> : vector<8x1024xf32>
    %204 = tpu.matmul %202, %203, %cst_62 {dimension_numbers = #tpu.dot_dimension_numbers<[1], [0], [0], [1], [0, 0, 1, 1], [], []>} : vector<8x256xbf16>, vector<256x1024xbf16>, vector<8x1024xf32> -> vector<8x1024xf32>
    %c24 = arith.constant 24 : index
    %c0_63 = arith.constant 0 : index
    %205 = vector.load %arg14[%c24, %c0_63] : memref<64x512xf32, #tpu.memory_space<vmem>>, vector<8x512xf32>
    %206 = vector.extract_strided_slice %204 {offsets = [0, 0], sizes = [8, 512], strides = [1, 1]} : vector<8x1024xf32> to vector<8x512xf32>
    %207 = arith.addf %205, %206 : vector<8x512xf32>
    %c32 = arith.constant 32 : index
    %c0_64 = arith.constant 0 : index
    %208 = vector.load %arg15[%c32, %c0_64] : memref<64x512xf32, #tpu.memory_space<vmem>>, vector<8x512xf32>
    %209 = vector.extract_strided_slice %204 {offsets = [0, 512], sizes = [8, 512], strides = [1, 1]} : vector<8x1024xf32> to vector<8x512xf32>
    %210 = arith.addf %208, %209 : vector<8x512xf32>
    %211 = vector.extract_strided_slice %207 {offsets = [0, 0], sizes = [8, 128], strides = [1, 1]} : vector<8x512xf32> to vector<8x128xf32>
    %212 = arith.negf %211 : vector<8x128xf32>
    %213 = math.exp %212 : vector<8x128xf32>
    %cst_65 = arith.constant 1.000000e+00 : f32
    %214 = vector.broadcast %cst_65 : f32 to vector<8x128xf32>
    %215 = arith.addf %214, %213 : vector<8x128xf32>
    %216 = arith.divf %214, %215 : vector<8x128xf32>
    %217 = vector.extract_strided_slice %207 {offsets = [0, 128], sizes = [8, 128], strides = [1, 1]} : vector<8x512xf32> to vector<8x128xf32>
    %218 = arith.negf %217 : vector<8x128xf32>
    %219 = math.exp %218 : vector<8x128xf32>
    %cst_66 = arith.constant 1.000000e+00 : f32
    %220 = vector.broadcast %cst_66 : f32 to vector<8x128xf32>
    %221 = arith.addf %220, %219 : vector<8x128xf32>
    %222 = arith.divf %220, %221 : vector<8x128xf32>
    %223 = vector.extract_strided_slice %207 {offsets = [0, 256], sizes = [8, 128], strides = [1, 1]} : vector<8x512xf32> to vector<8x128xf32>
    %224 = math.tanh %223 : vector<8x128xf32>
    %225 = vector.extract_strided_slice %207 {offsets = [0, 384], sizes = [8, 128], strides = [1, 1]} : vector<8x512xf32> to vector<8x128xf32>
    %226 = arith.negf %225 : vector<8x128xf32>
    %227 = math.exp %226 : vector<8x128xf32>
    %cst_67 = arith.constant 1.000000e+00 : f32
    %228 = vector.broadcast %cst_67 : f32 to vector<8x128xf32>
    %229 = arith.addf %228, %227 : vector<8x128xf32>
    %230 = arith.divf %228, %229 : vector<8x128xf32>
    %231 = arith.mulf %222, %171 : vector<8x128xf32>
    %232 = arith.mulf %216, %224 : vector<8x128xf32>
    %233 = arith.addf %231, %232 : vector<8x128xf32>
    %234 = math.tanh %233 : vector<8x128xf32>
    %235 = arith.mulf %230, %234 : vector<8x128xf32>
    %236 = vector.extract_strided_slice %210 {offsets = [0, 0], sizes = [8, 128], strides = [1, 1]} : vector<8x512xf32> to vector<8x128xf32>
    %237 = arith.negf %236 : vector<8x128xf32>
    %238 = math.exp %237 : vector<8x128xf32>
    %cst_68 = arith.constant 1.000000e+00 : f32
    %239 = vector.broadcast %cst_68 : f32 to vector<8x128xf32>
    %240 = arith.addf %239, %238 : vector<8x128xf32>
    %241 = arith.divf %239, %240 : vector<8x128xf32>
    %242 = vector.extract_strided_slice %210 {offsets = [0, 128], sizes = [8, 128], strides = [1, 1]} : vector<8x512xf32> to vector<8x128xf32>
    %243 = arith.negf %242 : vector<8x128xf32>
    %244 = math.exp %243 : vector<8x128xf32>
    %cst_69 = arith.constant 1.000000e+00 : f32
    %245 = vector.broadcast %cst_69 : f32 to vector<8x128xf32>
    %246 = arith.addf %245, %244 : vector<8x128xf32>
    %247 = arith.divf %245, %246 : vector<8x128xf32>
    %248 = vector.extract_strided_slice %210 {offsets = [0, 256], sizes = [8, 128], strides = [1, 1]} : vector<8x512xf32> to vector<8x128xf32>
    %249 = math.tanh %248 : vector<8x128xf32>
    %250 = vector.extract_strided_slice %210 {offsets = [0, 384], sizes = [8, 128], strides = [1, 1]} : vector<8x512xf32> to vector<8x128xf32>
    %251 = arith.negf %250 : vector<8x128xf32>
    %252 = math.exp %251 : vector<8x128xf32>
    %cst_70 = arith.constant 1.000000e+00 : f32
    %253 = vector.broadcast %cst_70 : f32 to vector<8x128xf32>
    %254 = arith.addf %253, %252 : vector<8x128xf32>
    %255 = arith.divf %253, %254 : vector<8x128xf32>
    %256 = arith.mulf %247, %196 : vector<8x128xf32>
    %257 = arith.mulf %241, %249 : vector<8x128xf32>
    %258 = arith.addf %256, %257 : vector<8x128xf32>
    %259 = math.tanh %258 : vector<8x128xf32>
    %260 = arith.mulf %255, %259 : vector<8x128xf32>
    %c24_71 = arith.constant 24 : index
    %c0_72 = arith.constant 0 : index
    %261 = vector.load %arg17[%c24_71, %c0_72] : memref<64x256xf32, #tpu.memory_space<vmem>>, vector<8x128xf32>
    tpu.vector_store %arg17[%c24_71, %c0_72], %235 {strides = array<i32>} : memref<64x256xf32, #tpu.memory_space<vmem>>, vector<8x128xf32>,
    %c32_73 = arith.constant 32 : index
    %c128_74 = arith.constant 128 : index
    %262 = vector.load %arg17[%c32_73, %c128_74] : memref<64x256xf32, #tpu.memory_space<vmem>>, vector<8x128xf32>
    tpu.vector_store %arg17[%c32_73, %c128_74], %260 {strides = array<i32>} : memref<64x256xf32, #tpu.memory_space<vmem>>, vector<8x128xf32>,
    %263 = tpu.concatenate %235, %260 in 1 : vector<8x128xf32>, vector<8x128xf32> -> vector<8x256xf32>
    %264 = arith.truncf %263 : vector<8x256xf32> to vector<8x256xbf16>
    %c0_75 = arith.constant 0 : index
    %c0_76 = arith.constant 0 : index
    %265 = vector.load %arg3[%c0_75, %c0_76] : memref<256x1024xbf16, #tpu.memory_space<vmem>>, vector<256x1024xbf16>
    %cst_77 = arith.constant dense<0.000000e+00> : vector<8x1024xf32>
    %266 = tpu.matmul %264, %265, %cst_77 {dimension_numbers = #tpu.dot_dimension_numbers<[1], [0], [0], [1], [0, 0, 1, 1], [], []>} : vector<8x256xbf16>, vector<256x1024xbf16>, vector<8x1024xf32> -> vector<8x1024xf32>
    %c32_78 = arith.constant 32 : index
    %c0_79 = arith.constant 0 : index
    %267 = vector.load %arg14[%c32_78, %c0_79] : memref<64x512xf32, #tpu.memory_space<vmem>>, vector<8x512xf32>
    %268 = vector.extract_strided_slice %266 {offsets = [0, 0], sizes = [8, 512], strides = [1, 1]} : vector<8x1024xf32> to vector<8x512xf32>
    %269 = arith.addf %267, %268 : vector<8x512xf32>
    %c24_80 = arith.constant 24 : index
    %c0_81 = arith.constant 0 : index
    %270 = vector.load %arg15[%c24_80, %c0_81] : memref<64x512xf32, #tpu.memory_space<vmem>>, vector<8x512xf32>
    %271 = vector.extract_strided_slice %266 {offsets = [0, 512], sizes = [8, 512], strides = [1, 1]} : vector<8x1024xf32> to vector<8x512xf32>
    %272 = arith.addf %270, %271 : vector<8x512xf32>
    %273 = vector.extract_strided_slice %269 {offsets = [0, 0], sizes = [8, 128], strides = [1, 1]} : vector<8x512xf32> to vector<8x128xf32>
    %274 = arith.negf %273 : vector<8x128xf32>
    %275 = math.exp %274 : vector<8x128xf32>
    %cst_82 = arith.constant 1.000000e+00 : f32
    %276 = vector.broadcast %cst_82 : f32 to vector<8x128xf32>
    %277 = arith.addf %276, %275 : vector<8x128xf32>
    %278 = arith.divf %276, %277 : vector<8x128xf32>
    %279 = vector.extract_strided_slice %269 {offsets = [0, 128], sizes = [8, 128], strides = [1, 1]} : vector<8x512xf32> to vector<8x128xf32>
    %280 = arith.negf %279 : vector<8x128xf32>
    %281 = math.exp %280 : vector<8x128xf32>
    %cst_83 = arith.constant 1.000000e+00 : f32
    %282 = vector.broadcast %cst_83 : f32 to vector<8x128xf32>
    %283 = arith.addf %282, %281 : vector<8x128xf32>
    %284 = arith.divf %282, %283 : vector<8x128xf32>
    %285 = vector.extract_strided_slice %269 {offsets = [0, 256], sizes = [8, 128], strides = [1, 1]} : vector<8x512xf32> to vector<8x128xf32>
    %286 = math.tanh %285 : vector<8x128xf32>
    %287 = vector.extract_strided_slice %269 {offsets = [0, 384], sizes = [8, 128], strides = [1, 1]} : vector<8x512xf32> to vector<8x128xf32>
    %288 = arith.negf %287 : vector<8x128xf32>
    %289 = math.exp %288 : vector<8x128xf32>
    %cst_84 = arith.constant 1.000000e+00 : f32
    %290 = vector.broadcast %cst_84 : f32 to vector<8x128xf32>
    %291 = arith.addf %290, %289 : vector<8x128xf32>
    %292 = arith.divf %290, %291 : vector<8x128xf32>
    %293 = arith.mulf %284, %233 : vector<8x128xf32>
    %294 = arith.mulf %278, %286 : vector<8x128xf32>
    %295 = arith.addf %293, %294 : vector<8x128xf32>
    %296 = math.tanh %295 : vector<8x128xf32>
    %297 = arith.mulf %292, %296 : vector<8x128xf32>
    %298 = vector.extract_strided_slice %272 {offsets = [0, 0], sizes = [8, 128], strides = [1, 1]} : vector<8x512xf32> to vector<8x128xf32>
    %299 = arith.negf %298 : vector<8x128xf32>
    %300 = math.exp %299 : vector<8x128xf32>
    %cst_85 = arith.constant 1.000000e+00 : f32
    %301 = vector.broadcast %cst_85 : f32 to vector<8x128xf32>
    %302 = arith.addf %301, %300 : vector<8x128xf32>
    %303 = arith.divf %301, %302 : vector<8x128xf32>
    %304 = vector.extract_strided_slice %272 {offsets = [0, 128], sizes = [8, 128], strides = [1, 1]} : vector<8x512xf32> to vector<8x128xf32>
    %305 = arith.negf %304 : vector<8x128xf32>
    %306 = math.exp %305 : vector<8x128xf32>
    %cst_86 = arith.constant 1.000000e+00 : f32
    %307 = vector.broadcast %cst_86 : f32 to vector<8x128xf32>
    %308 = arith.addf %307, %306 : vector<8x128xf32>
    %309 = arith.divf %307, %308 : vector<8x128xf32>
    %310 = vector.extract_strided_slice %272 {offsets = [0, 256], sizes = [8, 128], strides = [1, 1]} : vector<8x512xf32> to vector<8x128xf32>
    %311 = math.tanh %310 : vector<8x128xf32>
    %312 = vector.extract_strided_slice %272 {offsets = [0, 384], sizes = [8, 128], strides = [1, 1]} : vector<8x512xf32> to vector<8x128xf32>
    %313 = arith.negf %312 : vector<8x128xf32>
    %314 = math.exp %313 : vector<8x128xf32>
    %cst_87 = arith.constant 1.000000e+00 : f32
    %315 = vector.broadcast %cst_87 : f32 to vector<8x128xf32>
    %316 = arith.addf %315, %314 : vector<8x128xf32>
    %317 = arith.divf %315, %316 : vector<8x128xf32>
    %318 = arith.mulf %309, %258 : vector<8x128xf32>
    %319 = arith.mulf %303, %311 : vector<8x128xf32>
    %320 = arith.addf %318, %319 : vector<8x128xf32>
    %321 = math.tanh %320 : vector<8x128xf32>
    %322 = arith.mulf %317, %321 : vector<8x128xf32>
    %c32_88 = arith.constant 32 : index
    %c0_89 = arith.constant 0 : index
    %323 = vector.load %arg17[%c32_88, %c0_89] : memref<64x256xf32, #tpu.memory_space<vmem>>, vector<8x128xf32>
    tpu.vector_store %arg17[%c32_88, %c0_89], %297 {strides = array<i32>} : memref<64x256xf32, #tpu.memory_space<vmem>>, vector<8x128xf32>,
    %c24_90 = arith.constant 24 : index
    %c128_91 = arith.constant 128 : index
    %324 = vector.load %arg17[%c24_90, %c128_91] : memref<64x256xf32, #tpu.memory_space<vmem>>, vector<8x128xf32>
    tpu.vector_store %arg17[%c24_90, %c128_91], %322 {strides = array<i32>} : memref<64x256xf32, #tpu.memory_space<vmem>>, vector<8x128xf32>,
    %325 = tpu.concatenate %297, %322 in 1 : vector<8x128xf32>, vector<8x128xf32> -> vector<8x256xf32>
    %326 = arith.truncf %325 : vector<8x256xf32> to vector<8x256xbf16>
    %c0_92 = arith.constant 0 : index
    %c0_93 = arith.constant 0 : index
    %327 = vector.load %arg3[%c0_92, %c0_93] : memref<256x1024xbf16, #tpu.memory_space<vmem>>, vector<256x1024xbf16>
    %cst_94 = arith.constant dense<0.000000e+00> : vector<8x1024xf32>
    %328 = tpu.matmul %326, %327, %cst_94 {dimension_numbers = #tpu.dot_dimension_numbers<[1], [0], [0], [1], [0, 0, 1, 1], [], []>} : vector<8x256xbf16>, vector<256x1024xbf16>, vector<8x1024xf32> -> vector<8x1024xf32>
    %c40_95 = arith.constant 40 : index
    %c0_96 = arith.constant 0 : index
    %329 = vector.load %arg14[%c40_95, %c0_96] : memref<64x512xf32, #tpu.memory_space<vmem>>, vector<8x512xf32>
    %330 = vector.extract_strided_slice %328 {offsets = [0, 0], sizes = [8, 512], strides = [1, 1]} : vector<8x1024xf32> to vector<8x512xf32>
    %331 = arith.addf %329, %330 : vector<8x512xf32>
    %c16_97 = arith.constant 16 : index
    %c0_98 = arith.constant 0 : index
    %332 = vector.load %arg15[%c16_97, %c0_98] : memref<64x512xf32, #tpu.memory_space<vmem>>, vector<8x512xf32>
    %333 = vector.extract_strided_slice %328 {offsets = [0, 512], sizes = [8, 512], strides = [1, 1]} : vector<8x1024xf32> to vector<8x512xf32>
    %334 = arith.addf %332, %333 : vector<8x512xf32>
    %335 = vector.extract_strided_slice %331 {offsets = [0, 0], sizes = [8, 128], strides = [1, 1]} : vector<8x512xf32> to vector<8x128xf32>
    %336 = arith.negf %335 : vector<8x128xf32>
    %337 = math.exp %336 : vector<8x128xf32>
    %cst_99 = arith.constant 1.000000e+00 : f32
    %338 = vector.broadcast %cst_99 : f32 to vector<8x128xf32>
    %339 = arith.addf %338, %337 : vector<8x128xf32>
    %340 = arith.divf %338, %339 : vector<8x128xf32>
    %341 = vector.extract_strided_slice %331 {offsets = [0, 128], sizes = [8, 128], strides = [1, 1]} : vector<8x512xf32> to vector<8x128xf32>
    %342 = arith.negf %341 : vector<8x128xf32>
    %343 = math.exp %342 : vector<8x128xf32>
    %cst_100 = arith.constant 1.000000e+00 : f32
    %344 = vector.broadcast %cst_100 : f32 to vector<8x128xf32>
    %345 = arith.addf %344, %343 : vector<8x128xf32>
    %346 = arith.divf %344, %345 : vector<8x128xf32>
    %347 = vector.extract_strided_slice %331 {offsets = [0, 256], sizes = [8, 128], strides = [1, 1]} : vector<8x512xf32> to vector<8x128xf32>
    %348 = math.tanh %347 : vector<8x128xf32>
    %349 = vector.extract_strided_slice %331 {offsets = [0, 384], sizes = [8, 128], strides = [1, 1]} : vector<8x512xf32> to vector<8x128xf32>
    %350 = arith.negf %349 : vector<8x128xf32>
    %351 = math.exp %350 : vector<8x128xf32>
    %cst_101 = arith.constant 1.000000e+00 : f32
    %352 = vector.broadcast %cst_101 : f32 to vector<8x128xf32>
    %353 = arith.addf %352, %351 : vector<8x128xf32>
    %354 = arith.divf %352, %353 : vector<8x128xf32>
    %355 = arith.mulf %346, %295 : vector<8x128xf32>
    %356 = arith.mulf %340, %348 : vector<8x128xf32>
    %357 = arith.addf %355, %356 : vector<8x128xf32>
    %358 = math.tanh %357 : vector<8x128xf32>
    %359 = arith.mulf %354, %358 : vector<8x128xf32>
    %360 = vector.extract_strided_slice %334 {offsets = [0, 0], sizes = [8, 128], strides = [1, 1]} : vector<8x512xf32> to vector<8x128xf32>
    %361 = arith.negf %360 : vector<8x128xf32>
    %362 = math.exp %361 : vector<8x128xf32>
    %cst_102 = arith.constant 1.000000e+00 : f32
    %363 = vector.broadcast %cst_102 : f32 to vector<8x128xf32>
    %364 = arith.addf %363, %362 : vector<8x128xf32>
    %365 = arith.divf %363, %364 : vector<8x128xf32>
    %366 = vector.extract_strided_slice %334 {offsets = [0, 128], sizes = [8, 128], strides = [1, 1]} : vector<8x512xf32> to vector<8x128xf32>
    %367 = arith.negf %366 : vector<8x128xf32>
    %368 = math.exp %367 : vector<8x128xf32>
    %cst_103 = arith.constant 1.000000e+00 : f32
    %369 = vector.broadcast %cst_103 : f32 to vector<8x128xf32>
    %370 = arith.addf %369, %368 : vector<8x128xf32>
    %371 = arith.divf %369, %370 : vector<8x128xf32>
    %372 = vector.extract_strided_slice %334 {offsets = [0, 256], sizes = [8, 128], strides = [1, 1]} : vector<8x512xf32> to vector<8x128xf32>
    %373 = math.tanh %372 : vector<8x128xf32>
    %374 = vector.extract_strided_slice %334 {offsets = [0, 384], sizes = [8, 128], strides = [1, 1]} : vector<8x512xf32> to vector<8x128xf32>
    %375 = arith.negf %374 : vector<8x128xf32>
    %376 = math.exp %375 : vector<8x128xf32>
    %cst_104 = arith.constant 1.000000e+00 : f32
    %377 = vector.broadcast %cst_104 : f32 to vector<8x128xf32>
    %378 = arith.addf %377, %376 : vector<8x128xf32>
    %379 = arith.divf %377, %378 : vector<8x128xf32>
    %380 = arith.mulf %371, %320 : vector<8x128xf32>
    %381 = arith.mulf %365, %373 : vector<8x128xf32>
    %382 = arith.addf %380, %381 : vector<8x128xf32>
    %383 = math.tanh %382 : vector<8x128xf32>
    %384 = arith.mulf %379, %383 : vector<8x128xf32>
    %c40_105 = arith.constant 40 : index
    %c0_106 = arith.constant 0 : index
    %385 = vector.load %arg17[%c40_105, %c0_106] : memref<64x256xf32, #tpu.memory_space<vmem>>, vector<8x128xf32>
    tpu.vector_store %arg17[%c40_105, %c0_106], %359 {strides = array<i32>} : memref<64x256xf32, #tpu.memory_space<vmem>>, vector<8x128xf32>,
    %c16_107 = arith.constant 16 : index
    %c128_108 = arith.constant 128 : index
    %386 = vector.load %arg17[%c16_107, %c128_108] : memref<64x256xf32, #tpu.memory_space<vmem>>, vector<8x128xf32>
    tpu.vector_store %arg17[%c16_107, %c128_108], %384 {strides = array<i32>} : memref<64x256xf32, #tpu.memory_space<vmem>>, vector<8x128xf32>,
    %387 = tpu.concatenate %359, %384 in 1 : vector<8x128xf32>, vector<8x128xf32> -> vector<8x256xf32>
    %388 = arith.truncf %387 : vector<8x256xf32> to vector<8x256xbf16>
    %c0_109 = arith.constant 0 : index
    %c0_110 = arith.constant 0 : index
    %389 = vector.load %arg3[%c0_109, %c0_110] : memref<256x1024xbf16, #tpu.memory_space<vmem>>, vector<256x1024xbf16>
    %cst_111 = arith.constant dense<0.000000e+00> : vector<8x1024xf32>
    %390 = tpu.matmul %388, %389, %cst_111 {dimension_numbers = #tpu.dot_dimension_numbers<[1], [0], [0], [1], [0, 0, 1, 1], [], []>} : vector<8x256xbf16>, vector<256x1024xbf16>, vector<8x1024xf32> -> vector<8x1024xf32>
    %c48_112 = arith.constant 48 : index
    %c0_113 = arith.constant 0 : index
    %391 = vector.load %arg14[%c48_112, %c0_113] : memref<64x512xf32, #tpu.memory_space<vmem>>, vector<8x512xf32>
    %392 = vector.extract_strided_slice %390 {offsets = [0, 0], sizes = [8, 512], strides = [1, 1]} : vector<8x1024xf32> to vector<8x512xf32>
    %393 = arith.addf %391, %392 : vector<8x512xf32>
    %c8_114 = arith.constant 8 : index
    %c0_115 = arith.constant 0 : index
    %394 = vector.load %arg15[%c8_114, %c0_115] : memref<64x512xf32, #tpu.memory_space<vmem>>, vector<8x512xf32>
    %395 = vector.extract_strided_slice %390 {offsets = [0, 512], sizes = [8, 512], strides = [1, 1]} : vector<8x1024xf32> to vector<8x512xf32>
    %396 = arith.addf %394, %395 : vector<8x512xf32>
    %397 = vector.extract_strided_slice %393 {offsets = [0, 0], sizes = [8, 128], strides = [1, 1]} : vector<8x512xf32> to vector<8x128xf32>
    %398 = arith.negf %397 : vector<8x128xf32>
    %399 = math.exp %398 : vector<8x128xf32>
    %cst_116 = arith.constant 1.000000e+00 : f32
    %400 = vector.broadcast %cst_116 : f32 to vector<8x128xf32>
    %401 = arith.addf %400, %399 : vector<8x128xf32>
    %402 = arith.divf %400, %401 : vector<8x128xf32>
    %403 = vector.extract_strided_slice %393 {offsets = [0, 128], sizes = [8, 128], strides = [1, 1]} : vector<8x512xf32> to vector<8x128xf32>
    %404 = arith.negf %403 : vector<8x128xf32>
    %405 = math.exp %404 : vector<8x128xf32>
    %cst_117 = arith.constant 1.000000e+00 : f32
    %406 = vector.broadcast %cst_117 : f32 to vector<8x128xf32>
    %407 = arith.addf %406, %405 : vector<8x128xf32>
    %408 = arith.divf %406, %407 : vector<8x128xf32>
    %409 = vector.extract_strided_slice %393 {offsets = [0, 256], sizes = [8, 128], strides = [1, 1]} : vector<8x512xf32> to vector<8x128xf32>
    %410 = math.tanh %409 : vector<8x128xf32>
    %411 = vector.extract_strided_slice %393 {offsets = [0, 384], sizes = [8, 128], strides = [1, 1]} : vector<8x512xf32> to vector<8x128xf32>
    %412 = arith.negf %411 : vector<8x128xf32>
    %413 = math.exp %412 : vector<8x128xf32>
    %cst_118 = arith.constant 1.000000e+00 : f32
    %414 = vector.broadcast %cst_118 : f32 to vector<8x128xf32>
    %415 = arith.addf %414, %413 : vector<8x128xf32>
    %416 = arith.divf %414, %415 : vector<8x128xf32>
    %417 = arith.mulf %408, %357 : vector<8x128xf32>
    %418 = arith.mulf %402, %410 : vector<8x128xf32>
    %419 = arith.addf %417, %418 : vector<8x128xf32>
    %420 = math.tanh %419 : vector<8x128xf32>
    %421 = arith.mulf %416, %420 : vector<8x128xf32>
    %422 = vector.extract_strided_slice %396 {offsets = [0, 0], sizes = [8, 128], strides = [1, 1]} : vector<8x512xf32> to vector<8x128xf32>
    %423 = arith.negf %422 : vector<8x128xf32>
    %424 = math.exp %423 : vector<8x128xf32>
    %cst_119 = arith.constant 1.000000e+00 : f32
    %425 = vector.broadcast %cst_119 : f32 to vector<8x128xf32>
    %426 = arith.addf %425, %424 : vector<8x128xf32>
    %427 = arith.divf %425, %426 : vector<8x128xf32>
    %428 = vector.extract_strided_slice %396 {offsets = [0, 128], sizes = [8, 128], strides = [1, 1]} : vector<8x512xf32> to vector<8x128xf32>
    %429 = arith.negf %428 : vector<8x128xf32>
    %430 = math.exp %429 : vector<8x128xf32>
    %cst_120 = arith.constant 1.000000e+00 : f32
    %431 = vector.broadcast %cst_120 : f32 to vector<8x128xf32>
    %432 = arith.addf %431, %430 : vector<8x128xf32>
    %433 = arith.divf %431, %432 : vector<8x128xf32>
    %434 = vector.extract_strided_slice %396 {offsets = [0, 256], sizes = [8, 128], strides = [1, 1]} : vector<8x512xf32> to vector<8x128xf32>
    %435 = math.tanh %434 : vector<8x128xf32>
    %436 = vector.extract_strided_slice %396 {offsets = [0, 384], sizes = [8, 128], strides = [1, 1]} : vector<8x512xf32> to vector<8x128xf32>
    %437 = arith.negf %436 : vector<8x128xf32>
    %438 = math.exp %437 : vector<8x128xf32>
    %cst_121 = arith.constant 1.000000e+00 : f32
    %439 = vector.broadcast %cst_121 : f32 to vector<8x128xf32>
    %440 = arith.addf %439, %438 : vector<8x128xf32>
    %441 = arith.divf %439, %440 : vector<8x128xf32>
    %442 = arith.mulf %433, %382 : vector<8x128xf32>
    %443 = arith.mulf %427, %435 : vector<8x128xf32>
    %444 = arith.addf %442, %443 : vector<8x128xf32>
    %445 = math.tanh %444 : vector<8x128xf32>
    %446 = arith.mulf %441, %445 : vector<8x128xf32>
    %c48_122 = arith.constant 48 : index
    %c0_123 = arith.constant 0 : index
    %447 = vector.load %arg17[%c48_122, %c0_123] : memref<64x256xf32, #tpu.memory_space<vmem>>, vector<8x128xf32>
    tpu.vector_store %arg17[%c48_122, %c0_123], %421 {strides = array<i32>} : memref<64x256xf32, #tpu.memory_space<vmem>>, vector<8x128xf32>,
    %c8_124 = arith.constant 8 : index
    %c128_125 = arith.constant 128 : index
    %448 = vector.load %arg17[%c8_124, %c128_125] : memref<64x256xf32, #tpu.memory_space<vmem>>, vector<8x128xf32>
    tpu.vector_store %arg17[%c8_124, %c128_125], %446 {strides = array<i32>} : memref<64x256xf32, #tpu.memory_space<vmem>>, vector<8x128xf32>,
    %449 = tpu.concatenate %421, %446 in 1 : vector<8x128xf32>, vector<8x128xf32> -> vector<8x256xf32>
    %450 = arith.truncf %449 : vector<8x256xf32> to vector<8x256xbf16>
    %c0_126 = arith.constant 0 : index
    %c0_127 = arith.constant 0 : index
    %451 = vector.load %arg3[%c0_126, %c0_127] : memref<256x1024xbf16, #tpu.memory_space<vmem>>, vector<256x1024xbf16>
    %cst_128 = arith.constant dense<0.000000e+00> : vector<8x1024xf32>
    %452 = tpu.matmul %450, %451, %cst_128 {dimension_numbers = #tpu.dot_dimension_numbers<[1], [0], [0], [1], [0, 0, 1, 1], [], []>} : vector<8x256xbf16>, vector<256x1024xbf16>, vector<8x1024xf32> -> vector<8x1024xf32>
    %c56_129 = arith.constant 56 : index
    %c0_130 = arith.constant 0 : index
    %453 = vector.load %arg14[%c56_129, %c0_130] : memref<64x512xf32, #tpu.memory_space<vmem>>, vector<8x512xf32>
    %454 = vector.extract_strided_slice %452 {offsets = [0, 0], sizes = [8, 512], strides = [1, 1]} : vector<8x1024xf32> to vector<8x512xf32>
    %455 = arith.addf %453, %454 : vector<8x512xf32>
    %c0_131 = arith.constant 0 : index
    %c0_132 = arith.constant 0 : index
    %456 = vector.load %arg15[%c0_131, %c0_132] : memref<64x512xf32, #tpu.memory_space<vmem>>, vector<8x512xf32>
    %457 = vector.extract_strided_slice %452 {offsets = [0, 512], sizes = [8, 512], strides = [1, 1]} : vector<8x1024xf32> to vector<8x512xf32>
    %458 = arith.addf %456, %457 : vector<8x512xf32>
    %459 = vector.extract_strided_slice %455 {offsets = [0, 0], sizes = [8, 128], strides = [1, 1]} : vector<8x512xf32> to vector<8x128xf32>
    %460 = arith.negf %459 : vector<8x128xf32>
    %461 = math.exp %460 : vector<8x128xf32>
    %cst_133 = arith.constant 1.000000e+00 : f32
    %462 = vector.broadcast %cst_133 : f32 to vector<8x128xf32>
    %463 = arith.addf %462, %461 : vector<8x128xf32>
    %464 = arith.divf %462, %463 : vector<8x128xf32>
    %465 = vector.extract_strided_slice %455 {offsets = [0, 128], sizes = [8, 128], strides = [1, 1]} : vector<8x512xf32> to vector<8x128xf32>
    %466 = arith.negf %465 : vector<8x128xf32>
    %467 = math.exp %466 : vector<8x128xf32>
    %cst_134 = arith.constant 1.000000e+00 : f32
    %468 = vector.broadcast %cst_134 : f32 to vector<8x128xf32>
    %469 = arith.addf %468, %467 : vector<8x128xf32>
    %470 = arith.divf %468, %469 : vector<8x128xf32>
    %471 = vector.extract_strided_slice %455 {offsets = [0, 256], sizes = [8, 128], strides = [1, 1]} : vector<8x512xf32> to vector<8x128xf32>
    %472 = math.tanh %471 : vector<8x128xf32>
    %473 = vector.extract_strided_slice %455 {offsets = [0, 384], sizes = [8, 128], strides = [1, 1]} : vector<8x512xf32> to vector<8x128xf32>
    %474 = arith.negf %473 : vector<8x128xf32>
    %475 = math.exp %474 : vector<8x128xf32>
    %cst_135 = arith.constant 1.000000e+00 : f32
    %476 = vector.broadcast %cst_135 : f32 to vector<8x128xf32>
    %477 = arith.addf %476, %475 : vector<8x128xf32>
    %478 = arith.divf %476, %477 : vector<8x128xf32>
    %479 = arith.mulf %470, %419 : vector<8x128xf32>
    %480 = arith.mulf %464, %472 : vector<8x128xf32>
    %481 = arith.addf %479, %480 : vector<8x128xf32>
    %482 = math.tanh %481 : vector<8x128xf32>
    %483 = arith.mulf %478, %482 : vector<8x128xf32>
    %484 = vector.extract_strided_slice %458 {offsets = [0, 0], sizes = [8, 128], strides = [1, 1]} : vector<8x512xf32> to vector<8x128xf32>
    %485 = arith.negf %484 : vector<8x128xf32>
    %486 = math.exp %485 : vector<8x128xf32>
    %cst_136 = arith.constant 1.000000e+00 : f32
    %487 = vector.broadcast %cst_136 : f32 to vector<8x128xf32>
    %488 = arith.addf %487, %486 : vector<8x128xf32>
    %489 = arith.divf %487, %488 : vector<8x128xf32>
    %490 = vector.extract_strided_slice %458 {offsets = [0, 128], sizes = [8, 128], strides = [1, 1]} : vector<8x512xf32> to vector<8x128xf32>
    %491 = arith.negf %490 : vector<8x128xf32>
    %492 = math.exp %491 : vector<8x128xf32>
    %cst_137 = arith.constant 1.000000e+00 : f32
    %493 = vector.broadcast %cst_137 : f32 to vector<8x128xf32>
    %494 = arith.addf %493, %492 : vector<8x128xf32>
    %495 = arith.divf %493, %494 : vector<8x128xf32>
    %496 = vector.extract_strided_slice %458 {offsets = [0, 256], sizes = [8, 128], strides = [1, 1]} : vector<8x512xf32> to vector<8x128xf32>
    %497 = math.tanh %496 : vector<8x128xf32>
    %498 = vector.extract_strided_slice %458 {offsets = [0, 384], sizes = [8, 128], strides = [1, 1]} : vector<8x512xf32> to vector<8x128xf32>
    %499 = arith.negf %498 : vector<8x128xf32>
    %500 = math.exp %499 : vector<8x128xf32>
    %cst_138 = arith.constant 1.000000e+00 : f32
    %501 = vector.broadcast %cst_138 : f32 to vector<8x128xf32>
    %502 = arith.addf %501, %500 : vector<8x128xf32>
    %503 = arith.divf %501, %502 : vector<8x128xf32>
    %504 = arith.mulf %495, %444 : vector<8x128xf32>
    %505 = arith.mulf %489, %497 : vector<8x128xf32>
    %506 = arith.addf %504, %505 : vector<8x128xf32>
    %507 = math.tanh %506 : vector<8x128xf32>
    %508 = arith.mulf %503, %507 : vector<8x128xf32>
    %c56_139 = arith.constant 56 : index
    %c0_140 = arith.constant 0 : index
    %509 = vector.load %arg17[%c56_139, %c0_140] : memref<64x256xf32, #tpu.memory_space<vmem>>, vector<8x128xf32>
    tpu.vector_store %arg17[%c56_139, %c0_140], %483 {strides = array<i32>} : memref<64x256xf32, #tpu.memory_space<vmem>>, vector<8x128xf32>,
    %c0_141 = arith.constant 0 : index
    %c128_142 = arith.constant 128 : index
    %510 = vector.load %arg17[%c0_141, %c128_142] : memref<64x256xf32, #tpu.memory_space<vmem>>, vector<8x128xf32>
    tpu.vector_store %arg17[%c0_141, %c128_142], %508 {strides = array<i32>} : memref<64x256xf32, #tpu.memory_space<vmem>>, vector<8x128xf32>,
    %c0_143 = arith.constant 0 : index
    %c0_144 = arith.constant 0 : index
    %511 = vector.load %arg17[%c0_143, %c0_144] : memref<64x256xf32, #tpu.memory_space<vmem>>, vector<64x256xf32>
    %512 = arith.truncf %511 : vector<64x256xf32> to vector<64x256xbf16>
    %c0_145 = arith.constant 0 : index
    %c0_146 = arith.constant 0 : index
    %513 = vector.load %arg6[%c0_145, %c0_146] : memref<256x512xbf16, #tpu.memory_space<vmem>>, vector<256x512xbf16>
    %cst_147 = arith.constant dense<0.000000e+00> : vector<64x512xf32>
    %514 = tpu.matmul %512, %513, %cst_147 {dimension_numbers = #tpu.dot_dimension_numbers<[1], [0], [0], [1], [0, 0, 1, 1], [], []>} : vector<64x256xbf16>, vector<256x512xbf16>, vector<64x512xf32> -> vector<64x512xf32>
    %c0_148 = arith.constant 0 : index
    %c0_149 = arith.constant 0 : index
    %515 = vector.load %arg8[%c0_148, %c0_149] : memref<1x512xf32, #tpu.memory_space<vmem>>, vector<1x512xf32>
    %516 = vector.broadcast %515 : vector<1x512xf32> to vector<64x512xf32>
    %517 = arith.addf %514, %516 : vector<64x512xf32>
    %c0_150 = arith.constant 0 : index
    %c0_151 = arith.constant 0 : index
    %518 = vector.load %arg16[%c0_150, %c0_151] : memref<64x512xf32, #tpu.memory_space<vmem>>, vector<64x512xf32>
    tpu.vector_store %arg16[%c0_150, %c0_151], %517 {strides = array<i32>} : memref<64x512xf32, #tpu.memory_space<vmem>>, vector<64x512xf32>,
    %c0_152 = arith.constant 0 : index
    %c0_153 = arith.constant 0 : index
    %519 = vector.load %arg16[%c0_152, %c0_153] : memref<64x512xf32, #tpu.memory_space<vmem>>, vector<8x512xf32>
    %520 = arith.truncf %14 : vector<8x128xf32> to vector<8x128xbf16>
    %c0_154 = arith.constant 0 : index
    %c0_155 = arith.constant 0 : index
    %521 = vector.load %arg7[%c0_154, %c0_155] : memref<128x512xbf16, #tpu.memory_space<vmem>>, vector<128x512xbf16>
    %cst_156 = arith.constant dense<0.000000e+00> : vector<8x512xf32>
    %522 = tpu.matmul %520, %521, %cst_156 {dimension_numbers = #tpu.dot_dimension_numbers<[1], [0], [0], [1], [0, 0, 1, 1], [], []>} : vector<8x128xbf16>, vector<128x512xbf16>, vector<8x512xf32> -> vector<8x512xf32>
    %523 = arith.addf %519, %522 : vector<8x512xf32>
    %524 = vector.extract_strided_slice %523 {offsets = [0, 0], sizes = [8, 128], strides = [1, 1]} : vector<8x512xf32> to vector<8x128xf32>
    %525 = arith.negf %524 : vector<8x128xf32>
    %526 = math.exp %525 : vector<8x128xf32>
    %cst_157 = arith.constant 1.000000e+00 : f32
    %527 = vector.broadcast %cst_157 : f32 to vector<8x128xf32>
    %528 = arith.addf %527, %526 : vector<8x128xf32>
    %529 = arith.divf %527, %528 : vector<8x128xf32>
    %530 = vector.extract_strided_slice %523 {offsets = [0, 128], sizes = [8, 128], strides = [1, 1]} : vector<8x512xf32> to vector<8x128xf32>
    %531 = arith.negf %530 : vector<8x128xf32>
    %532 = math.exp %531 : vector<8x128xf32>
    %cst_158 = arith.constant 1.000000e+00 : f32
    %533 = vector.broadcast %cst_158 : f32 to vector<8x128xf32>
    %534 = arith.addf %533, %532 : vector<8x128xf32>
    %535 = arith.divf %533, %534 : vector<8x128xf32>
    %536 = vector.extract_strided_slice %523 {offsets = [0, 256], sizes = [8, 128], strides = [1, 1]} : vector<8x512xf32> to vector<8x128xf32>
    %537 = math.tanh %536 : vector<8x128xf32>
    %538 = vector.extract_strided_slice %523 {offsets = [0, 384], sizes = [8, 128], strides = [1, 1]} : vector<8x512xf32> to vector<8x128xf32>
    %539 = arith.negf %538 : vector<8x128xf32>
    %540 = math.exp %539 : vector<8x128xf32>
    %cst_159 = arith.constant 1.000000e+00 : f32
    %541 = vector.broadcast %cst_159 : f32 to vector<8x128xf32>
    %542 = arith.addf %541, %540 : vector<8x128xf32>
    %543 = arith.divf %541, %542 : vector<8x128xf32>
    %544 = arith.mulf %535, %14 : vector<8x128xf32>
    %545 = arith.mulf %529, %537 : vector<8x128xf32>
    %546 = arith.addf %544, %545 : vector<8x128xf32>
    %547 = math.tanh %546 : vector<8x128xf32>
    %548 = arith.mulf %543, %547 : vector<8x128xf32>
    %c8_160 = arith.constant 8 : index
    %c0_161 = arith.constant 0 : index
    %549 = vector.load %arg16[%c8_160, %c0_161] : memref<64x512xf32, #tpu.memory_space<vmem>>, vector<8x512xf32>
    %550 = arith.truncf %548 : vector<8x128xf32> to vector<8x128xbf16>
    %c0_162 = arith.constant 0 : index
    %c0_163 = arith.constant 0 : index
    %551 = vector.load %arg7[%c0_162, %c0_163] : memref<128x512xbf16, #tpu.memory_space<vmem>>, vector<128x512xbf16>
    %cst_164 = arith.constant dense<0.000000e+00> : vector<8x512xf32>
    %552 = tpu.matmul %550, %551, %cst_164 {dimension_numbers = #tpu.dot_dimension_numbers<[1], [0], [0], [1], [0, 0, 1, 1], [], []>} : vector<8x128xbf16>, vector<128x512xbf16>, vector<8x512xf32> -> vector<8x512xf32>
    %553 = arith.addf %549, %552 : vector<8x512xf32>
    %554 = vector.extract_strided_slice %553 {offsets = [0, 0], sizes = [8, 128], strides = [1, 1]} : vector<8x512xf32> to vector<8x128xf32>
    %555 = arith.negf %554 : vector<8x128xf32>
    %556 = math.exp %555 : vector<8x128xf32>
    %cst_165 = arith.constant 1.000000e+00 : f32
    %557 = vector.broadcast %cst_165 : f32 to vector<8x128xf32>
    %558 = arith.addf %557, %556 : vector<8x128xf32>
    %559 = arith.divf %557, %558 : vector<8x128xf32>
    %560 = vector.extract_strided_slice %553 {offsets = [0, 128], sizes = [8, 128], strides = [1, 1]} : vector<8x512xf32> to vector<8x128xf32>
    %561 = arith.negf %560 : vector<8x128xf32>
    %562 = math.exp %561 : vector<8x128xf32>
    %cst_166 = arith.constant 1.000000e+00 : f32
    %563 = vector.broadcast %cst_166 : f32 to vector<8x128xf32>
    %564 = arith.addf %563, %562 : vector<8x128xf32>
    %565 = arith.divf %563, %564 : vector<8x128xf32>
    %566 = vector.extract_strided_slice %553 {offsets = [0, 256], sizes = [8, 128], strides = [1, 1]} : vector<8x512xf32> to vector<8x128xf32>
    %567 = math.tanh %566 : vector<8x128xf32>
    %568 = vector.extract_strided_slice %553 {offsets = [0, 384], sizes = [8, 128], strides = [1, 1]} : vector<8x512xf32> to vector<8x128xf32>
    %569 = arith.negf %568 : vector<8x128xf32>
    %570 = math.exp %569 : vector<8x128xf32>
    %cst_167 = arith.constant 1.000000e+00 : f32
    %571 = vector.broadcast %cst_167 : f32 to vector<8x128xf32>
    %572 = arith.addf %571, %570 : vector<8x128xf32>
    %573 = arith.divf %571, %572 : vector<8x128xf32>
    %574 = arith.mulf %565, %546 : vector<8x128xf32>
    %575 = arith.mulf %559, %567 : vector<8x128xf32>
    %576 = arith.addf %574, %575 : vector<8x128xf32>
    %577 = math.tanh %576 : vector<8x128xf32>
    %578 = arith.mulf %573, %577 : vector<8x128xf32>
    %c16_168 = arith.constant 16 : index
    %c0_169 = arith.constant 0 : index
    %579 = vector.load %arg16[%c16_168, %c0_169] : memref<64x512xf32, #tpu.memory_space<vmem>>, vector<8x512xf32>
    %580 = arith.truncf %578 : vector<8x128xf32> to vector<8x128xbf16>
    %c0_170 = arith.constant 0 : index
    %c0_171 = arith.constant 0 : index
    %581 = vector.load %arg7[%c0_170, %c0_171] : memref<128x512xbf16, #tpu.memory_space<vmem>>, vector<128x512xbf16>
    %cst_172 = arith.constant dense<0.000000e+00> : vector<8x512xf32>
    %582 = tpu.matmul %580, %581, %cst_172 {dimension_numbers = #tpu.dot_dimension_numbers<[1], [0], [0], [1], [0, 0, 1, 1], [], []>} : vector<8x128xbf16>, vector<128x512xbf16>, vector<8x512xf32> -> vector<8x512xf32>
    %583 = arith.addf %579, %582 : vector<8x512xf32>
    %584 = vector.extract_strided_slice %583 {offsets = [0, 0], sizes = [8, 128], strides = [1, 1]} : vector<8x512xf32> to vector<8x128xf32>
    %585 = arith.negf %584 : vector<8x128xf32>
    %586 = math.exp %585 : vector<8x128xf32>
    %cst_173 = arith.constant 1.000000e+00 : f32
    %587 = vector.broadcast %cst_173 : f32 to vector<8x128xf32>
    %588 = arith.addf %587, %586 : vector<8x128xf32>
    %589 = arith.divf %587, %588 : vector<8x128xf32>
    %590 = vector.extract_strided_slice %583 {offsets = [0, 128], sizes = [8, 128], strides = [1, 1]} : vector<8x512xf32> to vector<8x128xf32>
    %591 = arith.negf %590 : vector<8x128xf32>
    %592 = math.exp %591 : vector<8x128xf32>
    %cst_174 = arith.constant 1.000000e+00 : f32
    %593 = vector.broadcast %cst_174 : f32 to vector<8x128xf32>
    %594 = arith.addf %593, %592 : vector<8x128xf32>
    %595 = arith.divf %593, %594 : vector<8x128xf32>
    %596 = vector.extract_strided_slice %583 {offsets = [0, 256], sizes = [8, 128], strides = [1, 1]} : vector<8x512xf32> to vector<8x128xf32>
    %597 = math.tanh %596 : vector<8x128xf32>
    %598 = vector.extract_strided_slice %583 {offsets = [0, 384], sizes = [8, 128], strides = [1, 1]} : vector<8x512xf32> to vector<8x128xf32>
    %599 = arith.negf %598 : vector<8x128xf32>
    %600 = math.exp %599 : vector<8x128xf32>
    %cst_175 = arith.constant 1.000000e+00 : f32
    %601 = vector.broadcast %cst_175 : f32 to vector<8x128xf32>
    %602 = arith.addf %601, %600 : vector<8x128xf32>
    %603 = arith.divf %601, %602 : vector<8x128xf32>
    %604 = arith.mulf %595, %576 : vector<8x128xf32>
    %605 = arith.mulf %589, %597 : vector<8x128xf32>
    %606 = arith.addf %604, %605 : vector<8x128xf32>
    %607 = math.tanh %606 : vector<8x128xf32>
    %608 = arith.mulf %603, %607 : vector<8x128xf32>
    %c24_176 = arith.constant 24 : index
    %c0_177 = arith.constant 0 : index
    %609 = vector.load %arg16[%c24_176, %c0_177] : memref<64x512xf32, #tpu.memory_space<vmem>>, vector<8x512xf32>
    %610 = arith.truncf %608 : vector<8x128xf32> to vector<8x128xbf16>
    %c0_178 = arith.constant 0 : index
    %c0_179 = arith.constant 0 : index
    %611 = vector.load %arg7[%c0_178, %c0_179] : memref<128x512xbf16, #tpu.memory_space<vmem>>, vector<128x512xbf16>
    %cst_180 = arith.constant dense<0.000000e+00> : vector<8x512xf32>
    %612 = tpu.matmul %610, %611, %cst_180 {dimension_numbers = #tpu.dot_dimension_numbers<[1], [0], [0], [1], [0, 0, 1, 1], [], []>} : vector<8x128xbf16>, vector<128x512xbf16>, vector<8x512xf32> -> vector<8x512xf32>
    %613 = arith.addf %609, %612 : vector<8x512xf32>
    %614 = vector.extract_strided_slice %613 {offsets = [0, 0], sizes = [8, 128], strides = [1, 1]} : vector<8x512xf32> to vector<8x128xf32>
    %615 = arith.negf %614 : vector<8x128xf32>
    %616 = math.exp %615 : vector<8x128xf32>
    %cst_181 = arith.constant 1.000000e+00 : f32
    %617 = vector.broadcast %cst_181 : f32 to vector<8x128xf32>
    %618 = arith.addf %617, %616 : vector<8x128xf32>
    %619 = arith.divf %617, %618 : vector<8x128xf32>
    %620 = vector.extract_strided_slice %613 {offsets = [0, 128], sizes = [8, 128], strides = [1, 1]} : vector<8x512xf32> to vector<8x128xf32>
    %621 = arith.negf %620 : vector<8x128xf32>
    %622 = math.exp %621 : vector<8x128xf32>
    %cst_182 = arith.constant 1.000000e+00 : f32
    %623 = vector.broadcast %cst_182 : f32 to vector<8x128xf32>
    %624 = arith.addf %623, %622 : vector<8x128xf32>
    %625 = arith.divf %623, %624 : vector<8x128xf32>
    %626 = vector.extract_strided_slice %613 {offsets = [0, 256], sizes = [8, 128], strides = [1, 1]} : vector<8x512xf32> to vector<8x128xf32>
    %627 = math.tanh %626 : vector<8x128xf32>
    %628 = vector.extract_strided_slice %613 {offsets = [0, 384], sizes = [8, 128], strides = [1, 1]} : vector<8x512xf32> to vector<8x128xf32>
    %629 = arith.negf %628 : vector<8x128xf32>
    %630 = math.exp %629 : vector<8x128xf32>
    %cst_183 = arith.constant 1.000000e+00 : f32
    %631 = vector.broadcast %cst_183 : f32 to vector<8x128xf32>
    %632 = arith.addf %631, %630 : vector<8x128xf32>
    %633 = arith.divf %631, %632 : vector<8x128xf32>
    %634 = arith.mulf %625, %606 : vector<8x128xf32>
    %635 = arith.mulf %619, %627 : vector<8x128xf32>
    %636 = arith.addf %634, %635 : vector<8x128xf32>
    %637 = math.tanh %636 : vector<8x128xf32>
    %638 = arith.mulf %633, %637 : vector<8x128xf32>
    %c32_184 = arith.constant 32 : index
    %c0_185 = arith.constant 0 : index
    %639 = vector.load %arg16[%c32_184, %c0_185] : memref<64x512xf32, #tpu.memory_space<vmem>>, vector<8x512xf32>
    %640 = arith.truncf %638 : vector<8x128xf32> to vector<8x128xbf16>
    %c0_186 = arith.constant 0 : index
    %c0_187 = arith.constant 0 : index
    %641 = vector.load %arg7[%c0_186, %c0_187] : memref<128x512xbf16, #tpu.memory_space<vmem>>, vector<128x512xbf16>
    %cst_188 = arith.constant dense<0.000000e+00> : vector<8x512xf32>
    %642 = tpu.matmul %640, %641, %cst_188 {dimension_numbers = #tpu.dot_dimension_numbers<[1], [0], [0], [1], [0, 0, 1, 1], [], []>} : vector<8x128xbf16>, vector<128x512xbf16>, vector<8x512xf32> -> vector<8x512xf32>
    %643 = arith.addf %639, %642 : vector<8x512xf32>
    %644 = vector.extract_strided_slice %643 {offsets = [0, 0], sizes = [8, 128], strides = [1, 1]} : vector<8x512xf32> to vector<8x128xf32>
    %645 = arith.negf %644 : vector<8x128xf32>
    %646 = math.exp %645 : vector<8x128xf32>
    %cst_189 = arith.constant 1.000000e+00 : f32
    %647 = vector.broadcast %cst_189 : f32 to vector<8x128xf32>
    %648 = arith.addf %647, %646 : vector<8x128xf32>
    %649 = arith.divf %647, %648 : vector<8x128xf32>
    %650 = vector.extract_strided_slice %643 {offsets = [0, 128], sizes = [8, 128], strides = [1, 1]} : vector<8x512xf32> to vector<8x128xf32>
    %651 = arith.negf %650 : vector<8x128xf32>
    %652 = math.exp %651 : vector<8x128xf32>
    %cst_190 = arith.constant 1.000000e+00 : f32
    %653 = vector.broadcast %cst_190 : f32 to vector<8x128xf32>
    %654 = arith.addf %653, %652 : vector<8x128xf32>
    %655 = arith.divf %653, %654 : vector<8x128xf32>
    %656 = vector.extract_strided_slice %643 {offsets = [0, 256], sizes = [8, 128], strides = [1, 1]} : vector<8x512xf32> to vector<8x128xf32>
    %657 = math.tanh %656 : vector<8x128xf32>
    %658 = vector.extract_strided_slice %643 {offsets = [0, 384], sizes = [8, 128], strides = [1, 1]} : vector<8x512xf32> to vector<8x128xf32>
    %659 = arith.negf %658 : vector<8x128xf32>
    %660 = math.exp %659 : vector<8x128xf32>
    %cst_191 = arith.constant 1.000000e+00 : f32
    %661 = vector.broadcast %cst_191 : f32 to vector<8x128xf32>
    %662 = arith.addf %661, %660 : vector<8x128xf32>
    %663 = arith.divf %661, %662 : vector<8x128xf32>
    %664 = arith.mulf %655, %636 : vector<8x128xf32>
    %665 = arith.mulf %649, %657 : vector<8x128xf32>
    %666 = arith.addf %664, %665 : vector<8x128xf32>
    %667 = math.tanh %666 : vector<8x128xf32>
    %668 = arith.mulf %663, %667 : vector<8x128xf32>
    %c40_192 = arith.constant 40 : index
    %c0_193 = arith.constant 0 : index
    %669 = vector.load %arg16[%c40_192, %c0_193] : memref<64x512xf32, #tpu.memory_space<vmem>>, vector<8x512xf32>
    %670 = arith.truncf %668 : vector<8x128xf32> to vector<8x128xbf16>
    %c0_194 = arith.constant 0 : index
    %c0_195 = arith.constant 0 : index
    %671 = vector.load %arg7[%c0_194, %c0_195] : memref<128x512xbf16, #tpu.memory_space<vmem>>, vector<128x512xbf16>
    %cst_196 = arith.constant dense<0.000000e+00> : vector<8x512xf32>
    %672 = tpu.matmul %670, %671, %cst_196 {dimension_numbers = #tpu.dot_dimension_numbers<[1], [0], [0], [1], [0, 0, 1, 1], [], []>} : vector<8x128xbf16>, vector<128x512xbf16>, vector<8x512xf32> -> vector<8x512xf32>
    %673 = arith.addf %669, %672 : vector<8x512xf32>
    %674 = vector.extract_strided_slice %673 {offsets = [0, 0], sizes = [8, 128], strides = [1, 1]} : vector<8x512xf32> to vector<8x128xf32>
    %675 = arith.negf %674 : vector<8x128xf32>
    %676 = math.exp %675 : vector<8x128xf32>
    %cst_197 = arith.constant 1.000000e+00 : f32
    %677 = vector.broadcast %cst_197 : f32 to vector<8x128xf32>
    %678 = arith.addf %677, %676 : vector<8x128xf32>
    %679 = arith.divf %677, %678 : vector<8x128xf32>
    %680 = vector.extract_strided_slice %673 {offsets = [0, 128], sizes = [8, 128], strides = [1, 1]} : vector<8x512xf32> to vector<8x128xf32>
    %681 = arith.negf %680 : vector<8x128xf32>
    %682 = math.exp %681 : vector<8x128xf32>
    %cst_198 = arith.constant 1.000000e+00 : f32
    %683 = vector.broadcast %cst_198 : f32 to vector<8x128xf32>
    %684 = arith.addf %683, %682 : vector<8x128xf32>
    %685 = arith.divf %683, %684 : vector<8x128xf32>
    %686 = vector.extract_strided_slice %673 {offsets = [0, 256], sizes = [8, 128], strides = [1, 1]} : vector<8x512xf32> to vector<8x128xf32>
    %687 = math.tanh %686 : vector<8x128xf32>
    %688 = vector.extract_strided_slice %673 {offsets = [0, 384], sizes = [8, 128], strides = [1, 1]} : vector<8x512xf32> to vector<8x128xf32>
    %689 = arith.negf %688 : vector<8x128xf32>
    %690 = math.exp %689 : vector<8x128xf32>
    %cst_199 = arith.constant 1.000000e+00 : f32
    %691 = vector.broadcast %cst_199 : f32 to vector<8x128xf32>
    %692 = arith.addf %691, %690 : vector<8x128xf32>
    %693 = arith.divf %691, %692 : vector<8x128xf32>
    %694 = arith.mulf %685, %666 : vector<8x128xf32>
    %695 = arith.mulf %679, %687 : vector<8x128xf32>
    %696 = arith.addf %694, %695 : vector<8x128xf32>
    %697 = math.tanh %696 : vector<8x128xf32>
    %698 = arith.mulf %693, %697 : vector<8x128xf32>
    %c48_200 = arith.constant 48 : index
    %c0_201 = arith.constant 0 : index
    %699 = vector.load %arg16[%c48_200, %c0_201] : memref<64x512xf32, #tpu.memory_space<vmem>>, vector<8x512xf32>
    %700 = arith.truncf %698 : vector<8x128xf32> to vector<8x128xbf16>
    %c0_202 = arith.constant 0 : index
    %c0_203 = arith.constant 0 : index
    %701 = vector.load %arg7[%c0_202, %c0_203] : memref<128x512xbf16, #tpu.memory_space<vmem>>, vector<128x512xbf16>
    %cst_204 = arith.constant dense<0.000000e+00> : vector<8x512xf32>
    %702 = tpu.matmul %700, %701, %cst_204 {dimension_numbers = #tpu.dot_dimension_numbers<[1], [0], [0], [1], [0, 0, 1, 1], [], []>} : vector<8x128xbf16>, vector<128x512xbf16>, vector<8x512xf32> -> vector<8x512xf32>
    %703 = arith.addf %699, %702 : vector<8x512xf32>
    %704 = vector.extract_strided_slice %703 {offsets = [0, 0], sizes = [8, 128], strides = [1, 1]} : vector<8x512xf32> to vector<8x128xf32>
    %705 = arith.negf %704 : vector<8x128xf32>
    %706 = math.exp %705 : vector<8x128xf32>
    %cst_205 = arith.constant 1.000000e+00 : f32
    %707 = vector.broadcast %cst_205 : f32 to vector<8x128xf32>
    %708 = arith.addf %707, %706 : vector<8x128xf32>
    %709 = arith.divf %707, %708 : vector<8x128xf32>
    %710 = vector.extract_strided_slice %703 {offsets = [0, 128], sizes = [8, 128], strides = [1, 1]} : vector<8x512xf32> to vector<8x128xf32>
    %711 = arith.negf %710 : vector<8x128xf32>
    %712 = math.exp %711 : vector<8x128xf32>
    %cst_206 = arith.constant 1.000000e+00 : f32
    %713 = vector.broadcast %cst_206 : f32 to vector<8x128xf32>
    %714 = arith.addf %713, %712 : vector<8x128xf32>
    %715 = arith.divf %713, %714 : vector<8x128xf32>
    %716 = vector.extract_strided_slice %703 {offsets = [0, 256], sizes = [8, 128], strides = [1, 1]} : vector<8x512xf32> to vector<8x128xf32>
    %717 = math.tanh %716 : vector<8x128xf32>
    %718 = vector.extract_strided_slice %703 {offsets = [0, 384], sizes = [8, 128], strides = [1, 1]} : vector<8x512xf32> to vector<8x128xf32>
    %719 = arith.negf %718 : vector<8x128xf32>
    %720 = math.exp %719 : vector<8x128xf32>
    %cst_207 = arith.constant 1.000000e+00 : f32
    %721 = vector.broadcast %cst_207 : f32 to vector<8x128xf32>
    %722 = arith.addf %721, %720 : vector<8x128xf32>
    %723 = arith.divf %721, %722 : vector<8x128xf32>
    %724 = arith.mulf %715, %696 : vector<8x128xf32>
    %725 = arith.mulf %709, %717 : vector<8x128xf32>
    %726 = arith.addf %724, %725 : vector<8x128xf32>
    %727 = math.tanh %726 : vector<8x128xf32>
    %728 = arith.mulf %723, %727 : vector<8x128xf32>
    %c56_208 = arith.constant 56 : index
    %c0_209 = arith.constant 0 : index
    %729 = vector.load %arg16[%c56_208, %c0_209] : memref<64x512xf32, #tpu.memory_space<vmem>>, vector<8x512xf32>
    %730 = arith.truncf %728 : vector<8x128xf32> to vector<8x128xbf16>
    %c0_210 = arith.constant 0 : index
    %c0_211 = arith.constant 0 : index
    %731 = vector.load %arg7[%c0_210, %c0_211] : memref<128x512xbf16, #tpu.memory_space<vmem>>, vector<128x512xbf16>
    %cst_212 = arith.constant dense<0.000000e+00> : vector<8x512xf32>
    %732 = tpu.matmul %730, %731, %cst_212 {dimension_numbers = #tpu.dot_dimension_numbers<[1], [0], [0], [1], [0, 0, 1, 1], [], []>} : vector<8x128xbf16>, vector<128x512xbf16>, vector<8x512xf32> -> vector<8x512xf32>
    %733 = arith.addf %729, %732 : vector<8x512xf32>
    %734 = vector.extract_strided_slice %733 {offsets = [0, 0], sizes = [8, 128], strides = [1, 1]} : vector<8x512xf32> to vector<8x128xf32>
    %735 = arith.negf %734 : vector<8x128xf32>
    %736 = math.exp %735 : vector<8x128xf32>
    %cst_213 = arith.constant 1.000000e+00 : f32
    %737 = vector.broadcast %cst_213 : f32 to vector<8x128xf32>
    %738 = arith.addf %737, %736 : vector<8x128xf32>
    %739 = arith.divf %737, %738 : vector<8x128xf32>
    %740 = vector.extract_strided_slice %733 {offsets = [0, 128], sizes = [8, 128], strides = [1, 1]} : vector<8x512xf32> to vector<8x128xf32>
    %741 = arith.negf %740 : vector<8x128xf32>
    %742 = math.exp %741 : vector<8x128xf32>
    %cst_214 = arith.constant 1.000000e+00 : f32
    %743 = vector.broadcast %cst_214 : f32 to vector<8x128xf32>
    %744 = arith.addf %743, %742 : vector<8x128xf32>
    %745 = arith.divf %743, %744 : vector<8x128xf32>
    %746 = vector.extract_strided_slice %733 {offsets = [0, 256], sizes = [8, 128], strides = [1, 1]} : vector<8x512xf32> to vector<8x128xf32>
    %747 = math.tanh %746 : vector<8x128xf32>
    %748 = vector.extract_strided_slice %733 {offsets = [0, 384], sizes = [8, 128], strides = [1, 1]} : vector<8x512xf32> to vector<8x128xf32>
    %749 = arith.negf %748 : vector<8x128xf32>
    %750 = math.exp %749 : vector<8x128xf32>
    %cst_215 = arith.constant 1.000000e+00 : f32
    %751 = vector.broadcast %cst_215 : f32 to vector<8x128xf32>
    %752 = arith.addf %751, %750 : vector<8x128xf32>
    %753 = arith.divf %751, %752 : vector<8x128xf32>
    %754 = arith.mulf %745, %726 : vector<8x128xf32>
    %755 = arith.mulf %739, %747 : vector<8x128xf32>
    %756 = arith.addf %754, %755 : vector<8x128xf32>
    %757 = math.tanh %756 : vector<8x128xf32>
    %758 = arith.mulf %753, %757 : vector<8x128xf32>
    %759 = tpu.concatenate %483, %74 in 1 : vector<8x128xf32>, vector<8x128xf32> -> vector<8x256xf32>
    %760 = arith.truncf %759 : vector<8x256xf32> to vector<8x256xbf16>
    %c0_216 = arith.constant 0 : index
    %c0_217 = arith.constant 0 : index
    %761 = vector.load %arg9[%c0_216, %c0_217] : memref<256x512xbf16, #tpu.memory_space<vmem>>, vector<256x512xbf16>
    %cst_218 = arith.constant dense<0.000000e+00> : vector<8x512xf32>
    %762 = tpu.matmul %760, %761, %cst_218 {dimension_numbers = #tpu.dot_dimension_numbers<[1], [0], [0], [1], [0, 0, 1, 1], [], []>} : vector<8x256xbf16>, vector<256x512xbf16>, vector<8x512xf32> -> vector<8x512xf32>
    %c0_219 = arith.constant 0 : index
    %c0_220 = arith.constant 0 : index
    %763 = vector.load %arg10[%c0_219, %c0_220] : memref<1x512xf32, #tpu.memory_space<vmem>>, vector<1x512xf32>
    %764 = vector.broadcast %763 : vector<1x512xf32> to vector<8x512xf32>
    %765 = arith.addf %762, %764 : vector<8x512xf32>
    %766 = vector.extract_strided_slice %765 {offsets = [0, 0], sizes = [8, 128], strides = [1, 1]} : vector<8x512xf32> to vector<8x128xf32>
    %767 = arith.negf %766 : vector<8x128xf32>
    %768 = math.exp %767 : vector<8x128xf32>
    %cst_221 = arith.constant 1.000000e+00 : f32
    %769 = vector.broadcast %cst_221 : f32 to vector<8x128xf32>
    %770 = arith.addf %769, %768 : vector<8x128xf32>
    %771 = arith.divf %769, %770 : vector<8x128xf32>
    %772 = vector.extract_strided_slice %765 {offsets = [0, 128], sizes = [8, 128], strides = [1, 1]} : vector<8x512xf32> to vector<8x128xf32>
    %773 = arith.negf %772 : vector<8x128xf32>
    %774 = math.exp %773 : vector<8x128xf32>
    %cst_222 = arith.constant 1.000000e+00 : f32
    %775 = vector.broadcast %cst_222 : f32 to vector<8x128xf32>
    %776 = arith.addf %775, %774 : vector<8x128xf32>
    %777 = arith.divf %775, %776 : vector<8x128xf32>
    %778 = vector.extract_strided_slice %765 {offsets = [0, 256], sizes = [8, 128], strides = [1, 1]} : vector<8x512xf32> to vector<8x128xf32>
    %779 = math.tanh %778 : vector<8x128xf32>
    %780 = vector.extract_strided_slice %765 {offsets = [0, 384], sizes = [8, 128], strides = [1, 1]} : vector<8x512xf32> to vector<8x128xf32>
    %781 = arith.negf %780 : vector<8x128xf32>
    %782 = math.exp %781 : vector<8x128xf32>
    %cst_223 = arith.constant 1.000000e+00 : f32
    %783 = vector.broadcast %cst_223 : f32 to vector<8x128xf32>
    %784 = arith.addf %783, %782 : vector<8x128xf32>
    %785 = arith.divf %783, %784 : vector<8x128xf32>
    %786 = arith.mulf %777, %14 : vector<8x128xf32>
    %787 = arith.mulf %771, %779 : vector<8x128xf32>
    %788 = arith.addf %786, %787 : vector<8x128xf32>
    %789 = math.tanh %788 : vector<8x128xf32>
    %790 = arith.mulf %785, %789 : vector<8x128xf32>
    %791 = tpu.concatenate %758, %790 in 1 : vector<8x128xf32>, vector<8x128xf32> -> vector<8x256xf32>
    %792 = arith.truncf %791 : vector<8x256xf32> to vector<8x256xbf16>
    %c0_224 = arith.constant 0 : index
    %c0_225 = arith.constant 0 : index
    %793 = vector.load %arg11[%c0_224, %c0_225] : memref<256x128xbf16, #tpu.memory_space<vmem>>, vector<256x128xbf16>
    %cst_226 = arith.constant dense<0.000000e+00> : vector<8x128xf32>
    %794 = tpu.matmul %792, %793, %cst_226 {dimension_numbers = #tpu.dot_dimension_numbers<[1], [0], [0], [1], [0, 0, 1, 1], [], []>} : vector<8x256xbf16>, vector<256x128xbf16>, vector<8x128xf32> -> vector<8x128xf32>
    %c0_227 = arith.constant 0 : index
    %c0_228 = arith.constant 0 : index
    %795 = vector.load %arg12[%c0_227, %c0_228] : memref<1x128xf32, #tpu.memory_space<vmem>>, vector<1x128xf32>
    %796 = vector.broadcast %795 : vector<1x128xf32> to vector<8x128xf32>
    %797 = arith.addf %794, %796 : vector<8x128xf32>
    %c0_229 = arith.constant 0 : index
    %c0_230 = arith.constant 0 : index
    %798 = vector.load %arg13[%c0_229, %c0_230] : memref<8x128xf32, #tpu.memory_space<vmem>>, vector<8x128xf32>
    tpu.vector_store %arg13[%c0_229, %c0_230], %797 {strides = array<i32>} : memref<8x128xf32, #tpu.memory_space<vmem>>, vector<8x128xf32>,
    return
  }
}

</mosaic_0001>

<llo_original>
// kernel: forward.1
$region0: #{forward.1}
  #allocation0 [shape = 'u32[]', space=smem, size = 0x4, offset = 0x4, fixed_abs, tag = 'smem constant byte address 0x4 - core index']
  #allocation1 [shape = 'u32[72,128]{1,0:T(1,128)}', space=vmem, size = 0x9000, scoped, tag = 'internal scratch']
  #allocation2 [shape = 'f32[64,512]{1,0:T(8,128)}', space=vmem, size = 0x20000, scoped, tag = 'scratch operand']
  #allocation3 [shape = 'f32[64,512]{1,0:T(8,128)}', space=vmem, size = 0x20000, scoped, tag = 'scratch operand']
  #allocation4 [shape = 'f32[64,512]{1,0:T(8,128)}', space=vmem, size = 0x20000, scoped, tag = 'scratch operand']
  #allocation5 [shape = 'f32[64,256]{1,0:T(8,128)}', space=vmem, size = 0x10000, scoped, tag = 'scratch operand']
  %s0 = inlined_call_operand.vmem [shape: f32[64,8], index: 0, kind: input, shape index: {}]
  %s1 = inlined_call_operand.vmem [shape: bf16[8,512], index: 1, kind: input, shape index: {}]
  %s2 = inlined_call_operand.vmem [shape: bf16[8,512], index: 2, kind: input, shape index: {}]
  %s3 = inlined_call_operand.vmem [shape: bf16[256,1024], index: 3, kind: input, shape index: {}]
  %s4 = inlined_call_operand.vmem [shape: f32[1,512], index: 4, kind: input, shape index: {}]
  %s5 = inlined_call_operand.vmem [shape: f32[1,512], index: 5, kind: input, shape index: {}]
  %s6 = inlined_call_operand.vmem [shape: bf16[256,512], index: 6, kind: input, shape index: {}]
  %s7 = inlined_call_operand.vmem [shape: bf16[128,512], index: 7, kind: input, shape index: {}]
  %s8 = inlined_call_operand.vmem [shape: f32[1,512], index: 8, kind: input, shape index: {}]
  %s9 = inlined_call_operand.vmem [shape: bf16[256,512], index: 9, kind: input, shape index: {}]
  %s10 = inlined_call_operand.vmem [shape: f32[1,512], index: 10, kind: input, shape index: {}]
  %s11 = inlined_call_operand.vmem [shape: bf16[256,128], index: 11, kind: input, shape index: {}]
  %s12 = inlined_call_operand.vmem [shape: f32[1,128], index: 12, kind: input, shape index: {}]
  %s13 = inlined_call_operand.vmem [shape: f32[8,128], index: 13, kind: output, shape index: {}]
  %s14 = sld [smem:[#allocation0]]
  $region62: #{forward.1} parent=0
    _
  %s16 = ssub.s32 1, %s14
  %s17 = scalar_select 0, %s16, %s14
  // Predicated region
  $region2: #{forward.1} parent=0 // pred_check
    _
  $region3: #{forward.1} parent=0 // pred_check_branch
    %19 = sbr.rel (0) target = $region5
  $region4: #{forward.1} parent=0 // pred_region
    _
  $region5: #{forward.1} parent=0 // pred_fallthru
    _
  // Predicated region
  $region6: #{forward.1} parent=0 // pred_check
    _
  $region7: #{forward.1} parent=0 // pred_check_branch
    %21 = sbr.rel (0) target = $region9
  $region8: #{forward.1} parent=0 // pred_region
    _
  $region9: #{forward.1} parent=0 // pred_fallthru
    _
  // Predicated region
  $region10: #{forward.1} parent=0 // pred_check
    _
  $region11: #{forward.1} parent=0 // pred_check_branch
    %23 = sbr.rel (0) target = $region13
  $region12: #{forward.1} parent=0 // pred_region
    _
  $region13: #{forward.1} parent=0 // pred_fallthru
    _
  // Predicated region
  $region14: #{forward.1} parent=0 // pred_check
    _
  $region15: #{forward.1} parent=0 // pred_check_branch
    %25 = sbr.rel (0) target = $region17
  $region16: #{forward.1} parent=0 // pred_region
    _
  $region17: #{forward.1} parent=0 // pred_fallthru
    _
  // Predicated region
  $region18: #{forward.1} parent=0 // pred_check
    _
  $region19: #{forward.1} parent=0 // pred_check_branch
    %27 = sbr.rel (0) target = $region21
  $region20: #{forward.1} parent=0 // pred_region
    _
  $region21: #{forward.1} parent=0 // pred_fallthru
    _
  // Predicated region
  $region22: #{forward.1} parent=0 // pred_check
    _
  $region23: #{forward.1} parent=0 // pred_check_branch
    %29 = sbr.rel (0) target = $region25
  $region24: #{forward.1} parent=0 // pred_region
    _
  $region25: #{forward.1} parent=0 // pred_fallthru
    _
  // Predicated region
  $region26: #{forward.1} parent=0 // pred_check
    _
  $region27: #{forward.1} parent=0 // pred_check_branch
    %31 = sbr.rel (0) target = $region29
  $region28: #{forward.1} parent=0 // pred_region
    _
  $region29: #{forward.1} parent=0 // pred_fallthru
    _
  // Predicated region
  $region30: #{forward.1} parent=0 // pred_check
    _
  $region31: #{forward.1} parent=0 // pred_check_branch
    %33 = sbr.rel (0) target = $region33
  $region32: #{forward.1} parent=0 // pred_region
    _
  $region33: #{forward.1} parent=0 // pred_fallthru
    _
  // Predicated region
  $region34: #{forward.1} parent=0 // pred_check
    _
  $region35: #{forward.1} parent=0 // pred_check_branch
    %35 = sbr.rel (0) target = $region37
  $region36: #{forward.1} parent=0 // pred_region
    _
  $region37: #{forward.1} parent=0 // pred_fallthru
    _
  // Predicated region
  $region38: #{forward.1} parent=0 // pred_check
    _
  $region39: #{forward.1} parent=0 // pred_check_branch
    %37 = sbr.rel (0) target = $region41
  $region40: #{forward.1} parent=0 // pred_region
    _
  $region41: #{forward.1} parent=0 // pred_fallthru
    _
  // Predicated region
  $region42: #{forward.1} parent=0 // pred_check
    _
  $region43: #{forward.1} parent=0 // pred_check_branch
    %39 = sbr.rel (0) target = $region45
  $region44: #{forward.1} parent=0 // pred_region
    _
  $region45: #{forward.1} parent=0 // pred_fallthru
    _
  // Predicated region
  $region46: #{forward.1} parent=0 // pred_check
    _
  $region47: #{forward.1} parent=0 // pred_check_branch
    %41 = sbr.rel (0) target = $region49
  $region48: #{forward.1} parent=0 // pred_region
    _
  $region49: #{forward.1} parent=0 // pred_fallthru
    _
  // Predicated region
  $region50: #{forward.1} parent=0 // pred_check
    _
  $region51: #{forward.1} parent=0 // pred_check_branch
    %43 = sbr.rel (0) target = $region53
  $region52: #{forward.1} parent=0 // pred_region
    _
  $region53: #{forward.1} parent=0 // pred_fallthru
    _
  %v45 = vld [vmem:[%s0] sm:$0xff]
  %v46 = vld [vmem:[%s0 + $0x8] sm:$0xff]
  %v47 = vld [vmem:[%s0 + $0x10] sm:$0xff]
  %v48 = vld [vmem:[%s0 + $0x18] sm:$0xff]
  %v49 = vld [vmem:[%s0 + $0x20] sm:$0xff]
  %v50 = vld [vmem:[%s0 + $0x28] sm:$0xff]
  %v51 = vld [vmem:[%s0 + $0x30] sm:$0xff]
  %v52 = vld [vmem:[%s0 + $0x38] sm:$0xff]
  %v53 = vpack.c.bf16 %v46, %v45
  %v54 = vpack.c.bf16 %v48, %v47
  %v55 = vpack.c.bf16 %v50, %v49
  %v56 = vpack.c.bf16 %v52, %v51
  %v57 = vld [vmem:[%s1] sm:$0xff]
  %v58 = vld [vmem:[%s1 + $0x8] sm:$0xff]
  %v59 = vld [vmem:[%s4] sm:$0xf]
  %v61 = vperm.slane %v59, 0
  %v62 = vperm.slane %v59, 1
  %v63 = vperm.slane %v59, 2
  %v64 = vperm.slane %v59, 3
  %v71 = vunpack.c.l.b16 %v57
  %v72 = vunpack.c.h.b16 %v57
  %v73 = vunpack.c.l.b16 %v58
  %v74 = vunpack.c.h.b16 %v58
  %v75 = vpack.c.b16 %v71, %v71
  %v76 = vpack.c.b16 %v72, %v72
  %v77 = vpack.c.b16 %v73, %v73
  %v78 = vpack.c.b16 %v74, %v74
  %vm79 = vcmask 64512
  %v81 = vsel %vm79, %v53, 0
  %v84 = vsel %vm79, %v54, 0
  %v87 = vsel %vm79, %v55, 0
  %v90 = vsel %vm79, %v56, 0
  %vm92 = vcmask 1043456
  %v94 = vsel %vm92, %v75, 0
  %v97 = vsel %vm92, %v76, 0
  %v100 = vsel %vm92, %v77, 0
  %v103 = vsel %vm92, %v78, 0
  %105 = vmatpush.bf16.msra.mxu0 0
  %106 = vmatpush.bf16.msra.mxu0 0
  %107 = vmatpush.bf16.msra.mxu0 0
  %108 = vmatpush.bf16.msra.mxu0 0
  %109 = vmatpush.bf16.msra.mxu0 0
  %110 = vmatpush.bf16.msra.mxu0 0
  %111 = vmatpush.bf16.msra.mxu0 0
  %112 = vmatpush.bf16.msra.mxu0 %v94
  %113 = vmatmul.bf16.gmra.mxu0 %v81
  %v114 = vpop.f32.mrf.mxu0
  %v115 = vadd.f32 %v61, %v114
  %v116 = vpop.f32.mrf.mxu0
  %v117 = vadd.f32 %v61, %v116
  %118 = vmatmul.bf16.gmra.mxu0 %v84
  %v119 = vpop.f32.mrf.mxu0
  %v120 = vadd.f32 %v61, %v119
  %v121 = vpop.f32.mrf.mxu0
  %v122 = vadd.f32 %v61, %v121
  %123 = vmatmul.bf16.gmra.mxu0 %v87
  %v124 = vpop.f32.mrf.mxu0
  %v125 = vadd.f32 %v61, %v124
  %v126 = vpop.f32.mrf.mxu0
  %v127 = vadd.f32 %v61, %v126
  %128 = vmatmul.bf16.gmra.mxu0 %v90
  %v129 = vpop.f32.mrf.mxu0
  %v130 = vadd.f32 %v61, %v129
  %v131 = vpop.f32.mrf.mxu0
  %v132 = vadd.f32 %v61, %v131
  %133 = vdwg.mxu0
  %134 = vmatpush.bf16.msra.mxu0 0
  %135 = vmatpush.bf16.msra.mxu0 0
  %136 = vmatpush.bf16.msra.mxu0 0
  %137 = vmatpush.bf16.msra.mxu0 0
  %138 = vmatpush.bf16.msra.mxu0 0
  %139 = vmatpush.bf16.msra.mxu0 0
  %140 = vmatpush.bf16.msra.mxu0 0
  %141 = vmatpush.bf16.msra.mxu0 %v97
  %142 = vmatmul.bf16.gmra.mxu0 %v81
  %v143 = vpop.f32.mrf.mxu0
  %v144 = vadd.f32 %v62, %v143
  %v145 = vpop.f32.mrf.mxu0
  %v146 = vadd.f32 %v62, %v145
  %147 = vmatmul.bf16.gmra.mxu0 %v84
  %v148 = vpop.f32.mrf.mxu0
  %v149 = vadd.f32 %v62, %v148
  %v150 = vpop.f32.mrf.mxu0
  %v151 = vadd.f32 %v62, %v150
  %152 = vmatmul.bf16.gmra.mxu0 %v87
  %v153 = vpop.f32.mrf.mxu0
  %v154 = vadd.f32 %v62, %v153
  %v155 = vpop.f32.mrf.mxu0
  %v156 = vadd.f32 %v62, %v155
  %157 = vmatmul.bf16.gmra.mxu0 %v90
  %v158 = vpop.f32.mrf.mxu0
  %v159 = vadd.f32 %v62, %v158
  %v160 = vpop.f32.mrf.mxu0
  %v161 = vadd.f32 %v62, %v160
  %162 = vdwg.mxu0
  %163 = vmatpush.bf16.msra.mxu0 0
  %164 = vmatpush.bf16.msra.mxu0 0
  %165 = vmatpush.bf16.msra.mxu0 0
  %166 = vmatpush.bf16.msra.mxu0 0
  %167 = vmatpush.bf16.msra.mxu0 0
  %168 = vmatpush.bf16.msra.mxu0 0
  %169 = vmatpush.bf16.msra.mxu0 0
  %170 = vmatpush.bf16.msra.mxu0 %v100
  %171 = vmatmul.bf16.gmra.mxu0 %v81
  %v172 = vpop.f32.mrf.mxu0
  %v173 = vadd.f32 %v63, %v172
  %v174 = vpop.f32.mrf.mxu0
  %v175 = vadd.f32 %v63, %v174
  %176 = vmatmul.bf16.gmra.mxu0 %v84
  %v177 = vpop.f32.mrf.mxu0
  %v178 = vadd.f32 %v63, %v177
  %v179 = vpop.f32.mrf.mxu0
  %v180 = vadd.f32 %v63, %v179
  %181 = vmatmul.bf16.gmra.mxu0 %v87
  %v182 = vpop.f32.mrf.mxu0
  %v183 = vadd.f32 %v63, %v182
  %v184 = vpop.f32.mrf.mxu0
  %v185 = vadd.f32 %v63, %v184
  %186 = vmatmul.bf16.gmra.mxu0 %v90
  %v187 = vpop.f32.mrf.mxu0
  %v188 = vadd.f32 %v63, %v187
  %v189 = vpop.f32.mrf.mxu0
  %v190 = vadd.f32 %v63, %v189
  %191 = vdwg.mxu0
  %192 = vmatpush.bf16.msra.mxu0 0
  %193 = vmatpush.bf16.msra.mxu0 0
  %194 = vmatpush.bf16.msra.mxu0 0
  %195 = vmatpush.bf16.msra.mxu0 0
  %196 = vmatpush.bf16.msra.mxu0 0
  %197 = vmatpush.bf16.msra.mxu0 0
  %198 = vmatpush.bf16.msra.mxu0 0
  %199 = vmatpush.bf16.msra.mxu0 %v103
  %200 = vmatmul.bf16.gmra.mxu0 %v81
  %v201 = vpop.f32.mrf.mxu0
  %v202 = vadd.f32 %v64, %v201
  %v203 = vpop.f32.mrf.mxu0
  %v204 = vadd.f32 %v64, %v203
  %205 = vmatmul.bf16.gmra.mxu0 %v84
  %v206 = vpop.f32.mrf.mxu0
  %v207 = vadd.f32 %v64, %v206
  %v208 = vpop.f32.mrf.mxu0
  %v209 = vadd.f32 %v64, %v208
  %210 = vmatmul.bf16.gmra.mxu0 %v87
  %v211 = vpop.f32.mrf.mxu0
  %v212 = vadd.f32 %v64, %v211
  %v213 = vpop.f32.mrf.mxu0
  %v214 = vadd.f32 %v64, %v213
  %215 = vmatmul.bf16.gmra.mxu0 %v90
  %v216 = vpop.f32.mrf.mxu0
  %v217 = vadd.f32 %v64, %v216
  %v218 = vpop.f32.mrf.mxu0
  %v219 = vadd.f32 %v64, %v218
  %220 = vdwg.mxu0
  %221 = vst [vmem:[#allocation2] sm:$0xff] %v115
  %222 = vst [vmem:[#allocation2 + $0x8] sm:$0xff] %v144
  %223 = vst [vmem:[#allocation2 + $0x10] sm:$0xff] %v173
  %224 = vst [vmem:[#allocation2 + $0x18] sm:$0xff] %v202
  %225 = vst [vmem:[#allocation2 + $0x20] sm:$0xff] %v117
  %226 = vst [vmem:[#allocation2 + $0x28] sm:$0xff] %v146
  %227 = vst [vmem:[#allocation2 + $0x30] sm:$0xff] %v175
  %228 = vst [vmem:[#allocation2 + $0x38] sm:$0xff] %v204
  %229 = vst [vmem:[#allocation2 + $0x40] sm:$0xff] %v120
  %230 = vst [vmem:[#allocation2 + $0x48] sm:$0xff] %v149
  %231 = vst [vmem:[#allocation2 + $0x50] sm:$0xff] %v178
  %232 = vst [vmem:[#allocation2 + $0x58] sm:$0xff] %v207
  %233 = vst [vmem:[#allocation2 + $0x60] sm:$0xff] %v122
  %234 = vst [vmem:[#allocation2 + $0x68] sm:$0xff] %v151
  %235 = vst [vmem:[#allocation2 + $0x70] sm:$0xff] %v180
  %236 = vst [vmem:[#allocation2 + $0x78] sm:$0xff] %v209
  %237 = vst [vmem:[#allocation2 + $0x80] sm:$0xff] %v125
  %238 = vst [vmem:[#allocation2 + $0x88] sm:$0xff] %v154
  %239 = vst [vmem:[#allocation2 + $0x90] sm:$0xff] %v183
  %240 = vst [vmem:[#allocation2 + $0x98] sm:$0xff] %v212
  %241 = vst [vmem:[#allocation2 + $0xa0] sm:$0xff] %v127
  %242 = vst [vmem:[#allocation2 + $0xa8] sm:$0xff] %v156
  %243 = vst [vmem:[#allocation2 + $0xb0] sm:$0xff] %v185
  %244 = vst [vmem:[#allocation2 + $0xb8] sm:$0xff] %v214
  %245 = vst [vmem:[#allocation2 + $0xc0] sm:$0xff] %v130
  %246 = vst [vmem:[#allocation2 + $0xc8] sm:$0xff] %v159
  %247 = vst [vmem:[#allocation2 + $0xd0] sm:$0xff] %v188
  %248 = vst [vmem:[#allocation2 + $0xd8] sm:$0xff] %v217
  %249 = vst [vmem:[#allocation2 + $0xe0] sm:$0xff] %v132
  %250 = vst [vmem:[#allocation2 + $0xe8] sm:$0xff] %v161
  %251 = vst [vmem:[#allocation2 + $0xf0] sm:$0xff] %v190
  %252 = vst [vmem:[#allocation2 + $0xf8] sm:$0xff] %v219
  %v253 = vld [vmem:[%s2] sm:$0xff]
  %v254 = vld [vmem:[%s2 + $0x8] sm:$0xff]
  %v255 = vld [vmem:[%s5] sm:$0xf]
  %v257 = vperm.slane %v255, 0
  %v258 = vperm.slane %v255, 1
  %v259 = vperm.slane %v255, 2
  %v260 = vperm.slane %v255, 3
  %v267 = vunpack.c.l.b16 %v253
  %v268 = vunpack.c.h.b16 %v253
  %v269 = vunpack.c.l.b16 %v254
  %v270 = vunpack.c.h.b16 %v254
  %v271 = vpack.c.b16 %v267, %v267
  %v272 = vpack.c.b16 %v268, %v268
  %v273 = vpack.c.b16 %v269, %v269
  %v274 = vpack.c.b16 %v270, %v270
  %v276 = vsel %vm92, %v271, 0
  %v279 = vsel %vm92, %v272, 0
  %v282 = vsel %vm92, %v273, 0
  %v285 = vsel %vm92, %v274, 0
  %287 = vmatpush.bf16.msra.mxu0 0
  %288 = vmatpush.bf16.msra.mxu0 0
  %289 = vmatpush.bf16.msra.mxu0 0
  %290 = vmatpush.bf16.msra.mxu0 0
  %291 = vmatpush.bf16.msra.mxu0 0
  %292 = vmatpush.bf16.msra.mxu0 0
  %293 = vmatpush.bf16.msra.mxu0 0
  %294 = vmatpush.bf16.msra.mxu0 %v276
  %295 = vmatmul.bf16.gmra.mxu0 %v81
  %v296 = vpop.f32.mrf.mxu0
  %v297 = vadd.f32 %v257, %v296
  %v298 = vpop.f32.mrf.mxu0
  %v299 = vadd.f32 %v257, %v298
  %300 = vmatmul.bf16.gmra.mxu0 %v84
  %v301 = vpop.f32.mrf.mxu0
  %v302 = vadd.f32 %v257, %v301
  %v303 = vpop.f32.mrf.mxu0
  %v304 = vadd.f32 %v257, %v303
  %305 = vmatmul.bf16.gmra.mxu0 %v87
  %v306 = vpop.f32.mrf.mxu0
  %v307 = vadd.f32 %v257, %v306
  %v308 = vpop.f32.mrf.mxu0
  %v309 = vadd.f32 %v257, %v308
  %310 = vmatmul.bf16.gmra.mxu0 %v90
  %v311 = vpop.f32.mrf.mxu0
  %v312 = vadd.f32 %v257, %v311
  %v313 = vpop.f32.mrf.mxu0
  %v314 = vadd.f32 %v257, %v313
  %315 = vdwg.mxu0
  %316 = vmatpush.bf16.msra.mxu0 0
  %317 = vmatpush.bf16.msra.mxu0 0
  %318 = vmatpush.bf16.msra.mxu0 0
  %319 = vmatpush.bf16.msra.mxu0 0
  %320 = vmatpush.bf16.msra.mxu0 0
  %321 = vmatpush.bf16.msra.mxu0 0
  %322 = vmatpush.bf16.msra.mxu0 0
  %323 = vmatpush.bf16.msra.mxu0 %v279
  %324 = vmatmul.bf16.gmra.mxu0 %v81
  %v325 = vpop.f32.mrf.mxu0
  %v326 = vadd.f32 %v258, %v325
  %v327 = vpop.f32.mrf.mxu0
  %v328 = vadd.f32 %v258, %v327
  %329 = vmatmul.bf16.gmra.mxu0 %v84
  %v330 = vpop.f32.mrf.mxu0
  %v331 = vadd.f32 %v258, %v330
  %v332 = vpop.f32.mrf.mxu0
  %v333 = vadd.f32 %v258, %v332
  %334 = vmatmul.bf16.gmra.mxu0 %v87
  %v335 = vpop.f32.mrf.mxu0
  %v336 = vadd.f32 %v258, %v335
  %v337 = vpop.f32.mrf.mxu0
  %v338 = vadd.f32 %v258, %v337
  %339 = vmatmul.bf16.gmra.mxu0 %v90
  %v340 = vpop.f32.mrf.mxu0
  %v341 = vadd.f32 %v258, %v340
  %v342 = vpop.f32.mrf.mxu0
  %v343 = vadd.f32 %v258, %v342
  %344 = vdwg.mxu0
  %345 = vmatpush.bf16.msra.mxu0 0
  %346 = vmatpush.bf16.msra.mxu0 0
  %347 = vmatpush.bf16.msra.mxu0 0
  %348 = vmatpush.bf16.msra.mxu0 0
  %349 = vmatpush.bf16.msra.mxu0 0
  %350 = vmatpush.bf16.msra.mxu0 0
  %351 = vmatpush.bf16.msra.mxu0 0
  %352 = vmatpush.bf16.msra.mxu0 %v282
  %353 = vmatmul.bf16.gmra.mxu0 %v81
  %v354 = vpop.f32.mrf.mxu0
  %v355 = vadd.f32 %v259, %v354
  %v356 = vpop.f32.mrf.mxu0
  %v357 = vadd.f32 %v259, %v356
  %358 = vmatmul.bf16.gmra.mxu0 %v84
  %v359 = vpop.f32.mrf.mxu0
  %v360 = vadd.f32 %v259, %v359
  %v361 = vpop.f32.mrf.mxu0
  %v362 = vadd.f32 %v259, %v361
  %363 = vmatmul.bf16.gmra.mxu0 %v87
  %v364 = vpop.f32.mrf.mxu0
  %v365 = vadd.f32 %v259, %v364
  %v366 = vpop.f32.mrf.mxu0
  %v367 = vadd.f32 %v259, %v366
  %368 = vmatmul.bf16.gmra.mxu0 %v90
  %v369 = vpop.f32.mrf.mxu0
  %v370 = vadd.f32 %v259, %v369
  %v371 = vpop.f32.mrf.mxu0
  %v372 = vadd.f32 %v259, %v371
  %373 = vdwg.mxu0
  %374 = vmatpush.bf16.msra.mxu0 0
  %375 = vmatpush.bf16.msra.mxu0 0
  %376 = vmatpush.bf16.msra.mxu0 0
  %377 = vmatpush.bf16.msra.mxu0 0
  %378 = vmatpush.bf16.msra.mxu0 0
  %379 = vmatpush.bf16.msra.mxu0 0
  %380 = vmatpush.bf16.msra.mxu0 0
  %381 = vmatpush.bf16.msra.mxu0 %v285
  %382 = vmatmul.bf16.gmra.mxu0 %v81
  %v383 = vpop.f32.mrf.mxu0
  %v384 = vadd.f32 %v260, %v383
  %v385 = vpop.f32.mrf.mxu0
  %v386 = vadd.f32 %v260, %v385
  %387 = vmatmul.bf16.gmra.mxu0 %v84
  %v388 = vpop.f32.mrf.mxu0
  %v389 = vadd.f32 %v260, %v388
  %v390 = vpop.f32.mrf.mxu0
  %v391 = vadd.f32 %v260, %v390
  %392 = vmatmul.bf16.gmra.mxu0 %v87
  %v393 = vpop.f32.mrf.mxu0
  %v394 = vadd.f32 %v260, %v393
  %v395 = vpop.f32.mrf.mxu0
  %v396 = vadd.f32 %v260, %v395
  %397 = vmatmul.bf16.gmra.mxu0 %v90
  %v398 = vpop.f32.mrf.mxu0
  %v399 = vadd.f32 %v260, %v398
  %v400 = vpop.f32.mrf.mxu0
  %v401 = vadd.f32 %v260, %v400
  %402 = vdwg.mxu0
  %403 = vst [vmem:[#allocation3] sm:$0xff] %v297
  %404 = vst [vmem:[#allocation3 + $0x8] sm:$0xff] %v326
  %405 = vst [vmem:[#allocation3 + $0x10] sm:$0xff] %v355
  %406 = vst [vmem:[#allocation3 + $0x18] sm:$0xff] %v384
  %407 = vst [vmem:[#allocation3 + $0x20] sm:$0xff] %v299
  %408 = vst [vmem:[#allocation3 + $0x28] sm:$0xff] %v328
  %409 = vst [vmem:[#allocation3 + $0x30] sm:$0xff] %v357
  %410 = vst [vmem:[#allocation3 + $0x38] sm:$0xff] %v386
  %411 = vst [vmem:[#allocation3 + $0x40] sm:$0xff] %v302
  %412 = vst [vmem:[#allocation3 + $0x48] sm:$0xff] %v331
  %413 = vst [vmem:[#allocation3 + $0x50] sm:$0xff] %v360
  %414 = vst [vmem:[#allocation3 + $0x58] sm:$0xff] %v389
  %415 = vst [vmem:[#allocation3 + $0x60] sm:$0xff] %v304
  %416 = vst [vmem:[#allocation3 + $0x68] sm:$0xff] %v333
  %417 = vst [vmem:[#allocation3 + $0x70] sm:$0xff] %v362
  %418 = vst [vmem:[#allocation3 + $0x78] sm:$0xff] %v391
  %419 = vst [vmem:[#allocation3 + $0x80] sm:$0xff] %v307
  %420 = vst [vmem:[#allocation3 + $0x88] sm:$0xff] %v336
  %421 = vst [vmem:[#allocation3 + $0x90] sm:$0xff] %v365
  %422 = vst [vmem:[#allocation3 + $0x98] sm:$0xff] %v394
  %423 = vst [vmem:[#allocation3 + $0xa0] sm:$0xff] %v309
  %424 = vst [vmem:[#allocation3 + $0xa8] sm:$0xff] %v338
  %425 = vst [vmem:[#allocation3 + $0xb0] sm:$0xff] %v367
  %426 = vst [vmem:[#allocation3 + $0xb8] sm:$0xff] %v396
  %427 = vst [vmem:[#allocation3 + $0xc0] sm:$0xff] %v312
  %428 = vst [vmem:[#allocation3 + $0xc8] sm:$0xff] %v341
  %429 = vst [vmem:[#allocation3 + $0xd0] sm:$0xff] %v370
  %430 = vst [vmem:[#allocation3 + $0xd8] sm:$0xff] %v399
  %431 = vst [vmem:[#allocation3 + $0xe0] sm:$0xff] %v314
  %432 = vst [vmem:[#allocation3 + $0xe8] sm:$0xff] %v343
  %433 = vst [vmem:[#allocation3 + $0xf0] sm:$0xff] %v372
  %434 = vst [vmem:[#allocation3 + $0xf8] sm:$0xff] %v401
  %v435 = vpack.c.bf16 0.0, 0.0
  %v436 = vld [vmem:[%s3] sm:$0xff]
  %v437 = vld [vmem:[%s3 + $0x8] sm:$0xff]
  %v438 = vld [vmem:[%s3 + $0x10] sm:$0xff]
  %v439 = vld [vmem:[%s3 + $0x18] sm:$0xff]
  %v440 = vld [vmem:[%s3 + $0x20] sm:$0xff]
  %v441 = vld [vmem:[%s3 + $0x28] sm:$0xff]
  %v442 = vld [vmem:[%s3 + $0x30] sm:$0xff]
  %v443 = vld [vmem:[%s3 + $0x38] sm:$0xff]
  %v444 = vld [vmem:[%s3 + $0x40] sm:$0xff]
  %v445 = vld [vmem:[%s3 + $0x48] sm:$0xff]
  %v446 = vld [vmem:[%s3 + $0x50] sm:$0xff]
  %v447 = vld [vmem:[%s3 + $0x58] sm:$0xff]
  %v448 = vld [vmem:[%s3 + $0x60] sm:$0xff]
  %v449 = vld [vmem:[%s3 + $0x68] sm:$0xff]
  %v450 = vld [vmem:[%s3 + $0x70] sm:$0xff]
  %v451 = vld [vmem:[%s3 + $0x78] sm:$0xff]
  %v452 = vld [vmem:[%s3 + $0x80] sm:$0xff]
  %v453 = vld [vmem:[%s3 + $0x88] sm:$0xff]
  %v454 = vld [vmem:[%s3 + $0x90] sm:$0xff]
  %v455 = vld [vmem:[%s3 + $0x98] sm:$0xff]
  %v456 = vld [vmem:[%s3 + $0xa0] sm:$0xff]
  %v457 = vld [vmem:[%s3 + $0xa8] sm:$0xff]
  %v458 = vld [vmem:[%s3 + $0xb0] sm:$0xff]
  %v459 = vld [vmem:[%s3 + $0xb8] sm:$0xff]
  %v460 = vld [vmem:[%s3 + $0xc0] sm:$0xff]
  %v461 = vld [vmem:[%s3 + $0xc8] sm:$0xff]
  %v462 = vld [vmem:[%s3 + $0xd0] sm:$0xff]
  %v463 = vld [vmem:[%s3 + $0xd8] sm:$0xff]
  %v464 = vld [vmem:[%s3 + $0xe0] sm:$0xff]
  %v465 = vld [vmem:[%s3 + $0xe8] sm:$0xff]
  %v466 = vld [vmem:[%s3 + $0xf0] sm:$0xff]
  %v467 = vld [vmem:[%s3 + $0xf8] sm:$0xff]
  %v468 = vld [vmem:[%s3 + $0x100] sm:$0xff]
  %v469 = vld [vmem:[%s3 + $0x108] sm:$0xff]
  %v470 = vld [vmem:[%s3 + $0x110] sm:$0xff]
  %v471 = vld [vmem:[%s3 + $0x118] sm:$0xff]
  %v472 = vld [vmem:[%s3 + $0x120] sm:$0xff]
  %v473 = vld [vmem:[%s3 + $0x128] sm:$0xff]
  %v474 = vld [vmem:[%s3 + $0x130] sm:$0xff]
  %v475 = vld [vmem:[%s3 + $0x138] sm:$0xff]
  %v476 = vld [vmem:[%s3 + $0x140] sm:$0xff]
  %v477 = vld [vmem:[%s3 + $0x148] sm:$0xff]
  %v478 = vld [vmem:[%s3 + $0x150] sm:$0xff]
  %v479 = vld [vmem:[%s3 + $0x158] sm:$0xff]
  %v480 = vld [vmem:[%s3 + $0x160] sm:$0xff]
  %v481 = vld [vmem:[%s3 + $0x168] sm:$0xff]
  %v482 = vld [vmem:[%s3 + $0x170] sm:$0xff]
  %v483 = vld [vmem:[%s3 + $0x178] sm:$0xff]
  %v484 = vld [vmem:[%s3 + $0x180] sm:$0xff]
  %v485 = vld [vmem:[%s3 + $0x188] sm:$0xff]
  %v486 = vld [vmem:[%s3 + $0x190] sm:$0xff]
  %v487 = vld [vmem:[%s3 + $0x198] sm:$0xff]
  %v488 = vld [vmem:[%s3 + $0x1a0] sm:$0xff]
  %v489 = vld [vmem:[%s3 + $0x1a8] sm:$0xff]
  %v490 = vld [vmem:[%s3 + $0x1b0] sm:$0xff]
  %v491 = vld [vmem:[%s3 + $0x1b8] sm:$0xff]
  %v492 = vld [vmem:[%s3 + $0x1c0] sm:$0xff]
  %v493 = vld [vmem:[%s3 + $0x1c8] sm:$0xff]
  %v494 = vld [vmem:[%s3 + $0x1d0] sm:$0xff]
  %v495 = vld [vmem:[%s3 + $0x1d8] sm:$0xff]
  %v496 = vld [vmem:[%s3 + $0x1e0] sm:$0xff]
  %v497 = vld [vmem:[%s3 + $0x1e8] sm:$0xff]
  %v498 = vld [vmem:[%s3 + $0x1f0] sm:$0xff]
  %v499 = vld [vmem:[%s3 + $0x1f8] sm:$0xff]
  %v500 = vld [vmem:[%s3 + $0x200] sm:$0xff]
  %v501 = vld [vmem:[%s3 + $0x208] sm:$0xff]
  %v502 = vld [vmem:[%s3 + $0x210] sm:$0xff]
  %v503 = vld [vmem:[%s3 + $0x218] sm:$0xff]
  %v504 = vld [vmem:[%s3 + $0x220] sm:$0xff]
  %v505 = vld [vmem:[%s3 + $0x228] sm:$0xff]
  %v506 = vld [vmem:[%s3 + $0x230] sm:$0xff]
  %v507 = vld [vmem:[%s3 + $0x238] sm:$0xff]
  %v508 = vld [vmem:[%s3 + $0x240] sm:$0xff]
  %v509 = vld [vmem:[%s3 + $0x248] sm:$0xff]
  %v510 = vld [vmem:[%s3 + $0x250] sm:$0xff]
  %v511 = vld [vmem:[%s3 + $0x258] sm:$0xff]
  %v512 = vld [vmem:[%s3 + $0x260] sm:$0xff]
  %v513 = vld [vmem:[%s3 + $0x268] sm:$0xff]
  %v514 = vld [vmem:[%s3 + $0x270] sm:$0xff]
  %v515 = vld [vmem:[%s3 + $0x278] sm:$0xff]
  %v516 = vld [vmem:[%s3 + $0x280] sm:$0xff]
  %v517 = vld [vmem:[%s3 + $0x288] sm:$0xff]
  %v518 = vld [vmem:[%s3 + $0x290] sm:$0xff]
  %v519 = vld [vmem:[%s3 + $0x298] sm:$0xff]
  %v520 = vld [vmem:[%s3 + $0x2a0] sm:$0xff]
  %v521 = vld [vmem:[%s3 + $0x2a8] sm:$0xff]
  %v522 = vld [vmem:[%s3 + $0x2b0] sm:$0xff]
  %v523 = vld [vmem:[%s3 + $0x2b8] sm:$0xff]
  %v524 = vld [vmem:[%s3 + $0x2c0] sm:$0xff]
  %v525 = vld [vmem:[%s3 + $0x2c8] sm:$0xff]
  %v526 = vld [vmem:[%s3 + $0x2d0] sm:$0xff]
  %v527 = vld [vmem:[%s3 + $0x2d8] sm:$0xff]
  %v528 = vld [vmem:[%s3 + $0x2e0] sm:$0xff]
  %v529 = vld [vmem:[%s3 + $0x2e8] sm:$0xff]
  %v530 = vld [vmem:[%s3 + $0x2f0] sm:$0xff]
  %v531 = vld [vmem:[%s3 + $0x2f8] sm:$0xff]
  %v532 = vld [vmem:[%s3 + $0x300] sm:$0xff]
  %v533 = vld [vmem:[%s3 + $0x308] sm:$0xff]
  %v534 = vld [vmem:[%s3 + $0x310] sm:$0xff]
  %v535 = vld [vmem:[%s3 + $0x318] sm:$0xff]
  %v536 = vld [vmem:[%s3 + $0x320] sm:$0xff]
  %v537 = vld [vmem:[%s3 + $0x328] sm:$0xff]
  %v538 = vld [vmem:[%s3 + $0x330] sm:$0xff]
  %v539 = vld [vmem:[%s3 + $0x338] sm:$0xff]
  %v540 = vld [vmem:[%s3 + $0x340] sm:$0xff]
  %v541 = vld [vmem:[%s3 + $0x348] sm:$0xff]
  %v542 = vld [vmem:[%s3 + $0x350] sm:$0xff]
  %v543 = vld [vmem:[%s3 + $0x358] sm:$0xff]
  %v544 = vld [vmem:[%s3 + $0x360] sm:$0xff]
  %v545 = vld [vmem:[%s3 + $0x368] sm:$0xff]
  %v546 = vld [vmem:[%s3 + $0x370] sm:$0xff]
  %v547 = vld [vmem:[%s3 + $0x378] sm:$0xff]
  %v548 = vld [vmem:[%s3 + $0x380] sm:$0xff]
  %v549 = vld [vmem:[%s3 + $0x388] sm:$0xff]
  %v550 = vld [vmem:[%s3 + $0x390] sm:$0xff]
  %v551 = vld [vmem:[%s3 + $0x398] sm:$0xff]
  %v552 = vld [vmem:[%s3 + $0x3a0] sm:$0xff]
  %v553 = vld [vmem:[%s3 + $0x3a8] sm:$0xff]
  %v554 = vld [vmem:[%s3 + $0x3b0] sm:$0xff]
  %v555 = vld [vmem:[%s3 + $0x3b8] sm:$0xff]
  %v556 = vld [vmem:[%s3 + $0x3c0] sm:$0xff]
  %v557 = vld [vmem:[%s3 + $0x3c8] sm:$0xff]
  %v558 = vld [vmem:[%s3 + $0x3d0] sm:$0xff]
  %v559 = vld [vmem:[%s3 + $0x3d8] sm:$0xff]
  %v560 = vld [vmem:[%s3 + $0x3e0] sm:$0xff]
  %v561 = vld [vmem:[%s3 + $0x3e8] sm:$0xff]
  %v562 = vld [vmem:[%s3 + $0x3f0] sm:$0xff]
  %v563 = vld [vmem:[%s3 + $0x3f8] sm:$0xff]
  %v692 = vunpack.c.l.b16 %v436
  %v693 = vunpack.c.h.b16 %v436
  %v694 = vunpack.c.l.b16 %v437
  %v695 = vunpack.c.h.b16 %v437
  %v696 = vunpack.c.l.b16 %v438
  %v697 = vunpack.c.h.b16 %v438
  %v698 = vunpack.c.l.b16 %v439
  %v699 = vunpack.c.h.b16 %v439
  %v700 = vunpack.c.l.b16 %v440
  %v701 = vunpack.c.h.b16 %v440
  %v702 = vunpack.c.l.b16 %v441
  %v703 = vunpack.c.h.b16 %v441
  %v704 = vunpack.c.l.b16 %v442
  %v705 = vunpack.c.h.b16 %v442
  %v706 = vunpack.c.l.b16 %v443
  %v707 = vunpack.c.h.b16 %v443
  %v708 = vunpack.c.l.b16 %v444
  %v709 = vunpack.c.h.b16 %v444
  %v710 = vunpack.c.l.b16 %v445
  %v711 = vunpack.c.h.b16 %v445
  %v712 = vunpack.c.l.b16 %v446
  %v713 = vunpack.c.h.b16 %v446
  %v714 = vunpack.c.l.b16 %v447
  %v715 = vunpack.c.h.b16 %v447
  %v716 = vunpack.c.l.b16 %v448
  %v717 = vunpack.c.h.b16 %v448
  %v718 = vunpack.c.l.b16 %v449
  %v719 = vunpack.c.h.b16 %v449
  %v720 = vunpack.c.l.b16 %v450
  %v721 = vunpack.c.h.b16 %v450
  %v722 = vunpack.c.l.b16 %v451
  %v723 = vunpack.c.h.b16 %v451
  %v724 = vunpack.c.l.b16 %v452
  %v725 = vunpack.c.h.b16 %v452
  %v726 = vunpack.c.l.b16 %v453
  %v727 = vunpack.c.h.b16 %v453
  %v728 = vunpack.c.l.b16 %v454
  %v729 = vunpack.c.h.b16 %v454
  %v730 = vunpack.c.l.b16 %v455
  %v731 = vunpack.c.h.b16 %v455
  %v732 = vunpack.c.l.b16 %v456
  %v733 = vunpack.c.h.b16 %v456
  %v734 = vunpack.c.l.b16 %v457
  %v735 = vunpack.c.h.b16 %v457
  %v736 = vunpack.c.l.b16 %v458
  %v737 = vunpack.c.h.b16 %v458
  %v738 = vunpack.c.l.b16 %v459
  %v739 = vunpack.c.h.b16 %v459
  %v740 = vunpack.c.l.b16 %v460
  %v741 = vunpack.c.h.b16 %v460
  %v742 = vunpack.c.l.b16 %v461
  %v743 = vunpack.c.h.b16 %v461
  %v744 = vunpack.c.l.b16 %v462
  %v745 = vunpack.c.h.b16 %v462
  %v746 = vunpack.c.l.b16 %v463
  %v747 = vunpack.c.h.b16 %v463
  %v748 = vunpack.c.l.b16 %v464
  %v749 = vunpack.c.h.b16 %v464
  %v750 = vunpack.c.l.b16 %v465
  %v751 = vunpack.c.h.b16 %v465
  %v752 = vunpack.c.l.b16 %v466
  %v753 = vunpack.c.h.b16 %v466
  %v754 = vunpack.c.l.b16 %v467
  %v755 = vunpack.c.h.b16 %v467
  %v756 = vunpack.c.l.b16 %v468
  %v757 = vunpack.c.h.b16 %v468
  %v758 = vunpack.c.l.b16 %v469
  %v759 = vunpack.c.h.b16 %v469
  %v760 = vunpack.c.l.b16 %v470
  %v761 = vunpack.c.h.b16 %v470
  %v762 = vunpack.c.l.b16 %v471
  %v763 = vunpack.c.h.b16 %v471
  %v764 = vunpack.c.l.b16 %v472
  %v765 = vunpack.c.h.b16 %v472
  %v766 = vunpack.c.l.b16 %v473
  %v767 = vunpack.c.h.b16 %v473
  %v768 = vunpack.c.l.b16 %v474
  %v769 = vunpack.c.h.b16 %v474
  %v770 = vunpack.c.l.b16 %v475
  %v771 = vunpack.c.h.b16 %v475
  %v772 = vunpack.c.l.b16 %v476
  %v773 = vunpack.c.h.b16 %v476
  %v774 = vunpack.c.l.b16 %v477
  %v775 = vunpack.c.h.b16 %v477
  %v776 = vunpack.c.l.b16 %v478
  %v777 = vunpack.c.h.b16 %v478
  %v778 = vunpack.c.l.b16 %v479
  %v779 = vunpack.c.h.b16 %v479
  %v780 = vunpack.c.l.b16 %v480
  %v781 = vunpack.c.h.b16 %v480
  %v782 = vunpack.c.l.b16 %v481
  %v783 = vunpack.c.h.b16 %v481
  %v784 = vunpack.c.l.b16 %v482
  %v785 = vunpack.c.h.b16 %v482
  %v786 = vunpack.c.l.b16 %v483
  %v787 = vunpack.c.h.b16 %v483
  %v788 = vunpack.c.l.b16 %v484
  %v789 = vunpack.c.h.b16 %v484
  %v790 = vunpack.c.l.b16 %v485
  %v791 = vunpack.c.h.b16 %v485
  %v792 = vunpack.c.l.b16 %v486
  %v793 = vunpack.c.h.b16 %v486
  %v794 = vunpack.c.l.b16 %v487
  %v795 = vunpack.c.h.b16 %v487
  %v796 = vunpack.c.l.b16 %v488
  %v797 = vunpack.c.h.b16 %v488
  %v798 = vunpack.c.l.b16 %v489
  %v799 = vunpack.c.h.b16 %v489
  %v800 = vunpack.c.l.b16 %v490
  %v801 = vunpack.c.h.b16 %v490
  %v802 = vunpack.c.l.b16 %v491
  %v803 = vunpack.c.h.b16 %v491
  %v804 = vunpack.c.l.b16 %v492
  %v805 = vunpack.c.h.b16 %v492
  %v806 = vunpack.c.l.b16 %v493
  %v807 = vunpack.c.h.b16 %v493
  %v808 = vunpack.c.l.b16 %v494
  %v809 = vunpack.c.h.b16 %v494
  %v810 = vunpack.c.l.b16 %v495
  %v811 = vunpack.c.h.b16 %v495
  %v812 = vunpack.c.l.b16 %v496
  %v813 = vunpack.c.h.b16 %v496
  %v814 = vunpack.c.l.b16 %v497
  %v815 = vunpack.c.h.b16 %v497
  %v816 = vunpack.c.l.b16 %v498
  %v817 = vunpack.c.h.b16 %v498
  %v818 = vunpack.c.l.b16 %v499
  %v819 = vunpack.c.h.b16 %v499
  %v820 = vunpack.c.l.b16 %v500
  %v821 = vunpack.c.h.b16 %v500
  %v822 = vunpack.c.l.b16 %v501
  %v823 = vunpack.c.h.b16 %v501
  %v824 = vunpack.c.l.b16 %v502
  %v825 = vunpack.c.h.b16 %v502
  %v826 = vunpack.c.l.b16 %v503
  %v827 = vunpack.c.h.b16 %v503
  %v828 = vunpack.c.l.b16 %v504
  %v829 = vunpack.c.h.b16 %v504
  %v830 = vunpack.c.l.b16 %v505
  %v831 = vunpack.c.h.b16 %v505
  %v832 = vunpack.c.l.b16 %v506
  %v833 = vunpack.c.h.b16 %v506
  %v834 = vunpack.c.l.b16 %v507
  %v835 = vunpack.c.h.b16 %v507
  %v836 = vunpack.c.l.b16 %v508
  %v837 = vunpack.c.h.b16 %v508
  %v838 = vunpack.c.l.b16 %v509
  %v839 = vunpack.c.h.b16 %v509
  %v840 = vunpack.c.l.b16 %v510
  %v841 = vunpack.c.h.b16 %v510
  %v842 = vunpack.c.l.b16 %v511
  %v843 = vunpack.c.h.b16 %v511
  %v844 = vunpack.c.l.b16 %v512
  %v845 = vunpack.c.h.b16 %v512
  %v846 = vunpack.c.l.b16 %v513
  %v847 = vunpack.c.h.b16 %v513
  %v848 = vunpack.c.l.b16 %v514
  %v849 = vunpack.c.h.b16 %v514
  %v850 = vunpack.c.l.b16 %v515
  %v851 = vunpack.c.h.b16 %v515
  %v852 = vunpack.c.l.b16 %v516
  %v853 = vunpack.c.h.b16 %v516
  %v854 = vunpack.c.l.b16 %v517
  %v855 = vunpack.c.h.b16 %v517
  %v856 = vunpack.c.l.b16 %v518
  %v857 = vunpack.c.h.b16 %v518
  %v858 = vunpack.c.l.b16 %v519
  %v859 = vunpack.c.h.b16 %v519
  %v860 = vunpack.c.l.b16 %v520
  %v861 = vunpack.c.h.b16 %v520
  %v862 = vunpack.c.l.b16 %v521
  %v863 = vunpack.c.h.b16 %v521
  %v864 = vunpack.c.l.b16 %v522
  %v865 = vunpack.c.h.b16 %v522
  %v866 = vunpack.c.l.b16 %v523
  %v867 = vunpack.c.h.b16 %v523
  %v868 = vunpack.c.l.b16 %v524
  %v869 = vunpack.c.h.b16 %v524
  %v870 = vunpack.c.l.b16 %v525
  %v871 = vunpack.c.h.b16 %v525
  %v872 = vunpack.c.l.b16 %v526
  %v873 = vunpack.c.h.b16 %v526
  %v874 = vunpack.c.l.b16 %v527
  %v875 = vunpack.c.h.b16 %v527
  %v876 = vunpack.c.l.b16 %v528
  %v877 = vunpack.c.h.b16 %v528
  %v878 = vunpack.c.l.b16 %v529
  %v879 = vunpack.c.h.b16 %v529
  %v880 = vunpack.c.l.b16 %v530
  %v881 = vunpack.c.h.b16 %v530
  %v882 = vunpack.c.l.b16 %v531
  %v883 = vunpack.c.h.b16 %v531
  %v884 = vunpack.c.l.b16 %v532
  %v885 = vunpack.c.h.b16 %v532
  %v886 = vunpack.c.l.b16 %v533
  %v887 = vunpack.c.h.b16 %v533
  %v888 = vunpack.c.l.b16 %v534
  %v889 = vunpack.c.h.b16 %v534
  %v890 = vunpack.c.l.b16 %v535
  %v891 = vunpack.c.h.b16 %v535
  %v892 = vunpack.c.l.b16 %v536
  %v893 = vunpack.c.h.b16 %v536
  %v894 = vunpack.c.l.b16 %v537
  %v895 = vunpack.c.h.b16 %v537
  %v896 = vunpack.c.l.b16 %v538
  %v897 = vunpack.c.h.b16 %v538
  %v898 = vunpack.c.l.b16 %v539
  %v899 = vunpack.c.h.b16 %v539
  %v900 = vunpack.c.l.b16 %v540
  %v901 = vunpack.c.h.b16 %v540
  %v902 = vunpack.c.l.b16 %v541
  %v903 = vunpack.c.h.b16 %v541
  %v904 = vunpack.c.l.b16 %v542
  %v905 = vunpack.c.h.b16 %v542
  %v906 = vunpack.c.l.b16 %v543
  %v907 = vunpack.c.h.b16 %v543
  %v908 = vunpack.c.l.b16 %v544
  %v909 = vunpack.c.h.b16 %v544
  %v910 = vunpack.c.l.b16 %v545
  %v911 = vunpack.c.h.b16 %v545
  %v912 = vunpack.c.l.b16 %v546
  %v913 = vunpack.c.h.b16 %v546
  %v914 = vunpack.c.l.b16 %v547
  %v915 = vunpack.c.h.b16 %v547
  %v916 = vunpack.c.l.b16 %v548
  %v917 = vunpack.c.h.b16 %v548
  %v918 = vunpack.c.l.b16 %v549
  %v919 = vunpack.c.h.b16 %v549
  %v920 = vunpack.c.l.b16 %v550
  %v921 = vunpack.c.h.b16 %v550
  %v922 = vunpack.c.l.b16 %v551
  %v923 = vunpack.c.h.b16 %v551
  %v924 = vunpack.c.l.b16 %v552
  %v925 = vunpack.c.h.b16 %v552
  %v926 = vunpack.c.l.b16 %v553
  %v927 = vunpack.c.h.b16 %v553
  %v928 = vunpack.c.l.b16 %v554
  %v929 = vunpack.c.h.b16 %v554
  %v930 = vunpack.c.l.b16 %v555
  %v931 = vunpack.c.h.b16 %v555
  %v932 = vunpack.c.l.b16 %v556
  %v933 = vunpack.c.h.b16 %v556
  %v934 = vunpack.c.l.b16 %v557
  %v935 = vunpack.c.h.b16 %v557
  %v936 = vunpack.c.l.b16 %v558
  %v937 = vunpack.c.h.b16 %v558
  %v938 = vunpack.c.l.b16 %v559
  %v939 = vunpack.c.h.b16 %v559
  %v940 = vunpack.c.l.b16 %v560
  %v941 = vunpack.c.h.b16 %v560
  %v942 = vunpack.c.l.b16 %v561
  %v943 = vunpack.c.h.b16 %v561
  %v944 = vunpack.c.l.b16 %v562
  %v945 = vunpack.c.h.b16 %v562
  %v946 = vunpack.c.l.b16 %v563
  %v947 = vunpack.c.h.b16 %v563
  %v948 = vpack.c.b16 %v700, %v692
  %v949 = vpack.c.b16 %v701, %v693
  %v950 = vpack.c.b16 %v702, %v694
  %v951 = vpack.c.b16 %v703, %v695
  %v952 = vpack.c.b16 %v704, %v696
  %v953 = vpack.c.b16 %v705, %v697
  %v954 = vpack.c.b16 %v706, %v698
  %v955 = vpack.c.b16 %v707, %v699
  %v956 = vpack.c.b16 %v716, %v708
  %v957 = vpack.c.b16 %v717, %v709
  %v958 = vpack.c.b16 %v718, %v710
  %v959 = vpack.c.b16 %v719, %v711
  %v960 = vpack.c.b16 %v720, %v712
  %v961 = vpack.c.b16 %v721, %v713
  %v962 = vpack.c.b16 %v722, %v714
  %v963 = vpack.c.b16 %v723, %v715
  %v964 = vpack.c.b16 %v732, %v724
  %v965 = vpack.c.b16 %v733, %v725
  %v966 = vpack.c.b16 %v734, %v726
  %v967 = vpack.c.b16 %v735, %v727
  %v968 = vpack.c.b16 %v736, %v728
  %v969 = vpack.c.b16 %v737, %v729
  %v970 = vpack.c.b16 %v738, %v730
  %v971 = vpack.c.b16 %v739, %v731
  %v972 = vpack.c.b16 %v748, %v740
  %v973 = vpack.c.b16 %v749, %v741
  %v974 = vpack.c.b16 %v750, %v742
  %v975 = vpack.c.b16 %v751, %v743
  %v976 = vpack.c.b16 %v752, %v744
  %v977 = vpack.c.b16 %v753, %v745
  %v978 = vpack.c.b16 %v754, %v746
  %v979 = vpack.c.b16 %v755, %v747
  %v980 = vpack.c.b16 %v764, %v756
  %v981 = vpack.c.b16 %v765, %v757
  %v982 = vpack.c.b16 %v766, %v758
  %v983 = vpack.c.b16 %v767, %v759
  %v984 = vpack.c.b16 %v768, %v760
  %v985 = vpack.c.b16 %v769, %v761
  %v986 = vpack.c.b16 %v770, %v762
  %v987 = vpack.c.b16 %v771, %v763
  %v988 = vpack.c.b16 %v780, %v772
  %v989 = vpack.c.b16 %v781, %v773
  %v990 = vpack.c.b16 %v782, %v774
  %v991 = vpack.c.b16 %v783, %v775
  %v992 = vpack.c.b16 %v784, %v776
  %v993 = vpack.c.b16 %v785, %v777
  %v994 = vpack.c.b16 %v786, %v778
  %v995 = vpack.c.b16 %v787, %v779
  %v996 = vpack.c.b16 %v796, %v788
  %v997 = vpack.c.b16 %v797, %v789
  %v998 = vpack.c.b16 %v798, %v790
  %v999 = vpack.c.b16 %v799, %v791
  %v1000 = vpack.c.b16 %v800, %v792
  %v1001 = vpack.c.b16 %v801, %v793
  %v1002 = vpack.c.b16 %v802, %v794
  %v1003 = vpack.c.b16 %v803, %v795
  %v1004 = vpack.c.b16 %v812, %v804
  %v1005 = vpack.c.b16 %v813, %v805
  %v1006 = vpack.c.b16 %v814, %v806
  %v1007 = vpack.c.b16 %v815, %v807
  %v1008 = vpack.c.b16 %v816, %v808
  %v1009 = vpack.c.b16 %v817, %v809
  %v1010 = vpack.c.b16 %v818, %v810
  %v1011 = vpack.c.b16 %v819, %v811
  %v1012 = vpack.c.b16 %v828, %v820
  %v1013 = vpack.c.b16 %v829, %v821
  %v1014 = vpack.c.b16 %v830, %v822
  %v1015 = vpack.c.b16 %v831, %v823
  %v1016 = vpack.c.b16 %v832, %v824
  %v1017 = vpack.c.b16 %v833, %v825
  %v1018 = vpack.c.b16 %v834, %v826
  %v1019 = vpack.c.b16 %v835, %v827
  %v1020 = vpack.c.b16 %v844, %v836
  %v1021 = vpack.c.b16 %v845, %v837
  %v1022 = vpack.c.b16 %v846, %v838
  %v1023 = vpack.c.b16 %v847, %v839
  %v1024 = vpack.c.b16 %v848, %v840
  %v1025 = vpack.c.b16 %v849, %v841
  %v1026 = vpack.c.b16 %v850, %v842
  %v1027 = vpack.c.b16 %v851, %v843
  %v1028 = vpack.c.b16 %v860, %v852
  %v1029 = vpack.c.b16 %v861, %v853
  %v1030 = vpack.c.b16 %v862, %v854
  %v1031 = vpack.c.b16 %v863, %v855
  %v1032 = vpack.c.b16 %v864, %v856
  %v1033 = vpack.c.b16 %v865, %v857
  %v1034 = vpack.c.b16 %v866, %v858
  %v1035 = vpack.c.b16 %v867, %v859
  %v1036 = vpack.c.b16 %v876, %v868
  %v1037 = vpack.c.b16 %v877, %v869
  %v1038 = vpack.c.b16 %v878, %v870
  %v1039 = vpack.c.b16 %v879, %v871
  %v1040 = vpack.c.b16 %v880, %v872
  %v1041 = vpack.c.b16 %v881, %v873
  %v1042 = vpack.c.b16 %v882, %v874
  %v1043 = vpack.c.b16 %v883, %v875
  %v1044 = vpack.c.b16 %v892, %v884
  %v1045 = vpack.c.b16 %v893, %v885
  %v1046 = vpack.c.b16 %v894, %v886
  %v1047 = vpack.c.b16 %v895, %v887
  %v1048 = vpack.c.b16 %v896, %v888
  %v1049 = vpack.c.b16 %v897, %v889
  %v1050 = vpack.c.b16 %v898, %v890
  %v1051 = vpack.c.b16 %v899, %v891
  %v1052 = vpack.c.b16 %v908, %v900
  %v1053 = vpack.c.b16 %v909, %v901
  %v1054 = vpack.c.b16 %v910, %v902
  %v1055 = vpack.c.b16 %v911, %v903
  %v1056 = vpack.c.b16 %v912, %v904
  %v1057 = vpack.c.b16 %v913, %v905
  %v1058 = vpack.c.b16 %v914, %v906
  %v1059 = vpack.c.b16 %v915, %v907
  %v1060 = vpack.c.b16 %v924, %v916
  %v1061 = vpack.c.b16 %v925, %v917
  %v1062 = vpack.c.b16 %v926, %v918
  %v1063 = vpack.c.b16 %v927, %v919
  %v1064 = vpack.c.b16 %v928, %v920
  %v1065 = vpack.c.b16 %v929, %v921
  %v1066 = vpack.c.b16 %v930, %v922
  %v1067 = vpack.c.b16 %v931, %v923
  %v1068 = vpack.c.b16 %v940, %v932
  %v1069 = vpack.c.b16 %v941, %v933
  %v1070 = vpack.c.b16 %v942, %v934
  %v1071 = vpack.c.b16 %v943, %v935
  %v1072 = vpack.c.b16 %v944, %v936
  %v1073 = vpack.c.b16 %v945, %v937
  %v1074 = vpack.c.b16 %v946, %v938
  %v1075 = vpack.c.b16 %v947, %v939
  %1204 = vmatpush.bf16.msra.mxu0 %v1004
  %1205 = vmatpush.bf16.msra.mxu0 %v996
  %1206 = vmatpush.bf16.msra.mxu0 %v988
  %1207 = vmatpush.bf16.msra.mxu0 %v980
  %1208 = vmatpush.bf16.msra.mxu0 %v972
  %1209 = vmatpush.bf16.msra.mxu0 %v964
  %1210 = vmatpush.bf16.msra.mxu0 %v956
  %1211 = vmatpush.bf16.msra.mxu0 %v948
  %1212 = vmatmul.bf16.gmra.mxu0 %v435
  %v1213 = vpop.f32.mrf.mxu0
  %v1214 = vadd.f32 0.0, %v1213
  %v1215 = vpop.f32.mrf.mxu0
  %1216 = vdwg.mxu0
  %1217 = vmatpush.bf16.msra.mxu0 %v1068
  %1218 = vmatpush.bf16.msra.mxu0 %v1060
  %1219 = vmatpush.bf16.msra.mxu0 %v1052
  %1220 = vmatpush.bf16.msra.mxu0 %v1044
  %1221 = vmatpush.bf16.msra.mxu0 %v1036
  %1222 = vmatpush.bf16.msra.mxu0 %v1028
  %1223 = vmatpush.bf16.msra.mxu0 %v1020
  %1224 = vmatpush.bf16.msra.mxu0 %v1012
  %1225 = vmatmul.bf16.gmra.mxu0 %v435
  %v1226 = vpop.f32.mrf.mxu0
  %v1227 = vadd.f32 %v1214, %v1226
  %v1228 = vpop.f32.mrf.mxu0
  %1229 = vdwg.mxu0
  %1230 = vmatpush.bf16.msra.mxu0 %v1005
  %1231 = vmatpush.bf16.msra.mxu0 %v997
  %1232 = vmatpush.bf16.msra.mxu0 %v989
  %1233 = vmatpush.bf16.msra.mxu0 %v981
  %1234 = vmatpush.bf16.msra.mxu0 %v973
  %1235 = vmatpush.bf16.msra.mxu0 %v965
  %1236 = vmatpush.bf16.msra.mxu0 %v957
  %1237 = vmatpush.bf16.msra.mxu0 %v949
  %1238 = vmatmul.bf16.gmra.mxu0 %v435
  %v1239 = vpop.f32.mrf.mxu0
  %v1240 = vadd.f32 0.0, %v1239
  %v1241 = vpop.f32.mrf.mxu0
  %1242 = vdwg.mxu0
  %1243 = vmatpush.bf16.msra.mxu0 %v1069
  %1244 = vmatpush.bf16.msra.mxu0 %v1061
  %1245 = vmatpush.bf16.msra.mxu0 %v1053
  %1246 = vmatpush.bf16.msra.mxu0 %v1045
  %1247 = vmatpush.bf16.msra.mxu0 %v1037
  %1248 = vmatpush.bf16.msra.mxu0 %v1029
  %1249 = vmatpush.bf16.msra.mxu0 %v1021
  %1250 = vmatpush.bf16.msra.mxu0 %v1013
  %1251 = vmatmul.bf16.gmra.mxu0 %v435
  %v1252 = vpop.f32.mrf.mxu0
  %v1253 = vadd.f32 %v1240, %v1252
  %v1254 = vpop.f32.mrf.mxu0
  %1255 = vdwg.mxu0
  %1256 = vmatpush.bf16.msra.mxu0 %v1006
  %1257 = vmatpush.bf16.msra.mxu0 %v998
  %1258 = vmatpush.bf16.msra.mxu0 %v990
  %1259 = vmatpush.bf16.msra.mxu0 %v982
  %1260 = vmatpush.bf16.msra.mxu0 %v974
  %1261 = vmatpush.bf16.msra.mxu0 %v966
  %1262 = vmatpush.bf16.msra.mxu0 %v958
  %1263 = vmatpush.bf16.msra.mxu0 %v950
  %1264 = vmatmul.bf16.gmra.mxu0 %v435
  %v1265 = vpop.f32.mrf.mxu0
  %v1266 = vadd.f32 0.0, %v1265
  %v1267 = vpop.f32.mrf.mxu0
  %1268 = vdwg.mxu0
  %1269 = vmatpush.bf16.msra.mxu0 %v1070
  %1270 = vmatpush.bf16.msra.mxu0 %v1062
  %1271 = vmatpush.bf16.msra.mxu0 %v1054
  %1272 = vmatpush.bf16.msra.mxu0 %v1046
  %1273 = vmatpush.bf16.msra.mxu0 %v1038
  %1274 = vmatpush.bf16.msra.mxu0 %v1030
  %1275 = vmatpush.bf16.msra.mxu0 %v1022
  %1276 = vmatpush.bf16.msra.mxu0 %v1014
  %1277 = vmatmul.bf16.gmra.mxu0 %v435
  %v1278 = vpop.f32.mrf.mxu0
  %v1279 = vadd.f32 %v1266, %v1278
  %v1280 = vpop.f32.mrf.mxu0
  %1281 = vdwg.mxu0
  %1282 = vmatpush.bf16.msra.mxu0 %v1007
  %1283 = vmatpush.bf16.msra.mxu0 %v999
  %1284 = vmatpush.bf16.msra.mxu0 %v991
  %1285 = vmatpush.bf16.msra.mxu0 %v983
  %1286 = vmatpush.bf16.msra.mxu0 %v975
  %1287 = vmatpush.bf16.msra.mxu0 %v967
  %1288 = vmatpush.bf16.msra.mxu0 %v959
  %1289 = vmatpush.bf16.msra.mxu0 %v951
  %1290 = vmatmul.bf16.gmra.mxu0 %v435
  %v1291 = vpop.f32.mrf.mxu0
  %v1292 = vadd.f32 0.0, %v1291
  %v1293 = vpop.f32.mrf.mxu0
  %1294 = vdwg.mxu0
  %1295 = vmatpush.bf16.msra.mxu0 %v1071
  %1296 = vmatpush.bf16.msra.mxu0 %v1063
  %1297 = vmatpush.bf16.msra.mxu0 %v1055
  %1298 = vmatpush.bf16.msra.mxu0 %v1047
  %1299 = vmatpush.bf16.msra.mxu0 %v1039
  %1300 = vmatpush.bf16.msra.mxu0 %v1031
  %1301 = vmatpush.bf16.msra.mxu0 %v1023
  %1302 = vmatpush.bf16.msra.mxu0 %v1015
  %1303 = vmatmul.bf16.gmra.mxu0 %v435
  %v1304 = vpop.f32.mrf.mxu0
  %v1305 = vadd.f32 %v1292, %v1304
  %v1306 = vpop.f32.mrf.mxu0
  %1307 = vdwg.mxu0
  %1308 = vmatpush.bf16.msra.mxu0 %v1008
  %1309 = vmatpush.bf16.msra.mxu0 %v1000
  %1310 = vmatpush.bf16.msra.mxu0 %v992
  %1311 = vmatpush.bf16.msra.mxu0 %v984
  %1312 = vmatpush.bf16.msra.mxu0 %v976
  %1313 = vmatpush.bf16.msra.mxu0 %v968
  %1314 = vmatpush.bf16.msra.mxu0 %v960
  %1315 = vmatpush.bf16.msra.mxu0 %v952
  %1316 = vmatmul.bf16.gmra.mxu0 %v435
  %v1317 = vpop.f32.mrf.mxu0
  %v1318 = vadd.f32 0.0, %v1317
  %v1319 = vpop.f32.mrf.mxu0
  %1320 = vdwg.mxu0
  %1321 = vmatpush.bf16.msra.mxu0 %v1072
  %1322 = vmatpush.bf16.msra.mxu0 %v1064
  %1323 = vmatpush.bf16.msra.mxu0 %v1056
  %1324 = vmatpush.bf16.msra.mxu0 %v1048
  %1325 = vmatpush.bf16.msra.mxu0 %v1040
  %1326 = vmatpush.bf16.msra.mxu0 %v1032
  %1327 = vmatpush.bf16.msra.mxu0 %v1024
  %1328 = vmatpush.bf16.msra.mxu0 %v1016
  %1329 = vmatmul.bf16.gmra.mxu0 %v435
  %v1330 = vpop.f32.mrf.mxu0
  %v1331 = vadd.f32 %v1318, %v1330
  %v1332 = vpop.f32.mrf.mxu0
  %1333 = vdwg.mxu0
  %1334 = vmatpush.bf16.msra.mxu0 %v1009
  %1335 = vmatpush.bf16.msra.mxu0 %v1001
  %1336 = vmatpush.bf16.msra.mxu0 %v993
  %1337 = vmatpush.bf16.msra.mxu0 %v985
  %1338 = vmatpush.bf16.msra.mxu0 %v977
  %1339 = vmatpush.bf16.msra.mxu0 %v969
  %1340 = vmatpush.bf16.msra.mxu0 %v961
  %1341 = vmatpush.bf16.msra.mxu0 %v953
  %1342 = vmatmul.bf16.gmra.mxu0 %v435
  %v1343 = vpop.f32.mrf.mxu0
  %v1344 = vadd.f32 0.0, %v1343
  %v1345 = vpop.f32.mrf.mxu0
  %1346 = vdwg.mxu0
  %1347 = vmatpush.bf16.msra.mxu0 %v1073
  %1348 = vmatpush.bf16.msra.mxu0 %v1065
  %1349 = vmatpush.bf16.msra.mxu0 %v1057
  %1350 = vmatpush.bf16.msra.mxu0 %v1049
  %1351 = vmatpush.bf16.msra.mxu0 %v1041
  %1352 = vmatpush.bf16.msra.mxu0 %v1033
  %1353 = vmatpush.bf16.msra.mxu0 %v1025
  %1354 = vmatpush.bf16.msra.mxu0 %v1017
  %1355 = vmatmul.bf16.gmra.mxu0 %v435
  %v1356 = vpop.f32.mrf.mxu0
  %v1357 = vadd.f32 %v1344, %v1356
  %v1358 = vpop.f32.mrf.mxu0
  %1359 = vdwg.mxu0
  %1360 = vmatpush.bf16.msra.mxu0 %v1010
  %1361 = vmatpush.bf16.msra.mxu0 %v1002
  %1362 = vmatpush.bf16.msra.mxu0 %v994
  %1363 = vmatpush.bf16.msra.mxu0 %v986
  %1364 = vmatpush.bf16.msra.mxu0 %v978
  %1365 = vmatpush.bf16.msra.mxu0 %v970
  %1366 = vmatpush.bf16.msra.mxu0 %v962
  %1367 = vmatpush.bf16.msra.mxu0 %v954
  %1368 = vmatmul.bf16.gmra.mxu0 %v435
  %v1369 = vpop.f32.mrf.mxu0
  %v1370 = vadd.f32 0.0, %v1369
  %v1371 = vpop.f32.mrf.mxu0
  %1372 = vdwg.mxu0
  %1373 = vmatpush.bf16.msra.mxu0 %v1074
  %1374 = vmatpush.bf16.msra.mxu0 %v1066
  %1375 = vmatpush.bf16.msra.mxu0 %v1058
  %1376 = vmatpush.bf16.msra.mxu0 %v1050
  %1377 = vmatpush.bf16.msra.mxu0 %v1042
  %1378 = vmatpush.bf16.msra.mxu0 %v1034
  %1379 = vmatpush.bf16.msra.mxu0 %v1026
  %1380 = vmatpush.bf16.msra.mxu0 %v1018
  %1381 = vmatmul.bf16.gmra.mxu0 %v435
  %v1382 = vpop.f32.mrf.mxu0
  %v1383 = vadd.f32 %v1370, %v1382
  %v1384 = vpop.f32.mrf.mxu0
  %1385 = vdwg.mxu0
  %1386 = vmatpush.bf16.msra.mxu0 %v1011
  %1387 = vmatpush.bf16.msra.mxu0 %v1003
  %1388 = vmatpush.bf16.msra.mxu0 %v995
  %1389 = vmatpush.bf16.msra.mxu0 %v987
  %1390 = vmatpush.bf16.msra.mxu0 %v979
  %1391 = vmatpush.bf16.msra.mxu0 %v971
  %1392 = vmatpush.bf16.msra.mxu0 %v963
  %1393 = vmatpush.bf16.msra.mxu0 %v955
  %1394 = vmatmul.bf16.gmra.mxu0 %v435
  %v1395 = vpop.f32.mrf.mxu0
  %v1396 = vadd.f32 0.0, %v1395
  %v1397 = vpop.f32.mrf.mxu0
  %1398 = vdwg.mxu0
  %1399 = vmatpush.bf16.msra.mxu0 %v1075
  %1400 = vmatpush.bf16.msra.mxu0 %v1067
  %1401 = vmatpush.bf16.msra.mxu0 %v1059
  %1402 = vmatpush.bf16.msra.mxu0 %v1051
  %1403 = vmatpush.bf16.msra.mxu0 %v1043
  %1404 = vmatpush.bf16.msra.mxu0 %v1035
  %1405 = vmatpush.bf16.msra.mxu0 %v1027
  %1406 = vmatpush.bf16.msra.mxu0 %v1019
  %1407 = vmatmul.bf16.gmra.mxu0 %v435
  %v1408 = vpop.f32.mrf.mxu0
  %v1409 = vadd.f32 %v1396, %v1408
  %v1410 = vpop.f32.mrf.mxu0
  %1411 = vdwg.mxu0
  %v1412 = vld [vmem:[#allocation2] sm:$0xff]
  %v1413 = vld [vmem:[#allocation2 + $0x8] sm:$0xff]
  %v1414 = vld [vmem:[#allocation2 + $0x10] sm:$0xff]
  %v1415 = vld [vmem:[#allocation2 + $0x18] sm:$0xff]
  %v1416 = vadd.f32 %v1412, %v1227
  %v1417 = vadd.f32 %v1413, %v1253
  %v1418 = vadd.f32 %v1414, %v1279
  %v1419 = vadd.f32 %v1415, %v1305
  %v1420 = vld [vmem:[#allocation3 + $0xe0] sm:$0xff]
  %v1421 = vld [vmem:[#allocation3 + $0xe8] sm:$0xff]
  %v1422 = vld [vmem:[#allocation3 + $0xf0] sm:$0xff]
  %v1423 = vld [vmem:[#allocation3 + $0xf8] sm:$0xff]
  %v1424 = vadd.f32 %v1420, %v1331
  %v1425 = vadd.f32 %v1421, %v1357
  %v1426 = vadd.f32 %v1422, %v1383
  %v1427 = vadd.f32 %v1423, %v1409
  %v1428 = vxor.u32 %v1416, 2147483648
  %v1429 = vmul.f32 %v1428, 1.442695
  %v1430 = vpow.pop %v1429
  %v1431 = vadd.f32 %v1430, 1.0
  %v1432 = vrcp.pop %v1431
  %v1433 = vmul.f32 %v1431, %v1432
  %v1434 = vsub.f32 1.0, %v1433
  %v1435 = vmul.f32 %v1432, %v1434
  %v1436 = vadd.f32 %v1432, %v1435
  %vm1437 = vweird.f32 %v1431
  %vm1438 = vweird.f32 %v1432
  %vm1439 = vmor %vm1437, %vm1438
  %v1440 = vsel %vm1439, %v1432, %v1436
  %v1441 = vand.u32 2147483647, %v1431
  %vm1442 = vcmp.eq.f32.partialorder %v1441, 8.507059e+37
  %v1443 = vand.u32 %v1431, 2147483648
  %v1444 = vor.u32 1.1754944e-38, %v1443
  %v1445 = vsel %vm1442, %v1444, %v1440
  %v1446 = vmul.f32 1.0, %v1445
  %v1447 = vxor.u32 %v1417, 2147483648
  %v1448 = vmul.f32 %v1447, 1.442695
  %v1449 = vpow.pop %v1448
  %v1450 = vadd.f32 %v1449, 1.0
  %v1451 = vrcp.pop %v1450
  %v1452 = vmul.f32 %v1450, %v1451
  %v1453 = vsub.f32 1.0, %v1452
  %v1454 = vmul.f32 %v1451, %v1453
  %v1455 = vadd.f32 %v1451, %v1454
  %vm1456 = vweird.f32 %v1450
  %vm1457 = vweird.f32 %v1451
  %vm1458 = vmor %vm1456, %vm1457
  %v1459 = vsel %vm1458, %v1451, %v1455
  %v1460 = vand.u32 2147483647, %v1450
  %vm1461 = vcmp.eq.f32.partialorder %v1460, 8.507059e+37
  %v1462 = vand.u32 %v1450, 2147483648
  %v1463 = vor.u32 1.1754944e-38, %v1462
  %v1464 = vsel %vm1461, %v1463, %v1459
  %v1465 = vmul.f32 1.0, %v1464
  %v1466 = vtanh.pop %v1418
  %v1467 = vxor.u32 %v1419, 2147483648
  %v1468 = vmul.f32 %v1467, 1.442695
  %v1469 = vpow.pop %v1468
  %v1470 = vadd.f32 %v1469, 1.0
  %v1471 = vrcp.pop %v1470
  %v1472 = vmul.f32 %v1470, %v1471
  %v1473 = vsub.f32 1.0, %v1472
  %v1474 = vmul.f32 %v1471, %v1473
  %v1475 = vadd.f32 %v1471, %v1474
  %vm1476 = vweird.f32 %v1470
  %vm1477 = vweird.f32 %v1471
  %vm1478 = vmor %vm1476, %vm1477
  %v1479 = vsel %vm1478, %v1471, %v1475
  %v1480 = vand.u32 2147483647, %v1470
  %vm1481 = vcmp.eq.f32.partialorder %v1480, 8.507059e+37
  %v1482 = vand.u32 %v1470, 2147483648
  %v1483 = vor.u32 1.1754944e-38, %v1482
  %v1484 = vsel %vm1481, %v1483, %v1479
  %v1485 = vmul.f32 1.0, %v1484
  %v1486 = vmul.f32 %v1465, 0.0
  %v1487 = vmul.f32 %v1446, %v1466
  %v1488 = vadd.f32 %v1486, %v1487
  %v1489 = vtanh.pop %v1488
  %v1490 = vmul.f32 %v1485, %v1489
  %v1491 = vxor.u32 %v1424, 2147483648
  %v1492 = vmul.f32 %v1491, 1.442695
  %v1493 = vpow.pop %v1492
  %v1494 = vadd.f32 %v1493, 1.0
  %v1495 = vrcp.pop %v1494
  %v1496 = vmul.f32 %v1494, %v1495
  %v1497 = vsub.f32 1.0, %v1496
  %v1498 = vmul.f32 %v1495, %v1497
  %v1499 = vadd.f32 %v1495, %v1498
  %vm1500 = vweird.f32 %v1494
  %vm1501 = vweird.f32 %v1495
  %vm1502 = vmor %vm1500, %vm1501
  %v1503 = vsel %vm1502, %v1495, %v1499
  %v1504 = vand.u32 2147483647, %v1494
  %vm1505 = vcmp.eq.f32.partialorder %v1504, 8.507059e+37
  %v1506 = vand.u32 %v1494, 2147483648
  %v1507 = vor.u32 1.1754944e-38, %v1506
  %v1508 = vsel %vm1505, %v1507, %v1503
  %v1509 = vmul.f32 1.0, %v1508
  %v1510 = vxor.u32 %v1425, 2147483648
  %v1511 = vmul.f32 %v1510, 1.442695
  %v1512 = vpow.pop %v1511
  %v1513 = vadd.f32 %v1512, 1.0
  %v1514 = vrcp.pop %v1513
  %v1515 = vmul.f32 %v1513, %v1514
  %v1516 = vsub.f32 1.0, %v1515
  %v1517 = vmul.f32 %v1514, %v1516
  %v1518 = vadd.f32 %v1514, %v1517
  %vm1519 = vweird.f32 %v1513
  %vm1520 = vweird.f32 %v1514
  %vm1521 = vmor %vm1519, %vm1520
  %v1522 = vsel %vm1521, %v1514, %v1518
  %v1523 = vand.u32 2147483647, %v1513
  %vm1524 = vcmp.eq.f32.partialorder %v1523, 8.507059e+37
  %v1525 = vand.u32 %v1513, 2147483648
  %v1526 = vor.u32 1.1754944e-38, %v1525
  %v1527 = vsel %vm1524, %v1526, %v1522
  %v1528 = vmul.f32 1.0, %v1527
  %v1529 = vtanh.pop %v1426
  %v1530 = vxor.u32 %v1427, 2147483648
  %v1531 = vmul.f32 %v1530, 1.442695
  %v1532 = vpow.pop %v1531
  %v1533 = vadd.f32 %v1532, 1.0
  %v1534 = vrcp.pop %v1533
  %v1535 = vmul.f32 %v1533, %v1534
  %v1536 = vsub.f32 1.0, %v1535
  %v1537 = vmul.f32 %v1534, %v1536
  %v1538 = vadd.f32 %v1534, %v1537
  %vm1539 = vweird.f32 %v1533
  %vm1540 = vweird.f32 %v1534
  %vm1541 = vmor %vm1539, %vm1540
  %v1542 = vsel %vm1541, %v1534, %v1538
  %v1543 = vand.u32 2147483647, %v1533
  %vm1544 = vcmp.eq.f32.partialorder %v1543, 8.507059e+37
  %v1545 = vand.u32 %v1533, 2147483648
  %v1546 = vor.u32 1.1754944e-38, %v1545
  %v1547 = vsel %vm1544, %v1546, %v1542
  %v1548 = vmul.f32 1.0, %v1547
  %v1549 = vmul.f32 %v1528, 0.0
  %v1550 = vmul.f32 %v1509, %v1529
  %v1551 = vadd.f32 %v1549, %v1550
  %v1552 = vtanh.pop %v1551
  %v1553 = vmul.f32 %v1548, %v1552
  %1554 = vst [vmem:[#allocation5] sm:$0xff] %v1490
  %1555 = vst [vmem:[#allocation5 + $0x78] sm:$0xff] %v1553
  %v1556 = vpack.c.bf16 %v1490, %v1490
  %v1557 = vpack.c.bf16 %v1553, %v1553
  %v1558 = vld [vmem:[%s3] sm:$0xff]
  %v1559 = vld [vmem:[%s3 + $0x8] sm:$0xff]
  %v1560 = vld [vmem:[%s3 + $0x10] sm:$0xff]
  %v1561 = vld [vmem:[%s3 + $0x18] sm:$0xff]
  %v1562 = vld [vmem:[%s3 + $0x20] sm:$0xff]
  %v1563 = vld [vmem:[%s3 + $0x28] sm:$0xff]
  %v1564 = vld [vmem:[%s3 + $0x30] sm:$0xff]
  %v1565 = vld [vmem:[%s3 + $0x38] sm:$0xff]
  %v1566 = vld [vmem:[%s3 + $0x40] sm:$0xff]
  %v1567 = vld [vmem:[%s3 + $0x48] sm:$0xff]
  %v1568 = vld [vmem:[%s3 + $0x50] sm:$0xff]
  %v1569 = vld [vmem:[%s3 + $0x58] sm:$0xff]
  %v1570 = vld [vmem:[%s3 + $0x60] sm:$0xff]
  %v1571 = vld [vmem:[%s3 + $0x68] sm:$0xff]
  %v1572 = vld [vmem:[%s3 + $0x70] sm:$0xff]
  %v1573 = vld [vmem:[%s3 + $0x78] sm:$0xff]
  %v1574 = vld [vmem:[%s3 + $0x80] sm:$0xff]
  %v1575 = vld [vmem:[%s3 + $0x88] sm:$0xff]
  %v1576 = vld [vmem:[%s3 + $0x90] sm:$0xff]
  %v1577 = vld [vmem:[%s3 + $0x98] sm:$0xff]
  %v1578 = vld [vmem:[%s3 + $0xa0] sm:$0xff]
  %v1579 = vld [vmem:[%s3 + $0xa8] sm:$0xff]
  %v1580 = vld [vmem:[%s3 + $0xb0] sm:$0xff]
  %v1581 = vld [vmem:[%s3 + $0xb8] sm:$0xff]
  %v1582 = vld [vmem:[%s3 + $0xc0] sm:$0xff]
  %v1583 = vld [vmem:[%s3 + $0xc8] sm:$0xff]
  %v1584 = vld [vmem:[%s3 + $0xd0] sm:$0xff]
  %v1585 = vld [vmem:[%s3 + $0xd8] sm:$0xff]
  %v1586 = vld [vmem:[%s3 + $0xe0] sm:$0xff]
  %v1587 = vld [vmem:[%s3 + $0xe8] sm:$0xff]
  %v1588 = vld [vmem:[%s3 + $0xf0] sm:$0xff]
  %v1589 = vld [vmem:[%s3 + $0xf8] sm:$0xff]
  %v1590 = vld [vmem:[%s3 + $0x100] sm:$0xff]
  %v1591 = vld [vmem:[%s3 + $0x108] sm:$0xff]
  %v1592 = vld [vmem:[%s3 + $0x110] sm:$0xff]
  %v1593 = vld [vmem:[%s3 + $0x118] sm:$0xff]
  %v1594 = vld [vmem:[%s3 + $0x120] sm:$0xff]
  %v1595 = vld [vmem:[%s3 + $0x128] sm:$0xff]
  %v1596 = vld [vmem:[%s3 + $0x130] sm:$0xff]
  %v1597 = vld [vmem:[%s3 + $0x138] sm:$0xff]
  %v1598 = vld [vmem:[%s3 + $0x140] sm:$0xff]
  %v1599 = vld [vmem:[%s3 + $0x148] sm:$0xff]
  %v1600 = vld [vmem:[%s3 + $0x150] sm:$0xff]
  %v1601 = vld [vmem:[%s3 + $0x158] sm:$0xff]
  %v1602 = vld [vmem:[%s3 + $0x160] sm:$0xff]
  %v1603 = vld [vmem:[%s3 + $0x168] sm:$0xff]
  %v1604 = vld [vmem:[%s3 + $0x170] sm:$0xff]
  %v1605 = vld [vmem:[%s3 + $0x178] sm:$0xff]
  %v1606 = vld [vmem:[%s3 + $0x180] sm:$0xff]
  %v1607 = vld [vmem:[%s3 + $0x188] sm:$0xff]
  %v1608 = vld [vmem:[%s3 + $0x190] sm:$0xff]
  %v1609 = vld [vmem:[%s3 + $0x198] sm:$0xff]
  %v1610 = vld [vmem:[%s3 + $0x1a0] sm:$0xff]
  %v1611 = vld [vmem:[%s3 + $0x1a8] sm:$0xff]
  %v1612 = vld [vmem:[%s3 + $0x1b0] sm:$0xff]
  %v1613 = vld [vmem:[%s3 + $0x1b8] sm:$0xff]
  %v1614 = vld [vmem:[%s3 + $0x1c0] sm:$0xff]
  %v1615 = vld [vmem:[%s3 + $0x1c8] sm:$0xff]
  %v1616 = vld [vmem:[%s3 + $0x1d0] sm:$0xff]
  %v1617 = vld [vmem:[%s3 + $0x1d8] sm:$0xff]
  %v1618 = vld [vmem:[%s3 + $0x1e0] sm:$0xff]
  %v1619 = vld [vmem:[%s3 + $0x1e8] sm:$0xff]
  %v1620 = vld [vmem:[%s3 + $0x1f0] sm:$0xff]
  %v1621 = vld [vmem:[%s3 + $0x1f8] sm:$0xff]
  %v1622 = vld [vmem:[%s3 + $0x200] sm:$0xff]
  %v1623 = vld [vmem:[%s3 + $0x208] sm:$0xff]
  %v1624 = vld [vmem:[%s3 + $0x210] sm:$0xff]
  %v1625 = vld [vmem:[%s3 + $0x218] sm:$0xff]
  %v1626 = vld [vmem:[%s3 + $0x220] sm:$0xff]
  %v1627 = vld [vmem:[%s3 + $0x228] sm:$0xff]
  %v1628 = vld [vmem:[%s3 + $0x230] sm:$0xff]
  %v1629 = vld [vmem:[%s3 + $0x238] sm:$0xff]
  %v1630 = vld [vmem:[%s3 + $0x240] sm:$0xff]
  %v1631 = vld [vmem:[%s3 + $0x248] sm:$0xff]
  %v1632 = vld [vmem:[%s3 + $0x250] sm:$0xff]
  %v1633 = vld [vmem:[%s3 + $0x258] sm:$0xff]
  %v1634 = vld [vmem:[%s3 + $0x260] sm:$0xff]
  %v1635 = vld [vmem:[%s3 + $0x268] sm:$0xff]
  %v1636 = vld [vmem:[%s3 + $0x270] sm:$0xff]
  %v1637 = vld [vmem:[%s3 + $0x278] sm:$0xff]
  %v1638 = vld [vmem:[%s3 + $0x280] sm:$0xff]
  %v1639 = vld [vmem:[%s3 + $0x288] sm:$0xff]
  %v1640 = vld [vmem:[%s3 + $0x290] sm:$0xff]
  %v1641 = vld [vmem:[%s3 + $0x298] sm:$0xff]
  %v1642 = vld [vmem:[%s3 + $0x2a0] sm:$0xff]
  %v1643 = vld [vmem:[%s3 + $0x2a8] sm:$0xff]
  %v1644 = vld [vmem:[%s3 + $0x2b0] sm:$0xff]
  %v1645 = vld [vmem:[%s3 + $0x2b8] sm:$0xff]
  %v1646 = vld [vmem:[%s3 + $0x2c0] sm:$0xff]
  %v1647 = vld [vmem:[%s3 + $0x2c8] sm:$0xff]
  %v1648 = vld [vmem:[%s3 + $0x2d0] sm:$0xff]
  %v1649 = vld [vmem:[%s3 + $0x2d8] sm:$0xff]
  %v1650 = vld [vmem:[%s3 + $0x2e0] sm:$0xff]
  %v1651 = vld [vmem:[%s3 + $0x2e8] sm:$0xff]
  %v1652 = vld [vmem:[%s3 + $0x2f0] sm:$0xff]
  %v1653 = vld [vmem:[%s3 + $0x2f8] sm:$0xff]
  %v1654 = vld [vmem:[%s3 + $0x300] sm:$0xff]
  %v1655 = vld [vmem:[%s3 + $0x308] sm:$0xff]
  %v1656 = vld [vmem:[%s3 + $0x310] sm:$0xff]
  %v1657 = vld [vmem:[%s3 + $0x318] sm:$0xff]
  %v1658 = vld [vmem:[%s3 + $0x320] sm:$0xff]
  %v1659 = vld [vmem:[%s3 + $0x328] sm:$0xff]
  %v1660 = vld [vmem:[%s3 + $0x330] sm:$0xff]
  %v1661 = vld [vmem:[%s3 + $0x338] sm:$0xff]
  %v1662 = vld [vmem:[%s3 + $0x340] sm:$0xff]
  %v1663 = vld [vmem:[%s3 + $0x348] sm:$0xff]
  %v1664 = vld [vmem:[%s3 + $0x350] sm:$0xff]
  %v1665 = vld [vmem:[%s3 + $0x358] sm:$0xff]
  %v1666 = vld [vmem:[%s3 + $0x360] sm:$0xff]
  %v1667 = vld [vmem:[%s3 + $0x368] sm:$0xff]
  %v1668 = vld [vmem:[%s3 + $0x370] sm:$0xff]
  %v1669 = vld [vmem:[%s3 + $0x378] sm:$0xff]
  %v1670 = vld [vmem:[%s3 + $0x380] sm:$0xff]
  %v1671 = vld [vmem:[%s3 + $0x388] sm:$0xff]
  %v1672 = vld [vmem:[%s3 + $0x390] sm:$0xff]
  %v1673 = vld [vmem:[%s3 + $0x398] sm:$0xff]
  %v1674 = vld [vmem:[%s3 + $0x3a0] sm:$0xff]
  %v1675 = vld [vmem:[%s3 + $0x3a8] sm:$0xff]
  %v1676 = vld [vmem:[%s3 + $0x3b0] sm:$0xff]
  %v1677 = vld [vmem:[%s3 + $0x3b8] sm:$0xff]
  %v1678 = vld [vmem:[%s3 + $0x3c0] sm:$0xff]
  %v1679 = vld [vmem:[%s3 + $0x3c8] sm:$0xff]
  %v1680 = vld [vmem:[%s3 + $0x3d0] sm:$0xff]
  %v1681 = vld [vmem:[%s3 + $0x3d8] sm:$0xff]
  %v1682 = vld [vmem:[%s3 + $0x3e0] sm:$0xff]
  %v1683 = vld [vmem:[%s3 + $0x3e8] sm:$0xff]
  %v1684 = vld [vmem:[%s3 + $0x3f0] sm:$0xff]
  %v1685 = vld [vmem:[%s3 + $0x3f8] sm:$0xff]
  %v1814 = vunpack.c.l.b16 %v1558
  %v1815 = vunpack.c.h.b16 %v1558
  %v1816 = vunpack.c.l.b16 %v1559
  %v1817 = vunpack.c.h.b16 %v1559
  %v1818 = vunpack.c.l.b16 %v1560
  %v1819 = vunpack.c.h.b16 %v1560
  %v1820 = vunpack.c.l.b16 %v1561
  %v1821 = vunpack.c.h.b16 %v1561
  %v1822 = vunpack.c.l.b16 %v1562
  %v1823 = vunpack.c.h.b16 %v1562
  %v1824 = vunpack.c.l.b16 %v1563
  %v1825 = vunpack.c.h.b16 %v1563
  %v1826 = vunpack.c.l.b16 %v1564
  %v1827 = vunpack.c.h.b16 %v1564
  %v1828 = vunpack.c.l.b16 %v1565
  %v1829 = vunpack.c.h.b16 %v1565
  %v1830 = vunpack.c.l.b16 %v1566
  %v1831 = vunpack.c.h.b16 %v1566
  %v1832 = vunpack.c.l.b16 %v1567
  %v1833 = vunpack.c.h.b16 %v1567
  %v1834 = vunpack.c.l.b16 %v1568
  %v1835 = vunpack.c.h.b16 %v1568
  %v1836 = vunpack.c.l.b16 %v1569
  %v1837 = vunpack.c.h.b16 %v1569
  %v1838 = vunpack.c.l.b16 %v1570
  %v1839 = vunpack.c.h.b16 %v1570
  %v1840 = vunpack.c.l.b16 %v1571
  %v1841 = vunpack.c.h.b16 %v1571
  %v1842 = vunpack.c.l.b16 %v1572
  %v1843 = vunpack.c.h.b16 %v1572
  %v1844 = vunpack.c.l.b16 %v1573
  %v1845 = vunpack.c.h.b16 %v1573
  %v1846 = vunpack.c.l.b16 %v1574
  %v1847 = vunpack.c.h.b16 %v1574
  %v1848 = vunpack.c.l.b16 %v1575
  %v1849 = vunpack.c.h.b16 %v1575
  %v1850 = vunpack.c.l.b16 %v1576
  %v1851 = vunpack.c.h.b16 %v1576
  %v1852 = vunpack.c.l.b16 %v1577
  %v1853 = vunpack.c.h.b16 %v1577
  %v1854 = vunpack.c.l.b16 %v1578
  %v1855 = vunpack.c.h.b16 %v1578
  %v1856 = vunpack.c.l.b16 %v1579
  %v1857 = vunpack.c.h.b16 %v1579
  %v1858 = vunpack.c.l.b16 %v1580
  %v1859 = vunpack.c.h.b16 %v1580
  %v1860 = vunpack.c.l.b16 %v1581
  %v1861 = vunpack.c.h.b16 %v1581
  %v1862 = vunpack.c.l.b16 %v1582
  %v1863 = vunpack.c.h.b16 %v1582
  %v1864 = vunpack.c.l.b16 %v1583
  %v1865 = vunpack.c.h.b16 %v1583
  %v1866 = vunpack.c.l.b16 %v1584
  %v1867 = vunpack.c.h.b16 %v1584
  %v1868 = vunpack.c.l.b16 %v1585
  %v1869 = vunpack.c.h.b16 %v1585
  %v1870 = vunpack.c.l.b16 %v1586
  %v1871 = vunpack.c.h.b16 %v1586
  %v1872 = vunpack.c.l.b16 %v1587
  %v1873 = vunpack.c.h.b16 %v1587
  %v1874 = vunpack.c.l.b16 %v1588
  %v1875 = vunpack.c.h.b16 %v1588
  %v1876 = vunpack.c.l.b16 %v1589
  %v1877 = vunpack.c.h.b16 %v1589
  %v1878 = vunpack.c.l.b16 %v1590
  %v1879 = vunpack.c.h.b16 %v1590
  %v1880 = vunpack.c.l.b16 %v1591
  %v1881 = vunpack.c.h.b16 %v1591
  %v1882 = vunpack.c.l.b16 %v1592
  %v1883 = vunpack.c.h.b16 %v1592
  %v1884 = vunpack.c.l.b16 %v1593
  %v1885 = vunpack.c.h.b16 %v1593
  %v1886 = vunpack.c.l.b16 %v1594
  %v1887 = vunpack.c.h.b16 %v1594
  %v1888 = vunpack.c.l.b16 %v1595
  %v1889 = vunpack.c.h.b16 %v1595
  %v1890 = vunpack.c.l.b16 %v1596
  %v1891 = vunpack.c.h.b16 %v1596
  %v1892 = vunpack.c.l.b16 %v1597
  %v1893 = vunpack.c.h.b16 %v1597
  %v1894 = vunpack.c.l.b16 %v1598
  %v1895 = vunpack.c.h.b16 %v1598
  %v1896 = vunpack.c.l.b16 %v1599
  %v1897 = vunpack.c.h.b16 %v1599
  %v1898 = vunpack.c.l.b16 %v1600
  %v1899 = vunpack.c.h.b16 %v1600
  %v1900 = vunpack.c.l.b16 %v1601
  %v1901 = vunpack.c.h.b16 %v1601
  %v1902 = vunpack.c.l.b16 %v1602
  %v1903 = vunpack.c.h.b16 %v1602
  %v1904 = vunpack.c.l.b16 %v1603
  %v1905 = vunpack.c.h.b16 %v1603
  %v1906 = vunpack.c.l.b16 %v1604
  %v1907 = vunpack.c.h.b16 %v1604
  %v1908 = vunpack.c.l.b16 %v1605
  %v1909 = vunpack.c.h.b16 %v1605
  %v1910 = vunpack.c.l.b16 %v1606
  %v1911 = vunpack.c.h.b16 %v1606
  %v1912 = vunpack.c.l.b16 %v1607
  %v1913 = vunpack.c.h.b16 %v1607
  %v1914 = vunpack.c.l.b16 %v1608
  %v1915 = vunpack.c.h.b16 %v1608
  %v1916 = vunpack.c.l.b16 %v1609
  %v1917 = vunpack.c.h.b16 %v1609
  %v1918 = vunpack.c.l.b16 %v1610
  %v1919 = vunpack.c.h.b16 %v1610
  %v1920 = vunpack.c.l.b16 %v1611
  %v1921 = vunpack.c.h.b16 %v1611
  %v1922 = vunpack.c.l.b16 %v1612
  %v1923 = vunpack.c.h.b16 %v1612
  %v1924 = vunpack.c.l.b16 %v1613
  %v1925 = vunpack.c.h.b16 %v1613
  %v1926 = vunpack.c.l.b16 %v1614
  %v1927 = vunpack.c.h.b16 %v1614
  %v1928 = vunpack.c.l.b16 %v1615
  %v1929 = vunpack.c.h.b16 %v1615
  %v1930 = vunpack.c.l.b16 %v1616
  %v1931 = vunpack.c.h.b16 %v1616
  %v1932 = vunpack.c.l.b16 %v1617
  %v1933 = vunpack.c.h.b16 %v1617
  %v1934 = vunpack.c.l.b16 %v1618
  %v1935 = vunpack.c.h.b16 %v1618
  %v1936 = vunpack.c.l.b16 %v1619
  %v1937 = vunpack.c.h.b16 %v1619
  %v1938 = vunpack.c.l.b16 %v1620
  %v1939 = vunpack.c.h.b16 %v1620
  %v1940 = vunpack.c.l.b16 %v1621
  %v1941 = vunpack.c.h.b16 %v1621
  %v1942 = vunpack.c.l.b16 %v1622
  %v1943 = vunpack.c.h.b16 %v1622
  %v1944 = vunpack.c.l.b16 %v1623
  %v1945 = vunpack.c.h.b16 %v1623
  %v1946 = vunpack.c.l.b16 %v1624
  %v1947 = vunpack.c.h.b16 %v1624
  %v1948 = vunpack.c.l.b16 %v1625
  %v1949 = vunpack.c.h.b16 %v1625
  %v1950 = vunpack.c.l.b16 %v1626
  %v1951 = vunpack.c.h.b16 %v1626
  %v1952 = vunpack.c.l.b16 %v1627
  %v1953 = vunpack.c.h.b16 %v1627
  %v1954 = vunpack.c.l.b16 %v1628
  %v1955 = vunpack.c.h.b16 %v1628
  %v1956 = vunpack.c.l.b16 %v1629
  %v1957 = vunpack.c.h.b16 %v1629
  %v1958 = vunpack.c.l.b16 %v1630
  %v1959 = vunpack.c.h.b16 %v1630
  %v1960 = vunpack.c.l.b16 %v1631
  %v1961 = vunpack.c.h.b16 %v1631
  %v1962 = vunpack.c.l.b16 %v1632
  %v1963 = vunpack.c.h.b16 %v1632
  %v1964 = vunpack.c.l.b16 %v1633
  %v1965 = vunpack.c.h.b16 %v1633
  %v1966 = vunpack.c.l.b16 %v1634
  %v1967 = vunpack.c.h.b16 %v1634
  %v1968 = vunpack.c.l.b16 %v1635
  %v1969 = vunpack.c.h.b16 %v1635
  %v1970 = vunpack.c.l.b16 %v1636
  %v1971 = vunpack.c.h.b16 %v1636
  %v1972 = vunpack.c.l.b16 %v1637
  %v1973 = vunpack.c.h.b16 %v1637
  %v1974 = vunpack.c.l.b16 %v1638
  %v1975 = vunpack.c.h.b16 %v1638
  %v1976 = vunpack.c.l.b16 %v1639
  %v1977 = vunpack.c.h.b16 %v1639
  %v1978 = vunpack.c.l.b16 %v1640
  %v1979 = vunpack.c.h.b16 %v1640
  %v1980 = vunpack.c.l.b16 %v1641
  %v1981 = vunpack.c.h.b16 %v1641
  %v1982 = vunpack.c.l.b16 %v1642
  %v1983 = vunpack.c.h.b16 %v1642
  %v1984 = vunpack.c.l.b16 %v1643
  %v1985 = vunpack.c.h.b16 %v1643
  %v1986 = vunpack.c.l.b16 %v1644
  %v1987 = vunpack.c.h.b16 %v1644
  %v1988 = vunpack.c.l.b16 %v1645
  %v1989 = vunpack.c.h.b16 %v1645
  %v1990 = vunpack.c.l.b16 %v1646
  %v1991 = vunpack.c.h.b16 %v1646
  %v1992 = vunpack.c.l.b16 %v1647
  %v1993 = vunpack.c.h.b16 %v1647
  %v1994 = vunpack.c.l.b16 %v1648
  %v1995 = vunpack.c.h.b16 %v1648
  %v1996 = vunpack.c.l.b16 %v1649
  %v1997 = vunpack.c.h.b16 %v1649
  %v1998 = vunpack.c.l.b16 %v1650
  %v1999 = vunpack.c.h.b16 %v1650
  %v2000 = vunpack.c.l.b16 %v1651
  %v2001 = vunpack.c.h.b16 %v1651
  %v2002 = vunpack.c.l.b16 %v1652
  %v2003 = vunpack.c.h.b16 %v1652
  %v2004 = vunpack.c.l.b16 %v1653
  %v2005 = vunpack.c.h.b16 %v1653
  %v2006 = vunpack.c.l.b16 %v1654
  %v2007 = vunpack.c.h.b16 %v1654
  %v2008 = vunpack.c.l.b16 %v1655
  %v2009 = vunpack.c.h.b16 %v1655
  %v2010 = vunpack.c.l.b16 %v1656
  %v2011 = vunpack.c.h.b16 %v1656
  %v2012 = vunpack.c.l.b16 %v1657
  %v2013 = vunpack.c.h.b16 %v1657
  %v2014 = vunpack.c.l.b16 %v1658
  %v2015 = vunpack.c.h.b16 %v1658
  %v2016 = vunpack.c.l.b16 %v1659
  %v2017 = vunpack.c.h.b16 %v1659
  %v2018 = vunpack.c.l.b16 %v1660
  %v2019 = vunpack.c.h.b16 %v1660
  %v2020 = vunpack.c.l.b16 %v1661
  %v2021 = vunpack.c.h.b16 %v1661
  %v2022 = vunpack.c.l.b16 %v1662
  %v2023 = vunpack.c.h.b16 %v1662
  %v2024 = vunpack.c.l.b16 %v1663
  %v2025 = vunpack.c.h.b16 %v1663
  %v2026 = vunpack.c.l.b16 %v1664
  %v2027 = vunpack.c.h.b16 %v1664
  %v2028 = vunpack.c.l.b16 %v1665
  %v2029 = vunpack.c.h.b16 %v1665
  %v2030 = vunpack.c.l.b16 %v1666
  %v2031 = vunpack.c.h.b16 %v1666
  %v2032 = vunpack.c.l.b16 %v1667
  %v2033 = vunpack.c.h.b16 %v1667
  %v2034 = vunpack.c.l.b16 %v1668
  %v2035 = vunpack.c.h.b16 %v1668
  %v2036 = vunpack.c.l.b16 %v1669
  %v2037 = vunpack.c.h.b16 %v1669
  %v2038 = vunpack.c.l.b16 %v1670
  %v2039 = vunpack.c.h.b16 %v1670
  %v2040 = vunpack.c.l.b16 %v1671
  %v2041 = vunpack.c.h.b16 %v1671
  %v2042 = vunpack.c.l.b16 %v1672
  %v2043 = vunpack.c.h.b16 %v1672
  %v2044 = vunpack.c.l.b16 %v1673
  %v2045 = vunpack.c.h.b16 %v1673
  %v2046 = vunpack.c.l.b16 %v1674
  %v2047 = vunpack.c.h.b16 %v1674
  %v2048 = vunpack.c.l.b16 %v1675
  %v2049 = vunpack.c.h.b16 %v1675
  %v2050 = vunpack.c.l.b16 %v1676
  %v2051 = vunpack.c.h.b16 %v1676
  %v2052 = vunpack.c.l.b16 %v1677
  %v2053 = vunpack.c.h.b16 %v1677
  %v2054 = vunpack.c.l.b16 %v1678
  %v2055 = vunpack.c.h.b16 %v1678
  %v2056 = vunpack.c.l.b16 %v1679
  %v2057 = vunpack.c.h.b16 %v1679
  %v2058 = vunpack.c.l.b16 %v1680
  %v2059 = vunpack.c.h.b16 %v1680
  %v2060 = vunpack.c.l.b16 %v1681
  %v2061 = vunpack.c.h.b16 %v1681
  %v2062 = vunpack.c.l.b16 %v1682
  %v2063 = vunpack.c.h.b16 %v1682
  %v2064 = vunpack.c.l.b16 %v1683
  %v2065 = vunpack.c.h.b16 %v1683
  %v2066 = vunpack.c.l.b16 %v1684
  %v2067 = vunpack.c.h.b16 %v1684
  %v2068 = vunpack.c.l.b16 %v1685
  %v2069 = vunpack.c.h.b16 %v1685
  %v2070 = vpack.c.b16 %v1822, %v1814
  %v2071 = vpack.c.b16 %v1823, %v1815
  %v2072 = vpack.c.b16 %v1824, %v1816
  %v2073 = vpack.c.b16 %v1825, %v1817
  %v2074 = vpack.c.b16 %v1826, %v1818
  %v2075 = vpack.c.b16 %v1827, %v1819
  %v2076 = vpack.c.b16 %v1828, %v1820
  %v2077 = vpack.c.b16 %v1829, %v1821
  %v2078 = vpack.c.b16 %v1838, %v1830
  %v2079 = vpack.c.b16 %v1839, %v1831
  %v2080 = vpack.c.b16 %v1840, %v1832
  %v2081 = vpack.c.b16 %v1841, %v1833
  %v2082 = vpack.c.b16 %v1842, %v1834
  %v2083 = vpack.c.b16 %v1843, %v1835
  %v2084 = vpack.c.b16 %v1844, %v1836
  %v2085 = vpack.c.b16 %v1845, %v1837
  %v2086 = vpack.c.b16 %v1854, %v1846
  %v2087 = vpack.c.b16 %v1855, %v1847
  %v2088 = vpack.c.b16 %v1856, %v1848
  %v2089 = vpack.c.b16 %v1857, %v1849
  %v2090 = vpack.c.b16 %v1858, %v1850
  %v2091 = vpack.c.b16 %v1859, %v1851
  %v2092 = vpack.c.b16 %v1860, %v1852
  %v2093 = vpack.c.b16 %v1861, %v1853
  %v2094 = vpack.c.b16 %v1870, %v1862
  %v2095 = vpack.c.b16 %v1871, %v1863
  %v2096 = vpack.c.b16 %v1872, %v1864
  %v2097 = vpack.c.b16 %v1873, %v1865
  %v2098 = vpack.c.b16 %v1874, %v1866
  %v2099 = vpack.c.b16 %v1875, %v1867
  %v2100 = vpack.c.b16 %v1876, %v1868
  %v2101 = vpack.c.b16 %v1877, %v1869
  %v2102 = vpack.c.b16 %v1886, %v1878
  %v2103 = vpack.c.b16 %v1887, %v1879
  %v2104 = vpack.c.b16 %v1888, %v1880
  %v2105 = vpack.c.b16 %v1889, %v1881
  %v2106 = vpack.c.b16 %v1890, %v1882
  %v2107 = vpack.c.b16 %v1891, %v1883
  %v2108 = vpack.c.b16 %v1892, %v1884
  %v2109 = vpack.c.b16 %v1893, %v1885
  %v2110 = vpack.c.b16 %v1902, %v1894
  %v2111 = vpack.c.b16 %v1903, %v1895
  %v2112 = vpack.c.b16 %v1904, %v1896
  %v2113 = vpack.c.b16 %v1905, %v1897
  %v2114 = vpack.c.b16 %v1906, %v1898
  %v2115 = vpack.c.b16 %v1907, %v1899
  %v2116 = vpack.c.b16 %v1908, %v1900
  %v2117 = vpack.c.b16 %v1909, %v1901
  %v2118 = vpack.c.b16 %v1918, %v1910
  %v2119 = vpack.c.b16 %v1919, %v1911
  %v2120 = vpack.c.b16 %v1920, %v1912
  %v2121 = vpack.c.b16 %v1921, %v1913
  %v2122 = vpack.c.b16 %v1922, %v1914
  %v2123 = vpack.c.b16 %v1923, %v1915
  %v2124 = vpack.c.b16 %v1924, %v1916
  %v2125 = vpack.c.b16 %v1925, %v1917
  %v2126 = vpack.c.b16 %v1934, %v1926
  %v2127 = vpack.c.b16 %v1935, %v1927
  %v2128 = vpack.c.b16 %v1936, %v1928
  %v2129 = vpack.c.b16 %v1937, %v1929
  %v2130 = vpack.c.b16 %v1938, %v1930
  %v2131 = vpack.c.b16 %v1939, %v1931
  %v2132 = vpack.c.b16 %v1940, %v1932
  %v2133 = vpack.c.b16 %v1941, %v1933
  %v2134 = vpack.c.b16 %v1950, %v1942
  %v2135 = vpack.c.b16 %v1951, %v1943
  %v2136 = vpack.c.b16 %v1952, %v1944
  %v2137 = vpack.c.b16 %v1953, %v1945
  %v2138 = vpack.c.b16 %v1954, %v1946
  %v2139 = vpack.c.b16 %v1955, %v1947
  %v2140 = vpack.c.b16 %v1956, %v1948
  %v2141 = vpack.c.b16 %v1957, %v1949
  %v2142 = vpack.c.b16 %v1966, %v1958
  %v2143 = vpack.c.b16 %v1967, %v1959
  %v2144 = vpack.c.b16 %v1968, %v1960
  %v2145 = vpack.c.b16 %v1969, %v1961
  %v2146 = vpack.c.b16 %v1970, %v1962
  %v2147 = vpack.c.b16 %v1971, %v1963
  %v2148 = vpack.c.b16 %v1972, %v1964
  %v2149 = vpack.c.b16 %v1973, %v1965
  %v2150 = vpack.c.b16 %v1982, %v1974
  %v2151 = vpack.c.b16 %v1983, %v1975
  %v2152 = vpack.c.b16 %v1984, %v1976
  %v2153 = vpack.c.b16 %v1985, %v1977
  %v2154 = vpack.c.b16 %v1986, %v1978
  %v2155 = vpack.c.b16 %v1987, %v1979
  %v2156 = vpack.c.b16 %v1988, %v1980
  %v2157 = vpack.c.b16 %v1989, %v1981
  %v2158 = vpack.c.b16 %v1998, %v1990
  %v2159 = vpack.c.b16 %v1999, %v1991
  %v2160 = vpack.c.b16 %v2000, %v1992
  %v2161 = vpack.c.b16 %v2001, %v1993
  %v2162 = vpack.c.b16 %v2002, %v1994
  %v2163 = vpack.c.b16 %v2003, %v1995
  %v2164 = vpack.c.b16 %v2004, %v1996
  %v2165 = vpack.c.b16 %v2005, %v1997
  %v2166 = vpack.c.b16 %v2014, %v2006
  %v2167 = vpack.c.b16 %v2015, %v2007
  %v2168 = vpack.c.b16 %v2016, %v2008
  %v2169 = vpack.c.b16 %v2017, %v2009
  %v2170 = vpack.c.b16 %v2018, %v2010
  %v2171 = vpack.c.b16 %v2019, %v2011
  %v2172 = vpack.c.b16 %v2020, %v2012
  %v2173 = vpack.c.b16 %v2021, %v2013
  %v2174 = vpack.c.b16 %v2030, %v2022
  %v2175 = vpack.c.b16 %v2031, %v2023
  %v2176 = vpack.c.b16 %v2032, %v2024
  %v2177 = vpack.c.b16 %v2033, %v2025
  %v2178 = vpack.c.b16 %v2034, %v2026
  %v2179 = vpack.c.b16 %v2035, %v2027
  %v2180 = vpack.c.b16 %v2036, %v2028
  %v2181 = vpack.c.b16 %v2037, %v2029
  %v2182 = vpack.c.b16 %v2046, %v2038
  %v2183 = vpack.c.b16 %v2047, %v2039
  %v2184 = vpack.c.b16 %v2048, %v2040
  %v2185 = vpack.c.b16 %v2049, %v2041
  %v2186 = vpack.c.b16 %v2050, %v2042
  %v2187 = vpack.c.b16 %v2051, %v2043
  %v2188 = vpack.c.b16 %v2052, %v2044
  %v2189 = vpack.c.b16 %v2053, %v2045
  %v2190 = vpack.c.b16 %v2062, %v2054
  %v2191 = vpack.c.b16 %v2063, %v2055
  %v2192 = vpack.c.b16 %v2064, %v2056
  %v2193 = vpack.c.b16 %v2065, %v2057
  %v2194 = vpack.c.b16 %v2066, %v2058
  %v2195 = vpack.c.b16 %v2067, %v2059
  %v2196 = vpack.c.b16 %v2068, %v2060
  %v2197 = vpack.c.b16 %v2069, %v2061
  %2326 = vmatpush.bf16.msra.mxu0 %v2126
  %2327 = vmatpush.bf16.msra.mxu0 %v2118
  %2328 = vmatpush.bf16.msra.mxu0 %v2110
  %2329 = vmatpush.bf16.msra.mxu0 %v2102
  %2330 = vmatpush.bf16.msra.mxu0 %v2094
  %2331 = vmatpush.bf16.msra.mxu0 %v2086
  %2332 = vmatpush.bf16.msra.mxu0 %v2078
  %2333 = vmatpush.bf16.msra.mxu0 %v2070
  %2334 = vmatmul.bf16.gmra.mxu0 %v1556
  %v2335 = vpop.f32.mrf.mxu0
  %v2336 = vadd.f32 0.0, %v2335
  %v2337 = vpop.f32.mrf.mxu0
  %2338 = vdwg.mxu0
  %2339 = vmatpush.bf16.msra.mxu0 %v2190
  %2340 = vmatpush.bf16.msra.mxu0 %v2182
  %2341 = vmatpush.bf16.msra.mxu0 %v2174
  %2342 = vmatpush.bf16.msra.mxu0 %v2166
  %2343 = vmatpush.bf16.msra.mxu0 %v2158
  %2344 = vmatpush.bf16.msra.mxu0 %v2150
  %2345 = vmatpush.bf16.msra.mxu0 %v2142
  %2346 = vmatpush.bf16.msra.mxu0 %v2134
  %2347 = vmatmul.bf16.gmra.mxu0 %v1557
  %v2348 = vpop.f32.mrf.mxu0
  %v2349 = vadd.f32 %v2336, %v2348
  %v2350 = vpop.f32.mrf.mxu0
  %2351 = vdwg.mxu0
  %2352 = vmatpush.bf16.msra.mxu0 %v2127
  %2353 = vmatpush.bf16.msra.mxu0 %v2119
  %2354 = vmatpush.bf16.msra.mxu0 %v2111
  %2355 = vmatpush.bf16.msra.mxu0 %v2103
  %2356 = vmatpush.bf16.msra.mxu0 %v2095
  %2357 = vmatpush.bf16.msra.mxu0 %v2087
  %2358 = vmatpush.bf16.msra.mxu0 %v2079
  %2359 = vmatpush.bf16.msra.mxu0 %v2071
  %2360 = vmatmul.bf16.gmra.mxu0 %v1556
  %v2361 = vpop.f32.mrf.mxu0
  %v2362 = vadd.f32 0.0, %v2361
  %v2363 = vpop.f32.mrf.mxu0
  %2364 = vdwg.mxu0
  %2365 = vmatpush.bf16.msra.mxu0 %v2191
  %2366 = vmatpush.bf16.msra.mxu0 %v2183
  %2367 = vmatpush.bf16.msra.mxu0 %v2175
  %2368 = vmatpush.bf16.msra.mxu0 %v2167
  %2369 = vmatpush.bf16.msra.mxu0 %v2159
  %2370 = vmatpush.bf16.msra.mxu0 %v2151
  %2371 = vmatpush.bf16.msra.mxu0 %v2143
  %2372 = vmatpush.bf16.msra.mxu0 %v2135
  %2373 = vmatmul.bf16.gmra.mxu0 %v1557
  %v2374 = vpop.f32.mrf.mxu0
  %v2375 = vadd.f32 %v2362, %v2374
  %v2376 = vpop.f32.mrf.mxu0
  %2377 = vdwg.mxu0
  %2378 = vmatpush.bf16.msra.mxu0 %v2128
  %2379 = vmatpush.bf16.msra.mxu0 %v2120
  %2380 = vmatpush.bf16.msra.mxu0 %v2112
  %2381 = vmatpush.bf16.msra.mxu0 %v2104
  %2382 = vmatpush.bf16.msra.mxu0 %v2096
  %2383 = vmatpush.bf16.msra.mxu0 %v2088
  %2384 = vmatpush.bf16.msra.mxu0 %v2080
  %2385 = vmatpush.bf16.msra.mxu0 %v2072
  %2386 = vmatmul.bf16.gmra.mxu0 %v1556
  %v2387 = vpop.f32.mrf.mxu0
  %v2388 = vadd.f32 0.0, %v2387
  %v2389 = vpop.f32.mrf.mxu0
  %2390 = vdwg.mxu0
  %2391 = vmatpush.bf16.msra.mxu0 %v2192
  %2392 = vmatpush.bf16.msra.mxu0 %v2184
  %2393 = vmatpush.bf16.msra.mxu0 %v2176
  %2394 = vmatpush.bf16.msra.mxu0 %v2168
  %2395 = vmatpush.bf16.msra.mxu0 %v2160
  %2396 = vmatpush.bf16.msra.mxu0 %v2152
  %2397 = vmatpush.bf16.msra.mxu0 %v2144
  %2398 = vmatpush.bf16.msra.mxu0 %v2136
  %2399 = vmatmul.bf16.gmra.mxu0 %v1557
  %v2400 = vpop.f32.mrf.mxu0
  %v2401 = vadd.f32 %v2388, %v2400
  %v2402 = vpop.f32.mrf.mxu0
  %2403 = vdwg.mxu0
  %2404 = vmatpush.bf16.msra.mxu0 %v2129
  %2405 = vmatpush.bf16.msra.mxu0 %v2121
  %2406 = vmatpush.bf16.msra.mxu0 %v2113
  %2407 = vmatpush.bf16.msra.mxu0 %v2105
  %2408 = vmatpush.bf16.msra.mxu0 %v2097
  %2409 = vmatpush.bf16.msra.mxu0 %v2089
  %2410 = vmatpush.bf16.msra.mxu0 %v2081
  %2411 = vmatpush.bf16.msra.mxu0 %v2073
  %2412 = vmatmul.bf16.gmra.mxu0 %v1556
  %v2413 = vpop.f32.mrf.mxu0
  %v2414 = vadd.f32 0.0, %v2413
  %v2415 = vpop.f32.mrf.mxu0
  %2416 = vdwg.mxu0
  %2417 = vmatpush.bf16.msra.mxu0 %v2193
  %2418 = vmatpush.bf16.msra.mxu0 %v2185
  %2419 = vmatpush.bf16.msra.mxu0 %v2177
  %2420 = vmatpush.bf16.msra.mxu0 %v2169
  %2421 = vmatpush.bf16.msra.mxu0 %v2161
  %2422 = vmatpush.bf16.msra.mxu0 %v2153
  %2423 = vmatpush.bf16.msra.mxu0 %v2145
  %2424 = vmatpush.bf16.msra.mxu0 %v2137
  %2425 = vmatmul.bf16.gmra.mxu0 %v1557
  %v2426 = vpop.f32.mrf.mxu0
  %v2427 = vadd.f32 %v2414, %v2426
  %v2428 = vpop.f32.mrf.mxu0
  %2429 = vdwg.mxu0
  %2430 = vmatpush.bf16.msra.mxu0 %v2130
  %2431 = vmatpush.bf16.msra.mxu0 %v2122
  %2432 = vmatpush.bf16.msra.mxu0 %v2114
  %2433 = vmatpush.bf16.msra.mxu0 %v2106
  %2434 = vmatpush.bf16.msra.mxu0 %v2098
  %2435 = vmatpush.bf16.msra.mxu0 %v2090
  %2436 = vmatpush.bf16.msra.mxu0 %v2082
  %2437 = vmatpush.bf16.msra.mxu0 %v2074
  %2438 = vmatmul.bf16.gmra.mxu0 %v1556
  %v2439 = vpop.f32.mrf.mxu0
  %v2440 = vadd.f32 0.0, %v2439
  %v2441 = vpop.f32.mrf.mxu0
  %2442 = vdwg.mxu0
  %2443 = vmatpush.bf16.msra.mxu0 %v2194
  %2444 = vmatpush.bf16.msra.mxu0 %v2186
  %2445 = vmatpush.bf16.msra.mxu0 %v2178
  %2446 = vmatpush.bf16.msra.mxu0 %v2170
  %2447 = vmatpush.bf16.msra.mxu0 %v2162
  %2448 = vmatpush.bf16.msra.mxu0 %v2154
  %2449 = vmatpush.bf16.msra.mxu0 %v2146
  %2450 = vmatpush.bf16.msra.mxu0 %v2138
  %2451 = vmatmul.bf16.gmra.mxu0 %v1557
  %v2452 = vpop.f32.mrf.mxu0
  %v2453 = vadd.f32 %v2440, %v2452
  %v2454 = vpop.f32.mrf.mxu0
  %2455 = vdwg.mxu0
  %2456 = vmatpush.bf16.msra.mxu0 %v2131
  %2457 = vmatpush.bf16.msra.mxu0 %v2123
  %2458 = vmatpush.bf16.msra.mxu0 %v2115
  %2459 = vmatpush.bf16.msra.mxu0 %v2107
  %2460 = vmatpush.bf16.msra.mxu0 %v2099
  %2461 = vmatpush.bf16.msra.mxu0 %v2091
  %2462 = vmatpush.bf16.msra.mxu0 %v2083
  %2463 = vmatpush.bf16.msra.mxu0 %v2075
  %2464 = vmatmul.bf16.gmra.mxu0 %v1556
  %v2465 = vpop.f32.mrf.mxu0
  %v2466 = vadd.f32 0.0, %v2465
  %v2467 = vpop.f32.mrf.mxu0
  %2468 = vdwg.mxu0
  %2469 = vmatpush.bf16.msra.mxu0 %v2195
  %2470 = vmatpush.bf16.msra.mxu0 %v2187
  %2471 = vmatpush.bf16.msra.mxu0 %v2179
  %2472 = vmatpush.bf16.msra.mxu0 %v2171
  %2473 = vmatpush.bf16.msra.mxu0 %v2163
  %2474 = vmatpush.bf16.msra.mxu0 %v2155
  %2475 = vmatpush.bf16.msra.mxu0 %v2147
  %2476 = vmatpush.bf16.msra.mxu0 %v2139
  %2477 = vmatmul.bf16.gmra.mxu0 %v1557
  %v2478 = vpop.f32.mrf.mxu0
  %v2479 = vadd.f32 %v2466, %v2478
  %v2480 = vpop.f32.mrf.mxu0
  %2481 = vdwg.mxu0
  %2482 = vmatpush.bf16.msra.mxu0 %v2132
  %2483 = vmatpush.bf16.msra.mxu0 %v2124
  %2484 = vmatpush.bf16.msra.mxu0 %v2116
  %2485 = vmatpush.bf16.msra.mxu0 %v2108
  %2486 = vmatpush.bf16.msra.mxu0 %v2100
  %2487 = vmatpush.bf16.msra.mxu0 %v2092
  %2488 = vmatpush.bf16.msra.mxu0 %v2084
  %2489 = vmatpush.bf16.msra.mxu0 %v2076
  %2490 = vmatmul.bf16.gmra.mxu0 %v1556
  %v2491 = vpop.f32.mrf.mxu0
  %v2492 = vadd.f32 0.0, %v2491
  %v2493 = vpop.f32.mrf.mxu0
  %2494 = vdwg.mxu0
  %2495 = vmatpush.bf16.msra.mxu0 %v2196
  %2496 = vmatpush.bf16.msra.mxu0 %v2188
  %2497 = vmatpush.bf16.msra.mxu0 %v2180
  %2498 = vmatpush.bf16.msra.mxu0 %v2172
  %2499 = vmatpush.bf16.msra.mxu0 %v2164
  %2500 = vmatpush.bf16.msra.mxu0 %v2156
  %2501 = vmatpush.bf16.msra.mxu0 %v2148
  %2502 = vmatpush.bf16.msra.mxu0 %v2140
  %2503 = vmatmul.bf16.gmra.mxu0 %v1557
  %v2504 = vpop.f32.mrf.mxu0
  %v2505 = vadd.f32 %v2492, %v2504
  %v2506 = vpop.f32.mrf.mxu0
  %2507 = vdwg.mxu0
  %2508 = vmatpush.bf16.msra.mxu0 %v2133
  %2509 = vmatpush.bf16.msra.mxu0 %v2125
  %2510 = vmatpush.bf16.msra.mxu0 %v2117
  %2511 = vmatpush.bf16.msra.mxu0 %v2109
  %2512 = vmatpush.bf16.msra.mxu0 %v2101
  %2513 = vmatpush.bf16.msra.mxu0 %v2093
  %2514 = vmatpush.bf16.msra.mxu0 %v2085
  %2515 = vmatpush.bf16.msra.mxu0 %v2077
  %2516 = vmatmul.bf16.gmra.mxu0 %v1556
  %v2517 = vpop.f32.mrf.mxu0
  %v2518 = vadd.f32 0.0, %v2517
  %v2519 = vpop.f32.mrf.mxu0
  %2520 = vdwg.mxu0
  %2521 = vmatpush.bf16.msra.mxu0 %v2197
  %2522 = vmatpush.bf16.msra.mxu0 %v2189
  %2523 = vmatpush.bf16.msra.mxu0 %v2181
  %2524 = vmatpush.bf16.msra.mxu0 %v2173
  %2525 = vmatpush.bf16.msra.mxu0 %v2165
  %2526 = vmatpush.bf16.msra.mxu0 %v2157
  %2527 = vmatpush.bf16.msra.mxu0 %v2149
  %2528 = vmatpush.bf16.msra.mxu0 %v2141
  %2529 = vmatmul.bf16.gmra.mxu0 %v1557
  %v2530 = vpop.f32.mrf.mxu0
  %v2531 = vadd.f32 %v2518, %v2530
  %v2532 = vpop.f32.mrf.mxu0
  %2533 = vdwg.mxu0
  %v2534 = vld [vmem:[#allocation2 + $0x20] sm:$0xff]
  %v2535 = vld [vmem:[#allocation2 + $0x28] sm:$0xff]
  %v2536 = vld [vmem:[#allocation2 + $0x30] sm:$0xff]
  %v2537 = vld [vmem:[#allocation2 + $0x38] sm:$0xff]
  %v2538 = vadd.f32 %v2534, %v2349
  %v2539 = vadd.f32 %v2535, %v2375
  %v2540 = vadd.f32 %v2536, %v2401
  %v2541 = vadd.f32 %v2537, %v2427
  %v2542 = vld [vmem:[#allocation3 + $0xc0] sm:$0xff]
  %v2543 = vld [vmem:[#allocation3 + $0xc8] sm:$0xff]
  %v2544 = vld [vmem:[#allocation3 + $0xd0] sm:$0xff]
  %v2545 = vld [vmem:[#allocation3 + $0xd8] sm:$0xff]
  %v2546 = vadd.f32 %v2542, %v2453
  %v2547 = vadd.f32 %v2543, %v2479
  %v2548 = vadd.f32 %v2544, %v2505
  %v2549 = vadd.f32 %v2545, %v2531
  %v2550 = vxor.u32 %v2538, 2147483648
  %v2551 = vmul.f32 %v2550, 1.442695
  %v2552 = vpow.pop %v2551
  %v2553 = vadd.f32 %v2552, 1.0
  %v2554 = vrcp.pop %v2553
  %v2555 = vmul.f32 %v2553, %v2554
  %v2556 = vsub.f32 1.0, %v2555
  %v2557 = vmul.f32 %v2554, %v2556
  %v2558 = vadd.f32 %v2554, %v2557
  %vm2559 = vweird.f32 %v2553
  %vm2560 = vweird.f32 %v2554
  %vm2561 = vmor %vm2559, %vm2560
  %v2562 = vsel %vm2561, %v2554, %v2558
  %v2563 = vand.u32 2147483647, %v2553
  %vm2564 = vcmp.eq.f32.partialorder %v2563, 8.507059e+37
  %v2565 = vand.u32 %v2553, 2147483648
  %v2566 = vor.u32 1.1754944e-38, %v2565
  %v2567 = vsel %vm2564, %v2566, %v2562
  %v2568 = vmul.f32 1.0, %v2567
  %v2569 = vxor.u32 %v2539, 2147483648
  %v2570 = vmul.f32 %v2569, 1.442695
  %v2571 = vpow.pop %v2570
  %v2572 = vadd.f32 %v2571, 1.0
  %v2573 = vrcp.pop %v2572
  %v2574 = vmul.f32 %v2572, %v2573
  %v2575 = vsub.f32 1.0, %v2574
  %v2576 = vmul.f32 %v2573, %v2575
  %v2577 = vadd.f32 %v2573, %v2576
  %vm2578 = vweird.f32 %v2572
  %vm2579 = vweird.f32 %v2573
  %vm2580 = vmor %vm2578, %vm2579
  %v2581 = vsel %vm2580, %v2573, %v2577
  %v2582 = vand.u32 2147483647, %v2572
  %vm2583 = vcmp.eq.f32.partialorder %v2582, 8.507059e+37
  %v2584 = vand.u32 %v2572, 2147483648
  %v2585 = vor.u32 1.1754944e-38, %v2584
  %v2586 = vsel %vm2583, %v2585, %v2581
  %v2587 = vmul.f32 1.0, %v2586
  %v2588 = vtanh.pop %v2540
  %v2589 = vxor.u32 %v2541, 2147483648
  %v2590 = vmul.f32 %v2589, 1.442695
  %v2591 = vpow.pop %v2590
  %v2592 = vadd.f32 %v2591, 1.0
  %v2593 = vrcp.pop %v2592
  %v2594 = vmul.f32 %v2592, %v2593
  %v2595 = vsub.f32 1.0, %v2594
  %v2596 = vmul.f32 %v2593, %v2595
  %v2597 = vadd.f32 %v2593, %v2596
  %vm2598 = vweird.f32 %v2592
  %vm2599 = vweird.f32 %v2593
  %vm2600 = vmor %vm2598, %vm2599
  %v2601 = vsel %vm2600, %v2593, %v2597
  %v2602 = vand.u32 2147483647, %v2592
  %vm2603 = vcmp.eq.f32.partialorder %v2602, 8.507059e+37
  %v2604 = vand.u32 %v2592, 2147483648
  %v2605 = vor.u32 1.1754944e-38, %v2604
  %v2606 = vsel %vm2603, %v2605, %v2601
  %v2607 = vmul.f32 1.0, %v2606
  %v2608 = vmul.f32 %v2587, %v1488
  %v2609 = vmul.f32 %v2568, %v2588
  %v2610 = vadd.f32 %v2608, %v2609
  %v2611 = vtanh.pop %v2610
  %v2612 = vmul.f32 %v2607, %v2611
  %v2613 = vxor.u32 %v2546, 2147483648
  %v2614 = vmul.f32 %v2613, 1.442695
  %v2615 = vpow.pop %v2614
  %v2616 = vadd.f32 %v2615, 1.0
  %v2617 = vrcp.pop %v2616
  %v2618 = vmul.f32 %v2616, %v2617
  %v2619 = vsub.f32 1.0, %v2618
  %v2620 = vmul.f32 %v2617, %v2619
  %v2621 = vadd.f32 %v2617, %v2620
  %vm2622 = vweird.f32 %v2616
  %vm2623 = vweird.f32 %v2617
  %vm2624 = vmor %vm2622, %vm2623
  %v2625 = vsel %vm2624, %v2617, %v2621
  %v2626 = vand.u32 2147483647, %v2616
  %vm2627 = vcmp.eq.f32.partialorder %v2626, 8.507059e+37
  %v2628 = vand.u32 %v2616, 2147483648
  %v2629 = vor.u32 1.1754944e-38, %v2628
  %v2630 = vsel %vm2627, %v2629, %v2625
  %v2631 = vmul.f32 1.0, %v2630
  %v2632 = vxor.u32 %v2547, 2147483648
  %v2633 = vmul.f32 %v2632, 1.442695
  %v2634 = vpow.pop %v2633
  %v2635 = vadd.f32 %v2634, 1.0
  %v2636 = vrcp.pop %v2635
  %v2637 = vmul.f32 %v2635, %v2636
  %v2638 = vsub.f32 1.0, %v2637
  %v2639 = vmul.f32 %v2636, %v2638
  %v2640 = vadd.f32 %v2636, %v2639
  %vm2641 = vweird.f32 %v2635
  %vm2642 = vweird.f32 %v2636
  %vm2643 = vmor %vm2641, %vm2642
  %v2644 = vsel %vm2643, %v2636, %v2640
  %v2645 = vand.u32 2147483647, %v2635
  %vm2646 = vcmp.eq.f32.partialorder %v2645, 8.507059e+37
  %v2647 = vand.u32 %v2635, 2147483648
  %v2648 = vor.u32 1.1754944e-38, %v2647
  %v2649 = vsel %vm2646, %v2648, %v2644
  %v2650 = vmul.f32 1.0, %v2649
  %v2651 = vtanh.pop %v2548
  %v2652 = vxor.u32 %v2549, 2147483648
  %v2653 = vmul.f32 %v2652, 1.442695
  %v2654 = vpow.pop %v2653
  %v2655 = vadd.f32 %v2654, 1.0
  %v2656 = vrcp.pop %v2655
  %v2657 = vmul.f32 %v2655, %v2656
  %v2658 = vsub.f32 1.0, %v2657
  %v2659 = vmul.f32 %v2656, %v2658
  %v2660 = vadd.f32 %v2656, %v2659
  %vm2661 = vweird.f32 %v2655
  %vm2662 = vweird.f32 %v2656
  %vm2663 = vmor %vm2661, %vm2662
  %v2664 = vsel %vm2663, %v2656, %v2660
  %v2665 = vand.u32 2147483647, %v2655
  %vm2666 = vcmp.eq.f32.partialorder %v2665, 8.507059e+37
  %v2667 = vand.u32 %v2655, 2147483648
  %v2668 = vor.u32 1.1754944e-38, %v2667
  %v2669 = vsel %vm2666, %v2668, %v2664
  %v2670 = vmul.f32 1.0, %v2669
  %v2671 = vmul.f32 %v2650, %v1551
  %v2672 = vmul.f32 %v2631, %v2651
  %v2673 = vadd.f32 %v2671, %v2672
  %v2674 = vtanh.pop %v2673
  %v2675 = vmul.f32 %v2670, %v2674
  %2676 = vst [vmem:[#allocation5 + $0x10] sm:$0xff] %v2612
  %2677 = vst [vmem:[#allocation5 + $0x68] sm:$0xff] %v2675
  %v2678 = vpack.c.bf16 %v2612, %v2612
  %v2679 = vpack.c.bf16 %v2675, %v2675
  %v2680 = vld [vmem:[%s3] sm:$0xff]
  %v2681 = vld [vmem:[%s3 + $0x8] sm:$0xff]
  %v2682 = vld [vmem:[%s3 + $0x10] sm:$0xff]
  %v2683 = vld [vmem:[%s3 + $0x18] sm:$0xff]
  %v2684 = vld [vmem:[%s3 + $0x20] sm:$0xff]
  %v2685 = vld [vmem:[%s3 + $0x28] sm:$0xff]
  %v2686 = vld [vmem:[%s3 + $0x30] sm:$0xff]
  %v2687 = vld [vmem:[%s3 + $0x38] sm:$0xff]
  %v2688 = vld [vmem:[%s3 + $0x40] sm:$0xff]
  %v2689 = vld [vmem:[%s3 + $0x48] sm:$0xff]
  %v2690 = vld [vmem:[%s3 + $0x50] sm:$0xff]
  %v2691 = vld [vmem:[%s3 + $0x58] sm:$0xff]
  %v2692 = vld [vmem:[%s3 + $0x60] sm:$0xff]
  %v2693 = vld [vmem:[%s3 + $0x68] sm:$0xff]
  %v2694 = vld [vmem:[%s3 + $0x70] sm:$0xff]
  %v2695 = vld [vmem:[%s3 + $0x78] sm:$0xff]
  %v2696 = vld [vmem:[%s3 + $0x80] sm:$0xff]
  %v2697 = vld [vmem:[%s3 + $0x88] sm:$0xff]
  %v2698 = vld [vmem:[%s3 + $0x90] sm:$0xff]
  %v2699 = vld [vmem:[%s3 + $0x98] sm:$0xff]
  %v2700 = vld [vmem:[%s3 + $0xa0] sm:$0xff]
  %v2701 = vld [vmem:[%s3 + $0xa8] sm:$0xff]
  %v2702 = vld [vmem:[%s3 + $0xb0] sm:$0xff]
  %v2703 = vld [vmem:[%s3 + $0xb8] sm:$0xff]
  %v2704 = vld [vmem:[%s3 + $0xc0] sm:$0xff]
  %v2705 = vld [vmem:[%s3 + $0xc8] sm:$0xff]
  %v2706 = vld [vmem:[%s3 + $0xd0] sm:$0xff]
  %v2707 = vld [vmem:[%s3 + $0xd8] sm:$0xff]
  %v2708 = vld [vmem:[%s3 + $0xe0] sm:$0xff]
  %v2709 = vld [vmem:[%s3 + $0xe8] sm:$0xff]
  %v2710 = vld [vmem:[%s3 + $0xf0] sm:$0xff]
  %v2711 = vld [vmem:[%s3 + $0xf8] sm:$0xff]
  %v2712 = vld [vmem:[%s3 + $0x100] sm:$0xff]
  %v2713 = vld [vmem:[%s3 + $0x108] sm:$0xff]
  %v2714 = vld [vmem:[%s3 + $0x110] sm:$0xff]
  %v2715 = vld [vmem:[%s3 + $0x118] sm:$0xff]
  %v2716 = vld [vmem:[%s3 + $0x120] sm:$0xff]
  %v2717 = vld [vmem:[%s3 + $0x128] sm:$0xff]
  %v2718 = vld [vmem:[%s3 + $0x130] sm:$0xff]
  %v2719 = vld [vmem:[%s3 + $0x138] sm:$0xff]
  %v2720 = vld [vmem:[%s3 + $0x140] sm:$0xff]
  %v2721 = vld [vmem:[%s3 + $0x148] sm:$0xff]
  %v2722 = vld [vmem:[%s3 + $0x150] sm:$0xff]
  %v2723 = vld [vmem:[%s3 + $0x158] sm:$0xff]
  %v2724 = vld [vmem:[%s3 + $0x160] sm:$0xff]
  %v2725 = vld [vmem:[%s3 + $0x168] sm:$0xff]
  %v2726 = vld [vmem:[%s3 + $0x170] sm:$0xff]
  %v2727 = vld [vmem:[%s3 + $0x178] sm:$0xff]
  %v2728 = vld [vmem:[%s3 + $0x180] sm:$0xff]
  %v2729 = vld [vmem:[%s3 + $0x188] sm:$0xff]
  %v2730 = vld [vmem:[%s3 + $0x190] sm:$0xff]
  %v2731 = vld [vmem:[%s3 + $0x198] sm:$0xff]
  %v2732 = vld [vmem:[%s3 + $0x1a0] sm:$0xff]
  %v2733 = vld [vmem:[%s3 + $0x1a8] sm:$0xff]
  %v2734 = vld [vmem:[%s3 + $0x1b0] sm:$0xff]
  %v2735 = vld [vmem:[%s3 + $0x1b8] sm:$0xff]
  %v2736 = vld [vmem:[%s3 + $0x1c0] sm:$0xff]
  %v2737 = vld [vmem:[%s3 + $0x1c8] sm:$0xff]
  %v2738 = vld [vmem:[%s3 + $0x1d0] sm:$0xff]
  %v2739 = vld [vmem:[%s3 + $0x1d8] sm:$0xff]
  %v2740 = vld [vmem:[%s3 + $0x1e0] sm:$0xff]
  %v2741 = vld [vmem:[%s3 + $0x1e8] sm:$0xff]
  %v2742 = vld [vmem:[%s3 + $0x1f0] sm:$0xff]
  %v2743 = vld [vmem:[%s3 + $0x1f8] sm:$0xff]
  %v2744 = vld [vmem:[%s3 + $0x200] sm:$0xff]
  %v2745 = vld [vmem:[%s3 + $0x208] sm:$0xff]
  %v2746 = vld [vmem:[%s3 + $0x210] sm:$0xff]
  %v2747 = vld [vmem:[%s3 + $0x218] sm:$0xff]
  %v2748 = vld [vmem:[%s3 + $0x220] sm:$0xff]
  %v2749 = vld [vmem:[%s3 + $0x228] sm:$0xff]
  %v2750 = vld [vmem:[%s3 + $0x230] sm:$0xff]
  %v2751 = vld [vmem:[%s3 + $0x238] sm:$0xff]
  %v2752 = vld [vmem:[%s3 + $0x240] sm:$0xff]
  %v2753 = vld [vmem:[%s3 + $0x248] sm:$0xff]
  %v2754 = vld [vmem:[%s3 + $0x250] sm:$0xff]
  %v2755 = vld [vmem:[%s3 + $0x258] sm:$0xff]
  %v2756 = vld [vmem:[%s3 + $0x260] sm:$0xff]
  %v2757 = vld [vmem:[%s3 + $0x268] sm:$0xff]
  %v2758 = vld [vmem:[%s3 + $0x270] sm:$0xff]
  %v2759 = vld [vmem:[%s3 + $0x278] sm:$0xff]
  %v2760 = vld [vmem:[%s3 + $0x280] sm:$0xff]
  %v2761 = vld [vmem:[%s3 + $0x288] sm:$0xff]
  %v2762 = vld [vmem:[%s3 + $0x290] sm:$0xff]
  %v2763 = vld [vmem:[%s3 + $0x298] sm:$0xff]
  %v2764 = vld [vmem:[%s3 + $0x2a0] sm:$0xff]
  %v2765 = vld [vmem:[%s3 + $0x2a8] sm:$0xff]
  %v2766 = vld [vmem:[%s3 + $0x2b0] sm:$0xff]
  %v2767 = vld [vmem:[%s3 + $0x2b8] sm:$0xff]
  %v2768 = vld [vmem:[%s3 + $0x2c0] sm:$0xff]
  %v2769 = vld [vmem:[%s3 + $0x2c8] sm:$0xff]
  %v2770 = vld [vmem:[%s3 + $0x2d0] sm:$0xff]
  %v2771 = vld [vmem:[%s3 + $0x2d8] sm:$0xff]
  %v2772 = vld [vmem:[%s3 + $0x2e0] sm:$0xff]
  %v2773 = vld [vmem:[%s3 + $0x2e8] sm:$0xff]
  %v2774 = vld [vmem:[%s3 + $0x2f0] sm:$0xff]
  %v2775 = vld [vmem:[%s3 + $0x2f8] sm:$0xff]
  %v2776 = vld [vmem:[%s3 + $0x300] sm:$0xff]
  %v2777 = vld [vmem:[%s3 + $0x308] sm:$0xff]
  %v2778 = vld [vmem:[%s3 + $0x310] sm:$0xff]
  %v2779 = vld [vmem:[%s3 + $0x318] sm:$0xff]
  %v2780 = vld [vmem:[%s3 + $0x320] sm:$0xff]
  %v2781 = vld [vmem:[%s3 + $0x328] sm:$0xff]
  %v2782 = vld [vmem:[%s3 + $0x330] sm:$0xff]
  %v2783 = vld [vmem:[%s3 + $0x338] sm:$0xff]
  %v2784 = vld [vmem:[%s3 + $0x340] sm:$0xff]
  %v2785 = vld [vmem:[%s3 + $0x348] sm:$0xff]
  %v2786 = vld [vmem:[%s3 + $0x350] sm:$0xff]
  %v2787 = vld [vmem:[%s3 + $0x358] sm:$0xff]
  %v2788 = vld [vmem:[%s3 + $0x360] sm:$0xff]
  %v2789 = vld [vmem:[%s3 + $0x368] sm:$0xff]
  %v2790 = vld [vmem:[%s3 + $0x370] sm:$0xff]
  %v2791 = vld [vmem:[%s3 + $0x378] sm:$0xff]
  %v2792 = vld [vmem:[%s3 + $0x380] sm:$0xff]
  %v2793 = vld [vmem:[%s3 + $0x388] sm:$0xff]
  %v2794 = vld [vmem:[%s3 + $0x390] sm:$0xff]
  %v2795 = vld [vmem:[%s3 + $0x398] sm:$0xff]
  %v2796 = vld [vmem:[%s3 + $0x3a0] sm:$0xff]
  %v2797 = vld [vmem:[%s3 + $0x3a8] sm:$0xff]
  %v2798 = vld [vmem:[%s3 + $0x3b0] sm:$0xff]
  %v2799 = vld [vmem:[%s3 + $0x3b8] sm:$0xff]
  %v2800 = vld [vmem:[%s3 + $0x3c0] sm:$0xff]
  %v2801 = vld [vmem:[%s3 + $0x3c8] sm:$0xff]
  %v2802 = vld [vmem:[%s3 + $0x3d0] sm:$0xff]
  %v2803 = vld [vmem:[%s3 + $0x3d8] sm:$0xff]
  %v2804 = vld [vmem:[%s3 + $0x3e0] sm:$0xff]
  %v2805 = vld [vmem:[%s3 + $0x3e8] sm:$0xff]
  %v2806 = vld [vmem:[%s3 + $0x3f0] sm:$0xff]
  %v2807 = vld [vmem:[%s3 + $0x3f8] sm:$0xff]
  %v2936 = vunpack.c.l.b16 %v2680
  %v2937 = vunpack.c.h.b16 %v2680
  %v2938 = vunpack.c.l.b16 %v2681
  %v2939 = vunpack.c.h.b16 %v2681
  %v2940 = vunpack.c.l.b16 %v2682
  %v2941 = vunpack.c.h.b16 %v2682
  %v2942 = vunpack.c.l.b16 %v2683
  %v2943 = vunpack.c.h.b16 %v2683
  %v2944 = vunpack.c.l.b16 %v2684
  %v2945 = vunpack.c.h.b16 %v2684
  %v2946 = vunpack.c.l.b16 %v2685
  %v2947 = vunpack.c.h.b16 %v2685
  %v2948 = vunpack.c.l.b16 %v2686
  %v2949 = vunpack.c.h.b16 %v2686
  %v2950 = vunpack.c.l.b16 %v2687
  %v2951 = vunpack.c.h.b16 %v2687
  %v2952 = vunpack.c.l.b16 %v2688
  %v2953 = vunpack.c.h.b16 %v2688
  %v2954 = vunpack.c.l.b16 %v2689
  %v2955 = vunpack.c.h.b16 %v2689
  %v2956 = vunpack.c.l.b16 %v2690
  %v2957 = vunpack.c.h.b16 %v2690
  %v2958 = vunpack.c.l.b16 %v2691
  %v2959 = vunpack.c.h.b16 %v2691
  %v2960 = vunpack.c.l.b16 %v2692
  %v2961 = vunpack.c.h.b16 %v2692
  %v2962 = vunpack.c.l.b16 %v2693
  %v2963 = vunpack.c.h.b16 %v2693
  %v2964 = vunpack.c.l.b16 %v2694
  %v2965 = vunpack.c.h.b16 %v2694
  %v2966 = vunpack.c.l.b16 %v2695
  %v2967 = vunpack.c.h.b16 %v2695
  %v2968 = vunpack.c.l.b16 %v2696
  %v2969 = vunpack.c.h.b16 %v2696
  %v2970 = vunpack.c.l.b16 %v2697
  %v2971 = vunpack.c.h.b16 %v2697
  %v2972 = vunpack.c.l.b16 %v2698
  %v2973 = vunpack.c.h.b16 %v2698
  %v2974 = vunpack.c.l.b16 %v2699
  %v2975 = vunpack.c.h.b16 %v2699
  %v2976 = vunpack.c.l.b16 %v2700
  %v2977 = vunpack.c.h.b16 %v2700
  %v2978 = vunpack.c.l.b16 %v2701
  %v2979 = vunpack.c.h.b16 %v2701
  %v2980 = vunpack.c.l.b16 %v2702
  %v2981 = vunpack.c.h.b16 %v2702
  %v2982 = vunpack.c.l.b16 %v2703
  %v2983 = vunpack.c.h.b16 %v2703
  %v2984 = vunpack.c.l.b16 %v2704
  %v2985 = vunpack.c.h.b16 %v2704
  %v2986 = vunpack.c.l.b16 %v2705
  %v2987 = vunpack.c.h.b16 %v2705
  %v2988 = vunpack.c.l.b16 %v2706
  %v2989 = vunpack.c.h.b16 %v2706
  %v2990 = vunpack.c.l.b16 %v2707
  %v2991 = vunpack.c.h.b16 %v2707
  %v2992 = vunpack.c.l.b16 %v2708
  %v2993 = vunpack.c.h.b16 %v2708
  %v2994 = vunpack.c.l.b16 %v2709
  %v2995 = vunpack.c.h.b16 %v2709
  %v2996 = vunpack.c.l.b16 %v2710
  %v2997 = vunpack.c.h.b16 %v2710
  %v2998 = vunpack.c.l.b16 %v2711
  %v2999 = vunpack.c.h.b16 %v2711
  %v3000 = vunpack.c.l.b16 %v2712
  %v3001 = vunpack.c.h.b16 %v2712
  %v3002 = vunpack.c.l.b16 %v2713
  %v3003 = vunpack.c.h.b16 %v2713
  %v3004 = vunpack.c.l.b16 %v2714
  %v3005 = vunpack.c.h.b16 %v2714
  %v3006 = vunpack.c.l.b16 %v2715
  %v3007 = vunpack.c.h.b16 %v2715
  %v3008 = vunpack.c.l.b16 %v2716
  %v3009 = vunpack.c.h.b16 %v2716
  %v3010 = vunpack.c.l.b16 %v2717
  %v3011 = vunpack.c.h.b16 %v2717
  %v3012 = vunpack.c.l.b16 %v2718
  %v3013 = vunpack.c.h.b16 %v2718
  %v3014 = vunpack.c.l.b16 %v2719
  %v3015 = vunpack.c.h.b16 %v2719
  %v3016 = vunpack.c.l.b16 %v2720
  %v3017 = vunpack.c.h.b16 %v2720
  %v3018 = vunpack.c.l.b16 %v2721
  %v3019 = vunpack.c.h.b16 %v2721
  %v3020 = vunpack.c.l.b16 %v2722
  %v3021 = vunpack.c.h.b16 %v2722
  %v3022 = vunpack.c.l.b16 %v2723
  %v3023 = vunpack.c.h.b16 %v2723
  %v3024 = vunpack.c.l.b16 %v2724
  %v3025 = vunpack.c.h.b16 %v2724
  %v3026 = vunpack.c.l.b16 %v2725
  %v3027 = vunpack.c.h.b16 %v2725
  %v3028 = vunpack.c.l.b16 %v2726
  %v3029 = vunpack.c.h.b16 %v2726
  %v3030 = vunpack.c.l.b16 %v2727
  %v3031 = vunpack.c.h.b16 %v2727
  %v3032 = vunpack.c.l.b16 %v2728
  %v3033 = vunpack.c.h.b16 %v2728
  %v3034 = vunpack.c.l.b16 %v2729
  %v3035 = vunpack.c.h.b16 %v2729
  %v3036 = vunpack.c.l.b16 %v2730
  %v3037 = vunpack.c.h.b16 %v2730
  %v3038 = vunpack.c.l.b16 %v2731
  %v3039 = vunpack.c.h.b16 %v2731
  %v3040 = vunpack.c.l.b16 %v2732
  %v3041 = vunpack.c.h.b16 %v2732
  %v3042 = vunpack.c.l.b16 %v2733
  %v3043 = vunpack.c.h.b16 %v2733
  %v3044 = vunpack.c.l.b16 %v2734
  %v3045 = vunpack.c.h.b16 %v2734
  %v3046 = vunpack.c.l.b16 %v2735
  %v3047 = vunpack.c.h.b16 %v2735
  %v3048 = vunpack.c.l.b16 %v2736
  %v3049 = vunpack.c.h.b16 %v2736
  %v3050 = vunpack.c.l.b16 %v2737
  %v3051 = vunpack.c.h.b16 %v2737
  %v3052 = vunpack.c.l.b16 %v2738
  %v3053 = vunpack.c.h.b16 %v2738
  %v3054 = vunpack.c.l.b16 %v2739
  %v3055 = vunpack.c.h.b16 %v2739
  %v3056 = vunpack.c.l.b16 %v2740
  %v3057 = vunpack.c.h.b16 %v2740
  %v3058 = vunpack.c.l.b16 %v2741
  %v3059 = vunpack.c.h.b16 %v2741
  %v3060 = vunpack.c.l.b16 %v2742
  %v3061 = vunpack.c.h.b16 %v2742
  %v3062 = vunpack.c.l.b16 %v2743
  %v3063 = vunpack.c.h.b16 %v2743
  %v3064 = vunpack.c.l.b16 %v2744
  %v3065 = vunpack.c.h.b16 %v2744
  %v3066 = vunpack.c.l.b16 %v2745
  %v3067 = vunpack.c.h.b16 %v2745
  %v3068 = vunpack.c.l.b16 %v2746
  %v3069 = vunpack.c.h.b16 %v2746
  %v3070 = vunpack.c.l.b16 %v2747
  %v3071 = vunpack.c.h.b16 %v2747
  %v3072 = vunpack.c.l.b16 %v2748
  %v3073 = vunpack.c.h.b16 %v2748
  %v3074 = vunpack.c.l.b16 %v2749
  %v3075 = vunpack.c.h.b16 %v2749
  %v3076 = vunpack.c.l.b16 %v2750
  %v3077 = vunpack.c.h.b16 %v2750
  %v3078 = vunpack.c.l.b16 %v2751
  %v3079 = vunpack.c.h.b16 %v2751
  %v3080 = vunpack.c.l.b16 %v2752
  %v3081 = vunpack.c.h.b16 %v2752
  %v3082 = vunpack.c.l.b16 %v2753
  %v3083 = vunpack.c.h.b16 %v2753
  %v3084 = vunpack.c.l.b16 %v2754
  %v3085 = vunpack.c.h.b16 %v2754
  %v3086 = vunpack.c.l.b16 %v2755
  %v3087 = vunpack.c.h.b16 %v2755
  %v3088 = vunpack.c.l.b16 %v2756
  %v3089 = vunpack.c.h.b16 %v2756
  %v3090 = vunpack.c.l.b16 %v2757
  %v3091 = vunpack.c.h.b16 %v2757
  %v3092 = vunpack.c.l.b16 %v2758
  %v3093 = vunpack.c.h.b16 %v2758
  %v3094 = vunpack.c.l.b16 %v2759
  %v3095 = vunpack.c.h.b16 %v2759
  %v3096 = vunpack.c.l.b16 %v2760
  %v3097 = vunpack.c.h.b16 %v2760
  %v3098 = vunpack.c.l.b16 %v2761
  %v3099 = vunpack.c.h.b16 %v2761
  %v3100 = vunpack.c.l.b16 %v2762
  %v3101 = vunpack.c.h.b16 %v2762
  %v3102 = vunpack.c.l.b16 %v2763
  %v3103 = vunpack.c.h.b16 %v2763
  %v3104 = vunpack.c.l.b16 %v2764
  %v3105 = vunpack.c.h.b16 %v2764
  %v3106 = vunpack.c.l.b16 %v2765
  %v3107 = vunpack.c.h.b16 %v2765
  %v3108 = vunpack.c.l.b16 %v2766
  %v3109 = vunpack.c.h.b16 %v2766
  %v3110 = vunpack.c.l.b16 %v2767
  %v3111 = vunpack.c.h.b16 %v2767
  %v3112 = vunpack.c.l.b16 %v2768
  %v3113 = vunpack.c.h.b16 %v2768
  %v3114 = vunpack.c.l.b16 %v2769
  %v3115 = vunpack.c.h.b16 %v2769
  %v3116 = vunpack.c.l.b16 %v2770
  %v3117 = vunpack.c.h.b16 %v2770
  %v3118 = vunpack.c.l.b16 %v2771
  %v3119 = vunpack.c.h.b16 %v2771
  %v3120 = vunpack.c.l.b16 %v2772
  %v3121 = vunpack.c.h.b16 %v2772
  %v3122 = vunpack.c.l.b16 %v2773
  %v3123 = vunpack.c.h.b16 %v2773
  %v3124 = vunpack.c.l.b16 %v2774
  %v3125 = vunpack.c.h.b16 %v2774
  %v3126 = vunpack.c.l.b16 %v2775
  %v3127 = vunpack.c.h.b16 %v2775
  %v3128 = vunpack.c.l.b16 %v2776
  %v3129 = vunpack.c.h.b16 %v2776
  %v3130 = vunpack.c.l.b16 %v2777
  %v3131 = vunpack.c.h.b16 %v2777
  %v3132 = vunpack.c.l.b16 %v2778
  %v3133 = vunpack.c.h.b16 %v2778
  %v3134 = vunpack.c.l.b16 %v2779
  %v3135 = vunpack.c.h.b16 %v2779
  %v3136 = vunpack.c.l.b16 %v2780
  %v3137 = vunpack.c.h.b16 %v2780
  %v3138 = vunpack.c.l.b16 %v2781
  %v3139 = vunpack.c.h.b16 %v2781
  %v3140 = vunpack.c.l.b16 %v2782
  %v3141 = vunpack.c.h.b16 %v2782
  %v3142 = vunpack.c.l.b16 %v2783
  %v3143 = vunpack.c.h.b16 %v2783
  %v3144 = vunpack.c.l.b16 %v2784
  %v3145 = vunpack.c.h.b16 %v2784
  %v3146 = vunpack.c.l.b16 %v2785
  %v3147 = vunpack.c.h.b16 %v2785
  %v3148 = vunpack.c.l.b16 %v2786
  %v3149 = vunpack.c.h.b16 %v2786
  %v3150 = vunpack.c.l.b16 %v2787
  %v3151 = vunpack.c.h.b16 %v2787
  %v3152 = vunpack.c.l.b16 %v2788
  %v3153 = vunpack.c.h.b16 %v2788
  %v3154 = vunpack.c.l.b16 %v2789
  %v3155 = vunpack.c.h.b16 %v2789
  %v3156 = vunpack.c.l.b16 %v2790
  %v3157 = vunpack.c.h.b16 %v2790
  %v3158 = vunpack.c.l.b16 %v2791
  %v3159 = vunpack.c.h.b16 %v2791
  %v3160 = vunpack.c.l.b16 %v2792
  %v3161 = vunpack.c.h.b16 %v2792
  %v3162 = vunpack.c.l.b16 %v2793
  %v3163 = vunpack.c.h.b16 %v2793
  %v3164 = vunpack.c.l.b16 %v2794
  %v3165 = vunpack.c.h.b16 %v2794
  %v3166 = vunpack.c.l.b16 %v2795
  %v3167 = vunpack.c.h.b16 %v2795
  %v3168 = vunpack.c.l.b16 %v2796
  %v3169 = vunpack.c.h.b16 %v2796
  %v3170 = vunpack.c.l.b16 %v2797
  %v3171 = vunpack.c.h.b16 %v2797
  %v3172 = vunpack.c.l.b16 %v2798
  %v3173 = vunpack.c.h.b16 %v2798
  %v3174 = vunpack.c.l.b16 %v2799
  %v3175 = vunpack.c.h.b16 %v2799
  %v3176 = vunpack.c.l.b16 %v2800
  %v3177 = vunpack.c.h.b16 %v2800
  %v3178 = vunpack.c.l.b16 %v2801
  %v3179 = vunpack.c.h.b16 %v2801
  %v3180 = vunpack.c.l.b16 %v2802
  %v3181 = vunpack.c.h.b16 %v2802
  %v3182 = vunpack.c.l.b16 %v2803
  %v3183 = vunpack.c.h.b16 %v2803
  %v3184 = vunpack.c.l.b16 %v2804
  %v3185 = vunpack.c.h.b16 %v2804
  %v3186 = vunpack.c.l.b16 %v2805
  %v3187 = vunpack.c.h.b16 %v2805
  %v3188 = vunpack.c.l.b16 %v2806
  %v3189 = vunpack.c.h.b16 %v2806
  %v3190 = vunpack.c.l.b16 %v2807
  %v3191 = vunpack.c.h.b16 %v2807
  %v3192 = vpack.c.b16 %v2944, %v2936
  %v3193 = vpack.c.b16 %v2945, %v2937
  %v3194 = vpack.c.b16 %v2946, %v2938
  %v3195 = vpack.c.b16 %v2947, %v2939
  %v3196 = vpack.c.b16 %v2948, %v2940
  %v3197 = vpack.c.b16 %v2949, %v2941
  %v3198 = vpack.c.b16 %v2950, %v2942
  %v3199 = vpack.c.b16 %v2951, %v2943
  %v3200 = vpack.c.b16 %v2960, %v2952
  %v3201 = vpack.c.b16 %v2961, %v2953
  %v3202 = vpack.c.b16 %v2962, %v2954
  %v3203 = vpack.c.b16 %v2963, %v2955
  %v3204 = vpack.c.b16 %v2964, %v2956
  %v3205 = vpack.c.b16 %v2965, %v2957
  %v3206 = vpack.c.b16 %v2966, %v2958
  %v3207 = vpack.c.b16 %v2967, %v2959
  %v3208 = vpack.c.b16 %v2976, %v2968
  %v3209 = vpack.c.b16 %v2977, %v2969
  %v3210 = vpack.c.b16 %v2978, %v2970
  %v3211 = vpack.c.b16 %v2979, %v2971
  %v3212 = vpack.c.b16 %v2980, %v2972
  %v3213 = vpack.c.b16 %v2981, %v2973
  %v3214 = vpack.c.b16 %v2982, %v2974
  %v3215 = vpack.c.b16 %v2983, %v2975
  %v3216 = vpack.c.b16 %v2992, %v2984
  %v3217 = vpack.c.b16 %v2993, %v2985
  %v3218 = vpack.c.b16 %v2994, %v2986
  %v3219 = vpack.c.b16 %v2995, %v2987
  %v3220 = vpack.c.b16 %v2996, %v2988
  %v3221 = vpack.c.b16 %v2997, %v2989
  %v3222 = vpack.c.b16 %v2998, %v2990
  %v3223 = vpack.c.b16 %v2999, %v2991
  %v3224 = vpack.c.b16 %v3008, %v3000
  %v3225 = vpack.c.b16 %v3009, %v3001
  %v3226 = vpack.c.b16 %v3010, %v3002
  %v3227 = vpack.c.b16 %v3011, %v3003
  %v3228 = vpack.c.b16 %v3012, %v3004
  %v3229 = vpack.c.b16 %v3013, %v3005
  %v3230 = vpack.c.b16 %v3014, %v3006
  %v3231 = vpack.c.b16 %v3015, %v3007
  %v3232 = vpack.c.b16 %v3024, %v3016
  %v3233 = vpack.c.b16 %v3025, %v3017
  %v3234 = vpack.c.b16 %v3026, %v3018
  %v3235 = vpack.c.b16 %v3027, %v3019
  %v3236 = vpack.c.b16 %v3028, %v3020
  %v3237 = vpack.c.b16 %v3029, %v3021
  %v3238 = vpack.c.b16 %v3030, %v3022
  %v3239 = vpack.c.b16 %v3031, %v3023
  %v3240 = vpack.c.b16 %v3040, %v3032
  %v3241 = vpack.c.b16 %v3041, %v3033
  %v3242 = vpack.c.b16 %v3042, %v3034
  %v3243 = vpack.c.b16 %v3043, %v3035
  %v3244 = vpack.c.b16 %v3044, %v3036
  %v3245 = vpack.c.b16 %v3045, %v3037
  %v3246 = vpack.c.b16 %v3046, %v3038
  %v3247 = vpack.c.b16 %v3047, %v3039
  %v3248 = vpack.c.b16 %v3056, %v3048
  %v3249 = vpack.c.b16 %v3057, %v3049
  %v3250 = vpack.c.b16 %v3058, %v3050
  %v3251 = vpack.c.b16 %v3059, %v3051
  %v3252 = vpack.c.b16 %v3060, %v3052
  %v3253 = vpack.c.b16 %v3061, %v3053
  %v3254 = vpack.c.b16 %v3062, %v3054
  %v3255 = vpack.c.b16 %v3063, %v3055
  %v3256 = vpack.c.b16 %v3072, %v3064
  %v3257 = vpack.c.b16 %v3073, %v3065
  %v3258 = vpack.c.b16 %v3074, %v3066
  %v3259 = vpack.c.b16 %v3075, %v3067
  %v3260 = vpack.c.b16 %v3076, %v3068
  %v3261 = vpack.c.b16 %v3077, %v3069
  %v3262 = vpack.c.b16 %v3078, %v3070
  %v3263 = vpack.c.b16 %v3079, %v3071
  %v3264 = vpack.c.b16 %v3088, %v3080
  %v3265 = vpack.c.b16 %v3089, %v3081
  %v3266 = vpack.c.b16 %v3090, %v3082
  %v3267 = vpack.c.b16 %v3091, %v3083
  %v3268 = vpack.c.b16 %v3092, %v3084
  %v3269 = vpack.c.b16 %v3093, %v3085
  %v3270 = vpack.c.b16 %v3094, %v3086
  %v3271 = vpack.c.b16 %v3095, %v3087
  %v3272 = vpack.c.b16 %v3104, %v3096
  %v3273 = vpack.c.b16 %v3105, %v3097
  %v3274 = vpack.c.b16 %v3106, %v3098
  %v3275 = vpack.c.b16 %v3107, %v3099
  %v3276 = vpack.c.b16 %v3108, %v3100
  %v3277 = vpack.c.b16 %v3109, %v3101
  %v3278 = vpack.c.b16 %v3110, %v3102
  %v3279 = vpack.c.b16 %v3111, %v3103
  %v3280 = vpack.c.b16 %v3120, %v3112
  %v3281 = vpack.c.b16 %v3121, %v3113
  %v3282 = vpack.c.b16 %v3122, %v3114
  %v3283 = vpack.c.b16 %v3123, %v3115
  %v3284 = vpack.c.b16 %v3124, %v3116
  %v3285 = vpack.c.b16 %v3125, %v3117
  %v3286 = vpack.c.b16 %v3126, %v3118
  %v3287 = vpack.c.b16 %v3127, %v3119
  %v3288 = vpack.c.b16 %v3136, %v3128
  %v3289 = vpack.c.b16 %v3137, %v3129
  %v3290 = vpack.c.b16 %v3138, %v3130
  %v3291 = vpack.c.b16 %v3139, %v3131
  %v3292 = vpack.c.b16 %v3140, %v3132
  %v3293 = vpack.c.b16 %v3141, %v3133
  %v3294 = vpack.c.b16 %v3142, %v3134
  %v3295 = vpack.c.b16 %v3143, %v3135
  %v3296 = vpack.c.b16 %v3152, %v3144
  %v3297 = vpack.c.b16 %v3153, %v3145
  %v3298 = vpack.c.b16 %v3154, %v3146
  %v3299 = vpack.c.b16 %v3155, %v3147
  %v3300 = vpack.c.b16 %v3156, %v3148
  %v3301 = vpack.c.b16 %v3157, %v3149
  %v3302 = vpack.c.b16 %v3158, %v3150
  %v3303 = vpack.c.b16 %v3159, %v3151
  %v3304 = vpack.c.b16 %v3168, %v3160
  %v3305 = vpack.c.b16 %v3169, %v3161
  %v3306 = vpack.c.b16 %v3170, %v3162
  %v3307 = vpack.c.b16 %v3171, %v3163
  %v3308 = vpack.c.b16 %v3172, %v3164
  %v3309 = vpack.c.b16 %v3173, %v3165
  %v3310 = vpack.c.b16 %v3174, %v3166
  %v3311 = vpack.c.b16 %v3175, %v3167
  %v3312 = vpack.c.b16 %v3184, %v3176
  %v3313 = vpack.c.b16 %v3185, %v3177
  %v3314 = vpack.c.b16 %v3186, %v3178
  %v3315 = vpack.c.b16 %v3187, %v3179
  %v3316 = vpack.c.b16 %v3188, %v3180
  %v3317 = vpack.c.b16 %v3189, %v3181
  %v3318 = vpack.c.b16 %v3190, %v3182
  %v3319 = vpack.c.b16 %v3191, %v3183
  %3448 = vmatpush.bf16.msra.mxu0 %v3248
  %3449 = vmatpush.bf16.msra.mxu0 %v3240
  %3450 = vmatpush.bf16.msra.mxu0 %v3232
  %3451 = vmatpush.bf16.msra.mxu0 %v3224
  %3452 = vmatpush.bf16.msra.mxu0 %v3216
  %3453 = vmatpush.bf16.msra.mxu0 %v3208
  %3454 = vmatpush.bf16.msra.mxu0 %v3200
  %3455 = vmatpush.bf16.msra.mxu0 %v3192
  %3456 = vmatmul.bf16.gmra.mxu0 %v2678
  %v3457 = vpop.f32.mrf.mxu0
  %v3458 = vadd.f32 0.0, %v3457
  %v3459 = vpop.f32.mrf.mxu0
  %3460 = vdwg.mxu0
  %3461 = vmatpush.bf16.msra.mxu0 %v3312
  %3462 = vmatpush.bf16.msra.mxu0 %v3304
  %3463 = vmatpush.bf16.msra.mxu0 %v3296
  %3464 = vmatpush.bf16.msra.mxu0 %v3288
  %3465 = vmatpush.bf16.msra.mxu0 %v3280
  %3466 = vmatpush.bf16.msra.mxu0 %v3272
  %3467 = vmatpush.bf16.msra.mxu0 %v3264
  %3468 = vmatpush.bf16.msra.mxu0 %v3256
  %3469 = vmatmul.bf16.gmra.mxu0 %v2679
  %v3470 = vpop.f32.mrf.mxu0
  %v3471 = vadd.f32 %v3458, %v3470
  %v3472 = vpop.f32.mrf.mxu0
  %3473 = vdwg.mxu0
  %3474 = vmatpush.bf16.msra.mxu0 %v3249
  %3475 = vmatpush.bf16.msra.mxu0 %v3241
  %3476 = vmatpush.bf16.msra.mxu0 %v3233
  %3477 = vmatpush.bf16.msra.mxu0 %v3225
  %3478 = vmatpush.bf16.msra.mxu0 %v3217
  %3479 = vmatpush.bf16.msra.mxu0 %v3209
  %3480 = vmatpush.bf16.msra.mxu0 %v3201
  %3481 = vmatpush.bf16.msra.mxu0 %v3193
  %3482 = vmatmul.bf16.gmra.mxu0 %v2678
  %v3483 = vpop.f32.mrf.mxu0
  %v3484 = vadd.f32 0.0, %v3483
  %v3485 = vpop.f32.mrf.mxu0
  %3486 = vdwg.mxu0
  %3487 = vmatpush.bf16.msra.mxu0 %v3313
  %3488 = vmatpush.bf16.msra.mxu0 %v3305
  %3489 = vmatpush.bf16.msra.mxu0 %v3297
  %3490 = vmatpush.bf16.msra.mxu0 %v3289
  %3491 = vmatpush.bf16.msra.mxu0 %v3281
  %3492 = vmatpush.bf16.msra.mxu0 %v3273
  %3493 = vmatpush.bf16.msra.mxu0 %v3265
  %3494 = vmatpush.bf16.msra.mxu0 %v3257
  %3495 = vmatmul.bf16.gmra.mxu0 %v2679
  %v3496 = vpop.f32.mrf.mxu0
  %v3497 = vadd.f32 %v3484, %v3496
  %v3498 = vpop.f32.mrf.mxu0
  %3499 = vdwg.mxu0
  %3500 = vmatpush.bf16.msra.mxu0 %v3250
  %3501 = vmatpush.bf16.msra.mxu0 %v3242
  %3502 = vmatpush.bf16.msra.mxu0 %v3234
  %3503 = vmatpush.bf16.msra.mxu0 %v3226
  %3504 = vmatpush.bf16.msra.mxu0 %v3218
  %3505 = vmatpush.bf16.msra.mxu0 %v3210
  %3506 = vmatpush.bf16.msra.mxu0 %v3202
  %3507 = vmatpush.bf16.msra.mxu0 %v3194
  %3508 = vmatmul.bf16.gmra.mxu0 %v2678
  %v3509 = vpop.f32.mrf.mxu0
  %v3510 = vadd.f32 0.0, %v3509
  %v3511 = vpop.f32.mrf.mxu0
  %3512 = vdwg.mxu0
  %3513 = vmatpush.bf16.msra.mxu0 %v3314
  %3514 = vmatpush.bf16.msra.mxu0 %v3306
  %3515 = vmatpush.bf16.msra.mxu0 %v3298
  %3516 = vmatpush.bf16.msra.mxu0 %v3290
  %3517 = vmatpush.bf16.msra.mxu0 %v3282
  %3518 = vmatpush.bf16.msra.mxu0 %v3274
  %3519 = vmatpush.bf16.msra.mxu0 %v3266
  %3520 = vmatpush.bf16.msra.mxu0 %v3258
  %3521 = vmatmul.bf16.gmra.mxu0 %v2679
  %v3522 = vpop.f32.mrf.mxu0
  %v3523 = vadd.f32 %v3510, %v3522
  %v3524 = vpop.f32.mrf.mxu0
  %3525 = vdwg.mxu0
  %3526 = vmatpush.bf16.msra.mxu0 %v3251
  %3527 = vmatpush.bf16.msra.mxu0 %v3243
  %3528 = vmatpush.bf16.msra.mxu0 %v3235
  %3529 = vmatpush.bf16.msra.mxu0 %v3227
  %3530 = vmatpush.bf16.msra.mxu0 %v3219
  %3531 = vmatpush.bf16.msra.mxu0 %v3211
  %3532 = vmatpush.bf16.msra.mxu0 %v3203
  %3533 = vmatpush.bf16.msra.mxu0 %v3195
  %3534 = vmatmul.bf16.gmra.mxu0 %v2678
  %v3535 = vpop.f32.mrf.mxu0
  %v3536 = vadd.f32 0.0, %v3535
  %v3537 = vpop.f32.mrf.mxu0
  %3538 = vdwg.mxu0
  %3539 = vmatpush.bf16.msra.mxu0 %v3315
  %3540 = vmatpush.bf16.msra.mxu0 %v3307
  %3541 = vmatpush.bf16.msra.mxu0 %v3299
  %3542 = vmatpush.bf16.msra.mxu0 %v3291
  %3543 = vmatpush.bf16.msra.mxu0 %v3283
  %3544 = vmatpush.bf16.msra.mxu0 %v3275
  %3545 = vmatpush.bf16.msra.mxu0 %v3267
  %3546 = vmatpush.bf16.msra.mxu0 %v3259
  %3547 = vmatmul.bf16.gmra.mxu0 %v2679
  %v3548 = vpop.f32.mrf.mxu0
  %v3549 = vadd.f32 %v3536, %v3548
  %v3550 = vpop.f32.mrf.mxu0
  %3551 = vdwg.mxu0
  %3552 = vmatpush.bf16.msra.mxu0 %v3252
  %3553 = vmatpush.bf16.msra.mxu0 %v3244
  %3554 = vmatpush.bf16.msra.mxu0 %v3236
  %3555 = vmatpush.bf16.msra.mxu0 %v3228
  %3556 = vmatpush.bf16.msra.mxu0 %v3220
  %3557 = vmatpush.bf16.msra.mxu0 %v3212
  %3558 = vmatpush.bf16.msra.mxu0 %v3204
  %3559 = vmatpush.bf16.msra.mxu0 %v3196
  %3560 = vmatmul.bf16.gmra.mxu0 %v2678
  %v3561 = vpop.f32.mrf.mxu0
  %v3562 = vadd.f32 0.0, %v3561
  %v3563 = vpop.f32.mrf.mxu0
  %3564 = vdwg.mxu0
  %3565 = vmatpush.bf16.msra.mxu0 %v3316
  %3566 = vmatpush.bf16.msra.mxu0 %v3308
  %3567 = vmatpush.bf16.msra.mxu0 %v3300
  %3568 = vmatpush.bf16.msra.mxu0 %v3292
  %3569 = vmatpush.bf16.msra.mxu0 %v3284
  %3570 = vmatpush.bf16.msra.mxu0 %v3276
  %3571 = vmatpush.bf16.msra.mxu0 %v3268
  %3572 = vmatpush.bf16.msra.mxu0 %v3260
  %3573 = vmatmul.bf16.gmra.mxu0 %v2679
  %v3574 = vpop.f32.mrf.mxu0
  %v3575 = vadd.f32 %v3562, %v3574
  %v3576 = vpop.f32.mrf.mxu0
  %3577 = vdwg.mxu0
  %3578 = vmatpush.bf16.msra.mxu0 %v3253
  %3579 = vmatpush.bf16.msra.mxu0 %v3245
  %3580 = vmatpush.bf16.msra.mxu0 %v3237
  %3581 = vmatpush.bf16.msra.mxu0 %v3229
  %3582 = vmatpush.bf16.msra.mxu0 %v3221
  %3583 = vmatpush.bf16.msra.mxu0 %v3213
  %3584 = vmatpush.bf16.msra.mxu0 %v3205
  %3585 = vmatpush.bf16.msra.mxu0 %v3197
  %3586 = vmatmul.bf16.gmra.mxu0 %v2678
  %v3587 = vpop.f32.mrf.mxu0
  %v3588 = vadd.f32 0.0, %v3587
  %v3589 = vpop.f32.mrf.mxu0
  %3590 = vdwg.mxu0
  %3591 = vmatpush.bf16.msra.mxu0 %v3317
  %3592 = vmatpush.bf16.msra.mxu0 %v3309
  %3593 = vmatpush.bf16.msra.mxu0 %v3301
  %3594 = vmatpush.bf16.msra.mxu0 %v3293
  %3595 = vmatpush.bf16.msra.mxu0 %v3285
  %3596 = vmatpush.bf16.msra.mxu0 %v3277
  %3597 = vmatpush.bf16.msra.mxu0 %v3269
  %3598 = vmatpush.bf16.msra.mxu0 %v3261
  %3599 = vmatmul.bf16.gmra.mxu0 %v2679
  %v3600 = vpop.f32.mrf.mxu0
  %v3601 = vadd.f32 %v3588, %v3600
  %v3602 = vpop.f32.mrf.mxu0
  %3603 = vdwg.mxu0
  %3604 = vmatpush.bf16.msra.mxu0 %v3254
  %3605 = vmatpush.bf16.msra.mxu0 %v3246
  %3606 = vmatpush.bf16.msra.mxu0 %v3238
  %3607 = vmatpush.bf16.msra.mxu0 %v3230
  %3608 = vmatpush.bf16.msra.mxu0 %v3222
  %3609 = vmatpush.bf16.msra.mxu0 %v3214
  %3610 = vmatpush.bf16.msra.mxu0 %v3206
  %3611 = vmatpush.bf16.msra.mxu0 %v3198
  %3612 = vmatmul.bf16.gmra.mxu0 %v2678
  %v3613 = vpop.f32.mrf.mxu0
  %v3614 = vadd.f32 0.0, %v3613
  %v3615 = vpop.f32.mrf.mxu0
  %3616 = vdwg.mxu0
  %3617 = vmatpush.bf16.msra.mxu0 %v3318
  %3618 = vmatpush.bf16.msra.mxu0 %v3310
  %3619 = vmatpush.bf16.msra.mxu0 %v3302
  %3620 = vmatpush.bf16.msra.mxu0 %v3294
  %3621 = vmatpush.bf16.msra.mxu0 %v3286
  %3622 = vmatpush.bf16.msra.mxu0 %v3278
  %3623 = vmatpush.bf16.msra.mxu0 %v3270
  %3624 = vmatpush.bf16.msra.mxu0 %v3262
  %3625 = vmatmul.bf16.gmra.mxu0 %v2679
  %v3626 = vpop.f32.mrf.mxu0
  %v3627 = vadd.f32 %v3614, %v3626
  %v3628 = vpop.f32.mrf.mxu0
  %3629 = vdwg.mxu0
  %3630 = vmatpush.bf16.msra.mxu0 %v3255
  %3631 = vmatpush.bf16.msra.mxu0 %v3247
  %3632 = vmatpush.bf16.msra.mxu0 %v3239
  %3633 = vmatpush.bf16.msra.mxu0 %v3231
  %3634 = vmatpush.bf16.msra.mxu0 %v3223
  %3635 = vmatpush.bf16.msra.mxu0 %v3215
  %3636 = vmatpush.bf16.msra.mxu0 %v3207
  %3637 = vmatpush.bf16.msra.mxu0 %v3199
  %3638 = vmatmul.bf16.gmra.mxu0 %v2678
  %v3639 = vpop.f32.mrf.mxu0
  %v3640 = vadd.f32 0.0, %v3639
  %v3641 = vpop.f32.mrf.mxu0
  %3642 = vdwg.mxu0
  %3643 = vmatpush.bf16.msra.mxu0 %v3319
  %3644 = vmatpush.bf16.msra.mxu0 %v3311
  %3645 = vmatpush.bf16.msra.mxu0 %v3303
  %3646 = vmatpush.bf16.msra.mxu0 %v3295
  %3647 = vmatpush.bf16.msra.mxu0 %v3287
  %3648 = vmatpush.bf16.msra.mxu0 %v3279
  %3649 = vmatpush.bf16.msra.mxu0 %v3271
  %3650 = vmatpush.bf16.msra.mxu0 %v3263
  %3651 = vmatmul.bf16.gmra.mxu0 %v2679
  %v3652 = vpop.f32.mrf.mxu0
  %v3653 = vadd.f32 %v3640, %v3652
  %v3654 = vpop.f32.mrf.mxu0
  %3655 = vdwg.mxu0
  %v3656 = vld [vmem:[#allocation2 + $0x40] sm:$0xff]
  %v3657 = vld [vmem:[#allocation2 + $0x48] sm:$0xff]
  %v3658 = vld [vmem:[#allocation2 + $0x50] sm:$0xff]
  %v3659 = vld [vmem:[#allocation2 + $0x58] sm:$0xff]
  %v3660 = vadd.f32 %v3656, %v3471
  %v3661 = vadd.f32 %v3657, %v3497
  %v3662 = vadd.f32 %v3658, %v3523
  %v3663 = vadd.f32 %v3659, %v3549
  %v3664 = vld [vmem:[#allocation3 + $0xa0] sm:$0xff]
  %v3665 = vld [vmem:[#allocation3 + $0xa8] sm:$0xff]
  %v3666 = vld [vmem:[#allocation3 + $0xb0] sm:$0xff]
  %v3667 = vld [vmem:[#allocation3 + $0xb8] sm:$0xff]
  %v3668 = vadd.f32 %v3664, %v3575
  %v3669 = vadd.f32 %v3665, %v3601
  %v3670 = vadd.f32 %v3666, %v3627
  %v3671 = vadd.f32 %v3667, %v3653
  %v3672 = vxor.u32 %v3660, 2147483648
  %v3673 = vmul.f32 %v3672, 1.442695
  %v3674 = vpow.pop %v3673
  %v3675 = vadd.f32 %v3674, 1.0
  %v3676 = vrcp.pop %v3675
  %v3677 = vmul.f32 %v3675, %v3676
  %v3678 = vsub.f32 1.0, %v3677
  %v3679 = vmul.f32 %v3676, %v3678
  %v3680 = vadd.f32 %v3676, %v3679
  %vm3681 = vweird.f32 %v3675
  %vm3682 = vweird.f32 %v3676
  %vm3683 = vmor %vm3681, %vm3682
  %v3684 = vsel %vm3683, %v3676, %v3680
  %v3685 = vand.u32 2147483647, %v3675
  %vm3686 = vcmp.eq.f32.partialorder %v3685, 8.507059e+37
  %v3687 = vand.u32 %v3675, 2147483648
  %v3688 = vor.u32 1.1754944e-38, %v3687
  %v3689 = vsel %vm3686, %v3688, %v3684
  %v3690 = vmul.f32 1.0, %v3689
  %v3691 = vxor.u32 %v3661, 2147483648
  %v3692 = vmul.f32 %v3691, 1.442695
  %v3693 = vpow.pop %v3692
  %v3694 = vadd.f32 %v3693, 1.0
  %v3695 = vrcp.pop %v3694
  %v3696 = vmul.f32 %v3694, %v3695
  %v3697 = vsub.f32 1.0, %v3696
  %v3698 = vmul.f32 %v3695, %v3697
  %v3699 = vadd.f32 %v3695, %v3698
  %vm3700 = vweird.f32 %v3694
  %vm3701 = vweird.f32 %v3695
  %vm3702 = vmor %vm3700, %vm3701
  %v3703 = vsel %vm3702, %v3695, %v3699
  %v3704 = vand.u32 2147483647, %v3694
  %vm3705 = vcmp.eq.f32.partialorder %v3704, 8.507059e+37
  %v3706 = vand.u32 %v3694, 2147483648
  %v3707 = vor.u32 1.1754944e-38, %v3706
  %v3708 = vsel %vm3705, %v3707, %v3703
  %v3709 = vmul.f32 1.0, %v3708
  %v3710 = vtanh.pop %v3662
  %v3711 = vxor.u32 %v3663, 2147483648
  %v3712 = vmul.f32 %v3711, 1.442695
  %v3713 = vpow.pop %v3712
  %v3714 = vadd.f32 %v3713, 1.0
  %v3715 = vrcp.pop %v3714
  %v3716 = vmul.f32 %v3714, %v3715
  %v3717 = vsub.f32 1.0, %v3716
  %v3718 = vmul.f32 %v3715, %v3717
  %v3719 = vadd.f32 %v3715, %v3718
  %vm3720 = vweird.f32 %v3714
  %vm3721 = vweird.f32 %v3715
  %vm3722 = vmor %vm3720, %vm3721
  %v3723 = vsel %vm3722, %v3715, %v3719
  %v3724 = vand.u32 2147483647, %v3714
  %vm3725 = vcmp.eq.f32.partialorder %v3724, 8.507059e+37
  %v3726 = vand.u32 %v3714, 2147483648
  %v3727 = vor.u32 1.1754944e-38, %v3726
  %v3728 = vsel %vm3725, %v3727, %v3723
  %v3729 = vmul.f32 1.0, %v3728
  %v3730 = vmul.f32 %v3709, %v2610
  %v3731 = vmul.f32 %v3690, %v3710
  %v3732 = vadd.f32 %v3730, %v3731
  %v3733 = vtanh.pop %v3732
  %v3734 = vmul.f32 %v3729, %v3733
  %v3735 = vxor.u32 %v3668, 2147483648
  %v3736 = vmul.f32 %v3735, 1.442695
  %v3737 = vpow.pop %v3736
  %v3738 = vadd.f32 %v3737, 1.0
  %v3739 = vrcp.pop %v3738
  %v3740 = vmul.f32 %v3738, %v3739
  %v3741 = vsub.f32 1.0, %v3740
  %v3742 = vmul.f32 %v3739, %v3741
  %v3743 = vadd.f32 %v3739, %v3742
  %vm3744 = vweird.f32 %v3738
  %vm3745 = vweird.f32 %v3739
  %vm3746 = vmor %vm3744, %vm3745
  %v3747 = vsel %vm3746, %v3739, %v3743
  %v3748 = vand.u32 2147483647, %v3738
  %vm3749 = vcmp.eq.f32.partialorder %v3748, 8.507059e+37
  %v3750 = vand.u32 %v3738, 2147483648
  %v3751 = vor.u32 1.1754944e-38, %v3750
  %v3752 = vsel %vm3749, %v3751, %v3747
  %v3753 = vmul.f32 1.0, %v3752
  %v3754 = vxor.u32 %v3669, 2147483648
  %v3755 = vmul.f32 %v3754, 1.442695
  %v3756 = vpow.pop %v3755
  %v3757 = vadd.f32 %v3756, 1.0
  %v3758 = vrcp.pop %v3757
  %v3759 = vmul.f32 %v3757, %v3758
  %v3760 = vsub.f32 1.0, %v3759
  %v3761 = vmul.f32 %v3758, %v3760
  %v3762 = vadd.f32 %v3758, %v3761
  %vm3763 = vweird.f32 %v3757
  %vm3764 = vweird.f32 %v3758
  %vm3765 = vmor %vm3763, %vm3764
  %v3766 = vsel %vm3765, %v3758, %v3762
  %v3767 = vand.u32 2147483647, %v3757
  %vm3768 = vcmp.eq.f32.partialorder %v3767, 8.507059e+37
  %v3769 = vand.u32 %v3757, 2147483648
  %v3770 = vor.u32 1.1754944e-38, %v3769
  %v3771 = vsel %vm3768, %v3770, %v3766
  %v3772 = vmul.f32 1.0, %v3771
  %v3773 = vtanh.pop %v3670
  %v3774 = vxor.u32 %v3671, 2147483648
  %v3775 = vmul.f32 %v3774, 1.442695
  %v3776 = vpow.pop %v3775
  %v3777 = vadd.f32 %v3776, 1.0
  %v3778 = vrcp.pop %v3777
  %v3779 = vmul.f32 %v3777, %v3778
  %v3780 = vsub.f32 1.0, %v3779
  %v3781 = vmul.f32 %v3778, %v3780
  %v3782 = vadd.f32 %v3778, %v3781
  %vm3783 = vweird.f32 %v3777
  %vm3784 = vweird.f32 %v3778
  %vm3785 = vmor %vm3783, %vm3784
  %v3786 = vsel %vm3785, %v3778, %v3782
  %v3787 = vand.u32 2147483647, %v3777
  %vm3788 = vcmp.eq.f32.partialorder %v3787, 8.507059e+37
  %v3789 = vand.u32 %v3777, 2147483648
  %v3790 = vor.u32 1.1754944e-38, %v3789
  %v3791 = vsel %vm3788, %v3790, %v3786
  %v3792 = vmul.f32 1.0, %v3791
  %v3793 = vmul.f32 %v3772, %v2673
  %v3794 = vmul.f32 %v3753, %v3773
  %v3795 = vadd.f32 %v3793, %v3794
  %v3796 = vtanh.pop %v3795
  %v3797 = vmul.f32 %v3792, %v3796
  %3798 = vst [vmem:[#allocation5 + $0x20] sm:$0xff] %v3734
  %3799 = vst [vmem:[#allocation5 + $0x58] sm:$0xff] %v3797
  %v3800 = vpack.c.bf16 %v3734, %v3734
  %v3801 = vpack.c.bf16 %v3797, %v3797
  %v3802 = vld [vmem:[%s3] sm:$0xff]
  %v3803 = vld [vmem:[%s3 + $0x8] sm:$0xff]
  %v3804 = vld [vmem:[%s3 + $0x10] sm:$0xff]
  %v3805 = vld [vmem:[%s3 + $0x18] sm:$0xff]
  %v3806 = vld [vmem:[%s3 + $0x20] sm:$0xff]
  %v3807 = vld [vmem:[%s3 + $0x28] sm:$0xff]
  %v3808 = vld [vmem:[%s3 + $0x30] sm:$0xff]
  %v3809 = vld [vmem:[%s3 + $0x38] sm:$0xff]
  %v3810 = vld [vmem:[%s3 + $0x40] sm:$0xff]
  %v3811 = vld [vmem:[%s3 + $0x48] sm:$0xff]
  %v3812 = vld [vmem:[%s3 + $0x50] sm:$0xff]
  %v3813 = vld [vmem:[%s3 + $0x58] sm:$0xff]
  %v3814 = vld [vmem:[%s3 + $0x60] sm:$0xff]
  %v3815 = vld [vmem:[%s3 + $0x68] sm:$0xff]
  %v3816 = vld [vmem:[%s3 + $0x70] sm:$0xff]
  %v3817 = vld [vmem:[%s3 + $0x78] sm:$0xff]
  %v3818 = vld [vmem:[%s3 + $0x80] sm:$0xff]
  %v3819 = vld [vmem:[%s3 + $0x88] sm:$0xff]
  %v3820 = vld [vmem:[%s3 + $0x90] sm:$0xff]
  %v3821 = vld [vmem:[%s3 + $0x98] sm:$0xff]
  %v3822 = vld [vmem:[%s3 + $0xa0] sm:$0xff]
  %v3823 = vld [vmem:[%s3 + $0xa8] sm:$0xff]
  %v3824 = vld [vmem:[%s3 + $0xb0] sm:$0xff]
  %v3825 = vld [vmem:[%s3 + $0xb8] sm:$0xff]
  %v3826 = vld [vmem:[%s3 + $0xc0] sm:$0xff]
  %v3827 = vld [vmem:[%s3 + $0xc8] sm:$0xff]
  %v3828 = vld [vmem:[%s3 + $0xd0] sm:$0xff]
  %v3829 = vld [vmem:[%s3 + $0xd8] sm:$0xff]
  %v3830 = vld [vmem:[%s3 + $0xe0] sm:$0xff]
  %v3831 = vld [vmem:[%s3 + $0xe8] sm:$0xff]
  %v3832 = vld [vmem:[%s3 + $0xf0] sm:$0xff]
  %v3833 = vld [vmem:[%s3 + $0xf8] sm:$0xff]
  %v3834 = vld [vmem:[%s3 + $0x100] sm:$0xff]
  %v3835 = vld [vmem:[%s3 + $0x108] sm:$0xff]
  %v3836 = vld [vmem:[%s3 + $0x110] sm:$0xff]
  %v3837 = vld [vmem:[%s3 + $0x118] sm:$0xff]
  %v3838 = vld [vmem:[%s3 + $0x120] sm:$0xff]
  %v3839 = vld [vmem:[%s3 + $0x128] sm:$0xff]
  %v3840 = vld [vmem:[%s3 + $0x130] sm:$0xff]
  %v3841 = vld [vmem:[%s3 + $0x138] sm:$0xff]
  %v3842 = vld [vmem:[%s3 + $0x140] sm:$0xff]
  %v3843 = vld [vmem:[%s3 + $0x148] sm:$0xff]
  %v3844 = vld [vmem:[%s3 + $0x150] sm:$0xff]
  %v3845 = vld [vmem:[%s3 + $0x158] sm:$0xff]
  %v3846 = vld [vmem:[%s3 + $0x160] sm:$0xff]
  %v3847 = vld [vmem:[%s3 + $0x168] sm:$0xff]
  %v3848 = vld [vmem:[%s3 + $0x170] sm:$0xff]
  %v3849 = vld [vmem:[%s3 + $0x178] sm:$0xff]
  %v3850 = vld [vmem:[%s3 + $0x180] sm:$0xff]
  %v3851 = vld [vmem:[%s3 + $0x188] sm:$0xff]
  %v3852 = vld [vmem:[%s3 + $0x190] sm:$0xff]
  %v3853 = vld [vmem:[%s3 + $0x198] sm:$0xff]
  %v3854 = vld [vmem:[%s3 + $0x1a0] sm:$0xff]
  %v3855 = vld [vmem:[%s3 + $0x1a8] sm:$0xff]
  %v3856 = vld [vmem:[%s3 + $0x1b0] sm:$0xff]
  %v3857 = vld [vmem:[%s3 + $0x1b8] sm:$0xff]
  %v3858 = vld [vmem:[%s3 + $0x1c0] sm:$0xff]
  %v3859 = vld [vmem:[%s3 + $0x1c8] sm:$0xff]
  %v3860 = vld [vmem:[%s3 + $0x1d0] sm:$0xff]
  %v3861 = vld [vmem:[%s3 + $0x1d8] sm:$0xff]
  %v3862 = vld [vmem:[%s3 + $0x1e0] sm:$0xff]
  %v3863 = vld [vmem:[%s3 + $0x1e8] sm:$0xff]
  %v3864 = vld [vmem:[%s3 + $0x1f0] sm:$0xff]
  %v3865 = vld [vmem:[%s3 + $0x1f8] sm:$0xff]
  %v3866 = vld [vmem:[%s3 + $0x200] sm:$0xff]
  %v3867 = vld [vmem:[%s3 + $0x208] sm:$0xff]
  %v3868 = vld [vmem:[%s3 + $0x210] sm:$0xff]
  %v3869 = vld [vmem:[%s3 + $0x218] sm:$0xff]
  %v3870 = vld [vmem:[%s3 + $0x220] sm:$0xff]
  %v3871 = vld [vmem:[%s3 + $0x228] sm:$0xff]
  %v3872 = vld [vmem:[%s3 + $0x230] sm:$0xff]
  %v3873 = vld [vmem:[%s3 + $0x238] sm:$0xff]
  %v3874 = vld [vmem:[%s3 + $0x240] sm:$0xff]
  %v3875 = vld [vmem:[%s3 + $0x248] sm:$0xff]
  %v3876 = vld [vmem:[%s3 + $0x250] sm:$0xff]
  %v3877 = vld [vmem:[%s3 + $0x258] sm:$0xff]
  %v3878 = vld [vmem:[%s3 + $0x260] sm:$0xff]
  %v3879 = vld [vmem:[%s3 + $0x268] sm:$0xff]
  %v3880 = vld [vmem:[%s3 + $0x270] sm:$0xff]
  %v3881 = vld [vmem:[%s3 + $0x278] sm:$0xff]
  %v3882 = vld [vmem:[%s3 + $0x280] sm:$0xff]
  %v3883 = vld [vmem:[%s3 + $0x288] sm:$0xff]
  %v3884 = vld [vmem:[%s3 + $0x290] sm:$0xff]
  %v3885 = vld [vmem:[%s3 + $0x298] sm:$0xff]
  %v3886 = vld [vmem:[%s3 + $0x2a0] sm:$0xff]
  %v3887 = vld [vmem:[%s3 + $0x2a8] sm:$0xff]
  %v3888 = vld [vmem:[%s3 + $0x2b0] sm:$0xff]
  %v3889 = vld [vmem:[%s3 + $0x2b8] sm:$0xff]
  %v3890 = vld [vmem:[%s3 + $0x2c0] sm:$0xff]
  %v3891 = vld [vmem:[%s3 + $0x2c8] sm:$0xff]
  %v3892 = vld [vmem:[%s3 + $0x2d0] sm:$0xff]
  %v3893 = vld [vmem:[%s3 + $0x2d8] sm:$0xff]
  %v3894 = vld [vmem:[%s3 + $0x2e0] sm:$0xff]
  %v3895 = vld [vmem:[%s3 + $0x2e8] sm:$0xff]
  %v3896 = vld [vmem:[%s3 + $0x2f0] sm:$0xff]
  %v3897 = vld [vmem:[%s3 + $0x2f8] sm:$0xff]
  %v3898 = vld [vmem:[%s3 + $0x300] sm:$0xff]
  %v3899 = vld [vmem:[%s3 + $0x308] sm:$0xff]
  %v3900 = vld [vmem:[%s3 + $0x310] sm:$0xff]
  %v3901 = vld [vmem:[%s3 + $0x318] sm:$0xff]
  %v3902 = vld [vmem:[%s3 + $0x320] sm:$0xff]
  %v3903 = vld [vmem:[%s3 + $0x328] sm:$0xff]
  %v3904 = vld [vmem:[%s3 + $0x330] sm:$0xff]
  %v3905 = vld [vmem:[%s3 + $0x338] sm:$0xff]
  %v3906 = vld [vmem:[%s3 + $0x340] sm:$0xff]
  %v3907 = vld [vmem:[%s3 + $0x348] sm:$0xff]
  %v3908 = vld [vmem:[%s3 + $0x350] sm:$0xff]
  %v3909 = vld [vmem:[%s3 + $0x358] sm:$0xff]
  %v3910 = vld [vmem:[%s3 + $0x360] sm:$0xff]
  %v3911 = vld [vmem:[%s3 + $0x368] sm:$0xff]
  %v3912 = vld [vmem:[%s3 + $0x370] sm:$0xff]
  %v3913 = vld [vmem:[%s3 + $0x378] sm:$0xff]
  %v3914 = vld [vmem:[%s3 + $0x380] sm:$0xff]
  %v3915 = vld [vmem:[%s3 + $0x388] sm:$0xff]
  %v3916 = vld [vmem:[%s3 + $0x390] sm:$0xff]
  %v3917 = vld [vmem:[%s3 + $0x398] sm:$0xff]
  %v3918 = vld [vmem:[%s3 + $0x3a0] sm:$0xff]
  %v3919 = vld [vmem:[%s3 + $0x3a8] sm:$0xff]
  %v3920 = vld [vmem:[%s3 + $0x3b0] sm:$0xff]
  %v3921 = vld [vmem:[%s3 + $0x3b8] sm:$0xff]
  %v3922 = vld [vmem:[%s3 + $0x3c0] sm:$0xff]
  %v3923 = vld [vmem:[%s3 + $0x3c8] sm:$0xff]
  %v3924 = vld [vmem:[%s3 + $0x3d0] sm:$0xff]
  %v3925 = vld [vmem:[%s3 + $0x3d8] sm:$0xff]
  %v3926 = vld [vmem:[%s3 + $0x3e0] sm:$0xff]
  %v3927 = vld [vmem:[%s3 + $0x3e8] sm:$0xff]
  %v3928 = vld [vmem:[%s3 + $0x3f0] sm:$0xff]
  %v3929 = vld [vmem:[%s3 + $0x3f8] sm:$0xff]
  %v4058 = vunpack.c.l.b16 %v3802
  %v4059 = vunpack.c.h.b16 %v3802
  %v4060 = vunpack.c.l.b16 %v3803
  %v4061 = vunpack.c.h.b16 %v3803
  %v4062 = vunpack.c.l.b16 %v3804
  %v4063 = vunpack.c.h.b16 %v3804
  %v4064 = vunpack.c.l.b16 %v3805
  %v4065 = vunpack.c.h.b16 %v3805
  %v4066 = vunpack.c.l.b16 %v3806
  %v4067 = vunpack.c.h.b16 %v3806
  %v4068 = vunpack.c.l.b16 %v3807
  %v4069 = vunpack.c.h.b16 %v3807
  %v4070 = vunpack.c.l.b16 %v3808
  %v4071 = vunpack.c.h.b16 %v3808
  %v4072 = vunpack.c.l.b16 %v3809
  %v4073 = vunpack.c.h.b16 %v3809
  %v4074 = vunpack.c.l.b16 %v3810
  %v4075 = vunpack.c.h.b16 %v3810
  %v4076 = vunpack.c.l.b16 %v3811
  %v4077 = vunpack.c.h.b16 %v3811
  %v4078 = vunpack.c.l.b16 %v3812
  %v4079 = vunpack.c.h.b16 %v3812
  %v4080 = vunpack.c.l.b16 %v3813
  %v4081 = vunpack.c.h.b16 %v3813
  %v4082 = vunpack.c.l.b16 %v3814
  %v4083 = vunpack.c.h.b16 %v3814
  %v4084 = vunpack.c.l.b16 %v3815
  %v4085 = vunpack.c.h.b16 %v3815
  %v4086 = vunpack.c.l.b16 %v3816
  %v4087 = vunpack.c.h.b16 %v3816
  %v4088 = vunpack.c.l.b16 %v3817
  %v4089 = vunpack.c.h.b16 %v3817
  %v4090 = vunpack.c.l.b16 %v3818
  %v4091 = vunpack.c.h.b16 %v3818
  %v4092 = vunpack.c.l.b16 %v3819
  %v4093 = vunpack.c.h.b16 %v3819
  %v4094 = vunpack.c.l.b16 %v3820
  %v4095 = vunpack.c.h.b16 %v3820
  %v4096 = vunpack.c.l.b16 %v3821
  %v4097 = vunpack.c.h.b16 %v3821
  %v4098 = vunpack.c.l.b16 %v3822
  %v4099 = vunpack.c.h.b16 %v3822
  %v4100 = vunpack.c.l.b16 %v3823
  %v4101 = vunpack.c.h.b16 %v3823
  %v4102 = vunpack.c.l.b16 %v3824
  %v4103 = vunpack.c.h.b16 %v3824
  %v4104 = vunpack.c.l.b16 %v3825
  %v4105 = vunpack.c.h.b16 %v3825
  %v4106 = vunpack.c.l.b16 %v3826
  %v4107 = vunpack.c.h.b16 %v3826
  %v4108 = vunpack.c.l.b16 %v3827
  %v4109 = vunpack.c.h.b16 %v3827
  %v4110 = vunpack.c.l.b16 %v3828
  %v4111 = vunpack.c.h.b16 %v3828
  %v4112 = vunpack.c.l.b16 %v3829
  %v4113 = vunpack.c.h.b16 %v3829
  %v4114 = vunpack.c.l.b16 %v3830
  %v4115 = vunpack.c.h.b16 %v3830
  %v4116 = vunpack.c.l.b16 %v3831
  %v4117 = vunpack.c.h.b16 %v3831
  %v4118 = vunpack.c.l.b16 %v3832
  %v4119 = vunpack.c.h.b16 %v3832
  %v4120 = vunpack.c.l.b16 %v3833
  %v4121 = vunpack.c.h.b16 %v3833
  %v4122 = vunpack.c.l.b16 %v3834
  %v4123 = vunpack.c.h.b16 %v3834
  %v4124 = vunpack.c.l.b16 %v3835
  %v4125 = vunpack.c.h.b16 %v3835
  %v4126 = vunpack.c.l.b16 %v3836
  %v4127 = vunpack.c.h.b16 %v3836
  %v4128 = vunpack.c.l.b16 %v3837
  %v4129 = vunpack.c.h.b16 %v3837
  %v4130 = vunpack.c.l.b16 %v3838
  %v4131 = vunpack.c.h.b16 %v3838
  %v4132 = vunpack.c.l.b16 %v3839
  %v4133 = vunpack.c.h.b16 %v3839
  %v4134 = vunpack.c.l.b16 %v3840
  %v4135 = vunpack.c.h.b16 %v3840
  %v4136 = vunpack.c.l.b16 %v3841
  %v4137 = vunpack.c.h.b16 %v3841
  %v4138 = vunpack.c.l.b16 %v3842
  %v4139 = vunpack.c.h.b16 %v3842
  %v4140 = vunpack.c.l.b16 %v3843
  %v4141 = vunpack.c.h.b16 %v3843
  %v4142 = vunpack.c.l.b16 %v3844
  %v4143 = vunpack.c.h.b16 %v3844
  %v4144 = vunpack.c.l.b16 %v3845
  %v4145 = vunpack.c.h.b16 %v3845
  %v4146 = vunpack.c.l.b16 %v3846
  %v4147 = vunpack.c.h.b16 %v3846
  %v4148 = vunpack.c.l.b16 %v3847
  %v4149 = vunpack.c.h.b16 %v3847
  %v4150 = vunpack.c.l.b16 %v3848
  %v4151 = vunpack.c.h.b16 %v3848
  %v4152 = vunpack.c.l.b16 %v3849
  %v4153 = vunpack.c.h.b16 %v3849
  %v4154 = vunpack.c.l.b16 %v3850
  %v4155 = vunpack.c.h.b16 %v3850
  %v4156 = vunpack.c.l.b16 %v3851
  %v4157 = vunpack.c.h.b16 %v3851
  %v4158 = vunpack.c.l.b16 %v3852
  %v4159 = vunpack.c.h.b16 %v3852
  %v4160 = vunpack.c.l.b16 %v3853
  %v4161 = vunpack.c.h.b16 %v3853
  %v4162 = vunpack.c.l.b16 %v3854
  %v4163 = vunpack.c.h.b16 %v3854
  %v4164 = vunpack.c.l.b16 %v3855
  %v4165 = vunpack.c.h.b16 %v3855
  %v4166 = vunpack.c.l.b16 %v3856
  %v4167 = vunpack.c.h.b16 %v3856
  %v4168 = vunpack.c.l.b16 %v3857
  %v4169 = vunpack.c.h.b16 %v3857
  %v4170 = vunpack.c.l.b16 %v3858
  %v4171 = vunpack.c.h.b16 %v3858
  %v4172 = vunpack.c.l.b16 %v3859
  %v4173 = vunpack.c.h.b16 %v3859
  %v4174 = vunpack.c.l.b16 %v3860
  %v4175 = vunpack.c.h.b16 %v3860
  %v4176 = vunpack.c.l.b16 %v3861
  %v4177 = vunpack.c.h.b16 %v3861
  %v4178 = vunpack.c.l.b16 %v3862
  %v4179 = vunpack.c.h.b16 %v3862
  %v4180 = vunpack.c.l.b16 %v3863
  %v4181 = vunpack.c.h.b16 %v3863
  %v4182 = vunpack.c.l.b16 %v3864
  %v4183 = vunpack.c.h.b16 %v3864
  %v4184 = vunpack.c.l.b16 %v3865
  %v4185 = vunpack.c.h.b16 %v3865
  %v4186 = vunpack.c.l.b16 %v3866
  %v4187 = vunpack.c.h.b16 %v3866
  %v4188 = vunpack.c.l.b16 %v3867
  %v4189 = vunpack.c.h.b16 %v3867
  %v4190 = vunpack.c.l.b16 %v3868
  %v4191 = vunpack.c.h.b16 %v3868
  %v4192 = vunpack.c.l.b16 %v3869
  %v4193 = vunpack.c.h.b16 %v3869
  %v4194 = vunpack.c.l.b16 %v3870
  %v4195 = vunpack.c.h.b16 %v3870
  %v4196 = vunpack.c.l.b16 %v3871
  %v4197 = vunpack.c.h.b16 %v3871
  %v4198 = vunpack.c.l.b16 %v3872
  %v4199 = vunpack.c.h.b16 %v3872
  %v4200 = vunpack.c.l.b16 %v3873
  %v4201 = vunpack.c.h.b16 %v3873
  %v4202 = vunpack.c.l.b16 %v3874
  %v4203 = vunpack.c.h.b16 %v3874
  %v4204 = vunpack.c.l.b16 %v3875
  %v4205 = vunpack.c.h.b16 %v3875
  %v4206 = vunpack.c.l.b16 %v3876
  %v4207 = vunpack.c.h.b16 %v3876
  %v4208 = vunpack.c.l.b16 %v3877
  %v4209 = vunpack.c.h.b16 %v3877
  %v4210 = vunpack.c.l.b16 %v3878
  %v4211 = vunpack.c.h.b16 %v3878
  %v4212 = vunpack.c.l.b16 %v3879
  %v4213 = vunpack.c.h.b16 %v3879
  %v4214 = vunpack.c.l.b16 %v3880
  %v4215 = vunpack.c.h.b16 %v3880
  %v4216 = vunpack.c.l.b16 %v3881
  %v4217 = vunpack.c.h.b16 %v3881
  %v4218 = vunpack.c.l.b16 %v3882
  %v4219 = vunpack.c.h.b16 %v3882
  %v4220 = vunpack.c.l.b16 %v3883
  %v4221 = vunpack.c.h.b16 %v3883
  %v4222 = vunpack.c.l.b16 %v3884
  %v4223 = vunpack.c.h.b16 %v3884
  %v4224 = vunpack.c.l.b16 %v3885
  %v4225 = vunpack.c.h.b16 %v3885
  %v4226 = vunpack.c.l.b16 %v3886
  %v4227 = vunpack.c.h.b16 %v3886
  %v4228 = vunpack.c.l.b16 %v3887
  %v4229 = vunpack.c.h.b16 %v3887
  %v4230 = vunpack.c.l.b16 %v3888
  %v4231 = vunpack.c.h.b16 %v3888
  %v4232 = vunpack.c.l.b16 %v3889
  %v4233 = vunpack.c.h.b16 %v3889
  %v4234 = vunpack.c.l.b16 %v3890
  %v4235 = vunpack.c.h.b16 %v3890
  %v4236 = vunpack.c.l.b16 %v3891
  %v4237 = vunpack.c.h.b16 %v3891
  %v4238 = vunpack.c.l.b16 %v3892
  %v4239 = vunpack.c.h.b16 %v3892
  %v4240 = vunpack.c.l.b16 %v3893
  %v4241 = vunpack.c.h.b16 %v3893
  %v4242 = vunpack.c.l.b16 %v3894
  %v4243 = vunpack.c.h.b16 %v3894
  %v4244 = vunpack.c.l.b16 %v3895
  %v4245 = vunpack.c.h.b16 %v3895
  %v4246 = vunpack.c.l.b16 %v3896
  %v4247 = vunpack.c.h.b16 %v3896
  %v4248 = vunpack.c.l.b16 %v3897
  %v4249 = vunpack.c.h.b16 %v3897
  %v4250 = vunpack.c.l.b16 %v3898
  %v4251 = vunpack.c.h.b16 %v3898
  %v4252 = vunpack.c.l.b16 %v3899
  %v4253 = vunpack.c.h.b16 %v3899
  %v4254 = vunpack.c.l.b16 %v3900
  %v4255 = vunpack.c.h.b16 %v3900
  %v4256 = vunpack.c.l.b16 %v3901
  %v4257 = vunpack.c.h.b16 %v3901
  %v4258 = vunpack.c.l.b16 %v3902
  %v4259 = vunpack.c.h.b16 %v3902
  %v4260 = vunpack.c.l.b16 %v3903
  %v4261 = vunpack.c.h.b16 %v3903
  %v4262 = vunpack.c.l.b16 %v3904
  %v4263 = vunpack.c.h.b16 %v3904
  %v4264 = vunpack.c.l.b16 %v3905
  %v4265 = vunpack.c.h.b16 %v3905
  %v4266 = vunpack.c.l.b16 %v3906
  %v4267 = vunpack.c.h.b16 %v3906
  %v4268 = vunpack.c.l.b16 %v3907
  %v4269 = vunpack.c.h.b16 %v3907
  %v4270 = vunpack.c.l.b16 %v3908
  %v4271 = vunpack.c.h.b16 %v3908
  %v4272 = vunpack.c.l.b16 %v3909
  %v4273 = vunpack.c.h.b16 %v3909
  %v4274 = vunpack.c.l.b16 %v3910
  %v4275 = vunpack.c.h.b16 %v3910
  %v4276 = vunpack.c.l.b16 %v3911
  %v4277 = vunpack.c.h.b16 %v3911
  %v4278 = vunpack.c.l.b16 %v3912
  %v4279 = vunpack.c.h.b16 %v3912
  %v4280 = vunpack.c.l.b16 %v3913
  %v4281 = vunpack.c.h.b16 %v3913
  %v4282 = vunpack.c.l.b16 %v3914
  %v4283 = vunpack.c.h.b16 %v3914
  %v4284 = vunpack.c.l.b16 %v3915
  %v4285 = vunpack.c.h.b16 %v3915
  %v4286 = vunpack.c.l.b16 %v3916
  %v4287 = vunpack.c.h.b16 %v3916
  %v4288 = vunpack.c.l.b16 %v3917
  %v4289 = vunpack.c.h.b16 %v3917
  %v4290 = vunpack.c.l.b16 %v3918
  %v4291 = vunpack.c.h.b16 %v3918
  %v4292 = vunpack.c.l.b16 %v3919
  %v4293 = vunpack.c.h.b16 %v3919
  %v4294 = vunpack.c.l.b16 %v3920
  %v4295 = vunpack.c.h.b16 %v3920
  %v4296 = vunpack.c.l.b16 %v3921
  %v4297 = vunpack.c.h.b16 %v3921
  %v4298 = vunpack.c.l.b16 %v3922
  %v4299 = vunpack.c.h.b16 %v3922
  %v4300 = vunpack.c.l.b16 %v3923
  %v4301 = vunpack.c.h.b16 %v3923
  %v4302 = vunpack.c.l.b16 %v3924
  %v4303 = vunpack.c.h.b16 %v3924
  %v4304 = vunpack.c.l.b16 %v3925
  %v4305 = vunpack.c.h.b16 %v3925
  %v4306 = vunpack.c.l.b16 %v3926
  %v4307 = vunpack.c.h.b16 %v3926
  %v4308 = vunpack.c.l.b16 %v3927
  %v4309 = vunpack.c.h.b16 %v3927
  %v4310 = vunpack.c.l.b16 %v3928
  %v4311 = vunpack.c.h.b16 %v3928
  %v4312 = vunpack.c.l.b16 %v3929
  %v4313 = vunpack.c.h.b16 %v3929
  %v4314 = vpack.c.b16 %v4066, %v4058
  %v4315 = vpack.c.b16 %v4067, %v4059
  %v4316 = vpack.c.b16 %v4068, %v4060
  %v4317 = vpack.c.b16 %v4069, %v4061
  %v4318 = vpack.c.b16 %v4070, %v4062
  %v4319 = vpack.c.b16 %v4071, %v4063
  %v4320 = vpack.c.b16 %v4072, %v4064
  %v4321 = vpack.c.b16 %v4073, %v4065
  %v4322 = vpack.c.b16 %v4082, %v4074
  %v4323 = vpack.c.b16 %v4083, %v4075
  %v4324 = vpack.c.b16 %v4084, %v4076
  %v4325 = vpack.c.b16 %v4085, %v4077
  %v4326 = vpack.c.b16 %v4086, %v4078
  %v4327 = vpack.c.b16 %v4087, %v4079
  %v4328 = vpack.c.b16 %v4088, %v4080
  %v4329 = vpack.c.b16 %v4089, %v4081
  %v4330 = vpack.c.b16 %v4098, %v4090
  %v4331 = vpack.c.b16 %v4099, %v4091
  %v4332 = vpack.c.b16 %v4100, %v4092
  %v4333 = vpack.c.b16 %v4101, %v4093
  %v4334 = vpack.c.b16 %v4102, %v4094
  %v4335 = vpack.c.b16 %v4103, %v4095
  %v4336 = vpack.c.b16 %v4104, %v4096
  %v4337 = vpack.c.b16 %v4105, %v4097
  %v4338 = vpack.c.b16 %v4114, %v4106
  %v4339 = vpack.c.b16 %v4115, %v4107
  %v4340 = vpack.c.b16 %v4116, %v4108
  %v4341 = vpack.c.b16 %v4117, %v4109
  %v4342 = vpack.c.b16 %v4118, %v4110
  %v4343 = vpack.c.b16 %v4119, %v4111
  %v4344 = vpack.c.b16 %v4120, %v4112
  %v4345 = vpack.c.b16 %v4121, %v4113
  %v4346 = vpack.c.b16 %v4130, %v4122
  %v4347 = vpack.c.b16 %v4131, %v4123
  %v4348 = vpack.c.b16 %v4132, %v4124
  %v4349 = vpack.c.b16 %v4133, %v4125
  %v4350 = vpack.c.b16 %v4134, %v4126
  %v4351 = vpack.c.b16 %v4135, %v4127
  %v4352 = vpack.c.b16 %v4136, %v4128
  %v4353 = vpack.c.b16 %v4137, %v4129
  %v4354 = vpack.c.b16 %v4146, %v4138
  %v4355 = vpack.c.b16 %v4147, %v4139
  %v4356 = vpack.c.b16 %v4148, %v4140
  %v4357 = vpack.c.b16 %v4149, %v4141
  %v4358 = vpack.c.b16 %v4150, %v4142
  %v4359 = vpack.c.b16 %v4151, %v4143
  %v4360 = vpack.c.b16 %v4152, %v4144
  %v4361 = vpack.c.b16 %v4153, %v4145
  %v4362 = vpack.c.b16 %v4162, %v4154
  %v4363 = vpack.c.b16 %v4163, %v4155
  %v4364 = vpack.c.b16 %v4164, %v4156
  %v4365 = vpack.c.b16 %v4165, %v4157
  %v4366 = vpack.c.b16 %v4166, %v4158
  %v4367 = vpack.c.b16 %v4167, %v4159
  %v4368 = vpack.c.b16 %v4168, %v4160
  %v4369 = vpack.c.b16 %v4169, %v4161
  %v4370 = vpack.c.b16 %v4178, %v4170
  %v4371 = vpack.c.b16 %v4179, %v4171
  %v4372 = vpack.c.b16 %v4180, %v4172
  %v4373 = vpack.c.b16 %v4181, %v4173
  %v4374 = vpack.c.b16 %v4182, %v4174
  %v4375 = vpack.c.b16 %v4183, %v4175
  %v4376 = vpack.c.b16 %v4184, %v4176
  %v4377 = vpack.c.b16 %v4185, %v4177
  %v4378 = vpack.c.b16 %v4194, %v4186
  %v4379 = vpack.c.b16 %v4195, %v4187
  %v4380 = vpack.c.b16 %v4196, %v4188
  %v4381 = vpack.c.b16 %v4197, %v4189
  %v4382 = vpack.c.b16 %v4198, %v4190
  %v4383 = vpack.c.b16 %v4199, %v4191
  %v4384 = vpack.c.b16 %v4200, %v4192
  %v4385 = vpack.c.b16 %v4201, %v4193
  %v4386 = vpack.c.b16 %v4210, %v4202
  %v4387 = vpack.c.b16 %v4211, %v4203
  %v4388 = vpack.c.b16 %v4212, %v4204
  %v4389 = vpack.c.b16 %v4213, %v4205
  %v4390 = vpack.c.b16 %v4214, %v4206
  %v4391 = vpack.c.b16 %v4215, %v4207
  %v4392 = vpack.c.b16 %v4216, %v4208
  %v4393 = vpack.c.b16 %v4217, %v4209
  %v4394 = vpack.c.b16 %v4226, %v4218
  %v4395 = vpack.c.b16 %v4227, %v4219
  %v4396 = vpack.c.b16 %v4228, %v4220
  %v4397 = vpack.c.b16 %v4229, %v4221
  %v4398 = vpack.c.b16 %v4230, %v4222
  %v4399 = vpack.c.b16 %v4231, %v4223
  %v4400 = vpack.c.b16 %v4232, %v4224
  %v4401 = vpack.c.b16 %v4233, %v4225
  %v4402 = vpack.c.b16 %v4242, %v4234
  %v4403 = vpack.c.b16 %v4243, %v4235
  %v4404 = vpack.c.b16 %v4244, %v4236
  %v4405 = vpack.c.b16 %v4245, %v4237
  %v4406 = vpack.c.b16 %v4246, %v4238
  %v4407 = vpack.c.b16 %v4247, %v4239
  %v4408 = vpack.c.b16 %v4248, %v4240
  %v4409 = vpack.c.b16 %v4249, %v4241
  %v4410 = vpack.c.b16 %v4258, %v4250
  %v4411 = vpack.c.b16 %v4259, %v4251
  %v4412 = vpack.c.b16 %v4260, %v4252
  %v4413 = vpack.c.b16 %v4261, %v4253
  %v4414 = vpack.c.b16 %v4262, %v4254
  %v4415 = vpack.c.b16 %v4263, %v4255
  %v4416 = vpack.c.b16 %v4264, %v4256
  %v4417 = vpack.c.b16 %v4265, %v4257
  %v4418 = vpack.c.b16 %v4274, %v4266
  %v4419 = vpack.c.b16 %v4275, %v4267
  %v4420 = vpack.c.b16 %v4276, %v4268
  %v4421 = vpack.c.b16 %v4277, %v4269
  %v4422 = vpack.c.b16 %v4278, %v4270
  %v4423 = vpack.c.b16 %v4279, %v4271
  %v4424 = vpack.c.b16 %v4280, %v4272
  %v4425 = vpack.c.b16 %v4281, %v4273
  %v4426 = vpack.c.b16 %v4290, %v4282
  %v4427 = vpack.c.b16 %v4291, %v4283
  %v4428 = vpack.c.b16 %v4292, %v4284
  %v4429 = vpack.c.b16 %v4293, %v4285
  %v4430 = vpack.c.b16 %v4294, %v4286
  %v4431 = vpack.c.b16 %v4295, %v4287
  %v4432 = vpack.c.b16 %v4296, %v4288
  %v4433 = vpack.c.b16 %v4297, %v4289
  %v4434 = vpack.c.b16 %v4306, %v4298
  %v4435 = vpack.c.b16 %v4307, %v4299
  %v4436 = vpack.c.b16 %v4308, %v4300
  %v4437 = vpack.c.b16 %v4309, %v4301
  %v4438 = vpack.c.b16 %v4310, %v4302
  %v4439 = vpack.c.b16 %v4311, %v4303
  %v4440 = vpack.c.b16 %v4312, %v4304
  %v4441 = vpack.c.b16 %v4313, %v4305
  %4570 = vmatpush.bf16.msra.mxu0 %v4370
  %4571 = vmatpush.bf16.msra.mxu0 %v4362
  %4572 = vmatpush.bf16.msra.mxu0 %v4354
  %4573 = vmatpush.bf16.msra.mxu0 %v4346
  %4574 = vmatpush.bf16.msra.mxu0 %v4338
  %4575 = vmatpush.bf16.msra.mxu0 %v4330
  %4576 = vmatpush.bf16.msra.mxu0 %v4322
  %4577 = vmatpush.bf16.msra.mxu0 %v4314
  %4578 = vmatmul.bf16.gmra.mxu0 %v3800
  %v4579 = vpop.f32.mrf.mxu0
  %v4580 = vadd.f32 0.0, %v4579
  %v4581 = vpop.f32.mrf.mxu0
  %4582 = vdwg.mxu0
  %4583 = vmatpush.bf16.msra.mxu0 %v4434
  %4584 = vmatpush.bf16.msra.mxu0 %v4426
  %4585 = vmatpush.bf16.msra.mxu0 %v4418
  %4586 = vmatpush.bf16.msra.mxu0 %v4410
  %4587 = vmatpush.bf16.msra.mxu0 %v4402
  %4588 = vmatpush.bf16.msra.mxu0 %v4394
  %4589 = vmatpush.bf16.msra.mxu0 %v4386
  %4590 = vmatpush.bf16.msra.mxu0 %v4378
  %4591 = vmatmul.bf16.gmra.mxu0 %v3801
  %v4592 = vpop.f32.mrf.mxu0
  %v4593 = vadd.f32 %v4580, %v4592
  %v4594 = vpop.f32.mrf.mxu0
  %4595 = vdwg.mxu0
  %4596 = vmatpush.bf16.msra.mxu0 %v4371
  %4597 = vmatpush.bf16.msra.mxu0 %v4363
  %4598 = vmatpush.bf16.msra.mxu0 %v4355
  %4599 = vmatpush.bf16.msra.mxu0 %v4347
  %4600 = vmatpush.bf16.msra.mxu0 %v4339
  %4601 = vmatpush.bf16.msra.mxu0 %v4331
  %4602 = vmatpush.bf16.msra.mxu0 %v4323
  %4603 = vmatpush.bf16.msra.mxu0 %v4315
  %4604 = vmatmul.bf16.gmra.mxu0 %v3800
  %v4605 = vpop.f32.mrf.mxu0
  %v4606 = vadd.f32 0.0, %v4605
  %v4607 = vpop.f32.mrf.mxu0
  %4608 = vdwg.mxu0
  %4609 = vmatpush.bf16.msra.mxu0 %v4435
  %4610 = vmatpush.bf16.msra.mxu0 %v4427
  %4611 = vmatpush.bf16.msra.mxu0 %v4419
  %4612 = vmatpush.bf16.msra.mxu0 %v4411
  %4613 = vmatpush.bf16.msra.mxu0 %v4403
  %4614 = vmatpush.bf16.msra.mxu0 %v4395
  %4615 = vmatpush.bf16.msra.mxu0 %v4387
  %4616 = vmatpush.bf16.msra.mxu0 %v4379
  %4617 = vmatmul.bf16.gmra.mxu0 %v3801
  %v4618 = vpop.f32.mrf.mxu0
  %v4619 = vadd.f32 %v4606, %v4618
  %v4620 = vpop.f32.mrf.mxu0
  %4621 = vdwg.mxu0
  %4622 = vmatpush.bf16.msra.mxu0 %v4372
  %4623 = vmatpush.bf16.msra.mxu0 %v4364
  %4624 = vmatpush.bf16.msra.mxu0 %v4356
  %4625 = vmatpush.bf16.msra.mxu0 %v4348
  %4626 = vmatpush.bf16.msra.mxu0 %v4340
  %4627 = vmatpush.bf16.msra.mxu0 %v4332
  %4628 = vmatpush.bf16.msra.mxu0 %v4324
  %4629 = vmatpush.bf16.msra.mxu0 %v4316
  %4630 = vmatmul.bf16.gmra.mxu0 %v3800
  %v4631 = vpop.f32.mrf.mxu0
  %v4632 = vadd.f32 0.0, %v4631
  %v4633 = vpop.f32.mrf.mxu0
  %4634 = vdwg.mxu0
  %4635 = vmatpush.bf16.msra.mxu0 %v4436
  %4636 = vmatpush.bf16.msra.mxu0 %v4428
  %4637 = vmatpush.bf16.msra.mxu0 %v4420
  %4638 = vmatpush.bf16.msra.mxu0 %v4412
  %4639 = vmatpush.bf16.msra.mxu0 %v4404
  %4640 = vmatpush.bf16.msra.mxu0 %v4396
  %4641 = vmatpush.bf16.msra.mxu0 %v4388
  %4642 = vmatpush.bf16.msra.mxu0 %v4380
  %4643 = vmatmul.bf16.gmra.mxu0 %v3801
  %v4644 = vpop.f32.mrf.mxu0
  %v4645 = vadd.f32 %v4632, %v4644
  %v4646 = vpop.f32.mrf.mxu0
  %4647 = vdwg.mxu0
  %4648 = vmatpush.bf16.msra.mxu0 %v4373
  %4649 = vmatpush.bf16.msra.mxu0 %v4365
  %4650 = vmatpush.bf16.msra.mxu0 %v4357
  %4651 = vmatpush.bf16.msra.mxu0 %v4349
  %4652 = vmatpush.bf16.msra.mxu0 %v4341
  %4653 = vmatpush.bf16.msra.mxu0 %v4333
  %4654 = vmatpush.bf16.msra.mxu0 %v4325
  %4655 = vmatpush.bf16.msra.mxu0 %v4317
  %4656 = vmatmul.bf16.gmra.mxu0 %v3800
  %v4657 = vpop.f32.mrf.mxu0
  %v4658 = vadd.f32 0.0, %v4657
  %v4659 = vpop.f32.mrf.mxu0
  %4660 = vdwg.mxu0
  %4661 = vmatpush.bf16.msra.mxu0 %v4437
  %4662 = vmatpush.bf16.msra.mxu0 %v4429
  %4663 = vmatpush.bf16.msra.mxu0 %v4421
  %4664 = vmatpush.bf16.msra.mxu0 %v4413
  %4665 = vmatpush.bf16.msra.mxu0 %v4405
  %4666 = vmatpush.bf16.msra.mxu0 %v4397
  %4667 = vmatpush.bf16.msra.mxu0 %v4389
  %4668 = vmatpush.bf16.msra.mxu0 %v4381
  %4669 = vmatmul.bf16.gmra.mxu0 %v3801
  %v4670 = vpop.f32.mrf.mxu0
  %v4671 = vadd.f32 %v4658, %v4670
  %v4672 = vpop.f32.mrf.mxu0
  %4673 = vdwg.mxu0
  %4674 = vmatpush.bf16.msra.mxu0 %v4374
  %4675 = vmatpush.bf16.msra.mxu0 %v4366
  %4676 = vmatpush.bf16.msra.mxu0 %v4358
  %4677 = vmatpush.bf16.msra.mxu0 %v4350
  %4678 = vmatpush.bf16.msra.mxu0 %v4342
  %4679 = vmatpush.bf16.msra.mxu0 %v4334
  %4680 = vmatpush.bf16.msra.mxu0 %v4326
  %4681 = vmatpush.bf16.msra.mxu0 %v4318
  %4682 = vmatmul.bf16.gmra.mxu0 %v3800
  %v4683 = vpop.f32.mrf.mxu0
  %v4684 = vadd.f32 0.0, %v4683
  %v4685 = vpop.f32.mrf.mxu0
  %4686 = vdwg.mxu0
  %4687 = vmatpush.bf16.msra.mxu0 %v4438
  %4688 = vmatpush.bf16.msra.mxu0 %v4430
  %4689 = vmatpush.bf16.msra.mxu0 %v4422
  %4690 = vmatpush.bf16.msra.mxu0 %v4414
  %4691 = vmatpush.bf16.msra.mxu0 %v4406
  %4692 = vmatpush.bf16.msra.mxu0 %v4398
  %4693 = vmatpush.bf16.msra.mxu0 %v4390
  %4694 = vmatpush.bf16.msra.mxu0 %v4382
  %4695 = vmatmul.bf16.gmra.mxu0 %v3801
  %v4696 = vpop.f32.mrf.mxu0
  %v4697 = vadd.f32 %v4684, %v4696
  %v4698 = vpop.f32.mrf.mxu0
  %4699 = vdwg.mxu0
  %4700 = vmatpush.bf16.msra.mxu0 %v4375
  %4701 = vmatpush.bf16.msra.mxu0 %v4367
  %4702 = vmatpush.bf16.msra.mxu0 %v4359
  %4703 = vmatpush.bf16.msra.mxu0 %v4351
  %4704 = vmatpush.bf16.msra.mxu0 %v4343
  %4705 = vmatpush.bf16.msra.mxu0 %v4335
  %4706 = vmatpush.bf16.msra.mxu0 %v4327
  %4707 = vmatpush.bf16.msra.mxu0 %v4319
  %4708 = vmatmul.bf16.gmra.mxu0 %v3800
  %v4709 = vpop.f32.mrf.mxu0
  %v4710 = vadd.f32 0.0, %v4709
  %v4711 = vpop.f32.mrf.mxu0
  %4712 = vdwg.mxu0
  %4713 = vmatpush.bf16.msra.mxu0 %v4439
  %4714 = vmatpush.bf16.msra.mxu0 %v4431
  %4715 = vmatpush.bf16.msra.mxu0 %v4423
  %4716 = vmatpush.bf16.msra.mxu0 %v4415
  %4717 = vmatpush.bf16.msra.mxu0 %v4407
  %4718 = vmatpush.bf16.msra.mxu0 %v4399
  %4719 = vmatpush.bf16.msra.mxu0 %v4391
  %4720 = vmatpush.bf16.msra.mxu0 %v4383
  %4721 = vmatmul.bf16.gmra.mxu0 %v3801
  %v4722 = vpop.f32.mrf.mxu0
  %v4723 = vadd.f32 %v4710, %v4722
  %v4724 = vpop.f32.mrf.mxu0
  %4725 = vdwg.mxu0
  %4726 = vmatpush.bf16.msra.mxu0 %v4376
  %4727 = vmatpush.bf16.msra.mxu0 %v4368
  %4728 = vmatpush.bf16.msra.mxu0 %v4360
  %4729 = vmatpush.bf16.msra.mxu0 %v4352
  %4730 = vmatpush.bf16.msra.mxu0 %v4344
  %4731 = vmatpush.bf16.msra.mxu0 %v4336
  %4732 = vmatpush.bf16.msra.mxu0 %v4328
  %4733 = vmatpush.bf16.msra.mxu0 %v4320
  %4734 = vmatmul.bf16.gmra.mxu0 %v3800
  %v4735 = vpop.f32.mrf.mxu0
  %v4736 = vadd.f32 0.0, %v4735
  %v4737 = vpop.f32.mrf.mxu0
  %4738 = vdwg.mxu0
  %4739 = vmatpush.bf16.msra.mxu0 %v4440
  %4740 = vmatpush.bf16.msra.mxu0 %v4432
  %4741 = vmatpush.bf16.msra.mxu0 %v4424
  %4742 = vmatpush.bf16.msra.mxu0 %v4416
  %4743 = vmatpush.bf16.msra.mxu0 %v4408
  %4744 = vmatpush.bf16.msra.mxu0 %v4400
  %4745 = vmatpush.bf16.msra.mxu0 %v4392
  %4746 = vmatpush.bf16.msra.mxu0 %v4384
  %4747 = vmatmul.bf16.gmra.mxu0 %v3801
  %v4748 = vpop.f32.mrf.mxu0
  %v4749 = vadd.f32 %v4736, %v4748
  %v4750 = vpop.f32.mrf.mxu0
  %4751 = vdwg.mxu0
  %4752 = vmatpush.bf16.msra.mxu0 %v4377
  %4753 = vmatpush.bf16.msra.mxu0 %v4369
  %4754 = vmatpush.bf16.msra.mxu0 %v4361
  %4755 = vmatpush.bf16.msra.mxu0 %v4353
  %4756 = vmatpush.bf16.msra.mxu0 %v4345
  %4757 = vmatpush.bf16.msra.mxu0 %v4337
  %4758 = vmatpush.bf16.msra.mxu0 %v4329
  %4759 = vmatpush.bf16.msra.mxu0 %v4321
  %4760 = vmatmul.bf16.gmra.mxu0 %v3800
  %v4761 = vpop.f32.mrf.mxu0
  %v4762 = vadd.f32 0.0, %v4761
  %v4763 = vpop.f32.mrf.mxu0
  %4764 = vdwg.mxu0
  %4765 = vmatpush.bf16.msra.mxu0 %v4441
  %4766 = vmatpush.bf16.msra.mxu0 %v4433
  %4767 = vmatpush.bf16.msra.mxu0 %v4425
  %4768 = vmatpush.bf16.msra.mxu0 %v4417
  %4769 = vmatpush.bf16.msra.mxu0 %v4409
  %4770 = vmatpush.bf16.msra.mxu0 %v4401
  %4771 = vmatpush.bf16.msra.mxu0 %v4393
  %4772 = vmatpush.bf16.msra.mxu0 %v4385
  %4773 = vmatmul.bf16.gmra.mxu0 %v3801
  %v4774 = vpop.f32.mrf.mxu0
  %v4775 = vadd.f32 %v4762, %v4774
  %v4776 = vpop.f32.mrf.mxu0
  %4777 = vdwg.mxu0
  %v4778 = vld [vmem:[#allocation2 + $0x60] sm:$0xff]
  %v4779 = vld [vmem:[#allocation2 + $0x68] sm:$0xff]
  %v4780 = vld [vmem:[#allocation2 + $0x70] sm:$0xff]
  %v4781 = vld [vmem:[#allocation2 + $0x78] sm:$0xff]
  %v4782 = vadd.f32 %v4778, %v4593
  %v4783 = vadd.f32 %v4779, %v4619
  %v4784 = vadd.f32 %v4780, %v4645
  %v4785 = vadd.f32 %v4781, %v4671
  %v4786 = vld [vmem:[#allocation3 + $0x80] sm:$0xff]
  %v4787 = vld [vmem:[#allocation3 + $0x88] sm:$0xff]
  %v4788 = vld [vmem:[#allocation3 + $0x90] sm:$0xff]
  %v4789 = vld [vmem:[#allocation3 + $0x98] sm:$0xff]
  %v4790 = vadd.f32 %v4786, %v4697
  %v4791 = vadd.f32 %v4787, %v4723
  %v4792 = vadd.f32 %v4788, %v4749
  %v4793 = vadd.f32 %v4789, %v4775
  %v4794 = vxor.u32 %v4782, 2147483648
  %v4795 = vmul.f32 %v4794, 1.442695
  %v4796 = vpow.pop %v4795
  %v4797 = vadd.f32 %v4796, 1.0
  %v4798 = vrcp.pop %v4797
  %v4799 = vmul.f32 %v4797, %v4798
  %v4800 = vsub.f32 1.0, %v4799
  %v4801 = vmul.f32 %v4798, %v4800
  %v4802 = vadd.f32 %v4798, %v4801
  %vm4803 = vweird.f32 %v4797
  %vm4804 = vweird.f32 %v4798
  %vm4805 = vmor %vm4803, %vm4804
  %v4806 = vsel %vm4805, %v4798, %v4802
  %v4807 = vand.u32 2147483647, %v4797
  %vm4808 = vcmp.eq.f32.partialorder %v4807, 8.507059e+37
  %v4809 = vand.u32 %v4797, 2147483648
  %v4810 = vor.u32 1.1754944e-38, %v4809
  %v4811 = vsel %vm4808, %v4810, %v4806
  %v4812 = vmul.f32 1.0, %v4811
  %v4813 = vxor.u32 %v4783, 2147483648
  %v4814 = vmul.f32 %v4813, 1.442695
  %v4815 = vpow.pop %v4814
  %v4816 = vadd.f32 %v4815, 1.0
  %v4817 = vrcp.pop %v4816
  %v4818 = vmul.f32 %v4816, %v4817
  %v4819 = vsub.f32 1.0, %v4818
  %v4820 = vmul.f32 %v4817, %v4819
  %v4821 = vadd.f32 %v4817, %v4820
  %vm4822 = vweird.f32 %v4816
  %vm4823 = vweird.f32 %v4817
  %vm4824 = vmor %vm4822, %vm4823
  %v4825 = vsel %vm4824, %v4817, %v4821
  %v4826 = vand.u32 2147483647, %v4816
  %vm4827 = vcmp.eq.f32.partialorder %v4826, 8.507059e+37
  %v4828 = vand.u32 %v4816, 2147483648
  %v4829 = vor.u32 1.1754944e-38, %v4828
  %v4830 = vsel %vm4827, %v4829, %v4825
  %v4831 = vmul.f32 1.0, %v4830
  %v4832 = vtanh.pop %v4784
  %v4833 = vxor.u32 %v4785, 2147483648
  %v4834 = vmul.f32 %v4833, 1.442695
  %v4835 = vpow.pop %v4834
  %v4836 = vadd.f32 %v4835, 1.0
  %v4837 = vrcp.pop %v4836
  %v4838 = vmul.f32 %v4836, %v4837
  %v4839 = vsub.f32 1.0, %v4838
  %v4840 = vmul.f32 %v4837, %v4839
  %v4841 = vadd.f32 %v4837, %v4840
  %vm4842 = vweird.f32 %v4836
  %vm4843 = vweird.f32 %v4837
  %vm4844 = vmor %vm4842, %vm4843
  %v4845 = vsel %vm4844, %v4837, %v4841
  %v4846 = vand.u32 2147483647, %v4836
  %vm4847 = vcmp.eq.f32.partialorder %v4846, 8.507059e+37
  %v4848 = vand.u32 %v4836, 2147483648
  %v4849 = vor.u32 1.1754944e-38, %v4848
  %v4850 = vsel %vm4847, %v4849, %v4845
  %v4851 = vmul.f32 1.0, %v4850
  %v4852 = vmul.f32 %v4831, %v3732
  %v4853 = vmul.f32 %v4812, %v4832
  %v4854 = vadd.f32 %v4852, %v4853
  %v4855 = vtanh.pop %v4854
  %v4856 = vmul.f32 %v4851, %v4855
  %v4857 = vxor.u32 %v4790, 2147483648
  %v4858 = vmul.f32 %v4857, 1.442695
  %v4859 = vpow.pop %v4858
  %v4860 = vadd.f32 %v4859, 1.0
  %v4861 = vrcp.pop %v4860
  %v4862 = vmul.f32 %v4860, %v4861
  %v4863 = vsub.f32 1.0, %v4862
  %v4864 = vmul.f32 %v4861, %v4863
  %v4865 = vadd.f32 %v4861, %v4864
  %vm4866 = vweird.f32 %v4860
  %vm4867 = vweird.f32 %v4861
  %vm4868 = vmor %vm4866, %vm4867
  %v4869 = vsel %vm4868, %v4861, %v4865
  %v4870 = vand.u32 2147483647, %v4860
  %vm4871 = vcmp.eq.f32.partialorder %v4870, 8.507059e+37
  %v4872 = vand.u32 %v4860, 2147483648
  %v4873 = vor.u32 1.1754944e-38, %v4872
  %v4874 = vsel %vm4871, %v4873, %v4869
  %v4875 = vmul.f32 1.0, %v4874
  %v4876 = vxor.u32 %v4791, 2147483648
  %v4877 = vmul.f32 %v4876, 1.442695
  %v4878 = vpow.pop %v4877
  %v4879 = vadd.f32 %v4878, 1.0
  %v4880 = vrcp.pop %v4879
  %v4881 = vmul.f32 %v4879, %v4880
  %v4882 = vsub.f32 1.0, %v4881
  %v4883 = vmul.f32 %v4880, %v4882
  %v4884 = vadd.f32 %v4880, %v4883
  %vm4885 = vweird.f32 %v4879
  %vm4886 = vweird.f32 %v4880
  %vm4887 = vmor %vm4885, %vm4886
  %v4888 = vsel %vm4887, %v4880, %v4884
  %v4889 = vand.u32 2147483647, %v4879
  %vm4890 = vcmp.eq.f32.partialorder %v4889, 8.507059e+37
  %v4891 = vand.u32 %v4879, 2147483648
  %v4892 = vor.u32 1.1754944e-38, %v4891
  %v4893 = vsel %vm4890, %v4892, %v4888
  %v4894 = vmul.f32 1.0, %v4893
  %v4895 = vtanh.pop %v4792
  %v4896 = vxor.u32 %v4793, 2147483648
  %v4897 = vmul.f32 %v4896, 1.442695
  %v4898 = vpow.pop %v4897
  %v4899 = vadd.f32 %v4898, 1.0
  %v4900 = vrcp.pop %v4899
  %v4901 = vmul.f32 %v4899, %v4900
  %v4902 = vsub.f32 1.0, %v4901
  %v4903 = vmul.f32 %v4900, %v4902
  %v4904 = vadd.f32 %v4900, %v4903
  %vm4905 = vweird.f32 %v4899
  %vm4906 = vweird.f32 %v4900
  %vm4907 = vmor %vm4905, %vm4906
  %v4908 = vsel %vm4907, %v4900, %v4904
  %v4909 = vand.u32 2147483647, %v4899
  %vm4910 = vcmp.eq.f32.partialorder %v4909, 8.507059e+37
  %v4911 = vand.u32 %v4899, 2147483648
  %v4912 = vor.u32 1.1754944e-38, %v4911
  %v4913 = vsel %vm4910, %v4912, %v4908
  %v4914 = vmul.f32 1.0, %v4913
  %v4915 = vmul.f32 %v4894, %v3795
  %v4916 = vmul.f32 %v4875, %v4895
  %v4917 = vadd.f32 %v4915, %v4916
  %v4918 = vtanh.pop %v4917
  %v4919 = vmul.f32 %v4914, %v4918
  %4920 = vst [vmem:[#allocation5 + $0x30] sm:$0xff] %v4856
  %4921 = vst [vmem:[#allocation5 + $0x48] sm:$0xff] %v4919
  %v4922 = vpack.c.bf16 %v4856, %v4856
  %v4923 = vpack.c.bf16 %v4919, %v4919
  %v4924 = vld [vmem:[%s3] sm:$0xff]
  %v4925 = vld [vmem:[%s3 + $0x8] sm:$0xff]
  %v4926 = vld [vmem:[%s3 + $0x10] sm:$0xff]
  %v4927 = vld [vmem:[%s3 + $0x18] sm:$0xff]
  %v4928 = vld [vmem:[%s3 + $0x20] sm:$0xff]
  %v4929 = vld [vmem:[%s3 + $0x28] sm:$0xff]
  %v4930 = vld [vmem:[%s3 + $0x30] sm:$0xff]
  %v4931 = vld [vmem:[%s3 + $0x38] sm:$0xff]
  %v4932 = vld [vmem:[%s3 + $0x40] sm:$0xff]
  %v4933 = vld [vmem:[%s3 + $0x48] sm:$0xff]
  %v4934 = vld [vmem:[%s3 + $0x50] sm:$0xff]
  %v4935 = vld [vmem:[%s3 + $0x58] sm:$0xff]
  %v4936 = vld [vmem:[%s3 + $0x60] sm:$0xff]
  %v4937 = vld [vmem:[%s3 + $0x68] sm:$0xff]
  %v4938 = vld [vmem:[%s3 + $0x70] sm:$0xff]
  %v4939 = vld [vmem:[%s3 + $0x78] sm:$0xff]
  %v4940 = vld [vmem:[%s3 + $0x80] sm:$0xff]
  %v4941 = vld [vmem:[%s3 + $0x88] sm:$0xff]
  %v4942 = vld [vmem:[%s3 + $0x90] sm:$0xff]
  %v4943 = vld [vmem:[%s3 + $0x98] sm:$0xff]
  %v4944 = vld [vmem:[%s3 + $0xa0] sm:$0xff]
  %v4945 = vld [vmem:[%s3 + $0xa8] sm:$0xff]
  %v4946 = vld [vmem:[%s3 + $0xb0] sm:$0xff]
  %v4947 = vld [vmem:[%s3 + $0xb8] sm:$0xff]
  %v4948 = vld [vmem:[%s3 + $0xc0] sm:$0xff]
  %v4949 = vld [vmem:[%s3 + $0xc8] sm:$0xff]
  %v4950 = vld [vmem:[%s3 + $0xd0] sm:$0xff]
  %v4951 = vld [vmem:[%s3 + $0xd8] sm:$0xff]
  %v4952 = vld [vmem:[%s3 + $0xe0] sm:$0xff]
  %v4953 = vld [vmem:[%s3 + $0xe8] sm:$0xff]
  %v4954 = vld [vmem:[%s3 + $0xf0] sm:$0xff]
  %v4955 = vld [vmem:[%s3 + $0xf8] sm:$0xff]
  %v4956 = vld [vmem:[%s3 + $0x100] sm:$0xff]
  %v4957 = vld [vmem:[%s3 + $0x108] sm:$0xff]
  %v4958 = vld [vmem:[%s3 + $0x110] sm:$0xff]
  %v4959 = vld [vmem:[%s3 + $0x118] sm:$0xff]
  %v4960 = vld [vmem:[%s3 + $0x120] sm:$0xff]
  %v4961 = vld [vmem:[%s3 + $0x128] sm:$0xff]
  %v4962 = vld [vmem:[%s3 + $0x130] sm:$0xff]
  %v4963 = vld [vmem:[%s3 + $0x138] sm:$0xff]
  %v4964 = vld [vmem:[%s3 + $0x140] sm:$0xff]
  %v4965 = vld [vmem:[%s3 + $0x148] sm:$0xff]
  %v4966 = vld [vmem:[%s3 + $0x150] sm:$0xff]
  %v4967 = vld [vmem:[%s3 + $0x158] sm:$0xff]
  %v4968 = vld [vmem:[%s3 + $0x160] sm:$0xff]
  %v4969 = vld [vmem:[%s3 + $0x168] sm:$0xff]
  %v4970 = vld [vmem:[%s3 + $0x170] sm:$0xff]
  %v4971 = vld [vmem:[%s3 + $0x178] sm:$0xff]
  %v4972 = vld [vmem:[%s3 + $0x180] sm:$0xff]
  %v4973 = vld [vmem:[%s3 + $0x188] sm:$0xff]
  %v4974 = vld [vmem:[%s3 + $0x190] sm:$0xff]
  %v4975 = vld [vmem:[%s3 + $0x198] sm:$0xff]
  %v4976 = vld [vmem:[%s3 + $0x1a0] sm:$0xff]
  %v4977 = vld [vmem:[%s3 + $0x1a8] sm:$0xff]
  %v4978 = vld [vmem:[%s3 + $0x1b0] sm:$0xff]
  %v4979 = vld [vmem:[%s3 + $0x1b8] sm:$0xff]
  %v4980 = vld [vmem:[%s3 + $0x1c0] sm:$0xff]
  %v4981 = vld [vmem:[%s3 + $0x1c8] sm:$0xff]
  %v4982 = vld [vmem:[%s3 + $0x1d0] sm:$0xff]
  %v4983 = vld [vmem:[%s3 + $0x1d8] sm:$0xff]
  %v4984 = vld [vmem:[%s3 + $0x1e0] sm:$0xff]
  %v4985 = vld [vmem:[%s3 + $0x1e8] sm:$0xff]
  %v4986 = vld [vmem:[%s3 + $0x1f0] sm:$0xff]
  %v4987 = vld [vmem:[%s3 + $0x1f8] sm:$0xff]
  %v4988 = vld [vmem:[%s3 + $0x200] sm:$0xff]
  %v4989 = vld [vmem:[%s3 + $0x208] sm:$0xff]
  %v4990 = vld [vmem:[%s3 + $0x210] sm:$0xff]
  %v4991 = vld [vmem:[%s3 + $0x218] sm:$0xff]
  %v4992 = vld [vmem:[%s3 + $0x220] sm:$0xff]
  %v4993 = vld [vmem:[%s3 + $0x228] sm:$0xff]
  %v4994 = vld [vmem:[%s3 + $0x230] sm:$0xff]
  %v4995 = vld [vmem:[%s3 + $0x238] sm:$0xff]
  %v4996 = vld [vmem:[%s3 + $0x240] sm:$0xff]
  %v4997 = vld [vmem:[%s3 + $0x248] sm:$0xff]
  %v4998 = vld [vmem:[%s3 + $0x250] sm:$0xff]
  %v4999 = vld [vmem:[%s3 + $0x258] sm:$0xff]
  %v5000 = vld [vmem:[%s3 + $0x260] sm:$0xff]
  %v5001 = vld [vmem:[%s3 + $0x268] sm:$0xff]
  %v5002 = vld [vmem:[%s3 + $0x270] sm:$0xff]
  %v5003 = vld [vmem:[%s3 + $0x278] sm:$0xff]
  %v5004 = vld [vmem:[%s3 + $0x280] sm:$0xff]
  %v5005 = vld [vmem:[%s3 + $0x288] sm:$0xff]
  %v5006 = vld [vmem:[%s3 + $0x290] sm:$0xff]
  %v5007 = vld [vmem:[%s3 + $0x298] sm:$0xff]
  %v5008 = vld [vmem:[%s3 + $0x2a0] sm:$0xff]
  %v5009 = vld [vmem:[%s3 + $0x2a8] sm:$0xff]
  %v5010 = vld [vmem:[%s3 + $0x2b0] sm:$0xff]
  %v5011 = vld [vmem:[%s3 + $0x2b8] sm:$0xff]
  %v5012 = vld [vmem:[%s3 + $0x2c0] sm:$0xff]
  %v5013 = vld [vmem:[%s3 + $0x2c8] sm:$0xff]
  %v5014 = vld [vmem:[%s3 + $0x2d0] sm:$0xff]
  %v5015 = vld [vmem:[%s3 + $0x2d8] sm:$0xff]
  %v5016 = vld [vmem:[%s3 + $0x2e0] sm:$0xff]
  %v5017 = vld [vmem:[%s3 + $0x2e8] sm:$0xff]
  %v5018 = vld [vmem:[%s3 + $0x2f0] sm:$0xff]
  %v5019 = vld [vmem:[%s3 + $0x2f8] sm:$0xff]
  %v5020 = vld [vmem:[%s3 + $0x300] sm:$0xff]
  %v5021 = vld [vmem:[%s3 + $0x308] sm:$0xff]
  %v5022 = vld [vmem:[%s3 + $0x310] sm:$0xff]
  %v5023 = vld [vmem:[%s3 + $0x318] sm:$0xff]
  %v5024 = vld [vmem:[%s3 + $0x320] sm:$0xff]
  %v5025 = vld [vmem:[%s3 + $0x328] sm:$0xff]
  %v5026 = vld [vmem:[%s3 + $0x330] sm:$0xff]
  %v5027 = vld [vmem:[%s3 + $0x338] sm:$0xff]
  %v5028 = vld [vmem:[%s3 + $0x340] sm:$0xff]
  %v5029 = vld [vmem:[%s3 + $0x348] sm:$0xff]
  %v5030 = vld [vmem:[%s3 + $0x350] sm:$0xff]
  %v5031 = vld [vmem:[%s3 + $0x358] sm:$0xff]
  %v5032 = vld [vmem:[%s3 + $0x360] sm:$0xff]
  %v5033 = vld [vmem:[%s3 + $0x368] sm:$0xff]
  %v5034 = vld [vmem:[%s3 + $0x370] sm:$0xff]
  %v5035 = vld [vmem:[%s3 + $0x378] sm:$0xff]
  %v5036 = vld [vmem:[%s3 + $0x380] sm:$0xff]
  %v5037 = vld [vmem:[%s3 + $0x388] sm:$0xff]
  %v5038 = vld [vmem:[%s3 + $0x390] sm:$0xff]
  %v5039 = vld [vmem:[%s3 + $0x398] sm:$0xff]
  %v5040 = vld [vmem:[%s3 + $0x3a0] sm:$0xff]
  %v5041 = vld [vmem:[%s3 + $0x3a8] sm:$0xff]
  %v5042 = vld [vmem:[%s3 + $0x3b0] sm:$0xff]
  %v5043 = vld [vmem:[%s3 + $0x3b8] sm:$0xff]
  %v5044 = vld [vmem:[%s3 + $0x3c0] sm:$0xff]
  %v5045 = vld [vmem:[%s3 + $0x3c8] sm:$0xff]
  %v5046 = vld [vmem:[%s3 + $0x3d0] sm:$0xff]
  %v5047 = vld [vmem:[%s3 + $0x3d8] sm:$0xff]
  %v5048 = vld [vmem:[%s3 + $0x3e0] sm:$0xff]
  %v5049 = vld [vmem:[%s3 + $0x3e8] sm:$0xff]
  %v5050 = vld [vmem:[%s3 + $0x3f0] sm:$0xff]
  %v5051 = vld [vmem:[%s3 + $0x3f8] sm:$0xff]
  %v5180 = vunpack.c.l.b16 %v4924
  %v5181 = vunpack.c.h.b16 %v4924
  %v5182 = vunpack.c.l.b16 %v4925
  %v5183 = vunpack.c.h.b16 %v4925
  %v5184 = vunpack.c.l.b16 %v4926
  %v5185 = vunpack.c.h.b16 %v4926
  %v5186 = vunpack.c.l.b16 %v4927
  %v5187 = vunpack.c.h.b16 %v4927
  %v5188 = vunpack.c.l.b16 %v4928
  %v5189 = vunpack.c.h.b16 %v4928
  %v5190 = vunpack.c.l.b16 %v4929
  %v5191 = vunpack.c.h.b16 %v4929
  %v5192 = vunpack.c.l.b16 %v4930
  %v5193 = vunpack.c.h.b16 %v4930
  %v5194 = vunpack.c.l.b16 %v4931
  %v5195 = vunpack.c.h.b16 %v4931
  %v5196 = vunpack.c.l.b16 %v4932
  %v5197 = vunpack.c.h.b16 %v4932
  %v5198 = vunpack.c.l.b16 %v4933
  %v5199 = vunpack.c.h.b16 %v4933
  %v5200 = vunpack.c.l.b16 %v4934
  %v5201 = vunpack.c.h.b16 %v4934
  %v5202 = vunpack.c.l.b16 %v4935
  %v5203 = vunpack.c.h.b16 %v4935
  %v5204 = vunpack.c.l.b16 %v4936
  %v5205 = vunpack.c.h.b16 %v4936
  %v5206 = vunpack.c.l.b16 %v4937
  %v5207 = vunpack.c.h.b16 %v4937
  %v5208 = vunpack.c.l.b16 %v4938
  %v5209 = vunpack.c.h.b16 %v4938
  %v5210 = vunpack.c.l.b16 %v4939
  %v5211 = vunpack.c.h.b16 %v4939
  %v5212 = vunpack.c.l.b16 %v4940
  %v5213 = vunpack.c.h.b16 %v4940
  %v5214 = vunpack.c.l.b16 %v4941
  %v5215 = vunpack.c.h.b16 %v4941
  %v5216 = vunpack.c.l.b16 %v4942
  %v5217 = vunpack.c.h.b16 %v4942
  %v5218 = vunpack.c.l.b16 %v4943
  %v5219 = vunpack.c.h.b16 %v4943
  %v5220 = vunpack.c.l.b16 %v4944
  %v5221 = vunpack.c.h.b16 %v4944
  %v5222 = vunpack.c.l.b16 %v4945
  %v5223 = vunpack.c.h.b16 %v4945
  %v5224 = vunpack.c.l.b16 %v4946
  %v5225 = vunpack.c.h.b16 %v4946
  %v5226 = vunpack.c.l.b16 %v4947
  %v5227 = vunpack.c.h.b16 %v4947
  %v5228 = vunpack.c.l.b16 %v4948
  %v5229 = vunpack.c.h.b16 %v4948
  %v5230 = vunpack.c.l.b16 %v4949
  %v5231 = vunpack.c.h.b16 %v4949
  %v5232 = vunpack.c.l.b16 %v4950
  %v5233 = vunpack.c.h.b16 %v4950
  %v5234 = vunpack.c.l.b16 %v4951
  %v5235 = vunpack.c.h.b16 %v4951
  %v5236 = vunpack.c.l.b16 %v4952
  %v5237 = vunpack.c.h.b16 %v4952
  %v5238 = vunpack.c.l.b16 %v4953
  %v5239 = vunpack.c.h.b16 %v4953
  %v5240 = vunpack.c.l.b16 %v4954
  %v5241 = vunpack.c.h.b16 %v4954
  %v5242 = vunpack.c.l.b16 %v4955
  %v5243 = vunpack.c.h.b16 %v4955
  %v5244 = vunpack.c.l.b16 %v4956
  %v5245 = vunpack.c.h.b16 %v4956
  %v5246 = vunpack.c.l.b16 %v4957
  %v5247 = vunpack.c.h.b16 %v4957
  %v5248 = vunpack.c.l.b16 %v4958
  %v5249 = vunpack.c.h.b16 %v4958
  %v5250 = vunpack.c.l.b16 %v4959
  %v5251 = vunpack.c.h.b16 %v4959
  %v5252 = vunpack.c.l.b16 %v4960
  %v5253 = vunpack.c.h.b16 %v4960
  %v5254 = vunpack.c.l.b16 %v4961
  %v5255 = vunpack.c.h.b16 %v4961
  %v5256 = vunpack.c.l.b16 %v4962
  %v5257 = vunpack.c.h.b16 %v4962
  %v5258 = vunpack.c.l.b16 %v4963
  %v5259 = vunpack.c.h.b16 %v4963
  %v5260 = vunpack.c.l.b16 %v4964
  %v5261 = vunpack.c.h.b16 %v4964
  %v5262 = vunpack.c.l.b16 %v4965
  %v5263 = vunpack.c.h.b16 %v4965
  %v5264 = vunpack.c.l.b16 %v4966
  %v5265 = vunpack.c.h.b16 %v4966
  %v5266 = vunpack.c.l.b16 %v4967
  %v5267 = vunpack.c.h.b16 %v4967
  %v5268 = vunpack.c.l.b16 %v4968
  %v5269 = vunpack.c.h.b16 %v4968
  %v5270 = vunpack.c.l.b16 %v4969
  %v5271 = vunpack.c.h.b16 %v4969
  %v5272 = vunpack.c.l.b16 %v4970
  %v5273 = vunpack.c.h.b16 %v4970
  %v5274 = vunpack.c.l.b16 %v4971
  %v5275 = vunpack.c.h.b16 %v4971
  %v5276 = vunpack.c.l.b16 %v4972
  %v5277 = vunpack.c.h.b16 %v4972
  %v5278 = vunpack.c.l.b16 %v4973
  %v5279 = vunpack.c.h.b16 %v4973
  %v5280 = vunpack.c.l.b16 %v4974
  %v5281 = vunpack.c.h.b16 %v4974
  %v5282 = vunpack.c.l.b16 %v4975
  %v5283 = vunpack.c.h.b16 %v4975
  %v5284 = vunpack.c.l.b16 %v4976
  %v5285 = vunpack.c.h.b16 %v4976
  %v5286 = vunpack.c.l.b16 %v4977
  %v5287 = vunpack.c.h.b16 %v4977
  %v5288 = vunpack.c.l.b16 %v4978
  %v5289 = vunpack.c.h.b16 %v4978
  %v5290 = vunpack.c.l.b16 %v4979
  %v5291 = vunpack.c.h.b16 %v4979
  %v5292 = vunpack.c.l.b16 %v4980
  %v5293 = vunpack.c.h.b16 %v4980
  %v5294 = vunpack.c.l.b16 %v4981
  %v5295 = vunpack.c.h.b16 %v4981
  %v5296 = vunpack.c.l.b16 %v4982
  %v5297 = vunpack.c.h.b16 %v4982
  %v5298 = vunpack.c.l.b16 %v4983
  %v5299 = vunpack.c.h.b16 %v4983
  %v5300 = vunpack.c.l.b16 %v4984
  %v5301 = vunpack.c.h.b16 %v4984
  %v5302 = vunpack.c.l.b16 %v4985
  %v5303 = vunpack.c.h.b16 %v4985
  %v5304 = vunpack.c.l.b16 %v4986
  %v5305 = vunpack.c.h.b16 %v4986
  %v5306 = vunpack.c.l.b16 %v4987
  %v5307 = vunpack.c.h.b16 %v4987
  %v5308 = vunpack.c.l.b16 %v4988
  %v5309 = vunpack.c.h.b16 %v4988
  %v5310 = vunpack.c.l.b16 %v4989
  %v5311 = vunpack.c.h.b16 %v4989
  %v5312 = vunpack.c.l.b16 %v4990
  %v5313 = vunpack.c.h.b16 %v4990
  %v5314 = vunpack.c.l.b16 %v4991
  %v5315 = vunpack.c.h.b16 %v4991
  %v5316 = vunpack.c.l.b16 %v4992
  %v5317 = vunpack.c.h.b16 %v4992
  %v5318 = vunpack.c.l.b16 %v4993
  %v5319 = vunpack.c.h.b16 %v4993
  %v5320 = vunpack.c.l.b16 %v4994
  %v5321 = vunpack.c.h.b16 %v4994
  %v5322 = vunpack.c.l.b16 %v4995
  %v5323 = vunpack.c.h.b16 %v4995
  %v5324 = vunpack.c.l.b16 %v4996
  %v5325 = vunpack.c.h.b16 %v4996
  %v5326 = vunpack.c.l.b16 %v4997
  %v5327 = vunpack.c.h.b16 %v4997
  %v5328 = vunpack.c.l.b16 %v4998
  %v5329 = vunpack.c.h.b16 %v4998
  %v5330 = vunpack.c.l.b16 %v4999
  %v5331 = vunpack.c.h.b16 %v4999
  %v5332 = vunpack.c.l.b16 %v5000
  %v5333 = vunpack.c.h.b16 %v5000
  %v5334 = vunpack.c.l.b16 %v5001
  %v5335 = vunpack.c.h.b16 %v5001
  %v5336 = vunpack.c.l.b16 %v5002
  %v5337 = vunpack.c.h.b16 %v5002
  %v5338 = vunpack.c.l.b16 %v5003
  %v5339 = vunpack.c.h.b16 %v5003
  %v5340 = vunpack.c.l.b16 %v5004
  %v5341 = vunpack.c.h.b16 %v5004
  %v5342 = vunpack.c.l.b16 %v5005
  %v5343 = vunpack.c.h.b16 %v5005
  %v5344 = vunpack.c.l.b16 %v5006
  %v5345 = vunpack.c.h.b16 %v5006
  %v5346 = vunpack.c.l.b16 %v5007
  %v5347 = vunpack.c.h.b16 %v5007
  %v5348 = vunpack.c.l.b16 %v5008
  %v5349 = vunpack.c.h.b16 %v5008
  %v5350 = vunpack.c.l.b16 %v5009
  %v5351 = vunpack.c.h.b16 %v5009
  %v5352 = vunpack.c.l.b16 %v5010
  %v5353 = vunpack.c.h.b16 %v5010
  %v5354 = vunpack.c.l.b16 %v5011
  %v5355 = vunpack.c.h.b16 %v5011
  %v5356 = vunpack.c.l.b16 %v5012
  %v5357 = vunpack.c.h.b16 %v5012
  %v5358 = vunpack.c.l.b16 %v5013
  %v5359 = vunpack.c.h.b16 %v5013
  %v5360 = vunpack.c.l.b16 %v5014
  %v5361 = vunpack.c.h.b16 %v5014
  %v5362 = vunpack.c.l.b16 %v5015
  %v5363 = vunpack.c.h.b16 %v5015
  %v5364 = vunpack.c.l.b16 %v5016
  %v5365 = vunpack.c.h.b16 %v5016
  %v5366 = vunpack.c.l.b16 %v5017
  %v5367 = vunpack.c.h.b16 %v5017
  %v5368 = vunpack.c.l.b16 %v5018
  %v5369 = vunpack.c.h.b16 %v5018
  %v5370 = vunpack.c.l.b16 %v5019
  %v5371 = vunpack.c.h.b16 %v5019
  %v5372 = vunpack.c.l.b16 %v5020
  %v5373 = vunpack.c.h.b16 %v5020
  %v5374 = vunpack.c.l.b16 %v5021
  %v5375 = vunpack.c.h.b16 %v5021
  %v5376 = vunpack.c.l.b16 %v5022
  %v5377 = vunpack.c.h.b16 %v5022
  %v5378 = vunpack.c.l.b16 %v5023
  %v5379 = vunpack.c.h.b16 %v5023
  %v5380 = vunpack.c.l.b16 %v5024
  %v5381 = vunpack.c.h.b16 %v5024
  %v5382 = vunpack.c.l.b16 %v5025
  %v5383 = vunpack.c.h.b16 %v5025
  %v5384 = vunpack.c.l.b16 %v5026
  %v5385 = vunpack.c.h.b16 %v5026
  %v5386 = vunpack.c.l.b16 %v5027
  %v5387 = vunpack.c.h.b16 %v5027
  %v5388 = vunpack.c.l.b16 %v5028
  %v5389 = vunpack.c.h.b16 %v5028
  %v5390 = vunpack.c.l.b16 %v5029
  %v5391 = vunpack.c.h.b16 %v5029
  %v5392 = vunpack.c.l.b16 %v5030
  %v5393 = vunpack.c.h.b16 %v5030
  %v5394 = vunpack.c.l.b16 %v5031
  %v5395 = vunpack.c.h.b16 %v5031
  %v5396 = vunpack.c.l.b16 %v5032
  %v5397 = vunpack.c.h.b16 %v5032
  %v5398 = vunpack.c.l.b16 %v5033
  %v5399 = vunpack.c.h.b16 %v5033
  %v5400 = vunpack.c.l.b16 %v5034
  %v5401 = vunpack.c.h.b16 %v5034
  %v5402 = vunpack.c.l.b16 %v5035
  %v5403 = vunpack.c.h.b16 %v5035
  %v5404 = vunpack.c.l.b16 %v5036
  %v5405 = vunpack.c.h.b16 %v5036
  %v5406 = vunpack.c.l.b16 %v5037
  %v5407 = vunpack.c.h.b16 %v5037
  %v5408 = vunpack.c.l.b16 %v5038
  %v5409 = vunpack.c.h.b16 %v5038
  %v5410 = vunpack.c.l.b16 %v5039
  %v5411 = vunpack.c.h.b16 %v5039
  %v5412 = vunpack.c.l.b16 %v5040
  %v5413 = vunpack.c.h.b16 %v5040
  %v5414 = vunpack.c.l.b16 %v5041
  %v5415 = vunpack.c.h.b16 %v5041
  %v5416 = vunpack.c.l.b16 %v5042
  %v5417 = vunpack.c.h.b16 %v5042
  %v5418 = vunpack.c.l.b16 %v5043
  %v5419 = vunpack.c.h.b16 %v5043
  %v5420 = vunpack.c.l.b16 %v5044
  %v5421 = vunpack.c.h.b16 %v5044
  %v5422 = vunpack.c.l.b16 %v5045
  %v5423 = vunpack.c.h.b16 %v5045
  %v5424 = vunpack.c.l.b16 %v5046
  %v5425 = vunpack.c.h.b16 %v5046
  %v5426 = vunpack.c.l.b16 %v5047
  %v5427 = vunpack.c.h.b16 %v5047
  %v5428 = vunpack.c.l.b16 %v5048
  %v5429 = vunpack.c.h.b16 %v5048
  %v5430 = vunpack.c.l.b16 %v5049
  %v5431 = vunpack.c.h.b16 %v5049
  %v5432 = vunpack.c.l.b16 %v5050
  %v5433 = vunpack.c.h.b16 %v5050
  %v5434 = vunpack.c.l.b16 %v5051
  %v5435 = vunpack.c.h.b16 %v5051
  %v5436 = vpack.c.b16 %v5188, %v5180
  %v5437 = vpack.c.b16 %v5189, %v5181
  %v5438 = vpack.c.b16 %v5190, %v5182
  %v5439 = vpack.c.b16 %v5191, %v5183
  %v5440 = vpack.c.b16 %v5192, %v5184
  %v5441 = vpack.c.b16 %v5193, %v5185
  %v5442 = vpack.c.b16 %v5194, %v5186
  %v5443 = vpack.c.b16 %v5195, %v5187
  %v5444 = vpack.c.b16 %v5204, %v5196
  %v5445 = vpack.c.b16 %v5205, %v5197
  %v5446 = vpack.c.b16 %v5206, %v5198
  %v5447 = vpack.c.b16 %v5207, %v5199
  %v5448 = vpack.c.b16 %v5208, %v5200
  %v5449 = vpack.c.b16 %v5209, %v5201
  %v5450 = vpack.c.b16 %v5210, %v5202
  %v5451 = vpack.c.b16 %v5211, %v5203
  %v5452 = vpack.c.b16 %v5220, %v5212
  %v5453 = vpack.c.b16 %v5221, %v5213
  %v5454 = vpack.c.b16 %v5222, %v5214
  %v5455 = vpack.c.b16 %v5223, %v5215
  %v5456 = vpack.c.b16 %v5224, %v5216
  %v5457 = vpack.c.b16 %v5225, %v5217
  %v5458 = vpack.c.b16 %v5226, %v5218
  %v5459 = vpack.c.b16 %v5227, %v5219
  %v5460 = vpack.c.b16 %v5236, %v5228
  %v5461 = vpack.c.b16 %v5237, %v5229
  %v5462 = vpack.c.b16 %v5238, %v5230
  %v5463 = vpack.c.b16 %v5239, %v5231
  %v5464 = vpack.c.b16 %v5240, %v5232
  %v5465 = vpack.c.b16 %v5241, %v5233
  %v5466 = vpack.c.b16 %v5242, %v5234
  %v5467 = vpack.c.b16 %v5243, %v5235
  %v5468 = vpack.c.b16 %v5252, %v5244
  %v5469 = vpack.c.b16 %v5253, %v5245
  %v5470 = vpack.c.b16 %v5254, %v5246
  %v5471 = vpack.c.b16 %v5255, %v5247
  %v5472 = vpack.c.b16 %v5256, %v5248
  %v5473 = vpack.c.b16 %v5257, %v5249
  %v5474 = vpack.c.b16 %v5258, %v5250
  %v5475 = vpack.c.b16 %v5259, %v5251
  %v5476 = vpack.c.b16 %v5268, %v5260
  %v5477 = vpack.c.b16 %v5269, %v5261
  %v5478 = vpack.c.b16 %v5270, %v5262
  %v5479 = vpack.c.b16 %v5271, %v5263
  %v5480 = vpack.c.b16 %v5272, %v5264
  %v5481 = vpack.c.b16 %v5273, %v5265
  %v5482 = vpack.c.b16 %v5274, %v5266
  %v5483 = vpack.c.b16 %v5275, %v5267
  %v5484 = vpack.c.b16 %v5284, %v5276
  %v5485 = vpack.c.b16 %v5285, %v5277
  %v5486 = vpack.c.b16 %v5286, %v5278
  %v5487 = vpack.c.b16 %v5287, %v5279
  %v5488 = vpack.c.b16 %v5288, %v5280
  %v5489 = vpack.c.b16 %v5289, %v5281
  %v5490 = vpack.c.b16 %v5290, %v5282
  %v5491 = vpack.c.b16 %v5291, %v5283
  %v5492 = vpack.c.b16 %v5300, %v5292
  %v5493 = vpack.c.b16 %v5301, %v5293
  %v5494 = vpack.c.b16 %v5302, %v5294
  %v5495 = vpack.c.b16 %v5303, %v5295
  %v5496 = vpack.c.b16 %v5304, %v5296
  %v5497 = vpack.c.b16 %v5305, %v5297
  %v5498 = vpack.c.b16 %v5306, %v5298
  %v5499 = vpack.c.b16 %v5307, %v5299
  %v5500 = vpack.c.b16 %v5316, %v5308
  %v5501 = vpack.c.b16 %v5317, %v5309
  %v5502 = vpack.c.b16 %v5318, %v5310
  %v5503 = vpack.c.b16 %v5319, %v5311
  %v5504 = vpack.c.b16 %v5320, %v5312
  %v5505 = vpack.c.b16 %v5321, %v5313
  %v5506 = vpack.c.b16 %v5322, %v5314
  %v5507 = vpack.c.b16 %v5323, %v5315
  %v5508 = vpack.c.b16 %v5332, %v5324
  %v5509 = vpack.c.b16 %v5333, %v5325
  %v5510 = vpack.c.b16 %v5334, %v5326
  %v5511 = vpack.c.b16 %v5335, %v5327
  %v5512 = vpack.c.b16 %v5336, %v5328
  %v5513 = vpack.c.b16 %v5337, %v5329
  %v5514 = vpack.c.b16 %v5338, %v5330
  %v5515 = vpack.c.b16 %v5339, %v5331
  %v5516 = vpack.c.b16 %v5348, %v5340
  %v5517 = vpack.c.b16 %v5349, %v5341
  %v5518 = vpack.c.b16 %v5350, %v5342
  %v5519 = vpack.c.b16 %v5351, %v5343
  %v5520 = vpack.c.b16 %v5352, %v5344
  %v5521 = vpack.c.b16 %v5353, %v5345
  %v5522 = vpack.c.b16 %v5354, %v5346
  %v5523 = vpack.c.b16 %v5355, %v5347
  %v5524 = vpack.c.b16 %v5364, %v5356
  %v5525 = vpack.c.b16 %v5365, %v5357
  %v5526 = vpack.c.b16 %v5366, %v5358
  %v5527 = vpack.c.b16 %v5367, %v5359
  %v5528 = vpack.c.b16 %v5368, %v5360
  %v5529 = vpack.c.b16 %v5369, %v5361
  %v5530 = vpack.c.b16 %v5370, %v5362
  %v5531 = vpack.c.b16 %v5371, %v5363
  %v5532 = vpack.c.b16 %v5380, %v5372
  %v5533 = vpack.c.b16 %v5381, %v5373
  %v5534 = vpack.c.b16 %v5382, %v5374
  %v5535 = vpack.c.b16 %v5383, %v5375
  %v5536 = vpack.c.b16 %v5384, %v5376
  %v5537 = vpack.c.b16 %v5385, %v5377
  %v5538 = vpack.c.b16 %v5386, %v5378
  %v5539 = vpack.c.b16 %v5387, %v5379
  %v5540 = vpack.c.b16 %v5396, %v5388
  %v5541 = vpack.c.b16 %v5397, %v5389
  %v5542 = vpack.c.b16 %v5398, %v5390
  %v5543 = vpack.c.b16 %v5399, %v5391
  %v5544 = vpack.c.b16 %v5400, %v5392
  %v5545 = vpack.c.b16 %v5401, %v5393
  %v5546 = vpack.c.b16 %v5402, %v5394
  %v5547 = vpack.c.b16 %v5403, %v5395
  %v5548 = vpack.c.b16 %v5412, %v5404
  %v5549 = vpack.c.b16 %v5413, %v5405
  %v5550 = vpack.c.b16 %v5414, %v5406
  %v5551 = vpack.c.b16 %v5415, %v5407
  %v5552 = vpack.c.b16 %v5416, %v5408
  %v5553 = vpack.c.b16 %v5417, %v5409
  %v5554 = vpack.c.b16 %v5418, %v5410
  %v5555 = vpack.c.b16 %v5419, %v5411
  %v5556 = vpack.c.b16 %v5428, %v5420
  %v5557 = vpack.c.b16 %v5429, %v5421
  %v5558 = vpack.c.b16 %v5430, %v5422
  %v5559 = vpack.c.b16 %v5431, %v5423
  %v5560 = vpack.c.b16 %v5432, %v5424
  %v5561 = vpack.c.b16 %v5433, %v5425
  %v5562 = vpack.c.b16 %v5434, %v5426
  %v5563 = vpack.c.b16 %v5435, %v5427
  %5692 = vmatpush.bf16.msra.mxu0 %v5492
  %5693 = vmatpush.bf16.msra.mxu0 %v5484
  %5694 = vmatpush.bf16.msra.mxu0 %v5476
  %5695 = vmatpush.bf16.msra.mxu0 %v5468
  %5696 = vmatpush.bf16.msra.mxu0 %v5460
  %5697 = vmatpush.bf16.msra.mxu0 %v5452
  %5698 = vmatpush.bf16.msra.mxu0 %v5444
  %5699 = vmatpush.bf16.msra.mxu0 %v5436
  %5700 = vmatmul.bf16.gmra.mxu0 %v4922
  %v5701 = vpop.f32.mrf.mxu0
  %v5702 = vadd.f32 0.0, %v5701
  %v5703 = vpop.f32.mrf.mxu0
  %5704 = vdwg.mxu0
  %5705 = vmatpush.bf16.msra.mxu0 %v5556
  %5706 = vmatpush.bf16.msra.mxu0 %v5548
  %5707 = vmatpush.bf16.msra.mxu0 %v5540
  %5708 = vmatpush.bf16.msra.mxu0 %v5532
  %5709 = vmatpush.bf16.msra.mxu0 %v5524
  %5710 = vmatpush.bf16.msra.mxu0 %v5516
  %5711 = vmatpush.bf16.msra.mxu0 %v5508
  %5712 = vmatpush.bf16.msra.mxu0 %v5500
  %5713 = vmatmul.bf16.gmra.mxu0 %v4923
  %v5714 = vpop.f32.mrf.mxu0
  %v5715 = vadd.f32 %v5702, %v5714
  %v5716 = vpop.f32.mrf.mxu0
  %5717 = vdwg.mxu0
  %5718 = vmatpush.bf16.msra.mxu0 %v5493
  %5719 = vmatpush.bf16.msra.mxu0 %v5485
  %5720 = vmatpush.bf16.msra.mxu0 %v5477
  %5721 = vmatpush.bf16.msra.mxu0 %v5469
  %5722 = vmatpush.bf16.msra.mxu0 %v5461
  %5723 = vmatpush.bf16.msra.mxu0 %v5453
  %5724 = vmatpush.bf16.msra.mxu0 %v5445
  %5725 = vmatpush.bf16.msra.mxu0 %v5437
  %5726 = vmatmul.bf16.gmra.mxu0 %v4922
  %v5727 = vpop.f32.mrf.mxu0
  %v5728 = vadd.f32 0.0, %v5727
  %v5729 = vpop.f32.mrf.mxu0
  %5730 = vdwg.mxu0
  %5731 = vmatpush.bf16.msra.mxu0 %v5557
  %5732 = vmatpush.bf16.msra.mxu0 %v5549
  %5733 = vmatpush.bf16.msra.mxu0 %v5541
  %5734 = vmatpush.bf16.msra.mxu0 %v5533
  %5735 = vmatpush.bf16.msra.mxu0 %v5525
  %5736 = vmatpush.bf16.msra.mxu0 %v5517
  %5737 = vmatpush.bf16.msra.mxu0 %v5509
  %5738 = vmatpush.bf16.msra.mxu0 %v5501
  %5739 = vmatmul.bf16.gmra.mxu0 %v4923
  %v5740 = vpop.f32.mrf.mxu0
  %v5741 = vadd.f32 %v5728, %v5740
  %v5742 = vpop.f32.mrf.mxu0
  %5743 = vdwg.mxu0
  %5744 = vmatpush.bf16.msra.mxu0 %v5494
  %5745 = vmatpush.bf16.msra.mxu0 %v5486
  %5746 = vmatpush.bf16.msra.mxu0 %v5478
  %5747 = vmatpush.bf16.msra.mxu0 %v5470
  %5748 = vmatpush.bf16.msra.mxu0 %v5462
  %5749 = vmatpush.bf16.msra.mxu0 %v5454
  %5750 = vmatpush.bf16.msra.mxu0 %v5446
  %5751 = vmatpush.bf16.msra.mxu0 %v5438
  %5752 = vmatmul.bf16.gmra.mxu0 %v4922
  %v5753 = vpop.f32.mrf.mxu0
  %v5754 = vadd.f32 0.0, %v5753
  %v5755 = vpop.f32.mrf.mxu0
  %5756 = vdwg.mxu0
  %5757 = vmatpush.bf16.msra.mxu0 %v5558
  %5758 = vmatpush.bf16.msra.mxu0 %v5550
  %5759 = vmatpush.bf16.msra.mxu0 %v5542
  %5760 = vmatpush.bf16.msra.mxu0 %v5534
  %5761 = vmatpush.bf16.msra.mxu0 %v5526
  %5762 = vmatpush.bf16.msra.mxu0 %v5518
  %5763 = vmatpush.bf16.msra.mxu0 %v5510
  %5764 = vmatpush.bf16.msra.mxu0 %v5502
  %5765 = vmatmul.bf16.gmra.mxu0 %v4923
  %v5766 = vpop.f32.mrf.mxu0
  %v5767 = vadd.f32 %v5754, %v5766
  %v5768 = vpop.f32.mrf.mxu0
  %5769 = vdwg.mxu0
  %5770 = vmatpush.bf16.msra.mxu0 %v5495
  %5771 = vmatpush.bf16.msra.mxu0 %v5487
  %5772 = vmatpush.bf16.msra.mxu0 %v5479
  %5773 = vmatpush.bf16.msra.mxu0 %v5471
  %5774 = vmatpush.bf16.msra.mxu0 %v5463
  %5775 = vmatpush.bf16.msra.mxu0 %v5455
  %5776 = vmatpush.bf16.msra.mxu0 %v5447
  %5777 = vmatpush.bf16.msra.mxu0 %v5439
  %5778 = vmatmul.bf16.gmra.mxu0 %v4922
  %v5779 = vpop.f32.mrf.mxu0
  %v5780 = vadd.f32 0.0, %v5779
  %v5781 = vpop.f32.mrf.mxu0
  %5782 = vdwg.mxu0
  %5783 = vmatpush.bf16.msra.mxu0 %v5559
  %5784 = vmatpush.bf16.msra.mxu0 %v5551
  %5785 = vmatpush.bf16.msra.mxu0 %v5543
  %5786 = vmatpush.bf16.msra.mxu0 %v5535
  %5787 = vmatpush.bf16.msra.mxu0 %v5527
  %5788 = vmatpush.bf16.msra.mxu0 %v5519
  %5789 = vmatpush.bf16.msra.mxu0 %v5511
  %5790 = vmatpush.bf16.msra.mxu0 %v5503
  %5791 = vmatmul.bf16.gmra.mxu0 %v4923
  %v5792 = vpop.f32.mrf.mxu0
  %v5793 = vadd.f32 %v5780, %v5792
  %v5794 = vpop.f32.mrf.mxu0
  %5795 = vdwg.mxu0
  %5796 = vmatpush.bf16.msra.mxu0 %v5496
  %5797 = vmatpush.bf16.msra.mxu0 %v5488
  %5798 = vmatpush.bf16.msra.mxu0 %v5480
  %5799 = vmatpush.bf16.msra.mxu0 %v5472
  %5800 = vmatpush.bf16.msra.mxu0 %v5464
  %5801 = vmatpush.bf16.msra.mxu0 %v5456
  %5802 = vmatpush.bf16.msra.mxu0 %v5448
  %5803 = vmatpush.bf16.msra.mxu0 %v5440
  %5804 = vmatmul.bf16.gmra.mxu0 %v4922
  %v5805 = vpop.f32.mrf.mxu0
  %v5806 = vadd.f32 0.0, %v5805
  %v5807 = vpop.f32.mrf.mxu0
  %5808 = vdwg.mxu0
  %5809 = vmatpush.bf16.msra.mxu0 %v5560
  %5810 = vmatpush.bf16.msra.mxu0 %v5552
  %5811 = vmatpush.bf16.msra.mxu0 %v5544
  %5812 = vmatpush.bf16.msra.mxu0 %v5536
  %5813 = vmatpush.bf16.msra.mxu0 %v5528
  %5814 = vmatpush.bf16.msra.mxu0 %v5520
  %5815 = vmatpush.bf16.msra.mxu0 %v5512
  %5816 = vmatpush.bf16.msra.mxu0 %v5504
  %5817 = vmatmul.bf16.gmra.mxu0 %v4923
  %v5818 = vpop.f32.mrf.mxu0
  %v5819 = vadd.f32 %v5806, %v5818
  %v5820 = vpop.f32.mrf.mxu0
  %5821 = vdwg.mxu0
  %5822 = vmatpush.bf16.msra.mxu0 %v5497
  %5823 = vmatpush.bf16.msra.mxu0 %v5489
  %5824 = vmatpush.bf16.msra.mxu0 %v5481
  %5825 = vmatpush.bf16.msra.mxu0 %v5473
  %5826 = vmatpush.bf16.msra.mxu0 %v5465
  %5827 = vmatpush.bf16.msra.mxu0 %v5457
  %5828 = vmatpush.bf16.msra.mxu0 %v5449
  %5829 = vmatpush.bf16.msra.mxu0 %v5441
  %5830 = vmatmul.bf16.gmra.mxu0 %v4922
  %v5831 = vpop.f32.mrf.mxu0
  %v5832 = vadd.f32 0.0, %v5831
  %v5833 = vpop.f32.mrf.mxu0
  %5834 = vdwg.mxu0
  %5835 = vmatpush.bf16.msra.mxu0 %v5561
  %5836 = vmatpush.bf16.msra.mxu0 %v5553
  %5837 = vmatpush.bf16.msra.mxu0 %v5545
  %5838 = vmatpush.bf16.msra.mxu0 %v5537
  %5839 = vmatpush.bf16.msra.mxu0 %v5529
  %5840 = vmatpush.bf16.msra.mxu0 %v5521
  %5841 = vmatpush.bf16.msra.mxu0 %v5513
  %5842 = vmatpush.bf16.msra.mxu0 %v5505
  %5843 = vmatmul.bf16.gmra.mxu0 %v4923
  %v5844 = vpop.f32.mrf.mxu0
  %v5845 = vadd.f32 %v5832, %v5844
  %v5846 = vpop.f32.mrf.mxu0
  %5847 = vdwg.mxu0
  %5848 = vmatpush.bf16.msra.mxu0 %v5498
  %5849 = vmatpush.bf16.msra.mxu0 %v5490
  %5850 = vmatpush.bf16.msra.mxu0 %v5482
  %5851 = vmatpush.bf16.msra.mxu0 %v5474
  %5852 = vmatpush.bf16.msra.mxu0 %v5466
  %5853 = vmatpush.bf16.msra.mxu0 %v5458
  %5854 = vmatpush.bf16.msra.mxu0 %v5450
  %5855 = vmatpush.bf16.msra.mxu0 %v5442
  %5856 = vmatmul.bf16.gmra.mxu0 %v4922
  %v5857 = vpop.f32.mrf.mxu0
  %v5858 = vadd.f32 0.0, %v5857
  %v5859 = vpop.f32.mrf.mxu0
  %5860 = vdwg.mxu0
  %5861 = vmatpush.bf16.msra.mxu0 %v5562
  %5862 = vmatpush.bf16.msra.mxu0 %v5554
  %5863 = vmatpush.bf16.msra.mxu0 %v5546
  %5864 = vmatpush.bf16.msra.mxu0 %v5538
  %5865 = vmatpush.bf16.msra.mxu0 %v5530
  %5866 = vmatpush.bf16.msra.mxu0 %v5522
  %5867 = vmatpush.bf16.msra.mxu0 %v5514
  %5868 = vmatpush.bf16.msra.mxu0 %v5506
  %5869 = vmatmul.bf16.gmra.mxu0 %v4923
  %v5870 = vpop.f32.mrf.mxu0
  %v5871 = vadd.f32 %v5858, %v5870
  %v5872 = vpop.f32.mrf.mxu0
  %5873 = vdwg.mxu0
  %5874 = vmatpush.bf16.msra.mxu0 %v5499
  %5875 = vmatpush.bf16.msra.mxu0 %v5491
  %5876 = vmatpush.bf16.msra.mxu0 %v5483
  %5877 = vmatpush.bf16.msra.mxu0 %v5475
  %5878 = vmatpush.bf16.msra.mxu0 %v5467
  %5879 = vmatpush.bf16.msra.mxu0 %v5459
  %5880 = vmatpush.bf16.msra.mxu0 %v5451
  %5881 = vmatpush.bf16.msra.mxu0 %v5443
  %5882 = vmatmul.bf16.gmra.mxu0 %v4922
  %v5883 = vpop.f32.mrf.mxu0
  %v5884 = vadd.f32 0.0, %v5883
  %v5885 = vpop.f32.mrf.mxu0
  %5886 = vdwg.mxu0
  %5887 = vmatpush.bf16.msra.mxu0 %v5563
  %5888 = vmatpush.bf16.msra.mxu0 %v5555
  %5889 = vmatpush.bf16.msra.mxu0 %v5547
  %5890 = vmatpush.bf16.msra.mxu0 %v5539
  %5891 = vmatpush.bf16.msra.mxu0 %v5531
  %5892 = vmatpush.bf16.msra.mxu0 %v5523
  %5893 = vmatpush.bf16.msra.mxu0 %v5515
  %5894 = vmatpush.bf16.msra.mxu0 %v5507
  %5895 = vmatmul.bf16.gmra.mxu0 %v4923
  %v5896 = vpop.f32.mrf.mxu0
  %v5897 = vadd.f32 %v5884, %v5896
  %v5898 = vpop.f32.mrf.mxu0
  %5899 = vdwg.mxu0
  %v5900 = vld [vmem:[#allocation2 + $0x80] sm:$0xff]
  %v5901 = vld [vmem:[#allocation2 + $0x88] sm:$0xff]
  %v5902 = vld [vmem:[#allocation2 + $0x90] sm:$0xff]
  %v5903 = vld [vmem:[#allocation2 + $0x98] sm:$0xff]
  %v5904 = vadd.f32 %v5900, %v5715
  %v5905 = vadd.f32 %v5901, %v5741
  %v5906 = vadd.f32 %v5902, %v5767
  %v5907 = vadd.f32 %v5903, %v5793
  %v5908 = vld [vmem:[#allocation3 + $0x60] sm:$0xff]
  %v5909 = vld [vmem:[#allocation3 + $0x68] sm:$0xff]
  %v5910 = vld [vmem:[#allocation3 + $0x70] sm:$0xff]
  %v5911 = vld [vmem:[#allocation3 + $0x78] sm:$0xff]
  %v5912 = vadd.f32 %v5908, %v5819
  %v5913 = vadd.f32 %v5909, %v5845
  %v5914 = vadd.f32 %v5910, %v5871
  %v5915 = vadd.f32 %v5911, %v5897
  %v5916 = vxor.u32 %v5904, 2147483648
  %v5917 = vmul.f32 %v5916, 1.442695
  %v5918 = vpow.pop %v5917
  %v5919 = vadd.f32 %v5918, 1.0
  %v5920 = vrcp.pop %v5919
  %v5921 = vmul.f32 %v5919, %v5920
  %v5922 = vsub.f32 1.0, %v5921
  %v5923 = vmul.f32 %v5920, %v5922
  %v5924 = vadd.f32 %v5920, %v5923
  %vm5925 = vweird.f32 %v5919
  %vm5926 = vweird.f32 %v5920
  %vm5927 = vmor %vm5925, %vm5926
  %v5928 = vsel %vm5927, %v5920, %v5924
  %v5929 = vand.u32 2147483647, %v5919
  %vm5930 = vcmp.eq.f32.partialorder %v5929, 8.507059e+37
  %v5931 = vand.u32 %v5919, 2147483648
  %v5932 = vor.u32 1.1754944e-38, %v5931
  %v5933 = vsel %vm5930, %v5932, %v5928
  %v5934 = vmul.f32 1.0, %v5933
  %v5935 = vxor.u32 %v5905, 2147483648
  %v5936 = vmul.f32 %v5935, 1.442695
  %v5937 = vpow.pop %v5936
  %v5938 = vadd.f32 %v5937, 1.0
  %v5939 = vrcp.pop %v5938
  %v5940 = vmul.f32 %v5938, %v5939
  %v5941 = vsub.f32 1.0, %v5940
  %v5942 = vmul.f32 %v5939, %v5941
  %v5943 = vadd.f32 %v5939, %v5942
  %vm5944 = vweird.f32 %v5938
  %vm5945 = vweird.f32 %v5939
  %vm5946 = vmor %vm5944, %vm5945
  %v5947 = vsel %vm5946, %v5939, %v5943
  %v5948 = vand.u32 2147483647, %v5938
  %vm5949 = vcmp.eq.f32.partialorder %v5948, 8.507059e+37
  %v5950 = vand.u32 %v5938, 2147483648
  %v5951 = vor.u32 1.1754944e-38, %v5950
  %v5952 = vsel %vm5949, %v5951, %v5947
  %v5953 = vmul.f32 1.0, %v5952
  %v5954 = vtanh.pop %v5906
  %v5955 = vxor.u32 %v5907, 2147483648
  %v5956 = vmul.f32 %v5955, 1.442695
  %v5957 = vpow.pop %v5956
  %v5958 = vadd.f32 %v5957, 1.0
  %v5959 = vrcp.pop %v5958
  %v5960 = vmul.f32 %v5958, %v5959
  %v5961 = vsub.f32 1.0, %v5960
  %v5962 = vmul.f32 %v5959, %v5961
  %v5963 = vadd.f32 %v5959, %v5962
  %vm5964 = vweird.f32 %v5958
  %vm5965 = vweird.f32 %v5959
  %vm5966 = vmor %vm5964, %vm5965
  %v5967 = vsel %vm5966, %v5959, %v5963
  %v5968 = vand.u32 2147483647, %v5958
  %vm5969 = vcmp.eq.f32.partialorder %v5968, 8.507059e+37
  %v5970 = vand.u32 %v5958, 2147483648
  %v5971 = vor.u32 1.1754944e-38, %v5970
  %v5972 = vsel %vm5969, %v5971, %v5967
  %v5973 = vmul.f32 1.0, %v5972
  %v5974 = vmul.f32 %v5953, %v4854
  %v5975 = vmul.f32 %v5934, %v5954
  %v5976 = vadd.f32 %v5974, %v5975
  %v5977 = vtanh.pop %v5976
  %v5978 = vmul.f32 %v5973, %v5977
  %v5979 = vxor.u32 %v5912, 2147483648
  %v5980 = vmul.f32 %v5979, 1.442695
  %v5981 = vpow.pop %v5980
  %v5982 = vadd.f32 %v5981, 1.0
  %v5983 = vrcp.pop %v5982
  %v5984 = vmul.f32 %v5982, %v5983
  %v5985 = vsub.f32 1.0, %v5984
  %v5986 = vmul.f32 %v5983, %v5985
  %v5987 = vadd.f32 %v5983, %v5986
  %vm5988 = vweird.f32 %v5982
  %vm5989 = vweird.f32 %v5983
  %vm5990 = vmor %vm5988, %vm5989
  %v5991 = vsel %vm5990, %v5983, %v5987
  %v5992 = vand.u32 2147483647, %v5982
  %vm5993 = vcmp.eq.f32.partialorder %v5992, 8.507059e+37
  %v5994 = vand.u32 %v5982, 2147483648
  %v5995 = vor.u32 1.1754944e-38, %v5994
  %v5996 = vsel %vm5993, %v5995, %v5991
  %v5997 = vmul.f32 1.0, %v5996
  %v5998 = vxor.u32 %v5913, 2147483648
  %v5999 = vmul.f32 %v5998, 1.442695
  %v6000 = vpow.pop %v5999
  %v6001 = vadd.f32 %v6000, 1.0
  %v6002 = vrcp.pop %v6001
  %v6003 = vmul.f32 %v6001, %v6002
  %v6004 = vsub.f32 1.0, %v6003
  %v6005 = vmul.f32 %v6002, %v6004
  %v6006 = vadd.f32 %v6002, %v6005
  %vm6007 = vweird.f32 %v6001
  %vm6008 = vweird.f32 %v6002
  %vm6009 = vmor %vm6007, %vm6008
  %v6010 = vsel %vm6009, %v6002, %v6006
  %v6011 = vand.u32 2147483647, %v6001
  %vm6012 = vcmp.eq.f32.partialorder %v6011, 8.507059e+37
  %v6013 = vand.u32 %v6001, 2147483648
  %v6014 = vor.u32 1.1754944e-38, %v6013
  %v6015 = vsel %vm6012, %v6014, %v6010
  %v6016 = vmul.f32 1.0, %v6015
  %v6017 = vtanh.pop %v5914
  %v6018 = vxor.u32 %v5915, 2147483648
  %v6019 = vmul.f32 %v6018, 1.442695
  %v6020 = vpow.pop %v6019
  %v6021 = vadd.f32 %v6020, 1.0
  %v6022 = vrcp.pop %v6021
  %v6023 = vmul.f32 %v6021, %v6022
  %v6024 = vsub.f32 1.0, %v6023
  %v6025 = vmul.f32 %v6022, %v6024
  %v6026 = vadd.f32 %v6022, %v6025
  %vm6027 = vweird.f32 %v6021
  %vm6028 = vweird.f32 %v6022
  %vm6029 = vmor %vm6027, %vm6028
  %v6030 = vsel %vm6029, %v6022, %v6026
  %v6031 = vand.u32 2147483647, %v6021
  %vm6032 = vcmp.eq.f32.partialorder %v6031, 8.507059e+37
  %v6033 = vand.u32 %v6021, 2147483648
  %v6034 = vor.u32 1.1754944e-38, %v6033
  %v6035 = vsel %vm6032, %v6034, %v6030
  %v6036 = vmul.f32 1.0, %v6035
  %v6037 = vmul.f32 %v6016, %v4917
  %v6038 = vmul.f32 %v5997, %v6017
  %v6039 = vadd.f32 %v6037, %v6038
  %v6040 = vtanh.pop %v6039
  %v6041 = vmul.f32 %v6036, %v6040
  %6042 = vst [vmem:[#allocation5 + $0x40] sm:$0xff] %v5978
  %6043 = vst [vmem:[#allocation5 + $0x38] sm:$0xff] %v6041
  %v6044 = vpack.c.bf16 %v5978, %v5978
  %v6045 = vpack.c.bf16 %v6041, %v6041
  %v6046 = vld [vmem:[%s3] sm:$0xff]
  %v6047 = vld [vmem:[%s3 + $0x8] sm:$0xff]
  %v6048 = vld [vmem:[%s3 + $0x10] sm:$0xff]
  %v6049 = vld [vmem:[%s3 + $0x18] sm:$0xff]
  %v6050 = vld [vmem:[%s3 + $0x20] sm:$0xff]
  %v6051 = vld [vmem:[%s3 + $0x28] sm:$0xff]
  %v6052 = vld [vmem:[%s3 + $0x30] sm:$0xff]
  %v6053 = vld [vmem:[%s3 + $0x38] sm:$0xff]
  %v6054 = vld [vmem:[%s3 + $0x40] sm:$0xff]
  %v6055 = vld [vmem:[%s3 + $0x48] sm:$0xff]
  %v6056 = vld [vmem:[%s3 + $0x50] sm:$0xff]
  %v6057 = vld [vmem:[%s3 + $0x58] sm:$0xff]
  %v6058 = vld [vmem:[%s3 + $0x60] sm:$0xff]
  %v6059 = vld [vmem:[%s3 + $0x68] sm:$0xff]
  %v6060 = vld [vmem:[%s3 + $0x70] sm:$0xff]
  %v6061 = vld [vmem:[%s3 + $0x78] sm:$0xff]
  %v6062 = vld [vmem:[%s3 + $0x80] sm:$0xff]
  %v6063 = vld [vmem:[%s3 + $0x88] sm:$0xff]
  %v6064 = vld [vmem:[%s3 + $0x90] sm:$0xff]
  %v6065 = vld [vmem:[%s3 + $0x98] sm:$0xff]
  %v6066 = vld [vmem:[%s3 + $0xa0] sm:$0xff]
  %v6067 = vld [vmem:[%s3 + $0xa8] sm:$0xff]
  %v6068 = vld [vmem:[%s3 + $0xb0] sm:$0xff]
  %v6069 = vld [vmem:[%s3 + $0xb8] sm:$0xff]
  %v6070 = vld [vmem:[%s3 + $0xc0] sm:$0xff]
  %v6071 = vld [vmem:[%s3 + $0xc8] sm:$0xff]
  %v6072 = vld [vmem:[%s3 + $0xd0] sm:$0xff]
  %v6073 = vld [vmem:[%s3 + $0xd8] sm:$0xff]
  %v6074 = vld [vmem:[%s3 + $0xe0] sm:$0xff]
  %v6075 = vld [vmem:[%s3 + $0xe8] sm:$0xff]
  %v6076 = vld [vmem:[%s3 + $0xf0] sm:$0xff]
  %v6077 = vld [vmem:[%s3 + $0xf8] sm:$0xff]
  %v6078 = vld [vmem:[%s3 + $0x100] sm:$0xff]
  %v6079 = vld [vmem:[%s3 + $0x108] sm:$0xff]
  %v6080 = vld [vmem:[%s3 + $0x110] sm:$0xff]
  %v6081 = vld [vmem:[%s3 + $0x118] sm:$0xff]
  %v6082 = vld [vmem:[%s3 + $0x120] sm:$0xff]
  %v6083 = vld [vmem:[%s3 + $0x128] sm:$0xff]
  %v6084 = vld [vmem:[%s3 + $0x130] sm:$0xff]
  %v6085 = vld [vmem:[%s3 + $0x138] sm:$0xff]
  %v6086 = vld [vmem:[%s3 + $0x140] sm:$0xff]
  %v6087 = vld [vmem:[%s3 + $0x148] sm:$0xff]
  %v6088 = vld [vmem:[%s3 + $0x150] sm:$0xff]
  %v6089 = vld [vmem:[%s3 + $0x158] sm:$0xff]
  %v6090 = vld [vmem:[%s3 + $0x160] sm:$0xff]
  %v6091 = vld [vmem:[%s3 + $0x168] sm:$0xff]
  %v6092 = vld [vmem:[%s3 + $0x170] sm:$0xff]
  %v6093 = vld [vmem:[%s3 + $0x178] sm:$0xff]
  %v6094 = vld [vmem:[%s3 + $0x180] sm:$0xff]
  %v6095 = vld [vmem:[%s3 + $0x188] sm:$0xff]
  %v6096 = vld [vmem:[%s3 + $0x190] sm:$0xff]
  %v6097 = vld [vmem:[%s3 + $0x198] sm:$0xff]
  %v6098 = vld [vmem:[%s3 + $0x1a0] sm:$0xff]
  %v6099 = vld [vmem:[%s3 + $0x1a8] sm:$0xff]
  %v6100 = vld [vmem:[%s3 + $0x1b0] sm:$0xff]
  %v6101 = vld [vmem:[%s3 + $0x1b8] sm:$0xff]
  %v6102 = vld [vmem:[%s3 + $0x1c0] sm:$0xff]
  %v6103 = vld [vmem:[%s3 + $0x1c8] sm:$0xff]
  %v6104 = vld [vmem:[%s3 + $0x1d0] sm:$0xff]
  %v6105 = vld [vmem:[%s3 + $0x1d8] sm:$0xff]
  %v6106 = vld [vmem:[%s3 + $0x1e0] sm:$0xff]
  %v6107 = vld [vmem:[%s3 + $0x1e8] sm:$0xff]
  %v6108 = vld [vmem:[%s3 + $0x1f0] sm:$0xff]
  %v6109 = vld [vmem:[%s3 + $0x1f8] sm:$0xff]
  %v6110 = vld [vmem:[%s3 + $0x200] sm:$0xff]
  %v6111 = vld [vmem:[%s3 + $0x208] sm:$0xff]
  %v6112 = vld [vmem:[%s3 + $0x210] sm:$0xff]
  %v6113 = vld [vmem:[%s3 + $0x218] sm:$0xff]
  %v6114 = vld [vmem:[%s3 + $0x220] sm:$0xff]
  %v6115 = vld [vmem:[%s3 + $0x228] sm:$0xff]
  %v6116 = vld [vmem:[%s3 + $0x230] sm:$0xff]
  %v6117 = vld [vmem:[%s3 + $0x238] sm:$0xff]
  %v6118 = vld [vmem:[%s3 + $0x240] sm:$0xff]
  %v6119 = vld [vmem:[%s3 + $0x248] sm:$0xff]
  %v6120 = vld [vmem:[%s3 + $0x250] sm:$0xff]
  %v6121 = vld [vmem:[%s3 + $0x258] sm:$0xff]
  %v6122 = vld [vmem:[%s3 + $0x260] sm:$0xff]
  %v6123 = vld [vmem:[%s3 + $0x268] sm:$0xff]
  %v6124 = vld [vmem:[%s3 + $0x270] sm:$0xff]
  %v6125 = vld [vmem:[%s3 + $0x278] sm:$0xff]
  %v6126 = vld [vmem:[%s3 + $0x280] sm:$0xff]
  %v6127 = vld [vmem:[%s3 + $0x288] sm:$0xff]
  %v6128 = vld [vmem:[%s3 + $0x290] sm:$0xff]
  %v6129 = vld [vmem:[%s3 + $0x298] sm:$0xff]
  %v6130 = vld [vmem:[%s3 + $0x2a0] sm:$0xff]
  %v6131 = vld [vmem:[%s3 + $0x2a8] sm:$0xff]
  %v6132 = vld [vmem:[%s3 + $0x2b0] sm:$0xff]
  %v6133 = vld [vmem:[%s3 + $0x2b8] sm:$0xff]
  %v6134 = vld [vmem:[%s3 + $0x2c0] sm:$0xff]
  %v6135 = vld [vmem:[%s3 + $0x2c8] sm:$0xff]
  %v6136 = vld [vmem:[%s3 + $0x2d0] sm:$0xff]
  %v6137 = vld [vmem:[%s3 + $0x2d8] sm:$0xff]
  %v6138 = vld [vmem:[%s3 + $0x2e0] sm:$0xff]
  %v6139 = vld [vmem:[%s3 + $0x2e8] sm:$0xff]
  %v6140 = vld [vmem:[%s3 + $0x2f0] sm:$0xff]
  %v6141 = vld [vmem:[%s3 + $0x2f8] sm:$0xff]
  %v6142 = vld [vmem:[%s3 + $0x300] sm:$0xff]
  %v6143 = vld [vmem:[%s3 + $0x308] sm:$0xff]
  %v6144 = vld [vmem:[%s3 + $0x310] sm:$0xff]
  %v6145 = vld [vmem:[%s3 + $0x318] sm:$0xff]
  %v6146 = vld [vmem:[%s3 + $0x320] sm:$0xff]
  %v6147 = vld [vmem:[%s3 + $0x328] sm:$0xff]
  %v6148 = vld [vmem:[%s3 + $0x330] sm:$0xff]
  %v6149 = vld [vmem:[%s3 + $0x338] sm:$0xff]
  %v6150 = vld [vmem:[%s3 + $0x340] sm:$0xff]
  %v6151 = vld [vmem:[%s3 + $0x348] sm:$0xff]
  %v6152 = vld [vmem:[%s3 + $0x350] sm:$0xff]
  %v6153 = vld [vmem:[%s3 + $0x358] sm:$0xff]
  %v6154 = vld [vmem:[%s3 + $0x360] sm:$0xff]
  %v6155 = vld [vmem:[%s3 + $0x368] sm:$0xff]
  %v6156 = vld [vmem:[%s3 + $0x370] sm:$0xff]
  %v6157 = vld [vmem:[%s3 + $0x378] sm:$0xff]
  %v6158 = vld [vmem:[%s3 + $0x380] sm:$0xff]
  %v6159 = vld [vmem:[%s3 + $0x388] sm:$0xff]
  %v6160 = vld [vmem:[%s3 + $0x390] sm:$0xff]
  %v6161 = vld [vmem:[%s3 + $0x398] sm:$0xff]
  %v6162 = vld [vmem:[%s3 + $0x3a0] sm:$0xff]
  %v6163 = vld [vmem:[%s3 + $0x3a8] sm:$0xff]
  %v6164 = vld [vmem:[%s3 + $0x3b0] sm:$0xff]
  %v6165 = vld [vmem:[%s3 + $0x3b8] sm:$0xff]
  %v6166 = vld [vmem:[%s3 + $0x3c0] sm:$0xff]
  %v6167 = vld [vmem:[%s3 + $0x3c8] sm:$0xff]
  %v6168 = vld [vmem:[%s3 + $0x3d0] sm:$0xff]
  %v6169 = vld [vmem:[%s3 + $0x3d8] sm:$0xff]
  %v6170 = vld [vmem:[%s3 + $0x3e0] sm:$0xff]
  %v6171 = vld [vmem:[%s3 + $0x3e8] sm:$0xff]
  %v6172 = vld [vmem:[%s3 + $0x3f0] sm:$0xff]
  %v6173 = vld [vmem:[%s3 + $0x3f8] sm:$0xff]
  %v6302 = vunpack.c.l.b16 %v6046
  %v6303 = vunpack.c.h.b16 %v6046
  %v6304 = vunpack.c.l.b16 %v6047
  %v6305 = vunpack.c.h.b16 %v6047
  %v6306 = vunpack.c.l.b16 %v6048
  %v6307 = vunpack.c.h.b16 %v6048
  %v6308 = vunpack.c.l.b16 %v6049
  %v6309 = vunpack.c.h.b16 %v6049
  %v6310 = vunpack.c.l.b16 %v6050
  %v6311 = vunpack.c.h.b16 %v6050
  %v6312 = vunpack.c.l.b16 %v6051
  %v6313 = vunpack.c.h.b16 %v6051
  %v6314 = vunpack.c.l.b16 %v6052
  %v6315 = vunpack.c.h.b16 %v6052
  %v6316 = vunpack.c.l.b16 %v6053
  %v6317 = vunpack.c.h.b16 %v6053
  %v6318 = vunpack.c.l.b16 %v6054
  %v6319 = vunpack.c.h.b16 %v6054
  %v6320 = vunpack.c.l.b16 %v6055
  %v6321 = vunpack.c.h.b16 %v6055
  %v6322 = vunpack.c.l.b16 %v6056
  %v6323 = vunpack.c.h.b16 %v6056
  %v6324 = vunpack.c.l.b16 %v6057
  %v6325 = vunpack.c.h.b16 %v6057
  %v6326 = vunpack.c.l.b16 %v6058
  %v6327 = vunpack.c.h.b16 %v6058
  %v6328 = vunpack.c.l.b16 %v6059
  %v6329 = vunpack.c.h.b16 %v6059
  %v6330 = vunpack.c.l.b16 %v6060
  %v6331 = vunpack.c.h.b16 %v6060
  %v6332 = vunpack.c.l.b16 %v6061
  %v6333 = vunpack.c.h.b16 %v6061
  %v6334 = vunpack.c.l.b16 %v6062
  %v6335 = vunpack.c.h.b16 %v6062
  %v6336 = vunpack.c.l.b16 %v6063
  %v6337 = vunpack.c.h.b16 %v6063
  %v6338 = vunpack.c.l.b16 %v6064
  %v6339 = vunpack.c.h.b16 %v6064
  %v6340 = vunpack.c.l.b16 %v6065
  %v6341 = vunpack.c.h.b16 %v6065
  %v6342 = vunpack.c.l.b16 %v6066
  %v6343 = vunpack.c.h.b16 %v6066
  %v6344 = vunpack.c.l.b16 %v6067
  %v6345 = vunpack.c.h.b16 %v6067
  %v6346 = vunpack.c.l.b16 %v6068
  %v6347 = vunpack.c.h.b16 %v6068
  %v6348 = vunpack.c.l.b16 %v6069
  %v6349 = vunpack.c.h.b16 %v6069
  %v6350 = vunpack.c.l.b16 %v6070
  %v6351 = vunpack.c.h.b16 %v6070
  %v6352 = vunpack.c.l.b16 %v6071
  %v6353 = vunpack.c.h.b16 %v6071
  %v6354 = vunpack.c.l.b16 %v6072
  %v6355 = vunpack.c.h.b16 %v6072
  %v6356 = vunpack.c.l.b16 %v6073
  %v6357 = vunpack.c.h.b16 %v6073
  %v6358 = vunpack.c.l.b16 %v6074
  %v6359 = vunpack.c.h.b16 %v6074
  %v6360 = vunpack.c.l.b16 %v6075
  %v6361 = vunpack.c.h.b16 %v6075
  %v6362 = vunpack.c.l.b16 %v6076
  %v6363 = vunpack.c.h.b16 %v6076
  %v6364 = vunpack.c.l.b16 %v6077
  %v6365 = vunpack.c.h.b16 %v6077
  %v6366 = vunpack.c.l.b16 %v6078
  %v6367 = vunpack.c.h.b16 %v6078
  %v6368 = vunpack.c.l.b16 %v6079
  %v6369 = vunpack.c.h.b16 %v6079
  %v6370 = vunpack.c.l.b16 %v6080
  %v6371 = vunpack.c.h.b16 %v6080
  %v6372 = vunpack.c.l.b16 %v6081
  %v6373 = vunpack.c.h.b16 %v6081
  %v6374 = vunpack.c.l.b16 %v6082
  %v6375 = vunpack.c.h.b16 %v6082
  %v6376 = vunpack.c.l.b16 %v6083
  %v6377 = vunpack.c.h.b16 %v6083
  %v6378 = vunpack.c.l.b16 %v6084
  %v6379 = vunpack.c.h.b16 %v6084
  %v6380 = vunpack.c.l.b16 %v6085
  %v6381 = vunpack.c.h.b16 %v6085
  %v6382 = vunpack.c.l.b16 %v6086
  %v6383 = vunpack.c.h.b16 %v6086
  %v6384 = vunpack.c.l.b16 %v6087
  %v6385 = vunpack.c.h.b16 %v6087
  %v6386 = vunpack.c.l.b16 %v6088
  %v6387 = vunpack.c.h.b16 %v6088
  %v6388 = vunpack.c.l.b16 %v6089
  %v6389 = vunpack.c.h.b16 %v6089
  %v6390 = vunpack.c.l.b16 %v6090
  %v6391 = vunpack.c.h.b16 %v6090
  %v6392 = vunpack.c.l.b16 %v6091
  %v6393 = vunpack.c.h.b16 %v6091
  %v6394 = vunpack.c.l.b16 %v6092
  %v6395 = vunpack.c.h.b16 %v6092
  %v6396 = vunpack.c.l.b16 %v6093
  %v6397 = vunpack.c.h.b16 %v6093
  %v6398 = vunpack.c.l.b16 %v6094
  %v6399 = vunpack.c.h.b16 %v6094
  %v6400 = vunpack.c.l.b16 %v6095
  %v6401 = vunpack.c.h.b16 %v6095
  %v6402 = vunpack.c.l.b16 %v6096
  %v6403 = vunpack.c.h.b16 %v6096
  %v6404 = vunpack.c.l.b16 %v6097
  %v6405 = vunpack.c.h.b16 %v6097
  %v6406 = vunpack.c.l.b16 %v6098
  %v6407 = vunpack.c.h.b16 %v6098
  %v6408 = vunpack.c.l.b16 %v6099
  %v6409 = vunpack.c.h.b16 %v6099
  %v6410 = vunpack.c.l.b16 %v6100
  %v6411 = vunpack.c.h.b16 %v6100
  %v6412 = vunpack.c.l.b16 %v6101
  %v6413 = vunpack.c.h.b16 %v6101
  %v6414 = vunpack.c.l.b16 %v6102
  %v6415 = vunpack.c.h.b16 %v6102
  %v6416 = vunpack.c.l.b16 %v6103
  %v6417 = vunpack.c.h.b16 %v6103
  %v6418 = vunpack.c.l.b16 %v6104
  %v6419 = vunpack.c.h.b16 %v6104
  %v6420 = vunpack.c.l.b16 %v6105
  %v6421 = vunpack.c.h.b16 %v6105
  %v6422 = vunpack.c.l.b16 %v6106
  %v6423 = vunpack.c.h.b16 %v6106
  %v6424 = vunpack.c.l.b16 %v6107
  %v6425 = vunpack.c.h.b16 %v6107
  %v6426 = vunpack.c.l.b16 %v6108
  %v6427 = vunpack.c.h.b16 %v6108
  %v6428 = vunpack.c.l.b16 %v6109
  %v6429 = vunpack.c.h.b16 %v6109
  %v6430 = vunpack.c.l.b16 %v6110
  %v6431 = vunpack.c.h.b16 %v6110
  %v6432 = vunpack.c.l.b16 %v6111
  %v6433 = vunpack.c.h.b16 %v6111
  %v6434 = vunpack.c.l.b16 %v6112
  %v6435 = vunpack.c.h.b16 %v6112
  %v6436 = vunpack.c.l.b16 %v6113
  %v6437 = vunpack.c.h.b16 %v6113
  %v6438 = vunpack.c.l.b16 %v6114
  %v6439 = vunpack.c.h.b16 %v6114
  %v6440 = vunpack.c.l.b16 %v6115
  %v6441 = vunpack.c.h.b16 %v6115
  %v6442 = vunpack.c.l.b16 %v6116
  %v6443 = vunpack.c.h.b16 %v6116
  %v6444 = vunpack.c.l.b16 %v6117
  %v6445 = vunpack.c.h.b16 %v6117
  %v6446 = vunpack.c.l.b16 %v6118
  %v6447 = vunpack.c.h.b16 %v6118
  %v6448 = vunpack.c.l.b16 %v6119
  %v6449 = vunpack.c.h.b16 %v6119
  %v6450 = vunpack.c.l.b16 %v6120
  %v6451 = vunpack.c.h.b16 %v6120
  %v6452 = vunpack.c.l.b16 %v6121
  %v6453 = vunpack.c.h.b16 %v6121
  %v6454 = vunpack.c.l.b16 %v6122
  %v6455 = vunpack.c.h.b16 %v6122
  %v6456 = vunpack.c.l.b16 %v6123
  %v6457 = vunpack.c.h.b16 %v6123
  %v6458 = vunpack.c.l.b16 %v6124
  %v6459 = vunpack.c.h.b16 %v6124
  %v6460 = vunpack.c.l.b16 %v6125
  %v6461 = vunpack.c.h.b16 %v6125
  %v6462 = vunpack.c.l.b16 %v6126
  %v6463 = vunpack.c.h.b16 %v6126
  %v6464 = vunpack.c.l.b16 %v6127
  %v6465 = vunpack.c.h.b16 %v6127
  %v6466 = vunpack.c.l.b16 %v6128
  %v6467 = vunpack.c.h.b16 %v6128
  %v6468 = vunpack.c.l.b16 %v6129
  %v6469 = vunpack.c.h.b16 %v6129
  %v6470 = vunpack.c.l.b16 %v6130
  %v6471 = vunpack.c.h.b16 %v6130
  %v6472 = vunpack.c.l.b16 %v6131
  %v6473 = vunpack.c.h.b16 %v6131
  %v6474 = vunpack.c.l.b16 %v6132
  %v6475 = vunpack.c.h.b16 %v6132
  %v6476 = vunpack.c.l.b16 %v6133
  %v6477 = vunpack.c.h.b16 %v6133
  %v6478 = vunpack.c.l.b16 %v6134
  %v6479 = vunpack.c.h.b16 %v6134
  %v6480 = vunpack.c.l.b16 %v6135
  %v6481 = vunpack.c.h.b16 %v6135
  %v6482 = vunpack.c.l.b16 %v6136
  %v6483 = vunpack.c.h.b16 %v6136
  %v6484 = vunpack.c.l.b16 %v6137
  %v6485 = vunpack.c.h.b16 %v6137
  %v6486 = vunpack.c.l.b16 %v6138
  %v6487 = vunpack.c.h.b16 %v6138
  %v6488 = vunpack.c.l.b16 %v6139
  %v6489 = vunpack.c.h.b16 %v6139
  %v6490 = vunpack.c.l.b16 %v6140
  %v6491 = vunpack.c.h.b16 %v6140
  %v6492 = vunpack.c.l.b16 %v6141
  %v6493 = vunpack.c.h.b16 %v6141
  %v6494 = vunpack.c.l.b16 %v6142
  %v6495 = vunpack.c.h.b16 %v6142
  %v6496 = vunpack.c.l.b16 %v6143
  %v6497 = vunpack.c.h.b16 %v6143
  %v6498 = vunpack.c.l.b16 %v6144
  %v6499 = vunpack.c.h.b16 %v6144
  %v6500 = vunpack.c.l.b16 %v6145
  %v6501 = vunpack.c.h.b16 %v6145
  %v6502 = vunpack.c.l.b16 %v6146
  %v6503 = vunpack.c.h.b16 %v6146
  %v6504 = vunpack.c.l.b16 %v6147
  %v6505 = vunpack.c.h.b16 %v6147
  %v6506 = vunpack.c.l.b16 %v6148
  %v6507 = vunpack.c.h.b16 %v6148
  %v6508 = vunpack.c.l.b16 %v6149
  %v6509 = vunpack.c.h.b16 %v6149
  %v6510 = vunpack.c.l.b16 %v6150
  %v6511 = vunpack.c.h.b16 %v6150
  %v6512 = vunpack.c.l.b16 %v6151
  %v6513 = vunpack.c.h.b16 %v6151
  %v6514 = vunpack.c.l.b16 %v6152
  %v6515 = vunpack.c.h.b16 %v6152
  %v6516 = vunpack.c.l.b16 %v6153
  %v6517 = vunpack.c.h.b16 %v6153
  %v6518 = vunpack.c.l.b16 %v6154
  %v6519 = vunpack.c.h.b16 %v6154
  %v6520 = vunpack.c.l.b16 %v6155
  %v6521 = vunpack.c.h.b16 %v6155
  %v6522 = vunpack.c.l.b16 %v6156
  %v6523 = vunpack.c.h.b16 %v6156
  %v6524 = vunpack.c.l.b16 %v6157
  %v6525 = vunpack.c.h.b16 %v6157
  %v6526 = vunpack.c.l.b16 %v6158
  %v6527 = vunpack.c.h.b16 %v6158
  %v6528 = vunpack.c.l.b16 %v6159
  %v6529 = vunpack.c.h.b16 %v6159
  %v6530 = vunpack.c.l.b16 %v6160
  %v6531 = vunpack.c.h.b16 %v6160
  %v6532 = vunpack.c.l.b16 %v6161
  %v6533 = vunpack.c.h.b16 %v6161
  %v6534 = vunpack.c.l.b16 %v6162
  %v6535 = vunpack.c.h.b16 %v6162
  %v6536 = vunpack.c.l.b16 %v6163
  %v6537 = vunpack.c.h.b16 %v6163
  %v6538 = vunpack.c.l.b16 %v6164
  %v6539 = vunpack.c.h.b16 %v6164
  %v6540 = vunpack.c.l.b16 %v6165
  %v6541 = vunpack.c.h.b16 %v6165
  %v6542 = vunpack.c.l.b16 %v6166
  %v6543 = vunpack.c.h.b16 %v6166
  %v6544 = vunpack.c.l.b16 %v6167
  %v6545 = vunpack.c.h.b16 %v6167
  %v6546 = vunpack.c.l.b16 %v6168
  %v6547 = vunpack.c.h.b16 %v6168
  %v6548 = vunpack.c.l.b16 %v6169
  %v6549 = vunpack.c.h.b16 %v6169
  %v6550 = vunpack.c.l.b16 %v6170
  %v6551 = vunpack.c.h.b16 %v6170
  %v6552 = vunpack.c.l.b16 %v6171
  %v6553 = vunpack.c.h.b16 %v6171
  %v6554 = vunpack.c.l.b16 %v6172
  %v6555 = vunpack.c.h.b16 %v6172
  %v6556 = vunpack.c.l.b16 %v6173
  %v6557 = vunpack.c.h.b16 %v6173
  %v6558 = vpack.c.b16 %v6310, %v6302
  %v6559 = vpack.c.b16 %v6311, %v6303
  %v6560 = vpack.c.b16 %v6312, %v6304
  %v6561 = vpack.c.b16 %v6313, %v6305
  %v6562 = vpack.c.b16 %v6314, %v6306
  %v6563 = vpack.c.b16 %v6315, %v6307
  %v6564 = vpack.c.b16 %v6316, %v6308
  %v6565 = vpack.c.b16 %v6317, %v6309
  %v6566 = vpack.c.b16 %v6326, %v6318
  %v6567 = vpack.c.b16 %v6327, %v6319
  %v6568 = vpack.c.b16 %v6328, %v6320
  %v6569 = vpack.c.b16 %v6329, %v6321
  %v6570 = vpack.c.b16 %v6330, %v6322
  %v6571 = vpack.c.b16 %v6331, %v6323
  %v6572 = vpack.c.b16 %v6332, %v6324
  %v6573 = vpack.c.b16 %v6333, %v6325
  %v6574 = vpack.c.b16 %v6342, %v6334
  %v6575 = vpack.c.b16 %v6343, %v6335
  %v6576 = vpack.c.b16 %v6344, %v6336
  %v6577 = vpack.c.b16 %v6345, %v6337
  %v6578 = vpack.c.b16 %v6346, %v6338
  %v6579 = vpack.c.b16 %v6347, %v6339
  %v6580 = vpack.c.b16 %v6348, %v6340
  %v6581 = vpack.c.b16 %v6349, %v6341
  %v6582 = vpack.c.b16 %v6358, %v6350
  %v6583 = vpack.c.b16 %v6359, %v6351
  %v6584 = vpack.c.b16 %v6360, %v6352
  %v6585 = vpack.c.b16 %v6361, %v6353
  %v6586 = vpack.c.b16 %v6362, %v6354
  %v6587 = vpack.c.b16 %v6363, %v6355
  %v6588 = vpack.c.b16 %v6364, %v6356
  %v6589 = vpack.c.b16 %v6365, %v6357
  %v6590 = vpack.c.b16 %v6374, %v6366
  %v6591 = vpack.c.b16 %v6375, %v6367
  %v6592 = vpack.c.b16 %v6376, %v6368
  %v6593 = vpack.c.b16 %v6377, %v6369
  %v6594 = vpack.c.b16 %v6378, %v6370
  %v6595 = vpack.c.b16 %v6379, %v6371
  %v6596 = vpack.c.b16 %v6380, %v6372
  %v6597 = vpack.c.b16 %v6381, %v6373
  %v6598 = vpack.c.b16 %v6390, %v6382
  %v6599 = vpack.c.b16 %v6391, %v6383
  %v6600 = vpack.c.b16 %v6392, %v6384
  %v6601 = vpack.c.b16 %v6393, %v6385
  %v6602 = vpack.c.b16 %v6394, %v6386
  %v6603 = vpack.c.b16 %v6395, %v6387
  %v6604 = vpack.c.b16 %v6396, %v6388
  %v6605 = vpack.c.b16 %v6397, %v6389
  %v6606 = vpack.c.b16 %v6406, %v6398
  %v6607 = vpack.c.b16 %v6407, %v6399
  %v6608 = vpack.c.b16 %v6408, %v6400
  %v6609 = vpack.c.b16 %v6409, %v6401
  %v6610 = vpack.c.b16 %v6410, %v6402
  %v6611 = vpack.c.b16 %v6411, %v6403
  %v6612 = vpack.c.b16 %v6412, %v6404
  %v6613 = vpack.c.b16 %v6413, %v6405
  %v6614 = vpack.c.b16 %v6422, %v6414
  %v6615 = vpack.c.b16 %v6423, %v6415
  %v6616 = vpack.c.b16 %v6424, %v6416
  %v6617 = vpack.c.b16 %v6425, %v6417
  %v6618 = vpack.c.b16 %v6426, %v6418
  %v6619 = vpack.c.b16 %v6427, %v6419
  %v6620 = vpack.c.b16 %v6428, %v6420
  %v6621 = vpack.c.b16 %v6429, %v6421
  %v6622 = vpack.c.b16 %v6438, %v6430
  %v6623 = vpack.c.b16 %v6439, %v6431
  %v6624 = vpack.c.b16 %v6440, %v6432
  %v6625 = vpack.c.b16 %v6441, %v6433
  %v6626 = vpack.c.b16 %v6442, %v6434
  %v6627 = vpack.c.b16 %v6443, %v6435
  %v6628 = vpack.c.b16 %v6444, %v6436
  %v6629 = vpack.c.b16 %v6445, %v6437
  %v6630 = vpack.c.b16 %v6454, %v6446
  %v6631 = vpack.c.b16 %v6455, %v6447
  %v6632 = vpack.c.b16 %v6456, %v6448
  %v6633 = vpack.c.b16 %v6457, %v6449
  %v6634 = vpack.c.b16 %v6458, %v6450
  %v6635 = vpack.c.b16 %v6459, %v6451
  %v6636 = vpack.c.b16 %v6460, %v6452
  %v6637 = vpack.c.b16 %v6461, %v6453
  %v6638 = vpack.c.b16 %v6470, %v6462
  %v6639 = vpack.c.b16 %v6471, %v6463
  %v6640 = vpack.c.b16 %v6472, %v6464
  %v6641 = vpack.c.b16 %v6473, %v6465
  %v6642 = vpack.c.b16 %v6474, %v6466
  %v6643 = vpack.c.b16 %v6475, %v6467
  %v6644 = vpack.c.b16 %v6476, %v6468
  %v6645 = vpack.c.b16 %v6477, %v6469
  %v6646 = vpack.c.b16 %v6486, %v6478
  %v6647 = vpack.c.b16 %v6487, %v6479
  %v6648 = vpack.c.b16 %v6488, %v6480
  %v6649 = vpack.c.b16 %v6489, %v6481
  %v6650 = vpack.c.b16 %v6490, %v6482
  %v6651 = vpack.c.b16 %v6491, %v6483
  %v6652 = vpack.c.b16 %v6492, %v6484
  %v6653 = vpack.c.b16 %v6493, %v6485
  %v6654 = vpack.c.b16 %v6502, %v6494
  %v6655 = vpack.c.b16 %v6503, %v6495
  %v6656 = vpack.c.b16 %v6504, %v6496
  %v6657 = vpack.c.b16 %v6505, %v6497
  %v6658 = vpack.c.b16 %v6506, %v6498
  %v6659 = vpack.c.b16 %v6507, %v6499
  %v6660 = vpack.c.b16 %v6508, %v6500
  %v6661 = vpack.c.b16 %v6509, %v6501
  %v6662 = vpack.c.b16 %v6518, %v6510
  %v6663 = vpack.c.b16 %v6519, %v6511
  %v6664 = vpack.c.b16 %v6520, %v6512
  %v6665 = vpack.c.b16 %v6521, %v6513
  %v6666 = vpack.c.b16 %v6522, %v6514
  %v6667 = vpack.c.b16 %v6523, %v6515
  %v6668 = vpack.c.b16 %v6524, %v6516
  %v6669 = vpack.c.b16 %v6525, %v6517
  %v6670 = vpack.c.b16 %v6534, %v6526
  %v6671 = vpack.c.b16 %v6535, %v6527
  %v6672 = vpack.c.b16 %v6536, %v6528
  %v6673 = vpack.c.b16 %v6537, %v6529
  %v6674 = vpack.c.b16 %v6538, %v6530
  %v6675 = vpack.c.b16 %v6539, %v6531
  %v6676 = vpack.c.b16 %v6540, %v6532
  %v6677 = vpack.c.b16 %v6541, %v6533
  %v6678 = vpack.c.b16 %v6550, %v6542
  %v6679 = vpack.c.b16 %v6551, %v6543
  %v6680 = vpack.c.b16 %v6552, %v6544
  %v6681 = vpack.c.b16 %v6553, %v6545
  %v6682 = vpack.c.b16 %v6554, %v6546
  %v6683 = vpack.c.b16 %v6555, %v6547
  %v6684 = vpack.c.b16 %v6556, %v6548
  %v6685 = vpack.c.b16 %v6557, %v6549
  %6814 = vmatpush.bf16.msra.mxu0 %v6614
  %6815 = vmatpush.bf16.msra.mxu0 %v6606
  %6816 = vmatpush.bf16.msra.mxu0 %v6598
  %6817 = vmatpush.bf16.msra.mxu0 %v6590
  %6818 = vmatpush.bf16.msra.mxu0 %v6582
  %6819 = vmatpush.bf16.msra.mxu0 %v6574
  %6820 = vmatpush.bf16.msra.mxu0 %v6566
  %6821 = vmatpush.bf16.msra.mxu0 %v6558
  %6822 = vmatmul.bf16.gmra.mxu0 %v6044
  %v6823 = vpop.f32.mrf.mxu0
  %v6824 = vadd.f32 0.0, %v6823
  %v6825 = vpop.f32.mrf.mxu0
  %6826 = vdwg.mxu0
  %6827 = vmatpush.bf16.msra.mxu0 %v6678
  %6828 = vmatpush.bf16.msra.mxu0 %v6670
  %6829 = vmatpush.bf16.msra.mxu0 %v6662
  %6830 = vmatpush.bf16.msra.mxu0 %v6654
  %6831 = vmatpush.bf16.msra.mxu0 %v6646
  %6832 = vmatpush.bf16.msra.mxu0 %v6638
  %6833 = vmatpush.bf16.msra.mxu0 %v6630
  %6834 = vmatpush.bf16.msra.mxu0 %v6622
  %6835 = vmatmul.bf16.gmra.mxu0 %v6045
  %v6836 = vpop.f32.mrf.mxu0
  %v6837 = vadd.f32 %v6824, %v6836
  %v6838 = vpop.f32.mrf.mxu0
  %6839 = vdwg.mxu0
  %6840 = vmatpush.bf16.msra.mxu0 %v6615
  %6841 = vmatpush.bf16.msra.mxu0 %v6607
  %6842 = vmatpush.bf16.msra.mxu0 %v6599
  %6843 = vmatpush.bf16.msra.mxu0 %v6591
  %6844 = vmatpush.bf16.msra.mxu0 %v6583
  %6845 = vmatpush.bf16.msra.mxu0 %v6575
  %6846 = vmatpush.bf16.msra.mxu0 %v6567
  %6847 = vmatpush.bf16.msra.mxu0 %v6559
  %6848 = vmatmul.bf16.gmra.mxu0 %v6044
  %v6849 = vpop.f32.mrf.mxu0
  %v6850 = vadd.f32 0.0, %v6849
  %v6851 = vpop.f32.mrf.mxu0
  %6852 = vdwg.mxu0
  %6853 = vmatpush.bf16.msra.mxu0 %v6679
  %6854 = vmatpush.bf16.msra.mxu0 %v6671
  %6855 = vmatpush.bf16.msra.mxu0 %v6663
  %6856 = vmatpush.bf16.msra.mxu0 %v6655
  %6857 = vmatpush.bf16.msra.mxu0 %v6647
  %6858 = vmatpush.bf16.msra.mxu0 %v6639
  %6859 = vmatpush.bf16.msra.mxu0 %v6631
  %6860 = vmatpush.bf16.msra.mxu0 %v6623
  %6861 = vmatmul.bf16.gmra.mxu0 %v6045
  %v6862 = vpop.f32.mrf.mxu0
  %v6863 = vadd.f32 %v6850, %v6862
  %v6864 = vpop.f32.mrf.mxu0
  %6865 = vdwg.mxu0
  %6866 = vmatpush.bf16.msra.mxu0 %v6616
  %6867 = vmatpush.bf16.msra.mxu0 %v6608
  %6868 = vmatpush.bf16.msra.mxu0 %v6600
  %6869 = vmatpush.bf16.msra.mxu0 %v6592
  %6870 = vmatpush.bf16.msra.mxu0 %v6584
  %6871 = vmatpush.bf16.msra.mxu0 %v6576
  %6872 = vmatpush.bf16.msra.mxu0 %v6568
  %6873 = vmatpush.bf16.msra.mxu0 %v6560
  %6874 = vmatmul.bf16.gmra.mxu0 %v6044
  %v6875 = vpop.f32.mrf.mxu0
  %v6876 = vadd.f32 0.0, %v6875
  %v6877 = vpop.f32.mrf.mxu0
  %6878 = vdwg.mxu0
  %6879 = vmatpush.bf16.msra.mxu0 %v6680
  %6880 = vmatpush.bf16.msra.mxu0 %v6672
  %6881 = vmatpush.bf16.msra.mxu0 %v6664
  %6882 = vmatpush.bf16.msra.mxu0 %v6656
  %6883 = vmatpush.bf16.msra.mxu0 %v6648
  %6884 = vmatpush.bf16.msra.mxu0 %v6640
  %6885 = vmatpush.bf16.msra.mxu0 %v6632
  %6886 = vmatpush.bf16.msra.mxu0 %v6624
  %6887 = vmatmul.bf16.gmra.mxu0 %v6045
  %v6888 = vpop.f32.mrf.mxu0
  %v6889 = vadd.f32 %v6876, %v6888
  %v6890 = vpop.f32.mrf.mxu0
  %6891 = vdwg.mxu0
  %6892 = vmatpush.bf16.msra.mxu0 %v6617
  %6893 = vmatpush.bf16.msra.mxu0 %v6609
  %6894 = vmatpush.bf16.msra.mxu0 %v6601
  %6895 = vmatpush.bf16.msra.mxu0 %v6593
  %6896 = vmatpush.bf16.msra.mxu0 %v6585
  %6897 = vmatpush.bf16.msra.mxu0 %v6577
  %6898 = vmatpush.bf16.msra.mxu0 %v6569
  %6899 = vmatpush.bf16.msra.mxu0 %v6561
  %6900 = vmatmul.bf16.gmra.mxu0 %v6044
  %v6901 = vpop.f32.mrf.mxu0
  %v6902 = vadd.f32 0.0, %v6901
  %v6903 = vpop.f32.mrf.mxu0
  %6904 = vdwg.mxu0
  %6905 = vmatpush.bf16.msra.mxu0 %v6681
  %6906 = vmatpush.bf16.msra.mxu0 %v6673
  %6907 = vmatpush.bf16.msra.mxu0 %v6665
  %6908 = vmatpush.bf16.msra.mxu0 %v6657
  %6909 = vmatpush.bf16.msra.mxu0 %v6649
  %6910 = vmatpush.bf16.msra.mxu0 %v6641
  %6911 = vmatpush.bf16.msra.mxu0 %v6633
  %6912 = vmatpush.bf16.msra.mxu0 %v6625
  %6913 = vmatmul.bf16.gmra.mxu0 %v6045
  %v6914 = vpop.f32.mrf.mxu0
  %v6915 = vadd.f32 %v6902, %v6914
  %v6916 = vpop.f32.mrf.mxu0
  %6917 = vdwg.mxu0
  %6918 = vmatpush.bf16.msra.mxu0 %v6618
  %6919 = vmatpush.bf16.msra.mxu0 %v6610
  %6920 = vmatpush.bf16.msra.mxu0 %v6602
  %6921 = vmatpush.bf16.msra.mxu0 %v6594
  %6922 = vmatpush.bf16.msra.mxu0 %v6586
  %6923 = vmatpush.bf16.msra.mxu0 %v6578
  %6924 = vmatpush.bf16.msra.mxu0 %v6570
  %6925 = vmatpush.bf16.msra.mxu0 %v6562
  %6926 = vmatmul.bf16.gmra.mxu0 %v6044
  %v6927 = vpop.f32.mrf.mxu0
  %v6928 = vadd.f32 0.0, %v6927
  %v6929 = vpop.f32.mrf.mxu0
  %6930 = vdwg.mxu0
  %6931 = vmatpush.bf16.msra.mxu0 %v6682
  %6932 = vmatpush.bf16.msra.mxu0 %v6674
  %6933 = vmatpush.bf16.msra.mxu0 %v6666
  %6934 = vmatpush.bf16.msra.mxu0 %v6658
  %6935 = vmatpush.bf16.msra.mxu0 %v6650
  %6936 = vmatpush.bf16.msra.mxu0 %v6642
  %6937 = vmatpush.bf16.msra.mxu0 %v6634
  %6938 = vmatpush.bf16.msra.mxu0 %v6626
  %6939 = vmatmul.bf16.gmra.mxu0 %v6045
  %v6940 = vpop.f32.mrf.mxu0
  %v6941 = vadd.f32 %v6928, %v6940
  %v6942 = vpop.f32.mrf.mxu0
  %6943 = vdwg.mxu0
  %6944 = vmatpush.bf16.msra.mxu0 %v6619
  %6945 = vmatpush.bf16.msra.mxu0 %v6611
  %6946 = vmatpush.bf16.msra.mxu0 %v6603
  %6947 = vmatpush.bf16.msra.mxu0 %v6595
  %6948 = vmatpush.bf16.msra.mxu0 %v6587
  %6949 = vmatpush.bf16.msra.mxu0 %v6579
  %6950 = vmatpush.bf16.msra.mxu0 %v6571
  %6951 = vmatpush.bf16.msra.mxu0 %v6563
  %6952 = vmatmul.bf16.gmra.mxu0 %v6044
  %v6953 = vpop.f32.mrf.mxu0
  %v6954 = vadd.f32 0.0, %v6953
  %v6955 = vpop.f32.mrf.mxu0
  %6956 = vdwg.mxu0
  %6957 = vmatpush.bf16.msra.mxu0 %v6683
  %6958 = vmatpush.bf16.msra.mxu0 %v6675
  %6959 = vmatpush.bf16.msra.mxu0 %v6667
  %6960 = vmatpush.bf16.msra.mxu0 %v6659
  %6961 = vmatpush.bf16.msra.mxu0 %v6651
  %6962 = vmatpush.bf16.msra.mxu0 %v6643
  %6963 = vmatpush.bf16.msra.mxu0 %v6635
  %6964 = vmatpush.bf16.msra.mxu0 %v6627
  %6965 = vmatmul.bf16.gmra.mxu0 %v6045
  %v6966 = vpop.f32.mrf.mxu0
  %v6967 = vadd.f32 %v6954, %v6966
  %v6968 = vpop.f32.mrf.mxu0
  %6969 = vdwg.mxu0
  %6970 = vmatpush.bf16.msra.mxu0 %v6620
  %6971 = vmatpush.bf16.msra.mxu0 %v6612
  %6972 = vmatpush.bf16.msra.mxu0 %v6604
  %6973 = vmatpush.bf16.msra.mxu0 %v6596
  %6974 = vmatpush.bf16.msra.mxu0 %v6588
  %6975 = vmatpush.bf16.msra.mxu0 %v6580
  %6976 = vmatpush.bf16.msra.mxu0 %v6572
  %6977 = vmatpush.bf16.msra.mxu0 %v6564
  %6978 = vmatmul.bf16.gmra.mxu0 %v6044
  %v6979 = vpop.f32.mrf.mxu0
  %v6980 = vadd.f32 0.0, %v6979
  %v6981 = vpop.f32.mrf.mxu0
  %6982 = vdwg.mxu0
  %6983 = vmatpush.bf16.msra.mxu0 %v6684
  %6984 = vmatpush.bf16.msra.mxu0 %v6676
  %6985 = vmatpush.bf16.msra.mxu0 %v6668
  %6986 = vmatpush.bf16.msra.mxu0 %v6660
  %6987 = vmatpush.bf16.msra.mxu0 %v6652
  %6988 = vmatpush.bf16.msra.mxu0 %v6644
  %6989 = vmatpush.bf16.msra.mxu0 %v6636
  %6990 = vmatpush.bf16.msra.mxu0 %v6628
  %6991 = vmatmul.bf16.gmra.mxu0 %v6045
  %v6992 = vpop.f32.mrf.mxu0
  %v6993 = vadd.f32 %v6980, %v6992
  %v6994 = vpop.f32.mrf.mxu0
  %6995 = vdwg.mxu0
  %6996 = vmatpush.bf16.msra.mxu0 %v6621
  %6997 = vmatpush.bf16.msra.mxu0 %v6613
  %6998 = vmatpush.bf16.msra.mxu0 %v6605
  %6999 = vmatpush.bf16.msra.mxu0 %v6597
  %7000 = vmatpush.bf16.msra.mxu0 %v6589
  %7001 = vmatpush.bf16.msra.mxu0 %v6581
  %7002 = vmatpush.bf16.msra.mxu0 %v6573
  %7003 = vmatpush.bf16.msra.mxu0 %v6565
  %7004 = vmatmul.bf16.gmra.mxu0 %v6044
  %v7005 = vpop.f32.mrf.mxu0
  %v7006 = vadd.f32 0.0, %v7005
  %v7007 = vpop.f32.mrf.mxu0
  %7008 = vdwg.mxu0
  %7009 = vmatpush.bf16.msra.mxu0 %v6685
  %7010 = vmatpush.bf16.msra.mxu0 %v6677
  %7011 = vmatpush.bf16.msra.mxu0 %v6669
  %7012 = vmatpush.bf16.msra.mxu0 %v6661
  %7013 = vmatpush.bf16.msra.mxu0 %v6653
  %7014 = vmatpush.bf16.msra.mxu0 %v6645
  %7015 = vmatpush.bf16.msra.mxu0 %v6637
  %7016 = vmatpush.bf16.msra.mxu0 %v6629
  %7017 = vmatmul.bf16.gmra.mxu0 %v6045
  %v7018 = vpop.f32.mrf.mxu0
  %v7019 = vadd.f32 %v7006, %v7018
  %v7020 = vpop.f32.mrf.mxu0
  %7021 = vdwg.mxu0
  %v7022 = vld [vmem:[#allocation2 + $0xa0] sm:$0xff]
  %v7023 = vld [vmem:[#allocation2 + $0xa8] sm:$0xff]
  %v7024 = vld [vmem:[#allocation2 + $0xb0] sm:$0xff]
  %v7025 = vld [vmem:[#allocation2 + $0xb8] sm:$0xff]
  %v7026 = vadd.f32 %v7022, %v6837
  %v7027 = vadd.f32 %v7023, %v6863
  %v7028 = vadd.f32 %v7024, %v6889
  %v7029 = vadd.f32 %v7025, %v6915
  %v7030 = vld [vmem:[#allocation3 + $0x40] sm:$0xff]
  %v7031 = vld [vmem:[#allocation3 + $0x48] sm:$0xff]
  %v7032 = vld [vmem:[#allocation3 + $0x50] sm:$0xff]
  %v7033 = vld [vmem:[#allocation3 + $0x58] sm:$0xff]
  %v7034 = vadd.f32 %v7030, %v6941
  %v7035 = vadd.f32 %v7031, %v6967
  %v7036 = vadd.f32 %v7032, %v6993
  %v7037 = vadd.f32 %v7033, %v7019
  %v7038 = vxor.u32 %v7026, 2147483648
  %v7039 = vmul.f32 %v7038, 1.442695
  %v7040 = vpow.pop %v7039
  %v7041 = vadd.f32 %v7040, 1.0
  %v7042 = vrcp.pop %v7041
  %v7043 = vmul.f32 %v7041, %v7042
  %v7044 = vsub.f32 1.0, %v7043
  %v7045 = vmul.f32 %v7042, %v7044
  %v7046 = vadd.f32 %v7042, %v7045
  %vm7047 = vweird.f32 %v7041
  %vm7048 = vweird.f32 %v7042
  %vm7049 = vmor %vm7047, %vm7048
  %v7050 = vsel %vm7049, %v7042, %v7046
  %v7051 = vand.u32 2147483647, %v7041
  %vm7052 = vcmp.eq.f32.partialorder %v7051, 8.507059e+37
  %v7053 = vand.u32 %v7041, 2147483648
  %v7054 = vor.u32 1.1754944e-38, %v7053
  %v7055 = vsel %vm7052, %v7054, %v7050
  %v7056 = vmul.f32 1.0, %v7055
  %v7057 = vxor.u32 %v7027, 2147483648
  %v7058 = vmul.f32 %v7057, 1.442695
  %v7059 = vpow.pop %v7058
  %v7060 = vadd.f32 %v7059, 1.0
  %v7061 = vrcp.pop %v7060
  %v7062 = vmul.f32 %v7060, %v7061
  %v7063 = vsub.f32 1.0, %v7062
  %v7064 = vmul.f32 %v7061, %v7063
  %v7065 = vadd.f32 %v7061, %v7064
  %vm7066 = vweird.f32 %v7060
  %vm7067 = vweird.f32 %v7061
  %vm7068 = vmor %vm7066, %vm7067
  %v7069 = vsel %vm7068, %v7061, %v7065
  %v7070 = vand.u32 2147483647, %v7060
  %vm7071 = vcmp.eq.f32.partialorder %v7070, 8.507059e+37
  %v7072 = vand.u32 %v7060, 2147483648
  %v7073 = vor.u32 1.1754944e-38, %v7072
  %v7074 = vsel %vm7071, %v7073, %v7069
  %v7075 = vmul.f32 1.0, %v7074
  %v7076 = vtanh.pop %v7028
  %v7077 = vxor.u32 %v7029, 2147483648
  %v7078 = vmul.f32 %v7077, 1.442695
  %v7079 = vpow.pop %v7078
  %v7080 = vadd.f32 %v7079, 1.0
  %v7081 = vrcp.pop %v7080
  %v7082 = vmul.f32 %v7080, %v7081
  %v7083 = vsub.f32 1.0, %v7082
  %v7084 = vmul.f32 %v7081, %v7083
  %v7085 = vadd.f32 %v7081, %v7084
  %vm7086 = vweird.f32 %v7080
  %vm7087 = vweird.f32 %v7081
  %vm7088 = vmor %vm7086, %vm7087
  %v7089 = vsel %vm7088, %v7081, %v7085
  %v7090 = vand.u32 2147483647, %v7080
  %vm7091 = vcmp.eq.f32.partialorder %v7090, 8.507059e+37
  %v7092 = vand.u32 %v7080, 2147483648
  %v7093 = vor.u32 1.1754944e-38, %v7092
  %v7094 = vsel %vm7091, %v7093, %v7089
  %v7095 = vmul.f32 1.0, %v7094
  %v7096 = vmul.f32 %v7075, %v5976
  %v7097 = vmul.f32 %v7056, %v7076
  %v7098 = vadd.f32 %v7096, %v7097
  %v7099 = vtanh.pop %v7098
  %v7100 = vmul.f32 %v7095, %v7099
  %v7101 = vxor.u32 %v7034, 2147483648
  %v7102 = vmul.f32 %v7101, 1.442695
  %v7103 = vpow.pop %v7102
  %v7104 = vadd.f32 %v7103, 1.0
  %v7105 = vrcp.pop %v7104
  %v7106 = vmul.f32 %v7104, %v7105
  %v7107 = vsub.f32 1.0, %v7106
  %v7108 = vmul.f32 %v7105, %v7107
  %v7109 = vadd.f32 %v7105, %v7108
  %vm7110 = vweird.f32 %v7104
  %vm7111 = vweird.f32 %v7105
  %vm7112 = vmor %vm7110, %vm7111
  %v7113 = vsel %vm7112, %v7105, %v7109
  %v7114 = vand.u32 2147483647, %v7104
  %vm7115 = vcmp.eq.f32.partialorder %v7114, 8.507059e+37
  %v7116 = vand.u32 %v7104, 2147483648
  %v7117 = vor.u32 1.1754944e-38, %v7116
  %v7118 = vsel %vm7115, %v7117, %v7113
  %v7119 = vmul.f32 1.0, %v7118
  %v7120 = vxor.u32 %v7035, 2147483648
  %v7121 = vmul.f32 %v7120, 1.442695
  %v7122 = vpow.pop %v7121
  %v7123 = vadd.f32 %v7122, 1.0
  %v7124 = vrcp.pop %v7123
  %v7125 = vmul.f32 %v7123, %v7124
  %v7126 = vsub.f32 1.0, %v7125
  %v7127 = vmul.f32 %v7124, %v7126
  %v7128 = vadd.f32 %v7124, %v7127
  %vm7129 = vweird.f32 %v7123
  %vm7130 = vweird.f32 %v7124
  %vm7131 = vmor %vm7129, %vm7130
  %v7132 = vsel %vm7131, %v7124, %v7128
  %v7133 = vand.u32 2147483647, %v7123
  %vm7134 = vcmp.eq.f32.partialorder %v7133, 8.507059e+37
  %v7135 = vand.u32 %v7123, 2147483648
  %v7136 = vor.u32 1.1754944e-38, %v7135
  %v7137 = vsel %vm7134, %v7136, %v7132
  %v7138 = vmul.f32 1.0, %v7137
  %v7139 = vtanh.pop %v7036
  %v7140 = vxor.u32 %v7037, 2147483648
  %v7141 = vmul.f32 %v7140, 1.442695
  %v7142 = vpow.pop %v7141
  %v7143 = vadd.f32 %v7142, 1.0
  %v7144 = vrcp.pop %v7143
  %v7145 = vmul.f32 %v7143, %v7144
  %v7146 = vsub.f32 1.0, %v7145
  %v7147 = vmul.f32 %v7144, %v7146
  %v7148 = vadd.f32 %v7144, %v7147
  %vm7149 = vweird.f32 %v7143
  %vm7150 = vweird.f32 %v7144
  %vm7151 = vmor %vm7149, %vm7150
  %v7152 = vsel %vm7151, %v7144, %v7148
  %v7153 = vand.u32 2147483647, %v7143
  %vm7154 = vcmp.eq.f32.partialorder %v7153, 8.507059e+37
  %v7155 = vand.u32 %v7143, 2147483648
  %v7156 = vor.u32 1.1754944e-38, %v7155
  %v7157 = vsel %vm7154, %v7156, %v7152
  %v7158 = vmul.f32 1.0, %v7157
  %v7159 = vmul.f32 %v7138, %v6039
  %v7160 = vmul.f32 %v7119, %v7139
  %v7161 = vadd.f32 %v7159, %v7160
  %v7162 = vtanh.pop %v7161
  %v7163 = vmul.f32 %v7158, %v7162
  %7164 = vst [vmem:[#allocation5 + $0x50] sm:$0xff] %v7100
  %7165 = vst [vmem:[#allocation5 + $0x28] sm:$0xff] %v7163
  %v7166 = vpack.c.bf16 %v7100, %v7100
  %v7167 = vpack.c.bf16 %v7163, %v7163
  %v7168 = vld [vmem:[%s3] sm:$0xff]
  %v7169 = vld [vmem:[%s3 + $0x8] sm:$0xff]
  %v7170 = vld [vmem:[%s3 + $0x10] sm:$0xff]
  %v7171 = vld [vmem:[%s3 + $0x18] sm:$0xff]
  %v7172 = vld [vmem:[%s3 + $0x20] sm:$0xff]
  %v7173 = vld [vmem:[%s3 + $0x28] sm:$0xff]
  %v7174 = vld [vmem:[%s3 + $0x30] sm:$0xff]
  %v7175 = vld [vmem:[%s3 + $0x38] sm:$0xff]
  %v7176 = vld [vmem:[%s3 + $0x40] sm:$0xff]
  %v7177 = vld [vmem:[%s3 + $0x48] sm:$0xff]
  %v7178 = vld [vmem:[%s3 + $0x50] sm:$0xff]
  %v7179 = vld [vmem:[%s3 + $0x58] sm:$0xff]
  %v7180 = vld [vmem:[%s3 + $0x60] sm:$0xff]
  %v7181 = vld [vmem:[%s3 + $0x68] sm:$0xff]
  %v7182 = vld [vmem:[%s3 + $0x70] sm:$0xff]
  %v7183 = vld [vmem:[%s3 + $0x78] sm:$0xff]
  %v7184 = vld [vmem:[%s3 + $0x80] sm:$0xff]
  %v7185 = vld [vmem:[%s3 + $0x88] sm:$0xff]
  %v7186 = vld [vmem:[%s3 + $0x90] sm:$0xff]
  %v7187 = vld [vmem:[%s3 + $0x98] sm:$0xff]
  %v7188 = vld [vmem:[%s3 + $0xa0] sm:$0xff]
  %v7189 = vld [vmem:[%s3 + $0xa8] sm:$0xff]
  %v7190 = vld [vmem:[%s3 + $0xb0] sm:$0xff]
  %v7191 = vld [vmem:[%s3 + $0xb8] sm:$0xff]
  %v7192 = vld [vmem:[%s3 + $0xc0] sm:$0xff]
  %v7193 = vld [vmem:[%s3 + $0xc8] sm:$0xff]
  %v7194 = vld [vmem:[%s3 + $0xd0] sm:$0xff]
  %v7195 = vld [vmem:[%s3 + $0xd8] sm:$0xff]
  %v7196 = vld [vmem:[%s3 + $0xe0] sm:$0xff]
  %v7197 = vld [vmem:[%s3 + $0xe8] sm:$0xff]
  %v7198 = vld [vmem:[%s3 + $0xf0] sm:$0xff]
  %v7199 = vld [vmem:[%s3 + $0xf8] sm:$0xff]
  %v7200 = vld [vmem:[%s3 + $0x100] sm:$0xff]
  %v7201 = vld [vmem:[%s3 + $0x108] sm:$0xff]
  %v7202 = vld [vmem:[%s3 + $0x110] sm:$0xff]
  %v7203 = vld [vmem:[%s3 + $0x118] sm:$0xff]
  %v7204 = vld [vmem:[%s3 + $0x120] sm:$0xff]
  %v7205 = vld [vmem:[%s3 + $0x128] sm:$0xff]
  %v7206 = vld [vmem:[%s3 + $0x130] sm:$0xff]
  %v7207 = vld [vmem:[%s3 + $0x138] sm:$0xff]
  %v7208 = vld [vmem:[%s3 + $0x140] sm:$0xff]
  %v7209 = vld [vmem:[%s3 + $0x148] sm:$0xff]
  %v7210 = vld [vmem:[%s3 + $0x150] sm:$0xff]
  %v7211 = vld [vmem:[%s3 + $0x158] sm:$0xff]
  %v7212 = vld [vmem:[%s3 + $0x160] sm:$0xff]
  %v7213 = vld [vmem:[%s3 + $0x168] sm:$0xff]
  %v7214 = vld [vmem:[%s3 + $0x170] sm:$0xff]
  %v7215 = vld [vmem:[%s3 + $0x178] sm:$0xff]
  %v7216 = vld [vmem:[%s3 + $0x180] sm:$0xff]
  %v7217 = vld [vmem:[%s3 + $0x188] sm:$0xff]
  %v7218 = vld [vmem:[%s3 + $0x190] sm:$0xff]
  %v7219 = vld [vmem:[%s3 + $0x198] sm:$0xff]
  %v7220 = vld [vmem:[%s3 + $0x1a0] sm:$0xff]
  %v7221 = vld [vmem:[%s3 + $0x1a8] sm:$0xff]
  %v7222 = vld [vmem:[%s3 + $0x1b0] sm:$0xff]
  %v7223 = vld [vmem:[%s3 + $0x1b8] sm:$0xff]
  %v7224 = vld [vmem:[%s3 + $0x1c0] sm:$0xff]
  %v7225 = vld [vmem:[%s3 + $0x1c8] sm:$0xff]
  %v7226 = vld [vmem:[%s3 + $0x1d0] sm:$0xff]
  %v7227 = vld [vmem:[%s3 + $0x1d8] sm:$0xff]
  %v7228 = vld [vmem:[%s3 + $0x1e0] sm:$0xff]
  %v7229 = vld [vmem:[%s3 + $0x1e8] sm:$0xff]
  %v7230 = vld [vmem:[%s3 + $0x1f0] sm:$0xff]
  %v7231 = vld [vmem:[%s3 + $0x1f8] sm:$0xff]
  %v7232 = vld [vmem:[%s3 + $0x200] sm:$0xff]
  %v7233 = vld [vmem:[%s3 + $0x208] sm:$0xff]
  %v7234 = vld [vmem:[%s3 + $0x210] sm:$0xff]
  %v7235 = vld [vmem:[%s3 + $0x218] sm:$0xff]
  %v7236 = vld [vmem:[%s3 + $0x220] sm:$0xff]
  %v7237 = vld [vmem:[%s3 + $0x228] sm:$0xff]
  %v7238 = vld [vmem:[%s3 + $0x230] sm:$0xff]
  %v7239 = vld [vmem:[%s3 + $0x238] sm:$0xff]
  %v7240 = vld [vmem:[%s3 + $0x240] sm:$0xff]
  %v7241 = vld [vmem:[%s3 + $0x248] sm:$0xff]
  %v7242 = vld [vmem:[%s3 + $0x250] sm:$0xff]
  %v7243 = vld [vmem:[%s3 + $0x258] sm:$0xff]
  %v7244 = vld [vmem:[%s3 + $0x260] sm:$0xff]
  %v7245 = vld [vmem:[%s3 + $0x268] sm:$0xff]
  %v7246 = vld [vmem:[%s3 + $0x270] sm:$0xff]
  %v7247 = vld [vmem:[%s3 + $0x278] sm:$0xff]
  %v7248 = vld [vmem:[%s3 + $0x280] sm:$0xff]
  %v7249 = vld [vmem:[%s3 + $0x288] sm:$0xff]
  %v7250 = vld [vmem:[%s3 + $0x290] sm:$0xff]
  %v7251 = vld [vmem:[%s3 + $0x298] sm:$0xff]
  %v7252 = vld [vmem:[%s3 + $0x2a0] sm:$0xff]
  %v7253 = vld [vmem:[%s3 + $0x2a8] sm:$0xff]
  %v7254 = vld [vmem:[%s3 + $0x2b0] sm:$0xff]
  %v7255 = vld [vmem:[%s3 + $0x2b8] sm:$0xff]
  %v7256 = vld [vmem:[%s3 + $0x2c0] sm:$0xff]
  %v7257 = vld [vmem:[%s3 + $0x2c8] sm:$0xff]
  %v7258 = vld [vmem:[%s3 + $0x2d0] sm:$0xff]
  %v7259 = vld [vmem:[%s3 + $0x2d8] sm:$0xff]
  %v7260 = vld [vmem:[%s3 + $0x2e0] sm:$0xff]
  %v7261 = vld [vmem:[%s3 + $0x2e8] sm:$0xff]
  %v7262 = vld [vmem:[%s3 + $0x2f0] sm:$0xff]
  %v7263 = vld [vmem:[%s3 + $0x2f8] sm:$0xff]
  %v7264 = vld [vmem:[%s3 + $0x300] sm:$0xff]
  %v7265 = vld [vmem:[%s3 + $0x308] sm:$0xff]
  %v7266 = vld [vmem:[%s3 + $0x310] sm:$0xff]
  %v7267 = vld [vmem:[%s3 + $0x318] sm:$0xff]
  %v7268 = vld [vmem:[%s3 + $0x320] sm:$0xff]
  %v7269 = vld [vmem:[%s3 + $0x328] sm:$0xff]
  %v7270 = vld [vmem:[%s3 + $0x330] sm:$0xff]
  %v7271 = vld [vmem:[%s3 + $0x338] sm:$0xff]
  %v7272 = vld [vmem:[%s3 + $0x340] sm:$0xff]
  %v7273 = vld [vmem:[%s3 + $0x348] sm:$0xff]
  %v7274 = vld [vmem:[%s3 + $0x350] sm:$0xff]
  %v7275 = vld [vmem:[%s3 + $0x358] sm:$0xff]
  %v7276 = vld [vmem:[%s3 + $0x360] sm:$0xff]
  %v7277 = vld [vmem:[%s3 + $0x368] sm:$0xff]
  %v7278 = vld [vmem:[%s3 + $0x370] sm:$0xff]
  %v7279 = vld [vmem:[%s3 + $0x378] sm:$0xff]
  %v7280 = vld [vmem:[%s3 + $0x380] sm:$0xff]
  %v7281 = vld [vmem:[%s3 + $0x388] sm:$0xff]
  %v7282 = vld [vmem:[%s3 + $0x390] sm:$0xff]
  %v7283 = vld [vmem:[%s3 + $0x398] sm:$0xff]
  %v7284 = vld [vmem:[%s3 + $0x3a0] sm:$0xff]
  %v7285 = vld [vmem:[%s3 + $0x3a8] sm:$0xff]
  %v7286 = vld [vmem:[%s3 + $0x3b0] sm:$0xff]
  %v7287 = vld [vmem:[%s3 + $0x3b8] sm:$0xff]
  %v7288 = vld [vmem:[%s3 + $0x3c0] sm:$0xff]
  %v7289 = vld [vmem:[%s3 + $0x3c8] sm:$0xff]
  %v7290 = vld [vmem:[%s3 + $0x3d0] sm:$0xff]
  %v7291 = vld [vmem:[%s3 + $0x3d8] sm:$0xff]
  %v7292 = vld [vmem:[%s3 + $0x3e0] sm:$0xff]
  %v7293 = vld [vmem:[%s3 + $0x3e8] sm:$0xff]
  %v7294 = vld [vmem:[%s3 + $0x3f0] sm:$0xff]
  %v7295 = vld [vmem:[%s3 + $0x3f8] sm:$0xff]
  %v7424 = vunpack.c.l.b16 %v7168
  %v7425 = vunpack.c.h.b16 %v7168
  %v7426 = vunpack.c.l.b16 %v7169
  %v7427 = vunpack.c.h.b16 %v7169
  %v7428 = vunpack.c.l.b16 %v7170
  %v7429 = vunpack.c.h.b16 %v7170
  %v7430 = vunpack.c.l.b16 %v7171
  %v7431 = vunpack.c.h.b16 %v7171
  %v7432 = vunpack.c.l.b16 %v7172
  %v7433 = vunpack.c.h.b16 %v7172
  %v7434 = vunpack.c.l.b16 %v7173
  %v7435 = vunpack.c.h.b16 %v7173
  %v7436 = vunpack.c.l.b16 %v7174
  %v7437 = vunpack.c.h.b16 %v7174
  %v7438 = vunpack.c.l.b16 %v7175
  %v7439 = vunpack.c.h.b16 %v7175
  %v7440 = vunpack.c.l.b16 %v7176
  %v7441 = vunpack.c.h.b16 %v7176
  %v7442 = vunpack.c.l.b16 %v7177
  %v7443 = vunpack.c.h.b16 %v7177
  %v7444 = vunpack.c.l.b16 %v7178
  %v7445 = vunpack.c.h.b16 %v7178
  %v7446 = vunpack.c.l.b16 %v7179
  %v7447 = vunpack.c.h.b16 %v7179
  %v7448 = vunpack.c.l.b16 %v7180
  %v7449 = vunpack.c.h.b16 %v7180
  %v7450 = vunpack.c.l.b16 %v7181
  %v7451 = vunpack.c.h.b16 %v7181
  %v7452 = vunpack.c.l.b16 %v7182
  %v7453 = vunpack.c.h.b16 %v7182
  %v7454 = vunpack.c.l.b16 %v7183
  %v7455 = vunpack.c.h.b16 %v7183
  %v7456 = vunpack.c.l.b16 %v7184
  %v7457 = vunpack.c.h.b16 %v7184
  %v7458 = vunpack.c.l.b16 %v7185
  %v7459 = vunpack.c.h.b16 %v7185
  %v7460 = vunpack.c.l.b16 %v7186
  %v7461 = vunpack.c.h.b16 %v7186
  %v7462 = vunpack.c.l.b16 %v7187
  %v7463 = vunpack.c.h.b16 %v7187
  %v7464 = vunpack.c.l.b16 %v7188
  %v7465 = vunpack.c.h.b16 %v7188
  %v7466 = vunpack.c.l.b16 %v7189
  %v7467 = vunpack.c.h.b16 %v7189
  %v7468 = vunpack.c.l.b16 %v7190
  %v7469 = vunpack.c.h.b16 %v7190
  %v7470 = vunpack.c.l.b16 %v7191
  %v7471 = vunpack.c.h.b16 %v7191
  %v7472 = vunpack.c.l.b16 %v7192
  %v7473 = vunpack.c.h.b16 %v7192
  %v7474 = vunpack.c.l.b16 %v7193
  %v7475 = vunpack.c.h.b16 %v7193
  %v7476 = vunpack.c.l.b16 %v7194
  %v7477 = vunpack.c.h.b16 %v7194
  %v7478 = vunpack.c.l.b16 %v7195
  %v7479 = vunpack.c.h.b16 %v7195
  %v7480 = vunpack.c.l.b16 %v7196
  %v7481 = vunpack.c.h.b16 %v7196
  %v7482 = vunpack.c.l.b16 %v7197
  %v7483 = vunpack.c.h.b16 %v7197
  %v7484 = vunpack.c.l.b16 %v7198
  %v7485 = vunpack.c.h.b16 %v7198
  %v7486 = vunpack.c.l.b16 %v7199
  %v7487 = vunpack.c.h.b16 %v7199
  %v7488 = vunpack.c.l.b16 %v7200
  %v7489 = vunpack.c.h.b16 %v7200
  %v7490 = vunpack.c.l.b16 %v7201
  %v7491 = vunpack.c.h.b16 %v7201
  %v7492 = vunpack.c.l.b16 %v7202
  %v7493 = vunpack.c.h.b16 %v7202
  %v7494 = vunpack.c.l.b16 %v7203
  %v7495 = vunpack.c.h.b16 %v7203
  %v7496 = vunpack.c.l.b16 %v7204
  %v7497 = vunpack.c.h.b16 %v7204
  %v7498 = vunpack.c.l.b16 %v7205
  %v7499 = vunpack.c.h.b16 %v7205
  %v7500 = vunpack.c.l.b16 %v7206
  %v7501 = vunpack.c.h.b16 %v7206
  %v7502 = vunpack.c.l.b16 %v7207
  %v7503 = vunpack.c.h.b16 %v7207
  %v7504 = vunpack.c.l.b16 %v7208
  %v7505 = vunpack.c.h.b16 %v7208
  %v7506 = vunpack.c.l.b16 %v7209
  %v7507 = vunpack.c.h.b16 %v7209
  %v7508 = vunpack.c.l.b16 %v7210
  %v7509 = vunpack.c.h.b16 %v7210
  %v7510 = vunpack.c.l.b16 %v7211
  %v7511 = vunpack.c.h.b16 %v7211
  %v7512 = vunpack.c.l.b16 %v7212
  %v7513 = vunpack.c.h.b16 %v7212
  %v7514 = vunpack.c.l.b16 %v7213
  %v7515 = vunpack.c.h.b16 %v7213
  %v7516 = vunpack.c.l.b16 %v7214
  %v7517 = vunpack.c.h.b16 %v7214
  %v7518 = vunpack.c.l.b16 %v7215
  %v7519 = vunpack.c.h.b16 %v7215
  %v7520 = vunpack.c.l.b16 %v7216
  %v7521 = vunpack.c.h.b16 %v7216
  %v7522 = vunpack.c.l.b16 %v7217
  %v7523 = vunpack.c.h.b16 %v7217
  %v7524 = vunpack.c.l.b16 %v7218
  %v7525 = vunpack.c.h.b16 %v7218
  %v7526 = vunpack.c.l.b16 %v7219
  %v7527 = vunpack.c.h.b16 %v7219
  %v7528 = vunpack.c.l.b16 %v7220
  %v7529 = vunpack.c.h.b16 %v7220
  %v7530 = vunpack.c.l.b16 %v7221
  %v7531 = vunpack.c.h.b16 %v7221
  %v7532 = vunpack.c.l.b16 %v7222
  %v7533 = vunpack.c.h.b16 %v7222
  %v7534 = vunpack.c.l.b16 %v7223
  %v7535 = vunpack.c.h.b16 %v7223
  %v7536 = vunpack.c.l.b16 %v7224
  %v7537 = vunpack.c.h.b16 %v7224
  %v7538 = vunpack.c.l.b16 %v7225
  %v7539 = vunpack.c.h.b16 %v7225
  %v7540 = vunpack.c.l.b16 %v7226
  %v7541 = vunpack.c.h.b16 %v7226
  %v7542 = vunpack.c.l.b16 %v7227
  %v7543 = vunpack.c.h.b16 %v7227
  %v7544 = vunpack.c.l.b16 %v7228
  %v7545 = vunpack.c.h.b16 %v7228
  %v7546 = vunpack.c.l.b16 %v7229
  %v7547 = vunpack.c.h.b16 %v7229
  %v7548 = vunpack.c.l.b16 %v7230
  %v7549 = vunpack.c.h.b16 %v7230
  %v7550 = vunpack.c.l.b16 %v7231
  %v7551 = vunpack.c.h.b16 %v7231
  %v7552 = vunpack.c.l.b16 %v7232
  %v7553 = vunpack.c.h.b16 %v7232
  %v7554 = vunpack.c.l.b16 %v7233
  %v7555 = vunpack.c.h.b16 %v7233
  %v7556 = vunpack.c.l.b16 %v7234
  %v7557 = vunpack.c.h.b16 %v7234
  %v7558 = vunpack.c.l.b16 %v7235
  %v7559 = vunpack.c.h.b16 %v7235
  %v7560 = vunpack.c.l.b16 %v7236
  %v7561 = vunpack.c.h.b16 %v7236
  %v7562 = vunpack.c.l.b16 %v7237
  %v7563 = vunpack.c.h.b16 %v7237
  %v7564 = vunpack.c.l.b16 %v7238
  %v7565 = vunpack.c.h.b16 %v7238
  %v7566 = vunpack.c.l.b16 %v7239
  %v7567 = vunpack.c.h.b16 %v7239
  %v7568 = vunpack.c.l.b16 %v7240
  %v7569 = vunpack.c.h.b16 %v7240
  %v7570 = vunpack.c.l.b16 %v7241
  %v7571 = vunpack.c.h.b16 %v7241
  %v7572 = vunpack.c.l.b16 %v7242
  %v7573 = vunpack.c.h.b16 %v7242
  %v7574 = vunpack.c.l.b16 %v7243
  %v7575 = vunpack.c.h.b16 %v7243
  %v7576 = vunpack.c.l.b16 %v7244
  %v7577 = vunpack.c.h.b16 %v7244
  %v7578 = vunpack.c.l.b16 %v7245
  %v7579 = vunpack.c.h.b16 %v7245
  %v7580 = vunpack.c.l.b16 %v7246
  %v7581 = vunpack.c.h.b16 %v7246
  %v7582 = vunpack.c.l.b16 %v7247
  %v7583 = vunpack.c.h.b16 %v7247
  %v7584 = vunpack.c.l.b16 %v7248
  %v7585 = vunpack.c.h.b16 %v7248
  %v7586 = vunpack.c.l.b16 %v7249
  %v7587 = vunpack.c.h.b16 %v7249
  %v7588 = vunpack.c.l.b16 %v7250
  %v7589 = vunpack.c.h.b16 %v7250
  %v7590 = vunpack.c.l.b16 %v7251
  %v7591 = vunpack.c.h.b16 %v7251
  %v7592 = vunpack.c.l.b16 %v7252
  %v7593 = vunpack.c.h.b16 %v7252
  %v7594 = vunpack.c.l.b16 %v7253
  %v7595 = vunpack.c.h.b16 %v7253
  %v7596 = vunpack.c.l.b16 %v7254
  %v7597 = vunpack.c.h.b16 %v7254
  %v7598 = vunpack.c.l.b16 %v7255
  %v7599 = vunpack.c.h.b16 %v7255
  %v7600 = vunpack.c.l.b16 %v7256
  %v7601 = vunpack.c.h.b16 %v7256
  %v7602 = vunpack.c.l.b16 %v7257
  %v7603 = vunpack.c.h.b16 %v7257
  %v7604 = vunpack.c.l.b16 %v7258
  %v7605 = vunpack.c.h.b16 %v7258
  %v7606 = vunpack.c.l.b16 %v7259
  %v7607 = vunpack.c.h.b16 %v7259
  %v7608 = vunpack.c.l.b16 %v7260
  %v7609 = vunpack.c.h.b16 %v7260
  %v7610 = vunpack.c.l.b16 %v7261
  %v7611 = vunpack.c.h.b16 %v7261
  %v7612 = vunpack.c.l.b16 %v7262
  %v7613 = vunpack.c.h.b16 %v7262
  %v7614 = vunpack.c.l.b16 %v7263
  %v7615 = vunpack.c.h.b16 %v7263
  %v7616 = vunpack.c.l.b16 %v7264
  %v7617 = vunpack.c.h.b16 %v7264
  %v7618 = vunpack.c.l.b16 %v7265
  %v7619 = vunpack.c.h.b16 %v7265
  %v7620 = vunpack.c.l.b16 %v7266
  %v7621 = vunpack.c.h.b16 %v7266
  %v7622 = vunpack.c.l.b16 %v7267
  %v7623 = vunpack.c.h.b16 %v7267
  %v7624 = vunpack.c.l.b16 %v7268
  %v7625 = vunpack.c.h.b16 %v7268
  %v7626 = vunpack.c.l.b16 %v7269
  %v7627 = vunpack.c.h.b16 %v7269
  %v7628 = vunpack.c.l.b16 %v7270
  %v7629 = vunpack.c.h.b16 %v7270
  %v7630 = vunpack.c.l.b16 %v7271
  %v7631 = vunpack.c.h.b16 %v7271
  %v7632 = vunpack.c.l.b16 %v7272
  %v7633 = vunpack.c.h.b16 %v7272
  %v7634 = vunpack.c.l.b16 %v7273
  %v7635 = vunpack.c.h.b16 %v7273
  %v7636 = vunpack.c.l.b16 %v7274
  %v7637 = vunpack.c.h.b16 %v7274
  %v7638 = vunpack.c.l.b16 %v7275
  %v7639 = vunpack.c.h.b16 %v7275
  %v7640 = vunpack.c.l.b16 %v7276
  %v7641 = vunpack.c.h.b16 %v7276
  %v7642 = vunpack.c.l.b16 %v7277
  %v7643 = vunpack.c.h.b16 %v7277
  %v7644 = vunpack.c.l.b16 %v7278
  %v7645 = vunpack.c.h.b16 %v7278
  %v7646 = vunpack.c.l.b16 %v7279
  %v7647 = vunpack.c.h.b16 %v7279
  %v7648 = vunpack.c.l.b16 %v7280
  %v7649 = vunpack.c.h.b16 %v7280
  %v7650 = vunpack.c.l.b16 %v7281
  %v7651 = vunpack.c.h.b16 %v7281
  %v7652 = vunpack.c.l.b16 %v7282
  %v7653 = vunpack.c.h.b16 %v7282
  %v7654 = vunpack.c.l.b16 %v7283
  %v7655 = vunpack.c.h.b16 %v7283
  %v7656 = vunpack.c.l.b16 %v7284
  %v7657 = vunpack.c.h.b16 %v7284
  %v7658 = vunpack.c.l.b16 %v7285
  %v7659 = vunpack.c.h.b16 %v7285
  %v7660 = vunpack.c.l.b16 %v7286
  %v7661 = vunpack.c.h.b16 %v7286
  %v7662 = vunpack.c.l.b16 %v7287
  %v7663 = vunpack.c.h.b16 %v7287
  %v7664 = vunpack.c.l.b16 %v7288
  %v7665 = vunpack.c.h.b16 %v7288
  %v7666 = vunpack.c.l.b16 %v7289
  %v7667 = vunpack.c.h.b16 %v7289
  %v7668 = vunpack.c.l.b16 %v7290
  %v7669 = vunpack.c.h.b16 %v7290
  %v7670 = vunpack.c.l.b16 %v7291
  %v7671 = vunpack.c.h.b16 %v7291
  %v7672 = vunpack.c.l.b16 %v7292
  %v7673 = vunpack.c.h.b16 %v7292
  %v7674 = vunpack.c.l.b16 %v7293
  %v7675 = vunpack.c.h.b16 %v7293
  %v7676 = vunpack.c.l.b16 %v7294
  %v7677 = vunpack.c.h.b16 %v7294
  %v7678 = vunpack.c.l.b16 %v7295
  %v7679 = vunpack.c.h.b16 %v7295
  %v7680 = vpack.c.b16 %v7432, %v7424
  %v7681 = vpack.c.b16 %v7433, %v7425
  %v7682 = vpack.c.b16 %v7434, %v7426
  %v7683 = vpack.c.b16 %v7435, %v7427
  %v7684 = vpack.c.b16 %v7436, %v7428
  %v7685 = vpack.c.b16 %v7437, %v7429
  %v7686 = vpack.c.b16 %v7438, %v7430
  %v7687 = vpack.c.b16 %v7439, %v7431
  %v7688 = vpack.c.b16 %v7448, %v7440
  %v7689 = vpack.c.b16 %v7449, %v7441
  %v7690 = vpack.c.b16 %v7450, %v7442
  %v7691 = vpack.c.b16 %v7451, %v7443
  %v7692 = vpack.c.b16 %v7452, %v7444
  %v7693 = vpack.c.b16 %v7453, %v7445
  %v7694 = vpack.c.b16 %v7454, %v7446
  %v7695 = vpack.c.b16 %v7455, %v7447
  %v7696 = vpack.c.b16 %v7464, %v7456
  %v7697 = vpack.c.b16 %v7465, %v7457
  %v7698 = vpack.c.b16 %v7466, %v7458
  %v7699 = vpack.c.b16 %v7467, %v7459
  %v7700 = vpack.c.b16 %v7468, %v7460
  %v7701 = vpack.c.b16 %v7469, %v7461
  %v7702 = vpack.c.b16 %v7470, %v7462
  %v7703 = vpack.c.b16 %v7471, %v7463
  %v7704 = vpack.c.b16 %v7480, %v7472
  %v7705 = vpack.c.b16 %v7481, %v7473
  %v7706 = vpack.c.b16 %v7482, %v7474
  %v7707 = vpack.c.b16 %v7483, %v7475
  %v7708 = vpack.c.b16 %v7484, %v7476
  %v7709 = vpack.c.b16 %v7485, %v7477
  %v7710 = vpack.c.b16 %v7486, %v7478
  %v7711 = vpack.c.b16 %v7487, %v7479
  %v7712 = vpack.c.b16 %v7496, %v7488
  %v7713 = vpack.c.b16 %v7497, %v7489
  %v7714 = vpack.c.b16 %v7498, %v7490
  %v7715 = vpack.c.b16 %v7499, %v7491
  %v7716 = vpack.c.b16 %v7500, %v7492
  %v7717 = vpack.c.b16 %v7501, %v7493
  %v7718 = vpack.c.b16 %v7502, %v7494
  %v7719 = vpack.c.b16 %v7503, %v7495
  %v7720 = vpack.c.b16 %v7512, %v7504
  %v7721 = vpack.c.b16 %v7513, %v7505
  %v7722 = vpack.c.b16 %v7514, %v7506
  %v7723 = vpack.c.b16 %v7515, %v7507
  %v7724 = vpack.c.b16 %v7516, %v7508
  %v7725 = vpack.c.b16 %v7517, %v7509
  %v7726 = vpack.c.b16 %v7518, %v7510
  %v7727 = vpack.c.b16 %v7519, %v7511
  %v7728 = vpack.c.b16 %v7528, %v7520
  %v7729 = vpack.c.b16 %v7529, %v7521
  %v7730 = vpack.c.b16 %v7530, %v7522
  %v7731 = vpack.c.b16 %v7531, %v7523
  %v7732 = vpack.c.b16 %v7532, %v7524
  %v7733 = vpack.c.b16 %v7533, %v7525
  %v7734 = vpack.c.b16 %v7534, %v7526
  %v7735 = vpack.c.b16 %v7535, %v7527
  %v7736 = vpack.c.b16 %v7544, %v7536
  %v7737 = vpack.c.b16 %v7545, %v7537
  %v7738 = vpack.c.b16 %v7546, %v7538
  %v7739 = vpack.c.b16 %v7547, %v7539
  %v7740 = vpack.c.b16 %v7548, %v7540
  %v7741 = vpack.c.b16 %v7549, %v7541
  %v7742 = vpack.c.b16 %v7550, %v7542
  %v7743 = vpack.c.b16 %v7551, %v7543
  %v7744 = vpack.c.b16 %v7560, %v7552
  %v7745 = vpack.c.b16 %v7561, %v7553
  %v7746 = vpack.c.b16 %v7562, %v7554
  %v7747 = vpack.c.b16 %v7563, %v7555
  %v7748 = vpack.c.b16 %v7564, %v7556
  %v7749 = vpack.c.b16 %v7565, %v7557
  %v7750 = vpack.c.b16 %v7566, %v7558
  %v7751 = vpack.c.b16 %v7567, %v7559
  %v7752 = vpack.c.b16 %v7576, %v7568
  %v7753 = vpack.c.b16 %v7577, %v7569
  %v7754 = vpack.c.b16 %v7578, %v7570
  %v7755 = vpack.c.b16 %v7579, %v7571
  %v7756 = vpack.c.b16 %v7580, %v7572
  %v7757 = vpack.c.b16 %v7581, %v7573
  %v7758 = vpack.c.b16 %v7582, %v7574
  %v7759 = vpack.c.b16 %v7583, %v7575
  %v7760 = vpack.c.b16 %v7592, %v7584
  %v7761 = vpack.c.b16 %v7593, %v7585
  %v7762 = vpack.c.b16 %v7594, %v7586
  %v7763 = vpack.c.b16 %v7595, %v7587
  %v7764 = vpack.c.b16 %v7596, %v7588
  %v7765 = vpack.c.b16 %v7597, %v7589
  %v7766 = vpack.c.b16 %v7598, %v7590
  %v7767 = vpack.c.b16 %v7599, %v7591
  %v7768 = vpack.c.b16 %v7608, %v7600
  %v7769 = vpack.c.b16 %v7609, %v7601
  %v7770 = vpack.c.b16 %v7610, %v7602
  %v7771 = vpack.c.b16 %v7611, %v7603
  %v7772 = vpack.c.b16 %v7612, %v7604
  %v7773 = vpack.c.b16 %v7613, %v7605
  %v7774 = vpack.c.b16 %v7614, %v7606
  %v7775 = vpack.c.b16 %v7615, %v7607
  %v7776 = vpack.c.b16 %v7624, %v7616
  %v7777 = vpack.c.b16 %v7625, %v7617
  %v7778 = vpack.c.b16 %v7626, %v7618
  %v7779 = vpack.c.b16 %v7627, %v7619
  %v7780 = vpack.c.b16 %v7628, %v7620
  %v7781 = vpack.c.b16 %v7629, %v7621
  %v7782 = vpack.c.b16 %v7630, %v7622
  %v7783 = vpack.c.b16 %v7631, %v7623
  %v7784 = vpack.c.b16 %v7640, %v7632
  %v7785 = vpack.c.b16 %v7641, %v7633
  %v7786 = vpack.c.b16 %v7642, %v7634
  %v7787 = vpack.c.b16 %v7643, %v7635
  %v7788 = vpack.c.b16 %v7644, %v7636
  %v7789 = vpack.c.b16 %v7645, %v7637
  %v7790 = vpack.c.b16 %v7646, %v7638
  %v7791 = vpack.c.b16 %v7647, %v7639
  %v7792 = vpack.c.b16 %v7656, %v7648
  %v7793 = vpack.c.b16 %v7657, %v7649
  %v7794 = vpack.c.b16 %v7658, %v7650
  %v7795 = vpack.c.b16 %v7659, %v7651
  %v7796 = vpack.c.b16 %v7660, %v7652
  %v7797 = vpack.c.b16 %v7661, %v7653
  %v7798 = vpack.c.b16 %v7662, %v7654
  %v7799 = vpack.c.b16 %v7663, %v7655
  %v7800 = vpack.c.b16 %v7672, %v7664
  %v7801 = vpack.c.b16 %v7673, %v7665
  %v7802 = vpack.c.b16 %v7674, %v7666
  %v7803 = vpack.c.b16 %v7675, %v7667
  %v7804 = vpack.c.b16 %v7676, %v7668
  %v7805 = vpack.c.b16 %v7677, %v7669
  %v7806 = vpack.c.b16 %v7678, %v7670
  %v7807 = vpack.c.b16 %v7679, %v7671
  %7936 = vmatpush.bf16.msra.mxu0 %v7736
  %7937 = vmatpush.bf16.msra.mxu0 %v7728
  %7938 = vmatpush.bf16.msra.mxu0 %v7720
  %7939 = vmatpush.bf16.msra.mxu0 %v7712
  %7940 = vmatpush.bf16.msra.mxu0 %v7704
  %7941 = vmatpush.bf16.msra.mxu0 %v7696
  %7942 = vmatpush.bf16.msra.mxu0 %v7688
  %7943 = vmatpush.bf16.msra.mxu0 %v7680
  %7944 = vmatmul.bf16.gmra.mxu0 %v7166
  %v7945 = vpop.f32.mrf.mxu0
  %v7946 = vadd.f32 0.0, %v7945
  %v7947 = vpop.f32.mrf.mxu0
  %7948 = vdwg.mxu0
  %7949 = vmatpush.bf16.msra.mxu0 %v7800
  %7950 = vmatpush.bf16.msra.mxu0 %v7792
  %7951 = vmatpush.bf16.msra.mxu0 %v7784
  %7952 = vmatpush.bf16.msra.mxu0 %v7776
  %7953 = vmatpush.bf16.msra.mxu0 %v7768
  %7954 = vmatpush.bf16.msra.mxu0 %v7760
  %7955 = vmatpush.bf16.msra.mxu0 %v7752
  %7956 = vmatpush.bf16.msra.mxu0 %v7744
  %7957 = vmatmul.bf16.gmra.mxu0 %v7167
  %v7958 = vpop.f32.mrf.mxu0
  %v7959 = vadd.f32 %v7946, %v7958
  %v7960 = vpop.f32.mrf.mxu0
  %7961 = vdwg.mxu0
  %7962 = vmatpush.bf16.msra.mxu0 %v7737
  %7963 = vmatpush.bf16.msra.mxu0 %v7729
  %7964 = vmatpush.bf16.msra.mxu0 %v7721
  %7965 = vmatpush.bf16.msra.mxu0 %v7713
  %7966 = vmatpush.bf16.msra.mxu0 %v7705
  %7967 = vmatpush.bf16.msra.mxu0 %v7697
  %7968 = vmatpush.bf16.msra.mxu0 %v7689
  %7969 = vmatpush.bf16.msra.mxu0 %v7681
  %7970 = vmatmul.bf16.gmra.mxu0 %v7166
  %v7971 = vpop.f32.mrf.mxu0
  %v7972 = vadd.f32 0.0, %v7971
  %v7973 = vpop.f32.mrf.mxu0
  %7974 = vdwg.mxu0
  %7975 = vmatpush.bf16.msra.mxu0 %v7801
  %7976 = vmatpush.bf16.msra.mxu0 %v7793
  %7977 = vmatpush.bf16.msra.mxu0 %v7785
  %7978 = vmatpush.bf16.msra.mxu0 %v7777
  %7979 = vmatpush.bf16.msra.mxu0 %v7769
  %7980 = vmatpush.bf16.msra.mxu0 %v7761
  %7981 = vmatpush.bf16.msra.mxu0 %v7753
  %7982 = vmatpush.bf16.msra.mxu0 %v7745
  %7983 = vmatmul.bf16.gmra.mxu0 %v7167
  %v7984 = vpop.f32.mrf.mxu0
  %v7985 = vadd.f32 %v7972, %v7984
  %v7986 = vpop.f32.mrf.mxu0
  %7987 = vdwg.mxu0
  %7988 = vmatpush.bf16.msra.mxu0 %v7738
  %7989 = vmatpush.bf16.msra.mxu0 %v7730
  %7990 = vmatpush.bf16.msra.mxu0 %v7722
  %7991 = vmatpush.bf16.msra.mxu0 %v7714
  %7992 = vmatpush.bf16.msra.mxu0 %v7706
  %7993 = vmatpush.bf16.msra.mxu0 %v7698
  %7994 = vmatpush.bf16.msra.mxu0 %v7690
  %7995 = vmatpush.bf16.msra.mxu0 %v7682
  %7996 = vmatmul.bf16.gmra.mxu0 %v7166
  %v7997 = vpop.f32.mrf.mxu0
  %v7998 = vadd.f32 0.0, %v7997
  %v7999 = vpop.f32.mrf.mxu0
  %8000 = vdwg.mxu0
  %8001 = vmatpush.bf16.msra.mxu0 %v7802
  %8002 = vmatpush.bf16.msra.mxu0 %v7794
  %8003 = vmatpush.bf16.msra.mxu0 %v7786
  %8004 = vmatpush.bf16.msra.mxu0 %v7778
  %8005 = vmatpush.bf16.msra.mxu0 %v7770
  %8006 = vmatpush.bf16.msra.mxu0 %v7762
  %8007 = vmatpush.bf16.msra.mxu0 %v7754
  %8008 = vmatpush.bf16.msra.mxu0 %v7746
  %8009 = vmatmul.bf16.gmra.mxu0 %v7167
  %v8010 = vpop.f32.mrf.mxu0
  %v8011 = vadd.f32 %v7998, %v8010
  %v8012 = vpop.f32.mrf.mxu0
  %8013 = vdwg.mxu0
  %8014 = vmatpush.bf16.msra.mxu0 %v7739
  %8015 = vmatpush.bf16.msra.mxu0 %v7731
  %8016 = vmatpush.bf16.msra.mxu0 %v7723
  %8017 = vmatpush.bf16.msra.mxu0 %v7715
  %8018 = vmatpush.bf16.msra.mxu0 %v7707
  %8019 = vmatpush.bf16.msra.mxu0 %v7699
  %8020 = vmatpush.bf16.msra.mxu0 %v7691
  %8021 = vmatpush.bf16.msra.mxu0 %v7683
  %8022 = vmatmul.bf16.gmra.mxu0 %v7166
  %v8023 = vpop.f32.mrf.mxu0
  %v8024 = vadd.f32 0.0, %v8023
  %v8025 = vpop.f32.mrf.mxu0
  %8026 = vdwg.mxu0
  %8027 = vmatpush.bf16.msra.mxu0 %v7803
  %8028 = vmatpush.bf16.msra.mxu0 %v7795
  %8029 = vmatpush.bf16.msra.mxu0 %v7787
  %8030 = vmatpush.bf16.msra.mxu0 %v7779
  %8031 = vmatpush.bf16.msra.mxu0 %v7771
  %8032 = vmatpush.bf16.msra.mxu0 %v7763
  %8033 = vmatpush.bf16.msra.mxu0 %v7755
  %8034 = vmatpush.bf16.msra.mxu0 %v7747
  %8035 = vmatmul.bf16.gmra.mxu0 %v7167
  %v8036 = vpop.f32.mrf.mxu0
  %v8037 = vadd.f32 %v8024, %v8036
  %v8038 = vpop.f32.mrf.mxu0
  %8039 = vdwg.mxu0
  %8040 = vmatpush.bf16.msra.mxu0 %v7740
  %8041 = vmatpush.bf16.msra.mxu0 %v7732
  %8042 = vmatpush.bf16.msra.mxu0 %v7724
  %8043 = vmatpush.bf16.msra.mxu0 %v7716
  %8044 = vmatpush.bf16.msra.mxu0 %v7708
  %8045 = vmatpush.bf16.msra.mxu0 %v7700
  %8046 = vmatpush.bf16.msra.mxu0 %v7692
  %8047 = vmatpush.bf16.msra.mxu0 %v7684
  %8048 = vmatmul.bf16.gmra.mxu0 %v7166
  %v8049 = vpop.f32.mrf.mxu0
  %v8050 = vadd.f32 0.0, %v8049
  %v8051 = vpop.f32.mrf.mxu0
  %8052 = vdwg.mxu0
  %8053 = vmatpush.bf16.msra.mxu0 %v7804
  %8054 = vmatpush.bf16.msra.mxu0 %v7796
  %8055 = vmatpush.bf16.msra.mxu0 %v7788
  %8056 = vmatpush.bf16.msra.mxu0 %v7780
  %8057 = vmatpush.bf16.msra.mxu0 %v7772
  %8058 = vmatpush.bf16.msra.mxu0 %v7764
  %8059 = vmatpush.bf16.msra.mxu0 %v7756
  %8060 = vmatpush.bf16.msra.mxu0 %v7748
  %8061 = vmatmul.bf16.gmra.mxu0 %v7167
  %v8062 = vpop.f32.mrf.mxu0
  %v8063 = vadd.f32 %v8050, %v8062
  %v8064 = vpop.f32.mrf.mxu0
  %8065 = vdwg.mxu0
  %8066 = vmatpush.bf16.msra.mxu0 %v7741
  %8067 = vmatpush.bf16.msra.mxu0 %v7733
  %8068 = vmatpush.bf16.msra.mxu0 %v7725
  %8069 = vmatpush.bf16.msra.mxu0 %v7717
  %8070 = vmatpush.bf16.msra.mxu0 %v7709
  %8071 = vmatpush.bf16.msra.mxu0 %v7701
  %8072 = vmatpush.bf16.msra.mxu0 %v7693
  %8073 = vmatpush.bf16.msra.mxu0 %v7685
  %8074 = vmatmul.bf16.gmra.mxu0 %v7166
  %v8075 = vpop.f32.mrf.mxu0
  %v8076 = vadd.f32 0.0, %v8075
  %v8077 = vpop.f32.mrf.mxu0
  %8078 = vdwg.mxu0
  %8079 = vmatpush.bf16.msra.mxu0 %v7805
  %8080 = vmatpush.bf16.msra.mxu0 %v7797
  %8081 = vmatpush.bf16.msra.mxu0 %v7789
  %8082 = vmatpush.bf16.msra.mxu0 %v7781
  %8083 = vmatpush.bf16.msra.mxu0 %v7773
  %8084 = vmatpush.bf16.msra.mxu0 %v7765
  %8085 = vmatpush.bf16.msra.mxu0 %v7757
  %8086 = vmatpush.bf16.msra.mxu0 %v7749
  %8087 = vmatmul.bf16.gmra.mxu0 %v7167
  %v8088 = vpop.f32.mrf.mxu0
  %v8089 = vadd.f32 %v8076, %v8088
  %v8090 = vpop.f32.mrf.mxu0
  %8091 = vdwg.mxu0
  %8092 = vmatpush.bf16.msra.mxu0 %v7742
  %8093 = vmatpush.bf16.msra.mxu0 %v7734
  %8094 = vmatpush.bf16.msra.mxu0 %v7726
  %8095 = vmatpush.bf16.msra.mxu0 %v7718
  %8096 = vmatpush.bf16.msra.mxu0 %v7710
  %8097 = vmatpush.bf16.msra.mxu0 %v7702
  %8098 = vmatpush.bf16.msra.mxu0 %v7694
  %8099 = vmatpush.bf16.msra.mxu0 %v7686
  %8100 = vmatmul.bf16.gmra.mxu0 %v7166
  %v8101 = vpop.f32.mrf.mxu0
  %v8102 = vadd.f32 0.0, %v8101
  %v8103 = vpop.f32.mrf.mxu0
  %8104 = vdwg.mxu0
  %8105 = vmatpush.bf16.msra.mxu0 %v7806
  %8106 = vmatpush.bf16.msra.mxu0 %v7798
  %8107 = vmatpush.bf16.msra.mxu0 %v7790
  %8108 = vmatpush.bf16.msra.mxu0 %v7782
  %8109 = vmatpush.bf16.msra.mxu0 %v7774
  %8110 = vmatpush.bf16.msra.mxu0 %v7766
  %8111 = vmatpush.bf16.msra.mxu0 %v7758
  %8112 = vmatpush.bf16.msra.mxu0 %v7750
  %8113 = vmatmul.bf16.gmra.mxu0 %v7167
  %v8114 = vpop.f32.mrf.mxu0
  %v8115 = vadd.f32 %v8102, %v8114
  %v8116 = vpop.f32.mrf.mxu0
  %8117 = vdwg.mxu0
  %8118 = vmatpush.bf16.msra.mxu0 %v7743
  %8119 = vmatpush.bf16.msra.mxu0 %v7735
  %8120 = vmatpush.bf16.msra.mxu0 %v7727
  %8121 = vmatpush.bf16.msra.mxu0 %v7719
  %8122 = vmatpush.bf16.msra.mxu0 %v7711
  %8123 = vmatpush.bf16.msra.mxu0 %v7703
  %8124 = vmatpush.bf16.msra.mxu0 %v7695
  %8125 = vmatpush.bf16.msra.mxu0 %v7687
  %8126 = vmatmul.bf16.gmra.mxu0 %v7166
  %v8127 = vpop.f32.mrf.mxu0
  %v8128 = vadd.f32 0.0, %v8127
  %v8129 = vpop.f32.mrf.mxu0
  %8130 = vdwg.mxu0
  %8131 = vmatpush.bf16.msra.mxu0 %v7807
  %8132 = vmatpush.bf16.msra.mxu0 %v7799
  %8133 = vmatpush.bf16.msra.mxu0 %v7791
  %8134 = vmatpush.bf16.msra.mxu0 %v7783
  %8135 = vmatpush.bf16.msra.mxu0 %v7775
  %8136 = vmatpush.bf16.msra.mxu0 %v7767
  %8137 = vmatpush.bf16.msra.mxu0 %v7759
  %8138 = vmatpush.bf16.msra.mxu0 %v7751
  %8139 = vmatmul.bf16.gmra.mxu0 %v7167
  %v8140 = vpop.f32.mrf.mxu0
  %v8141 = vadd.f32 %v8128, %v8140
  %v8142 = vpop.f32.mrf.mxu0
  %8143 = vdwg.mxu0
  %v8144 = vld [vmem:[#allocation2 + $0xc0] sm:$0xff]
  %v8145 = vld [vmem:[#allocation2 + $0xc8] sm:$0xff]
  %v8146 = vld [vmem:[#allocation2 + $0xd0] sm:$0xff]
  %v8147 = vld [vmem:[#allocation2 + $0xd8] sm:$0xff]
  %v8148 = vadd.f32 %v8144, %v7959
  %v8149 = vadd.f32 %v8145, %v7985
  %v8150 = vadd.f32 %v8146, %v8011
  %v8151 = vadd.f32 %v8147, %v8037
  %v8152 = vld [vmem:[#allocation3 + $0x20] sm:$0xff]
  %v8153 = vld [vmem:[#allocation3 + $0x28] sm:$0xff]
  %v8154 = vld [vmem:[#allocation3 + $0x30] sm:$0xff]
  %v8155 = vld [vmem:[#allocation3 + $0x38] sm:$0xff]
  %v8156 = vadd.f32 %v8152, %v8063
  %v8157 = vadd.f32 %v8153, %v8089
  %v8158 = vadd.f32 %v8154, %v8115
  %v8159 = vadd.f32 %v8155, %v8141
  %v8160 = vxor.u32 %v8148, 2147483648
  %v8161 = vmul.f32 %v8160, 1.442695
  %v8162 = vpow.pop %v8161
  %v8163 = vadd.f32 %v8162, 1.0
  %v8164 = vrcp.pop %v8163
  %v8165 = vmul.f32 %v8163, %v8164
  %v8166 = vsub.f32 1.0, %v8165
  %v8167 = vmul.f32 %v8164, %v8166
  %v8168 = vadd.f32 %v8164, %v8167
  %vm8169 = vweird.f32 %v8163
  %vm8170 = vweird.f32 %v8164
  %vm8171 = vmor %vm8169, %vm8170
  %v8172 = vsel %vm8171, %v8164, %v8168
  %v8173 = vand.u32 2147483647, %v8163
  %vm8174 = vcmp.eq.f32.partialorder %v8173, 8.507059e+37
  %v8175 = vand.u32 %v8163, 2147483648
  %v8176 = vor.u32 1.1754944e-38, %v8175
  %v8177 = vsel %vm8174, %v8176, %v8172
  %v8178 = vmul.f32 1.0, %v8177
  %v8179 = vxor.u32 %v8149, 2147483648
  %v8180 = vmul.f32 %v8179, 1.442695
  %v8181 = vpow.pop %v8180
  %v8182 = vadd.f32 %v8181, 1.0
  %v8183 = vrcp.pop %v8182
  %v8184 = vmul.f32 %v8182, %v8183
  %v8185 = vsub.f32 1.0, %v8184
  %v8186 = vmul.f32 %v8183, %v8185
  %v8187 = vadd.f32 %v8183, %v8186
  %vm8188 = vweird.f32 %v8182
  %vm8189 = vweird.f32 %v8183
  %vm8190 = vmor %vm8188, %vm8189
  %v8191 = vsel %vm8190, %v8183, %v8187
  %v8192 = vand.u32 2147483647, %v8182
  %vm8193 = vcmp.eq.f32.partialorder %v8192, 8.507059e+37
  %v8194 = vand.u32 %v8182, 2147483648
  %v8195 = vor.u32 1.1754944e-38, %v8194
  %v8196 = vsel %vm8193, %v8195, %v8191
  %v8197 = vmul.f32 1.0, %v8196
  %v8198 = vtanh.pop %v8150
  %v8199 = vxor.u32 %v8151, 2147483648
  %v8200 = vmul.f32 %v8199, 1.442695
  %v8201 = vpow.pop %v8200
  %v8202 = vadd.f32 %v8201, 1.0
  %v8203 = vrcp.pop %v8202
  %v8204 = vmul.f32 %v8202, %v8203
  %v8205 = vsub.f32 1.0, %v8204
  %v8206 = vmul.f32 %v8203, %v8205
  %v8207 = vadd.f32 %v8203, %v8206
  %vm8208 = vweird.f32 %v8202
  %vm8209 = vweird.f32 %v8203
  %vm8210 = vmor %vm8208, %vm8209
  %v8211 = vsel %vm8210, %v8203, %v8207
  %v8212 = vand.u32 2147483647, %v8202
  %vm8213 = vcmp.eq.f32.partialorder %v8212, 8.507059e+37
  %v8214 = vand.u32 %v8202, 2147483648
  %v8215 = vor.u32 1.1754944e-38, %v8214
  %v8216 = vsel %vm8213, %v8215, %v8211
  %v8217 = vmul.f32 1.0, %v8216
  %v8218 = vmul.f32 %v8197, %v7098
  %v8219 = vmul.f32 %v8178, %v8198
  %v8220 = vadd.f32 %v8218, %v8219
  %v8221 = vtanh.pop %v8220
  %v8222 = vmul.f32 %v8217, %v8221
  %v8223 = vxor.u32 %v8156, 2147483648
  %v8224 = vmul.f32 %v8223, 1.442695
  %v8225 = vpow.pop %v8224
  %v8226 = vadd.f32 %v8225, 1.0
  %v8227 = vrcp.pop %v8226
  %v8228 = vmul.f32 %v8226, %v8227
  %v8229 = vsub.f32 1.0, %v8228
  %v8230 = vmul.f32 %v8227, %v8229
  %v8231 = vadd.f32 %v8227, %v8230
  %vm8232 = vweird.f32 %v8226
  %vm8233 = vweird.f32 %v8227
  %vm8234 = vmor %vm8232, %vm8233
  %v8235 = vsel %vm8234, %v8227, %v8231
  %v8236 = vand.u32 2147483647, %v8226
  %vm8237 = vcmp.eq.f32.partialorder %v8236, 8.507059e+37
  %v8238 = vand.u32 %v8226, 2147483648
  %v8239 = vor.u32 1.1754944e-38, %v8238
  %v8240 = vsel %vm8237, %v8239, %v8235
  %v8241 = vmul.f32 1.0, %v8240
  %v8242 = vxor.u32 %v8157, 2147483648
  %v8243 = vmul.f32 %v8242, 1.442695
  %v8244 = vpow.pop %v8243
  %v8245 = vadd.f32 %v8244, 1.0
  %v8246 = vrcp.pop %v8245
  %v8247 = vmul.f32 %v8245, %v8246
  %v8248 = vsub.f32 1.0, %v8247
  %v8249 = vmul.f32 %v8246, %v8248
  %v8250 = vadd.f32 %v8246, %v8249
  %vm8251 = vweird.f32 %v8245
  %vm8252 = vweird.f32 %v8246
  %vm8253 = vmor %vm8251, %vm8252
  %v8254 = vsel %vm8253, %v8246, %v8250
  %v8255 = vand.u32 2147483647, %v8245
  %vm8256 = vcmp.eq.f32.partialorder %v8255, 8.507059e+37
  %v8257 = vand.u32 %v8245, 2147483648
  %v8258 = vor.u32 1.1754944e-38, %v8257
  %v8259 = vsel %vm8256, %v8258, %v8254
  %v8260 = vmul.f32 1.0, %v8259
  %v8261 = vtanh.pop %v8158
  %v8262 = vxor.u32 %v8159, 2147483648
  %v8263 = vmul.f32 %v8262, 1.442695
  %v8264 = vpow.pop %v8263
  %v8265 = vadd.f32 %v8264, 1.0
  %v8266 = vrcp.pop %v8265
  %v8267 = vmul.f32 %v8265, %v8266
  %v8268 = vsub.f32 1.0, %v8267
  %v8269 = vmul.f32 %v8266, %v8268
  %v8270 = vadd.f32 %v8266, %v8269
  %vm8271 = vweird.f32 %v8265
  %vm8272 = vweird.f32 %v8266
  %vm8273 = vmor %vm8271, %vm8272
  %v8274 = vsel %vm8273, %v8266, %v8270
  %v8275 = vand.u32 2147483647, %v8265
  %vm8276 = vcmp.eq.f32.partialorder %v8275, 8.507059e+37
  %v8277 = vand.u32 %v8265, 2147483648
  %v8278 = vor.u32 1.1754944e-38, %v8277
  %v8279 = vsel %vm8276, %v8278, %v8274
  %v8280 = vmul.f32 1.0, %v8279
  %v8281 = vmul.f32 %v8260, %v7161
  %v8282 = vmul.f32 %v8241, %v8261
  %v8283 = vadd.f32 %v8281, %v8282
  %v8284 = vtanh.pop %v8283
  %v8285 = vmul.f32 %v8280, %v8284
  %8286 = vst [vmem:[#allocation5 + $0x60] sm:$0xff] %v8222
  %8287 = vst [vmem:[#allocation5 + $0x18] sm:$0xff] %v8285
  %v8288 = vpack.c.bf16 %v8222, %v8222
  %v8289 = vpack.c.bf16 %v8285, %v8285
  %v8290 = vld [vmem:[%s3] sm:$0xff]
  %v8291 = vld [vmem:[%s3 + $0x8] sm:$0xff]
  %v8292 = vld [vmem:[%s3 + $0x10] sm:$0xff]
  %v8293 = vld [vmem:[%s3 + $0x18] sm:$0xff]
  %v8294 = vld [vmem:[%s3 + $0x20] sm:$0xff]
  %v8295 = vld [vmem:[%s3 + $0x28] sm:$0xff]
  %v8296 = vld [vmem:[%s3 + $0x30] sm:$0xff]
  %v8297 = vld [vmem:[%s3 + $0x38] sm:$0xff]
  %v8298 = vld [vmem:[%s3 + $0x40] sm:$0xff]
  %v8299 = vld [vmem:[%s3 + $0x48] sm:$0xff]
  %v8300 = vld [vmem:[%s3 + $0x50] sm:$0xff]
  %v8301 = vld [vmem:[%s3 + $0x58] sm:$0xff]
  %v8302 = vld [vmem:[%s3 + $0x60] sm:$0xff]
  %v8303 = vld [vmem:[%s3 + $0x68] sm:$0xff]
  %v8304 = vld [vmem:[%s3 + $0x70] sm:$0xff]
  %v8305 = vld [vmem:[%s3 + $0x78] sm:$0xff]
  %v8306 = vld [vmem:[%s3 + $0x80] sm:$0xff]
  %v8307 = vld [vmem:[%s3 + $0x88] sm:$0xff]
  %v8308 = vld [vmem:[%s3 + $0x90] sm:$0xff]
  %v8309 = vld [vmem:[%s3 + $0x98] sm:$0xff]
  %v8310 = vld [vmem:[%s3 + $0xa0] sm:$0xff]
  %v8311 = vld [vmem:[%s3 + $0xa8] sm:$0xff]
  %v8312 = vld [vmem:[%s3 + $0xb0] sm:$0xff]
  %v8313 = vld [vmem:[%s3 + $0xb8] sm:$0xff]
  %v8314 = vld [vmem:[%s3 + $0xc0] sm:$0xff]
  %v8315 = vld [vmem:[%s3 + $0xc8] sm:$0xff]
  %v8316 = vld [vmem:[%s3 + $0xd0] sm:$0xff]
  %v8317 = vld [vmem:[%s3 + $0xd8] sm:$0xff]
  %v8318 = vld [vmem:[%s3 + $0xe0] sm:$0xff]
  %v8319 = vld [vmem:[%s3 + $0xe8] sm:$0xff]
  %v8320 = vld [vmem:[%s3 + $0xf0] sm:$0xff]
  %v8321 = vld [vmem:[%s3 + $0xf8] sm:$0xff]
  %v8322 = vld [vmem:[%s3 + $0x100] sm:$0xff]
  %v8323 = vld [vmem:[%s3 + $0x108] sm:$0xff]
  %v8324 = vld [vmem:[%s3 + $0x110] sm:$0xff]
  %v8325 = vld [vmem:[%s3 + $0x118] sm:$0xff]
  %v8326 = vld [vmem:[%s3 + $0x120] sm:$0xff]
  %v8327 = vld [vmem:[%s3 + $0x128] sm:$0xff]
  %v8328 = vld [vmem:[%s3 + $0x130] sm:$0xff]
  %v8329 = vld [vmem:[%s3 + $0x138] sm:$0xff]
  %v8330 = vld [vmem:[%s3 + $0x140] sm:$0xff]
  %v8331 = vld [vmem:[%s3 + $0x148] sm:$0xff]
  %v8332 = vld [vmem:[%s3 + $0x150] sm:$0xff]
  %v8333 = vld [vmem:[%s3 + $0x158] sm:$0xff]
  %v8334 = vld [vmem:[%s3 + $0x160] sm:$0xff]
  %v8335 = vld [vmem:[%s3 + $0x168] sm:$0xff]
  %v8336 = vld [vmem:[%s3 + $0x170] sm:$0xff]
  %v8337 = vld [vmem:[%s3 + $0x178] sm:$0xff]
  %v8338 = vld [vmem:[%s3 + $0x180] sm:$0xff]
  %v8339 = vld [vmem:[%s3 + $0x188] sm:$0xff]
  %v8340 = vld [vmem:[%s3 + $0x190] sm:$0xff]
  %v8341 = vld [vmem:[%s3 + $0x198] sm:$0xff]
  %v8342 = vld [vmem:[%s3 + $0x1a0] sm:$0xff]
  %v8343 = vld [vmem:[%s3 + $0x1a8] sm:$0xff]
  %v8344 = vld [vmem:[%s3 + $0x1b0] sm:$0xff]
  %v8345 = vld [vmem:[%s3 + $0x1b8] sm:$0xff]
  %v8346 = vld [vmem:[%s3 + $0x1c0] sm:$0xff]
  %v8347 = vld [vmem:[%s3 + $0x1c8] sm:$0xff]
  %v8348 = vld [vmem:[%s3 + $0x1d0] sm:$0xff]
  %v8349 = vld [vmem:[%s3 + $0x1d8] sm:$0xff]
  %v8350 = vld [vmem:[%s3 + $0x1e0] sm:$0xff]
  %v8351 = vld [vmem:[%s3 + $0x1e8] sm:$0xff]
  %v8352 = vld [vmem:[%s3 + $0x1f0] sm:$0xff]
  %v8353 = vld [vmem:[%s3 + $0x1f8] sm:$0xff]
  %v8354 = vld [vmem:[%s3 + $0x200] sm:$0xff]
  %v8355 = vld [vmem:[%s3 + $0x208] sm:$0xff]
  %v8356 = vld [vmem:[%s3 + $0x210] sm:$0xff]
  %v8357 = vld [vmem:[%s3 + $0x218] sm:$0xff]
  %v8358 = vld [vmem:[%s3 + $0x220] sm:$0xff]
  %v8359 = vld [vmem:[%s3 + $0x228] sm:$0xff]
  %v8360 = vld [vmem:[%s3 + $0x230] sm:$0xff]
  %v8361 = vld [vmem:[%s3 + $0x238] sm:$0xff]
  %v8362 = vld [vmem:[%s3 + $0x240] sm:$0xff]
  %v8363 = vld [vmem:[%s3 + $0x248] sm:$0xff]
  %v8364 = vld [vmem:[%s3 + $0x250] sm:$0xff]
  %v8365 = vld [vmem:[%s3 + $0x258] sm:$0xff]
  %v8366 = vld [vmem:[%s3 + $0x260] sm:$0xff]
  %v8367 = vld [vmem:[%s3 + $0x268] sm:$0xff]
  %v8368 = vld [vmem:[%s3 + $0x270] sm:$0xff]
  %v8369 = vld [vmem:[%s3 + $0x278] sm:$0xff]
  %v8370 = vld [vmem:[%s3 + $0x280] sm:$0xff]
  %v8371 = vld [vmem:[%s3 + $0x288] sm:$0xff]
  %v8372 = vld [vmem:[%s3 + $0x290] sm:$0xff]
  %v8373 = vld [vmem:[%s3 + $0x298] sm:$0xff]
  %v8374 = vld [vmem:[%s3 + $0x2a0] sm:$0xff]
  %v8375 = vld [vmem:[%s3 + $0x2a8] sm:$0xff]
  %v8376 = vld [vmem:[%s3 + $0x2b0] sm:$0xff]
  %v8377 = vld [vmem:[%s3 + $0x2b8] sm:$0xff]
  %v8378 = vld [vmem:[%s3 + $0x2c0] sm:$0xff]
  %v8379 = vld [vmem:[%s3 + $0x2c8] sm:$0xff]
  %v8380 = vld [vmem:[%s3 + $0x2d0] sm:$0xff]
  %v8381 = vld [vmem:[%s3 + $0x2d8] sm:$0xff]
  %v8382 = vld [vmem:[%s3 + $0x2e0] sm:$0xff]
  %v8383 = vld [vmem:[%s3 + $0x2e8] sm:$0xff]
  %v8384 = vld [vmem:[%s3 + $0x2f0] sm:$0xff]
  %v8385 = vld [vmem:[%s3 + $0x2f8] sm:$0xff]
  %v8386 = vld [vmem:[%s3 + $0x300] sm:$0xff]
  %v8387 = vld [vmem:[%s3 + $0x308] sm:$0xff]
  %v8388 = vld [vmem:[%s3 + $0x310] sm:$0xff]
  %v8389 = vld [vmem:[%s3 + $0x318] sm:$0xff]
  %v8390 = vld [vmem:[%s3 + $0x320] sm:$0xff]
  %v8391 = vld [vmem:[%s3 + $0x328] sm:$0xff]
  %v8392 = vld [vmem:[%s3 + $0x330] sm:$0xff]
  %v8393 = vld [vmem:[%s3 + $0x338] sm:$0xff]
  %v8394 = vld [vmem:[%s3 + $0x340] sm:$0xff]
  %v8395 = vld [vmem:[%s3 + $0x348] sm:$0xff]
  %v8396 = vld [vmem:[%s3 + $0x350] sm:$0xff]
  %v8397 = vld [vmem:[%s3 + $0x358] sm:$0xff]
  %v8398 = vld [vmem:[%s3 + $0x360] sm:$0xff]
  %v8399 = vld [vmem:[%s3 + $0x368] sm:$0xff]
  %v8400 = vld [vmem:[%s3 + $0x370] sm:$0xff]
  %v8401 = vld [vmem:[%s3 + $0x378] sm:$0xff]
  %v8402 = vld [vmem:[%s3 + $0x380] sm:$0xff]
  %v8403 = vld [vmem:[%s3 + $0x388] sm:$0xff]
  %v8404 = vld [vmem:[%s3 + $0x390] sm:$0xff]
  %v8405 = vld [vmem:[%s3 + $0x398] sm:$0xff]
  %v8406 = vld [vmem:[%s3 + $0x3a0] sm:$0xff]
  %v8407 = vld [vmem:[%s3 + $0x3a8] sm:$0xff]
  %v8408 = vld [vmem:[%s3 + $0x3b0] sm:$0xff]
  %v8409 = vld [vmem:[%s3 + $0x3b8] sm:$0xff]
  %v8410 = vld [vmem:[%s3 + $0x3c0] sm:$0xff]
  %v8411 = vld [vmem:[%s3 + $0x3c8] sm:$0xff]
  %v8412 = vld [vmem:[%s3 + $0x3d0] sm:$0xff]
  %v8413 = vld [vmem:[%s3 + $0x3d8] sm:$0xff]
  %v8414 = vld [vmem:[%s3 + $0x3e0] sm:$0xff]
  %v8415 = vld [vmem:[%s3 + $0x3e8] sm:$0xff]
  %v8416 = vld [vmem:[%s3 + $0x3f0] sm:$0xff]
  %v8417 = vld [vmem:[%s3 + $0x3f8] sm:$0xff]
  %v8546 = vunpack.c.l.b16 %v8290
  %v8547 = vunpack.c.h.b16 %v8290
  %v8548 = vunpack.c.l.b16 %v8291
  %v8549 = vunpack.c.h.b16 %v8291
  %v8550 = vunpack.c.l.b16 %v8292
  %v8551 = vunpack.c.h.b16 %v8292
  %v8552 = vunpack.c.l.b16 %v8293
  %v8553 = vunpack.c.h.b16 %v8293
  %v8554 = vunpack.c.l.b16 %v8294
  %v8555 = vunpack.c.h.b16 %v8294
  %v8556 = vunpack.c.l.b16 %v8295
  %v8557 = vunpack.c.h.b16 %v8295
  %v8558 = vunpack.c.l.b16 %v8296
  %v8559 = vunpack.c.h.b16 %v8296
  %v8560 = vunpack.c.l.b16 %v8297
  %v8561 = vunpack.c.h.b16 %v8297
  %v8562 = vunpack.c.l.b16 %v8298
  %v8563 = vunpack.c.h.b16 %v8298
  %v8564 = vunpack.c.l.b16 %v8299
  %v8565 = vunpack.c.h.b16 %v8299
  %v8566 = vunpack.c.l.b16 %v8300
  %v8567 = vunpack.c.h.b16 %v8300
  %v8568 = vunpack.c.l.b16 %v8301
  %v8569 = vunpack.c.h.b16 %v8301
  %v8570 = vunpack.c.l.b16 %v8302
  %v8571 = vunpack.c.h.b16 %v8302
  %v8572 = vunpack.c.l.b16 %v8303
  %v8573 = vunpack.c.h.b16 %v8303
  %v8574 = vunpack.c.l.b16 %v8304
  %v8575 = vunpack.c.h.b16 %v8304
  %v8576 = vunpack.c.l.b16 %v8305
  %v8577 = vunpack.c.h.b16 %v8305
  %v8578 = vunpack.c.l.b16 %v8306
  %v8579 = vunpack.c.h.b16 %v8306
  %v8580 = vunpack.c.l.b16 %v8307
  %v8581 = vunpack.c.h.b16 %v8307
  %v8582 = vunpack.c.l.b16 %v8308
  %v8583 = vunpack.c.h.b16 %v8308
  %v8584 = vunpack.c.l.b16 %v8309
  %v8585 = vunpack.c.h.b16 %v8309
  %v8586 = vunpack.c.l.b16 %v8310
  %v8587 = vunpack.c.h.b16 %v8310
  %v8588 = vunpack.c.l.b16 %v8311
  %v8589 = vunpack.c.h.b16 %v8311
  %v8590 = vunpack.c.l.b16 %v8312
  %v8591 = vunpack.c.h.b16 %v8312
  %v8592 = vunpack.c.l.b16 %v8313
  %v8593 = vunpack.c.h.b16 %v8313
  %v8594 = vunpack.c.l.b16 %v8314
  %v8595 = vunpack.c.h.b16 %v8314
  %v8596 = vunpack.c.l.b16 %v8315
  %v8597 = vunpack.c.h.b16 %v8315
  %v8598 = vunpack.c.l.b16 %v8316
  %v8599 = vunpack.c.h.b16 %v8316
  %v8600 = vunpack.c.l.b16 %v8317
  %v8601 = vunpack.c.h.b16 %v8317
  %v8602 = vunpack.c.l.b16 %v8318
  %v8603 = vunpack.c.h.b16 %v8318
  %v8604 = vunpack.c.l.b16 %v8319
  %v8605 = vunpack.c.h.b16 %v8319
  %v8606 = vunpack.c.l.b16 %v8320
  %v8607 = vunpack.c.h.b16 %v8320
  %v8608 = vunpack.c.l.b16 %v8321
  %v8609 = vunpack.c.h.b16 %v8321
  %v8610 = vunpack.c.l.b16 %v8322
  %v8611 = vunpack.c.h.b16 %v8322
  %v8612 = vunpack.c.l.b16 %v8323
  %v8613 = vunpack.c.h.b16 %v8323
  %v8614 = vunpack.c.l.b16 %v8324
  %v8615 = vunpack.c.h.b16 %v8324
  %v8616 = vunpack.c.l.b16 %v8325
  %v8617 = vunpack.c.h.b16 %v8325
  %v8618 = vunpack.c.l.b16 %v8326
  %v8619 = vunpack.c.h.b16 %v8326
  %v8620 = vunpack.c.l.b16 %v8327
  %v8621 = vunpack.c.h.b16 %v8327
  %v8622 = vunpack.c.l.b16 %v8328
  %v8623 = vunpack.c.h.b16 %v8328
  %v8624 = vunpack.c.l.b16 %v8329
  %v8625 = vunpack.c.h.b16 %v8329
  %v8626 = vunpack.c.l.b16 %v8330
  %v8627 = vunpack.c.h.b16 %v8330
  %v8628 = vunpack.c.l.b16 %v8331
  %v8629 = vunpack.c.h.b16 %v8331
  %v8630 = vunpack.c.l.b16 %v8332
  %v8631 = vunpack.c.h.b16 %v8332
  %v8632 = vunpack.c.l.b16 %v8333
  %v8633 = vunpack.c.h.b16 %v8333
  %v8634 = vunpack.c.l.b16 %v8334
  %v8635 = vunpack.c.h.b16 %v8334
  %v8636 = vunpack.c.l.b16 %v8335
  %v8637 = vunpack.c.h.b16 %v8335
  %v8638 = vunpack.c.l.b16 %v8336
  %v8639 = vunpack.c.h.b16 %v8336
  %v8640 = vunpack.c.l.b16 %v8337
  %v8641 = vunpack.c.h.b16 %v8337
  %v8642 = vunpack.c.l.b16 %v8338
  %v8643 = vunpack.c.h.b16 %v8338
  %v8644 = vunpack.c.l.b16 %v8339
  %v8645 = vunpack.c.h.b16 %v8339
  %v8646 = vunpack.c.l.b16 %v8340
  %v8647 = vunpack.c.h.b16 %v8340
  %v8648 = vunpack.c.l.b16 %v8341
  %v8649 = vunpack.c.h.b16 %v8341
  %v8650 = vunpack.c.l.b16 %v8342
  %v8651 = vunpack.c.h.b16 %v8342
  %v8652 = vunpack.c.l.b16 %v8343
  %v8653 = vunpack.c.h.b16 %v8343
  %v8654 = vunpack.c.l.b16 %v8344
  %v8655 = vunpack.c.h.b16 %v8344
  %v8656 = vunpack.c.l.b16 %v8345
  %v8657 = vunpack.c.h.b16 %v8345
  %v8658 = vunpack.c.l.b16 %v8346
  %v8659 = vunpack.c.h.b16 %v8346
  %v8660 = vunpack.c.l.b16 %v8347
  %v8661 = vunpack.c.h.b16 %v8347
  %v8662 = vunpack.c.l.b16 %v8348
  %v8663 = vunpack.c.h.b16 %v8348
  %v8664 = vunpack.c.l.b16 %v8349
  %v8665 = vunpack.c.h.b16 %v8349
  %v8666 = vunpack.c.l.b16 %v8350
  %v8667 = vunpack.c.h.b16 %v8350
  %v8668 = vunpack.c.l.b16 %v8351
  %v8669 = vunpack.c.h.b16 %v8351
  %v8670 = vunpack.c.l.b16 %v8352
  %v8671 = vunpack.c.h.b16 %v8352
  %v8672 = vunpack.c.l.b16 %v8353
  %v8673 = vunpack.c.h.b16 %v8353
  %v8674 = vunpack.c.l.b16 %v8354
  %v8675 = vunpack.c.h.b16 %v8354
  %v8676 = vunpack.c.l.b16 %v8355
  %v8677 = vunpack.c.h.b16 %v8355
  %v8678 = vunpack.c.l.b16 %v8356
  %v8679 = vunpack.c.h.b16 %v8356
  %v8680 = vunpack.c.l.b16 %v8357
  %v8681 = vunpack.c.h.b16 %v8357
  %v8682 = vunpack.c.l.b16 %v8358
  %v8683 = vunpack.c.h.b16 %v8358
  %v8684 = vunpack.c.l.b16 %v8359
  %v8685 = vunpack.c.h.b16 %v8359
  %v8686 = vunpack.c.l.b16 %v8360
  %v8687 = vunpack.c.h.b16 %v8360
  %v8688 = vunpack.c.l.b16 %v8361
  %v8689 = vunpack.c.h.b16 %v8361
  %v8690 = vunpack.c.l.b16 %v8362
  %v8691 = vunpack.c.h.b16 %v8362
  %v8692 = vunpack.c.l.b16 %v8363
  %v8693 = vunpack.c.h.b16 %v8363
  %v8694 = vunpack.c.l.b16 %v8364
  %v8695 = vunpack.c.h.b16 %v8364
  %v8696 = vunpack.c.l.b16 %v8365
  %v8697 = vunpack.c.h.b16 %v8365
  %v8698 = vunpack.c.l.b16 %v8366
  %v8699 = vunpack.c.h.b16 %v8366
  %v8700 = vunpack.c.l.b16 %v8367
  %v8701 = vunpack.c.h.b16 %v8367
  %v8702 = vunpack.c.l.b16 %v8368
  %v8703 = vunpack.c.h.b16 %v8368
  %v8704 = vunpack.c.l.b16 %v8369
  %v8705 = vunpack.c.h.b16 %v8369
  %v8706 = vunpack.c.l.b16 %v8370
  %v8707 = vunpack.c.h.b16 %v8370
  %v8708 = vunpack.c.l.b16 %v8371
  %v8709 = vunpack.c.h.b16 %v8371
  %v8710 = vunpack.c.l.b16 %v8372
  %v8711 = vunpack.c.h.b16 %v8372
  %v8712 = vunpack.c.l.b16 %v8373
  %v8713 = vunpack.c.h.b16 %v8373
  %v8714 = vunpack.c.l.b16 %v8374
  %v8715 = vunpack.c.h.b16 %v8374
  %v8716 = vunpack.c.l.b16 %v8375
  %v8717 = vunpack.c.h.b16 %v8375
  %v8718 = vunpack.c.l.b16 %v8376
  %v8719 = vunpack.c.h.b16 %v8376
  %v8720 = vunpack.c.l.b16 %v8377
  %v8721 = vunpack.c.h.b16 %v8377
  %v8722 = vunpack.c.l.b16 %v8378
  %v8723 = vunpack.c.h.b16 %v8378
  %v8724 = vunpack.c.l.b16 %v8379
  %v8725 = vunpack.c.h.b16 %v8379
  %v8726 = vunpack.c.l.b16 %v8380
  %v8727 = vunpack.c.h.b16 %v8380
  %v8728 = vunpack.c.l.b16 %v8381
  %v8729 = vunpack.c.h.b16 %v8381
  %v8730 = vunpack.c.l.b16 %v8382
  %v8731 = vunpack.c.h.b16 %v8382
  %v8732 = vunpack.c.l.b16 %v8383
  %v8733 = vunpack.c.h.b16 %v8383
  %v8734 = vunpack.c.l.b16 %v8384
  %v8735 = vunpack.c.h.b16 %v8384
  %v8736 = vunpack.c.l.b16 %v8385
  %v8737 = vunpack.c.h.b16 %v8385
  %v8738 = vunpack.c.l.b16 %v8386
  %v8739 = vunpack.c.h.b16 %v8386
  %v8740 = vunpack.c.l.b16 %v8387
  %v8741 = vunpack.c.h.b16 %v8387
  %v8742 = vunpack.c.l.b16 %v8388
  %v8743 = vunpack.c.h.b16 %v8388
  %v8744 = vunpack.c.l.b16 %v8389
  %v8745 = vunpack.c.h.b16 %v8389
  %v8746 = vunpack.c.l.b16 %v8390
  %v8747 = vunpack.c.h.b16 %v8390
  %v8748 = vunpack.c.l.b16 %v8391
  %v8749 = vunpack.c.h.b16 %v8391
  %v8750 = vunpack.c.l.b16 %v8392
  %v8751 = vunpack.c.h.b16 %v8392
  %v8752 = vunpack.c.l.b16 %v8393
  %v8753 = vunpack.c.h.b16 %v8393
  %v8754 = vunpack.c.l.b16 %v8394
  %v8755 = vunpack.c.h.b16 %v8394
  %v8756 = vunpack.c.l.b16 %v8395
  %v8757 = vunpack.c.h.b16 %v8395
  %v8758 = vunpack.c.l.b16 %v8396
  %v8759 = vunpack.c.h.b16 %v8396
  %v8760 = vunpack.c.l.b16 %v8397
  %v8761 = vunpack.c.h.b16 %v8397
  %v8762 = vunpack.c.l.b16 %v8398
  %v8763 = vunpack.c.h.b16 %v8398
  %v8764 = vunpack.c.l.b16 %v8399
  %v8765 = vunpack.c.h.b16 %v8399
  %v8766 = vunpack.c.l.b16 %v8400
  %v8767 = vunpack.c.h.b16 %v8400
  %v8768 = vunpack.c.l.b16 %v8401
  %v8769 = vunpack.c.h.b16 %v8401
  %v8770 = vunpack.c.l.b16 %v8402
  %v8771 = vunpack.c.h.b16 %v8402
  %v8772 = vunpack.c.l.b16 %v8403
  %v8773 = vunpack.c.h.b16 %v8403
  %v8774 = vunpack.c.l.b16 %v8404
  %v8775 = vunpack.c.h.b16 %v8404
  %v8776 = vunpack.c.l.b16 %v8405
  %v8777 = vunpack.c.h.b16 %v8405
  %v8778 = vunpack.c.l.b16 %v8406
  %v8779 = vunpack.c.h.b16 %v8406
  %v8780 = vunpack.c.l.b16 %v8407
  %v8781 = vunpack.c.h.b16 %v8407
  %v8782 = vunpack.c.l.b16 %v8408
  %v8783 = vunpack.c.h.b16 %v8408
  %v8784 = vunpack.c.l.b16 %v8409
  %v8785 = vunpack.c.h.b16 %v8409
  %v8786 = vunpack.c.l.b16 %v8410
  %v8787 = vunpack.c.h.b16 %v8410
  %v8788 = vunpack.c.l.b16 %v8411
  %v8789 = vunpack.c.h.b16 %v8411
  %v8790 = vunpack.c.l.b16 %v8412
  %v8791 = vunpack.c.h.b16 %v8412
  %v8792 = vunpack.c.l.b16 %v8413
  %v8793 = vunpack.c.h.b16 %v8413
  %v8794 = vunpack.c.l.b16 %v8414
  %v8795 = vunpack.c.h.b16 %v8414
  %v8796 = vunpack.c.l.b16 %v8415
  %v8797 = vunpack.c.h.b16 %v8415
  %v8798 = vunpack.c.l.b16 %v8416
  %v8799 = vunpack.c.h.b16 %v8416
  %v8800 = vunpack.c.l.b16 %v8417
  %v8801 = vunpack.c.h.b16 %v8417
  %v8802 = vpack.c.b16 %v8554, %v8546
  %v8803 = vpack.c.b16 %v8555, %v8547
  %v8804 = vpack.c.b16 %v8556, %v8548
  %v8805 = vpack.c.b16 %v8557, %v8549
  %v8806 = vpack.c.b16 %v8558, %v8550
  %v8807 = vpack.c.b16 %v8559, %v8551
  %v8808 = vpack.c.b16 %v8560, %v8552
  %v8809 = vpack.c.b16 %v8561, %v8553
  %v8810 = vpack.c.b16 %v8570, %v8562
  %v8811 = vpack.c.b16 %v8571, %v8563
  %v8812 = vpack.c.b16 %v8572, %v8564
  %v8813 = vpack.c.b16 %v8573, %v8565
  %v8814 = vpack.c.b16 %v8574, %v8566
  %v8815 = vpack.c.b16 %v8575, %v8567
  %v8816 = vpack.c.b16 %v8576, %v8568
  %v8817 = vpack.c.b16 %v8577, %v8569
  %v8818 = vpack.c.b16 %v8586, %v8578
  %v8819 = vpack.c.b16 %v8587, %v8579
  %v8820 = vpack.c.b16 %v8588, %v8580
  %v8821 = vpack.c.b16 %v8589, %v8581
  %v8822 = vpack.c.b16 %v8590, %v8582
  %v8823 = vpack.c.b16 %v8591, %v8583
  %v8824 = vpack.c.b16 %v8592, %v8584
  %v8825 = vpack.c.b16 %v8593, %v8585
  %v8826 = vpack.c.b16 %v8602, %v8594
  %v8827 = vpack.c.b16 %v8603, %v8595
  %v8828 = vpack.c.b16 %v8604, %v8596
  %v8829 = vpack.c.b16 %v8605, %v8597
  %v8830 = vpack.c.b16 %v8606, %v8598
  %v8831 = vpack.c.b16 %v8607, %v8599
  %v8832 = vpack.c.b16 %v8608, %v8600
  %v8833 = vpack.c.b16 %v8609, %v8601
  %v8834 = vpack.c.b16 %v8618, %v8610
  %v8835 = vpack.c.b16 %v8619, %v8611
  %v8836 = vpack.c.b16 %v8620, %v8612
  %v8837 = vpack.c.b16 %v8621, %v8613
  %v8838 = vpack.c.b16 %v8622, %v8614
  %v8839 = vpack.c.b16 %v8623, %v8615
  %v8840 = vpack.c.b16 %v8624, %v8616
  %v8841 = vpack.c.b16 %v8625, %v8617
  %v8842 = vpack.c.b16 %v8634, %v8626
  %v8843 = vpack.c.b16 %v8635, %v8627
  %v8844 = vpack.c.b16 %v8636, %v8628
  %v8845 = vpack.c.b16 %v8637, %v8629
  %v8846 = vpack.c.b16 %v8638, %v8630
  %v8847 = vpack.c.b16 %v8639, %v8631
  %v8848 = vpack.c.b16 %v8640, %v8632
  %v8849 = vpack.c.b16 %v8641, %v8633
  %v8850 = vpack.c.b16 %v8650, %v8642
  %v8851 = vpack.c.b16 %v8651, %v8643
  %v8852 = vpack.c.b16 %v8652, %v8644
  %v8853 = vpack.c.b16 %v8653, %v8645
  %v8854 = vpack.c.b16 %v8654, %v8646
  %v8855 = vpack.c.b16 %v8655, %v8647
  %v8856 = vpack.c.b16 %v8656, %v8648
  %v8857 = vpack.c.b16 %v8657, %v8649
  %v8858 = vpack.c.b16 %v8666, %v8658
  %v8859 = vpack.c.b16 %v8667, %v8659
  %v8860 = vpack.c.b16 %v8668, %v8660
  %v8861 = vpack.c.b16 %v8669, %v8661
  %v8862 = vpack.c.b16 %v8670, %v8662
  %v8863 = vpack.c.b16 %v8671, %v8663
  %v8864 = vpack.c.b16 %v8672, %v8664
  %v8865 = vpack.c.b16 %v8673, %v8665
  %v8866 = vpack.c.b16 %v8682, %v8674
  %v8867 = vpack.c.b16 %v8683, %v8675
  %v8868 = vpack.c.b16 %v8684, %v8676
  %v8869 = vpack.c.b16 %v8685, %v8677
  %v8870 = vpack.c.b16 %v8686, %v8678
  %v8871 = vpack.c.b16 %v8687, %v8679
  %v8872 = vpack.c.b16 %v8688, %v8680
  %v8873 = vpack.c.b16 %v8689, %v8681
  %v8874 = vpack.c.b16 %v8698, %v8690
  %v8875 = vpack.c.b16 %v8699, %v8691
  %v8876 = vpack.c.b16 %v8700, %v8692
  %v8877 = vpack.c.b16 %v8701, %v8693
  %v8878 = vpack.c.b16 %v8702, %v8694
  %v8879 = vpack.c.b16 %v8703, %v8695
  %v8880 = vpack.c.b16 %v8704, %v8696
  %v8881 = vpack.c.b16 %v8705, %v8697
  %v8882 = vpack.c.b16 %v8714, %v8706
  %v8883 = vpack.c.b16 %v8715, %v8707
  %v8884 = vpack.c.b16 %v8716, %v8708
  %v8885 = vpack.c.b16 %v8717, %v8709
  %v8886 = vpack.c.b16 %v8718, %v8710
  %v8887 = vpack.c.b16 %v8719, %v8711
  %v8888 = vpack.c.b16 %v8720, %v8712
  %v8889 = vpack.c.b16 %v8721, %v8713
  %v8890 = vpack.c.b16 %v8730, %v8722
  %v8891 = vpack.c.b16 %v8731, %v8723
  %v8892 = vpack.c.b16 %v8732, %v8724
  %v8893 = vpack.c.b16 %v8733, %v8725
  %v8894 = vpack.c.b16 %v8734, %v8726
  %v8895 = vpack.c.b16 %v8735, %v8727
  %v8896 = vpack.c.b16 %v8736, %v8728
  %v8897 = vpack.c.b16 %v8737, %v8729
  %v8898 = vpack.c.b16 %v8746, %v8738
  %v8899 = vpack.c.b16 %v8747, %v8739
  %v8900 = vpack.c.b16 %v8748, %v8740
  %v8901 = vpack.c.b16 %v8749, %v8741
  %v8902 = vpack.c.b16 %v8750, %v8742
  %v8903 = vpack.c.b16 %v8751, %v8743
  %v8904 = vpack.c.b16 %v8752, %v8744
  %v8905 = vpack.c.b16 %v8753, %v8745
  %v8906 = vpack.c.b16 %v8762, %v8754
  %v8907 = vpack.c.b16 %v8763, %v8755
  %v8908 = vpack.c.b16 %v8764, %v8756
  %v8909 = vpack.c.b16 %v8765, %v8757
  %v8910 = vpack.c.b16 %v8766, %v8758
  %v8911 = vpack.c.b16 %v8767, %v8759
  %v8912 = vpack.c.b16 %v8768, %v8760
  %v8913 = vpack.c.b16 %v8769, %v8761
  %v8914 = vpack.c.b16 %v8778, %v8770
  %v8915 = vpack.c.b16 %v8779, %v8771
  %v8916 = vpack.c.b16 %v8780, %v8772
  %v8917 = vpack.c.b16 %v8781, %v8773
  %v8918 = vpack.c.b16 %v8782, %v8774
  %v8919 = vpack.c.b16 %v8783, %v8775
  %v8920 = vpack.c.b16 %v8784, %v8776
  %v8921 = vpack.c.b16 %v8785, %v8777
  %v8922 = vpack.c.b16 %v8794, %v8786
  %v8923 = vpack.c.b16 %v8795, %v8787
  %v8924 = vpack.c.b16 %v8796, %v8788
  %v8925 = vpack.c.b16 %v8797, %v8789
  %v8926 = vpack.c.b16 %v8798, %v8790
  %v8927 = vpack.c.b16 %v8799, %v8791
  %v8928 = vpack.c.b16 %v8800, %v8792
  %v8929 = vpack.c.b16 %v8801, %v8793
  %9058 = vmatpush.bf16.msra.mxu0 %v8858
  %9059 = vmatpush.bf16.msra.mxu0 %v8850
  %9060 = vmatpush.bf16.msra.mxu0 %v8842
  %9061 = vmatpush.bf16.msra.mxu0 %v8834
  %9062 = vmatpush.bf16.msra.mxu0 %v8826
  %9063 = vmatpush.bf16.msra.mxu0 %v8818
  %9064 = vmatpush.bf16.msra.mxu0 %v8810
  %9065 = vmatpush.bf16.msra.mxu0 %v8802
  %9066 = vmatmul.bf16.gmra.mxu0 %v8288
  %v9067 = vpop.f32.mrf.mxu0
  %v9068 = vadd.f32 0.0, %v9067
  %v9069 = vpop.f32.mrf.mxu0
  %9070 = vdwg.mxu0
  %9071 = vmatpush.bf16.msra.mxu0 %v8922
  %9072 = vmatpush.bf16.msra.mxu0 %v8914
  %9073 = vmatpush.bf16.msra.mxu0 %v8906
  %9074 = vmatpush.bf16.msra.mxu0 %v8898
  %9075 = vmatpush.bf16.msra.mxu0 %v8890
  %9076 = vmatpush.bf16.msra.mxu0 %v8882
  %9077 = vmatpush.bf16.msra.mxu0 %v8874
  %9078 = vmatpush.bf16.msra.mxu0 %v8866
  %9079 = vmatmul.bf16.gmra.mxu0 %v8289
  %v9080 = vpop.f32.mrf.mxu0
  %v9081 = vadd.f32 %v9068, %v9080
  %v9082 = vpop.f32.mrf.mxu0
  %9083 = vdwg.mxu0
  %9084 = vmatpush.bf16.msra.mxu0 %v8859
  %9085 = vmatpush.bf16.msra.mxu0 %v8851
  %9086 = vmatpush.bf16.msra.mxu0 %v8843
  %9087 = vmatpush.bf16.msra.mxu0 %v8835
  %9088 = vmatpush.bf16.msra.mxu0 %v8827
  %9089 = vmatpush.bf16.msra.mxu0 %v8819
  %9090 = vmatpush.bf16.msra.mxu0 %v8811
  %9091 = vmatpush.bf16.msra.mxu0 %v8803
  %9092 = vmatmul.bf16.gmra.mxu0 %v8288
  %v9093 = vpop.f32.mrf.mxu0
  %v9094 = vadd.f32 0.0, %v9093
  %v9095 = vpop.f32.mrf.mxu0
  %9096 = vdwg.mxu0
  %9097 = vmatpush.bf16.msra.mxu0 %v8923
  %9098 = vmatpush.bf16.msra.mxu0 %v8915
  %9099 = vmatpush.bf16.msra.mxu0 %v8907
  %9100 = vmatpush.bf16.msra.mxu0 %v8899
  %9101 = vmatpush.bf16.msra.mxu0 %v8891
  %9102 = vmatpush.bf16.msra.mxu0 %v8883
  %9103 = vmatpush.bf16.msra.mxu0 %v8875
  %9104 = vmatpush.bf16.msra.mxu0 %v8867
  %9105 = vmatmul.bf16.gmra.mxu0 %v8289
  %v9106 = vpop.f32.mrf.mxu0
  %v9107 = vadd.f32 %v9094, %v9106
  %v9108 = vpop.f32.mrf.mxu0
  %9109 = vdwg.mxu0
  %9110 = vmatpush.bf16.msra.mxu0 %v8860
  %9111 = vmatpush.bf16.msra.mxu0 %v8852
  %9112 = vmatpush.bf16.msra.mxu0 %v8844
  %9113 = vmatpush.bf16.msra.mxu0 %v8836
  %9114 = vmatpush.bf16.msra.mxu0 %v8828
  %9115 = vmatpush.bf16.msra.mxu0 %v8820
  %9116 = vmatpush.bf16.msra.mxu0 %v8812
  %9117 = vmatpush.bf16.msra.mxu0 %v8804
  %9118 = vmatmul.bf16.gmra.mxu0 %v8288
  %v9119 = vpop.f32.mrf.mxu0
  %v9120 = vadd.f32 0.0, %v9119
  %v9121 = vpop.f32.mrf.mxu0
  %9122 = vdwg.mxu0
  %9123 = vmatpush.bf16.msra.mxu0 %v8924
  %9124 = vmatpush.bf16.msra.mxu0 %v8916
  %9125 = vmatpush.bf16.msra.mxu0 %v8908
  %9126 = vmatpush.bf16.msra.mxu0 %v8900
  %9127 = vmatpush.bf16.msra.mxu0 %v8892
  %9128 = vmatpush.bf16.msra.mxu0 %v8884
  %9129 = vmatpush.bf16.msra.mxu0 %v8876
  %9130 = vmatpush.bf16.msra.mxu0 %v8868
  %9131 = vmatmul.bf16.gmra.mxu0 %v8289
  %v9132 = vpop.f32.mrf.mxu0
  %v9133 = vadd.f32 %v9120, %v9132
  %v9134 = vpop.f32.mrf.mxu0
  %9135 = vdwg.mxu0
  %9136 = vmatpush.bf16.msra.mxu0 %v8861
  %9137 = vmatpush.bf16.msra.mxu0 %v8853
  %9138 = vmatpush.bf16.msra.mxu0 %v8845
  %9139 = vmatpush.bf16.msra.mxu0 %v8837
  %9140 = vmatpush.bf16.msra.mxu0 %v8829
  %9141 = vmatpush.bf16.msra.mxu0 %v8821
  %9142 = vmatpush.bf16.msra.mxu0 %v8813
  %9143 = vmatpush.bf16.msra.mxu0 %v8805
  %9144 = vmatmul.bf16.gmra.mxu0 %v8288
  %v9145 = vpop.f32.mrf.mxu0
  %v9146 = vadd.f32 0.0, %v9145
  %v9147 = vpop.f32.mrf.mxu0
  %9148 = vdwg.mxu0
  %9149 = vmatpush.bf16.msra.mxu0 %v8925
  %9150 = vmatpush.bf16.msra.mxu0 %v8917
  %9151 = vmatpush.bf16.msra.mxu0 %v8909
  %9152 = vmatpush.bf16.msra.mxu0 %v8901
  %9153 = vmatpush.bf16.msra.mxu0 %v8893
  %9154 = vmatpush.bf16.msra.mxu0 %v8885
  %9155 = vmatpush.bf16.msra.mxu0 %v8877
  %9156 = vmatpush.bf16.msra.mxu0 %v8869
  %9157 = vmatmul.bf16.gmra.mxu0 %v8289
  %v9158 = vpop.f32.mrf.mxu0
  %v9159 = vadd.f32 %v9146, %v9158
  %v9160 = vpop.f32.mrf.mxu0
  %9161 = vdwg.mxu0
  %9162 = vmatpush.bf16.msra.mxu0 %v8862
  %9163 = vmatpush.bf16.msra.mxu0 %v8854
  %9164 = vmatpush.bf16.msra.mxu0 %v8846
  %9165 = vmatpush.bf16.msra.mxu0 %v8838
  %9166 = vmatpush.bf16.msra.mxu0 %v8830
  %9167 = vmatpush.bf16.msra.mxu0 %v8822
  %9168 = vmatpush.bf16.msra.mxu0 %v8814
  %9169 = vmatpush.bf16.msra.mxu0 %v8806
  %9170 = vmatmul.bf16.gmra.mxu0 %v8288
  %v9171 = vpop.f32.mrf.mxu0
  %v9172 = vadd.f32 0.0, %v9171
  %v9173 = vpop.f32.mrf.mxu0
  %9174 = vdwg.mxu0
  %9175 = vmatpush.bf16.msra.mxu0 %v8926
  %9176 = vmatpush.bf16.msra.mxu0 %v8918
  %9177 = vmatpush.bf16.msra.mxu0 %v8910
  %9178 = vmatpush.bf16.msra.mxu0 %v8902
  %9179 = vmatpush.bf16.msra.mxu0 %v8894
  %9180 = vmatpush.bf16.msra.mxu0 %v8886
  %9181 = vmatpush.bf16.msra.mxu0 %v8878
  %9182 = vmatpush.bf16.msra.mxu0 %v8870
  %9183 = vmatmul.bf16.gmra.mxu0 %v8289
  %v9184 = vpop.f32.mrf.mxu0
  %v9185 = vadd.f32 %v9172, %v9184
  %v9186 = vpop.f32.mrf.mxu0
  %9187 = vdwg.mxu0
  %9188 = vmatpush.bf16.msra.mxu0 %v8863
  %9189 = vmatpush.bf16.msra.mxu0 %v8855
  %9190 = vmatpush.bf16.msra.mxu0 %v8847
  %9191 = vmatpush.bf16.msra.mxu0 %v8839
  %9192 = vmatpush.bf16.msra.mxu0 %v8831
  %9193 = vmatpush.bf16.msra.mxu0 %v8823
  %9194 = vmatpush.bf16.msra.mxu0 %v8815
  %9195 = vmatpush.bf16.msra.mxu0 %v8807
  %9196 = vmatmul.bf16.gmra.mxu0 %v8288
  %v9197 = vpop.f32.mrf.mxu0
  %v9198 = vadd.f32 0.0, %v9197
  %v9199 = vpop.f32.mrf.mxu0
  %9200 = vdwg.mxu0
  %9201 = vmatpush.bf16.msra.mxu0 %v8927
  %9202 = vmatpush.bf16.msra.mxu0 %v8919
  %9203 = vmatpush.bf16.msra.mxu0 %v8911
  %9204 = vmatpush.bf16.msra.mxu0 %v8903
  %9205 = vmatpush.bf16.msra.mxu0 %v8895
  %9206 = vmatpush.bf16.msra.mxu0 %v8887
  %9207 = vmatpush.bf16.msra.mxu0 %v8879
  %9208 = vmatpush.bf16.msra.mxu0 %v8871
  %9209 = vmatmul.bf16.gmra.mxu0 %v8289
  %v9210 = vpop.f32.mrf.mxu0
  %v9211 = vadd.f32 %v9198, %v9210
  %v9212 = vpop.f32.mrf.mxu0
  %9213 = vdwg.mxu0
  %9214 = vmatpush.bf16.msra.mxu0 %v8864
  %9215 = vmatpush.bf16.msra.mxu0 %v8856
  %9216 = vmatpush.bf16.msra.mxu0 %v8848
  %9217 = vmatpush.bf16.msra.mxu0 %v8840
  %9218 = vmatpush.bf16.msra.mxu0 %v8832
  %9219 = vmatpush.bf16.msra.mxu0 %v8824
  %9220 = vmatpush.bf16.msra.mxu0 %v8816
  %9221 = vmatpush.bf16.msra.mxu0 %v8808
  %9222 = vmatmul.bf16.gmra.mxu0 %v8288
  %v9223 = vpop.f32.mrf.mxu0
  %v9224 = vadd.f32 0.0, %v9223
  %v9225 = vpop.f32.mrf.mxu0
  %9226 = vdwg.mxu0
  %9227 = vmatpush.bf16.msra.mxu0 %v8928
  %9228 = vmatpush.bf16.msra.mxu0 %v8920
  %9229 = vmatpush.bf16.msra.mxu0 %v8912
  %9230 = vmatpush.bf16.msra.mxu0 %v8904
  %9231 = vmatpush.bf16.msra.mxu0 %v8896
  %9232 = vmatpush.bf16.msra.mxu0 %v8888
  %9233 = vmatpush.bf16.msra.mxu0 %v8880
  %9234 = vmatpush.bf16.msra.mxu0 %v8872
  %9235 = vmatmul.bf16.gmra.mxu0 %v8289
  %v9236 = vpop.f32.mrf.mxu0
  %v9237 = vadd.f32 %v9224, %v9236
  %v9238 = vpop.f32.mrf.mxu0
  %9239 = vdwg.mxu0
  %9240 = vmatpush.bf16.msra.mxu0 %v8865
  %9241 = vmatpush.bf16.msra.mxu0 %v8857
  %9242 = vmatpush.bf16.msra.mxu0 %v8849
  %9243 = vmatpush.bf16.msra.mxu0 %v8841
  %9244 = vmatpush.bf16.msra.mxu0 %v8833
  %9245 = vmatpush.bf16.msra.mxu0 %v8825
  %9246 = vmatpush.bf16.msra.mxu0 %v8817
  %9247 = vmatpush.bf16.msra.mxu0 %v8809
  %9248 = vmatmul.bf16.gmra.mxu0 %v8288
  %v9249 = vpop.f32.mrf.mxu0
  %v9250 = vadd.f32 0.0, %v9249
  %v9251 = vpop.f32.mrf.mxu0
  %9252 = vdwg.mxu0
  %9253 = vmatpush.bf16.msra.mxu0 %v8929
  %9254 = vmatpush.bf16.msra.mxu0 %v8921
  %9255 = vmatpush.bf16.msra.mxu0 %v8913
  %9256 = vmatpush.bf16.msra.mxu0 %v8905
  %9257 = vmatpush.bf16.msra.mxu0 %v8897
  %9258 = vmatpush.bf16.msra.mxu0 %v8889
  %9259 = vmatpush.bf16.msra.mxu0 %v8881
  %9260 = vmatpush.bf16.msra.mxu0 %v8873
  %9261 = vmatmul.bf16.gmra.mxu0 %v8289
  %v9262 = vpop.f32.mrf.mxu0
  %v9263 = vadd.f32 %v9250, %v9262
  %v9264 = vpop.f32.mrf.mxu0
  %9265 = vdwg.mxu0
  %v9266 = vld [vmem:[#allocation2 + $0xe0] sm:$0xff]
  %v9267 = vld [vmem:[#allocation2 + $0xe8] sm:$0xff]
  %v9268 = vld [vmem:[#allocation2 + $0xf0] sm:$0xff]
  %v9269 = vld [vmem:[#allocation2 + $0xf8] sm:$0xff]
  %v9270 = vadd.f32 %v9266, %v9081
  %v9271 = vadd.f32 %v9267, %v9107
  %v9272 = vadd.f32 %v9268, %v9133
  %v9273 = vadd.f32 %v9269, %v9159
  %v9274 = vld [vmem:[#allocation3] sm:$0xff]
  %v9275 = vld [vmem:[#allocation3 + $0x8] sm:$0xff]
  %v9276 = vld [vmem:[#allocation3 + $0x10] sm:$0xff]
  %v9277 = vld [vmem:[#allocation3 + $0x18] sm:$0xff]
  %v9278 = vadd.f32 %v9274, %v9185
  %v9279 = vadd.f32 %v9275, %v9211
  %v9280 = vadd.f32 %v9276, %v9237
  %v9281 = vadd.f32 %v9277, %v9263
  %v9282 = vxor.u32 %v9270, 2147483648
  %v9283 = vmul.f32 %v9282, 1.442695
  %v9284 = vpow.pop %v9283
  %v9285 = vadd.f32 %v9284, 1.0
  %v9286 = vrcp.pop %v9285
  %v9287 = vmul.f32 %v9285, %v9286
  %v9288 = vsub.f32 1.0, %v9287
  %v9289 = vmul.f32 %v9286, %v9288
  %v9290 = vadd.f32 %v9286, %v9289
  %vm9291 = vweird.f32 %v9285
  %vm9292 = vweird.f32 %v9286
  %vm9293 = vmor %vm9291, %vm9292
  %v9294 = vsel %vm9293, %v9286, %v9290
  %v9295 = vand.u32 2147483647, %v9285
  %vm9296 = vcmp.eq.f32.partialorder %v9295, 8.507059e+37
  %v9297 = vand.u32 %v9285, 2147483648
  %v9298 = vor.u32 1.1754944e-38, %v9297
  %v9299 = vsel %vm9296, %v9298, %v9294
  %v9300 = vmul.f32 1.0, %v9299
  %v9301 = vxor.u32 %v9271, 2147483648
  %v9302 = vmul.f32 %v9301, 1.442695
  %v9303 = vpow.pop %v9302
  %v9304 = vadd.f32 %v9303, 1.0
  %v9305 = vrcp.pop %v9304
  %v9306 = vmul.f32 %v9304, %v9305
  %v9307 = vsub.f32 1.0, %v9306
  %v9308 = vmul.f32 %v9305, %v9307
  %v9309 = vadd.f32 %v9305, %v9308
  %vm9310 = vweird.f32 %v9304
  %vm9311 = vweird.f32 %v9305
  %vm9312 = vmor %vm9310, %vm9311
  %v9313 = vsel %vm9312, %v9305, %v9309
  %v9314 = vand.u32 2147483647, %v9304
  %vm9315 = vcmp.eq.f32.partialorder %v9314, 8.507059e+37
  %v9316 = vand.u32 %v9304, 2147483648
  %v9317 = vor.u32 1.1754944e-38, %v9316
  %v9318 = vsel %vm9315, %v9317, %v9313
  %v9319 = vmul.f32 1.0, %v9318
  %v9320 = vtanh.pop %v9272
  %v9321 = vxor.u32 %v9273, 2147483648
  %v9322 = vmul.f32 %v9321, 1.442695
  %v9323 = vpow.pop %v9322
  %v9324 = vadd.f32 %v9323, 1.0
  %v9325 = vrcp.pop %v9324
  %v9326 = vmul.f32 %v9324, %v9325
  %v9327 = vsub.f32 1.0, %v9326
  %v9328 = vmul.f32 %v9325, %v9327
  %v9329 = vadd.f32 %v9325, %v9328
  %vm9330 = vweird.f32 %v9324
  %vm9331 = vweird.f32 %v9325
  %vm9332 = vmor %vm9330, %vm9331
  %v9333 = vsel %vm9332, %v9325, %v9329
  %v9334 = vand.u32 2147483647, %v9324
  %vm9335 = vcmp.eq.f32.partialorder %v9334, 8.507059e+37
  %v9336 = vand.u32 %v9324, 2147483648
  %v9337 = vor.u32 1.1754944e-38, %v9336
  %v9338 = vsel %vm9335, %v9337, %v9333
  %v9339 = vmul.f32 1.0, %v9338
  %v9340 = vmul.f32 %v9319, %v8220
  %v9341 = vmul.f32 %v9300, %v9320
  %v9342 = vadd.f32 %v9340, %v9341
  %v9343 = vtanh.pop %v9342
  %v9344 = vmul.f32 %v9339, %v9343
  %v9345 = vxor.u32 %v9278, 2147483648
  %v9346 = vmul.f32 %v9345, 1.442695
  %v9347 = vpow.pop %v9346
  %v9348 = vadd.f32 %v9347, 1.0
  %v9349 = vrcp.pop %v9348
  %v9350 = vmul.f32 %v9348, %v9349
  %v9351 = vsub.f32 1.0, %v9350
  %v9352 = vmul.f32 %v9349, %v9351
  %v9353 = vadd.f32 %v9349, %v9352
  %vm9354 = vweird.f32 %v9348
  %vm9355 = vweird.f32 %v9349
  %vm9356 = vmor %vm9354, %vm9355
  %v9357 = vsel %vm9356, %v9349, %v9353
  %v9358 = vand.u32 2147483647, %v9348
  %vm9359 = vcmp.eq.f32.partialorder %v9358, 8.507059e+37
  %v9360 = vand.u32 %v9348, 2147483648
  %v9361 = vor.u32 1.1754944e-38, %v9360
  %v9362 = vsel %vm9359, %v9361, %v9357
  %v9363 = vmul.f32 1.0, %v9362
  %v9364 = vxor.u32 %v9279, 2147483648
  %v9365 = vmul.f32 %v9364, 1.442695
  %v9366 = vpow.pop %v9365
  %v9367 = vadd.f32 %v9366, 1.0
  %v9368 = vrcp.pop %v9367
  %v9369 = vmul.f32 %v9367, %v9368
  %v9370 = vsub.f32 1.0, %v9369
  %v9371 = vmul.f32 %v9368, %v9370
  %v9372 = vadd.f32 %v9368, %v9371
  %vm9373 = vweird.f32 %v9367
  %vm9374 = vweird.f32 %v9368
  %vm9375 = vmor %vm9373, %vm9374
  %v9376 = vsel %vm9375, %v9368, %v9372
  %v9377 = vand.u32 2147483647, %v9367
  %vm9378 = vcmp.eq.f32.partialorder %v9377, 8.507059e+37
  %v9379 = vand.u32 %v9367, 2147483648
  %v9380 = vor.u32 1.1754944e-38, %v9379
  %v9381 = vsel %vm9378, %v9380, %v9376
  %v9382 = vmul.f32 1.0, %v9381
  %v9383 = vtanh.pop %v9280
  %v9384 = vxor.u32 %v9281, 2147483648
  %v9385 = vmul.f32 %v9384, 1.442695
  %v9386 = vpow.pop %v9385
  %v9387 = vadd.f32 %v9386, 1.0
  %v9388 = vrcp.pop %v9387
  %v9389 = vmul.f32 %v9387, %v9388
  %v9390 = vsub.f32 1.0, %v9389
  %v9391 = vmul.f32 %v9388, %v9390
  %v9392 = vadd.f32 %v9388, %v9391
  %vm9393 = vweird.f32 %v9387
  %vm9394 = vweird.f32 %v9388
  %vm9395 = vmor %vm9393, %vm9394
  %v9396 = vsel %vm9395, %v9388, %v9392
  %v9397 = vand.u32 2147483647, %v9387
  %vm9398 = vcmp.eq.f32.partialorder %v9397, 8.507059e+37
  %v9399 = vand.u32 %v9387, 2147483648
  %v9400 = vor.u32 1.1754944e-38, %v9399
  %v9401 = vsel %vm9398, %v9400, %v9396
  %v9402 = vmul.f32 1.0, %v9401
  %v9403 = vmul.f32 %v9382, %v8283
  %v9404 = vmul.f32 %v9363, %v9383
  %v9405 = vadd.f32 %v9403, %v9404
  %v9406 = vtanh.pop %v9405
  %v9407 = vmul.f32 %v9402, %v9406
  %9408 = vst [vmem:[#allocation5 + $0x70] sm:$0xff] %v9344
  %9409 = vst [vmem:[#allocation5 + $0x8] sm:$0xff] %v9407
  %v9410 = vld [vmem:[#allocation5] sm:$0xff]
  %v9411 = vld [vmem:[#allocation5 + $0x8] sm:$0xff]
  %v9412 = vld [vmem:[#allocation5 + $0x10] sm:$0xff]
  %v9413 = vld [vmem:[#allocation5 + $0x18] sm:$0xff]
  %v9414 = vld [vmem:[#allocation5 + $0x20] sm:$0xff]
  %v9415 = vld [vmem:[#allocation5 + $0x28] sm:$0xff]
  %v9416 = vld [vmem:[#allocation5 + $0x30] sm:$0xff]
  %v9417 = vld [vmem:[#allocation5 + $0x38] sm:$0xff]
  %v9418 = vld [vmem:[#allocation5 + $0x40] sm:$0xff]
  %v9419 = vld [vmem:[#allocation5 + $0x48] sm:$0xff]
  %v9420 = vld [vmem:[#allocation5 + $0x50] sm:$0xff]
  %v9421 = vld [vmem:[#allocation5 + $0x58] sm:$0xff]
  %v9422 = vld [vmem:[#allocation5 + $0x60] sm:$0xff]
  %v9423 = vld [vmem:[#allocation5 + $0x68] sm:$0xff]
  %v9424 = vld [vmem:[#allocation5 + $0x70] sm:$0xff]
  %v9425 = vld [vmem:[#allocation5 + $0x78] sm:$0xff]
  %v9426 = vpack.c.bf16 %v9412, %v9410
  %v9427 = vpack.c.bf16 %v9413, %v9411
  %v9428 = vpack.c.bf16 %v9416, %v9414
  %v9429 = vpack.c.bf16 %v9417, %v9415
  %v9430 = vpack.c.bf16 %v9420, %v9418
  %v9431 = vpack.c.bf16 %v9421, %v9419
  %v9432 = vpack.c.bf16 %v9424, %v9422
  %v9433 = vpack.c.bf16 %v9425, %v9423
  %v9434 = vld [vmem:[%s6] sm:$0xff]
  %v9435 = vld [vmem:[%s6 + $0x8] sm:$0xff]
  %v9436 = vld [vmem:[%s6 + $0x10] sm:$0xff]
  %v9437 = vld [vmem:[%s6 + $0x18] sm:$0xff]
  %v9438 = vld [vmem:[%s6 + $0x20] sm:$0xff]
  %v9439 = vld [vmem:[%s6 + $0x28] sm:$0xff]
  %v9440 = vld [vmem:[%s6 + $0x30] sm:$0xff]
  %v9441 = vld [vmem:[%s6 + $0x38] sm:$0xff]
  %v9442 = vld [vmem:[%s6 + $0x40] sm:$0xff]
  %v9443 = vld [vmem:[%s6 + $0x48] sm:$0xff]
  %v9444 = vld [vmem:[%s6 + $0x50] sm:$0xff]
  %v9445 = vld [vmem:[%s6 + $0x58] sm:$0xff]
  %v9446 = vld [vmem:[%s6 + $0x60] sm:$0xff]
  %v9447 = vld [vmem:[%s6 + $0x68] sm:$0xff]
  %v9448 = vld [vmem:[%s6 + $0x70] sm:$0xff]
  %v9449 = vld [vmem:[%s6 + $0x78] sm:$0xff]
  %v9450 = vld [vmem:[%s6 + $0x80] sm:$0xff]
  %v9451 = vld [vmem:[%s6 + $0x88] sm:$0xff]
  %v9452 = vld [vmem:[%s6 + $0x90] sm:$0xff]
  %v9453 = vld [vmem:[%s6 + $0x98] sm:$0xff]
  %v9454 = vld [vmem:[%s6 + $0xa0] sm:$0xff]
  %v9455 = vld [vmem:[%s6 + $0xa8] sm:$0xff]
  %v9456 = vld [vmem:[%s6 + $0xb0] sm:$0xff]
  %v9457 = vld [vmem:[%s6 + $0xb8] sm:$0xff]
  %v9458 = vld [vmem:[%s6 + $0xc0] sm:$0xff]
  %v9459 = vld [vmem:[%s6 + $0xc8] sm:$0xff]
  %v9460 = vld [vmem:[%s6 + $0xd0] sm:$0xff]
  %v9461 = vld [vmem:[%s6 + $0xd8] sm:$0xff]
  %v9462 = vld [vmem:[%s6 + $0xe0] sm:$0xff]
  %v9463 = vld [vmem:[%s6 + $0xe8] sm:$0xff]
  %v9464 = vld [vmem:[%s6 + $0xf0] sm:$0xff]
  %v9465 = vld [vmem:[%s6 + $0xf8] sm:$0xff]
  %v9466 = vld [vmem:[%s6 + $0x100] sm:$0xff]
  %v9467 = vld [vmem:[%s6 + $0x108] sm:$0xff]
  %v9468 = vld [vmem:[%s6 + $0x110] sm:$0xff]
  %v9469 = vld [vmem:[%s6 + $0x118] sm:$0xff]
  %v9470 = vld [vmem:[%s6 + $0x120] sm:$0xff]
  %v9471 = vld [vmem:[%s6 + $0x128] sm:$0xff]
  %v9472 = vld [vmem:[%s6 + $0x130] sm:$0xff]
  %v9473 = vld [vmem:[%s6 + $0x138] sm:$0xff]
  %v9474 = vld [vmem:[%s6 + $0x140] sm:$0xff]
  %v9475 = vld [vmem:[%s6 + $0x148] sm:$0xff]
  %v9476 = vld [vmem:[%s6 + $0x150] sm:$0xff]
  %v9477 = vld [vmem:[%s6 + $0x158] sm:$0xff]
  %v9478 = vld [vmem:[%s6 + $0x160] sm:$0xff]
  %v9479 = vld [vmem:[%s6 + $0x168] sm:$0xff]
  %v9480 = vld [vmem:[%s6 + $0x170] sm:$0xff]
  %v9481 = vld [vmem:[%s6 + $0x178] sm:$0xff]
  %v9482 = vld [vmem:[%s6 + $0x180] sm:$0xff]
  %v9483 = vld [vmem:[%s6 + $0x188] sm:$0xff]
  %v9484 = vld [vmem:[%s6 + $0x190] sm:$0xff]
  %v9485 = vld [vmem:[%s6 + $0x198] sm:$0xff]
  %v9486 = vld [vmem:[%s6 + $0x1a0] sm:$0xff]
  %v9487 = vld [vmem:[%s6 + $0x1a8] sm:$0xff]
  %v9488 = vld [vmem:[%s6 + $0x1b0] sm:$0xff]
  %v9489 = vld [vmem:[%s6 + $0x1b8] sm:$0xff]
  %v9490 = vld [vmem:[%s6 + $0x1c0] sm:$0xff]
  %v9491 = vld [vmem:[%s6 + $0x1c8] sm:$0xff]
  %v9492 = vld [vmem:[%s6 + $0x1d0] sm:$0xff]
  %v9493 = vld [vmem:[%s6 + $0x1d8] sm:$0xff]
  %v9494 = vld [vmem:[%s6 + $0x1e0] sm:$0xff]
  %v9495 = vld [vmem:[%s6 + $0x1e8] sm:$0xff]
  %v9496 = vld [vmem:[%s6 + $0x1f0] sm:$0xff]
  %v9497 = vld [vmem:[%s6 + $0x1f8] sm:$0xff]
  %v9498 = vld [vmem:[%s8] sm:$0xf]
  %v9500 = vperm.slane %v9498, 0
  %v9501 = vperm.slane %v9498, 1
  %v9502 = vperm.slane %v9498, 2
  %v9503 = vperm.slane %v9498, 3
  %v9572 = vunpack.c.l.b16 %v9434
  %v9573 = vunpack.c.h.b16 %v9434
  %v9574 = vunpack.c.l.b16 %v9435
  %v9575 = vunpack.c.h.b16 %v9435
  %v9576 = vunpack.c.l.b16 %v9436
  %v9577 = vunpack.c.h.b16 %v9436
  %v9578 = vunpack.c.l.b16 %v9437
  %v9579 = vunpack.c.h.b16 %v9437
  %v9580 = vunpack.c.l.b16 %v9438
  %v9581 = vunpack.c.h.b16 %v9438
  %v9582 = vunpack.c.l.b16 %v9439
  %v9583 = vunpack.c.h.b16 %v9439
  %v9584 = vunpack.c.l.b16 %v9440
  %v9585 = vunpack.c.h.b16 %v9440
  %v9586 = vunpack.c.l.b16 %v9441
  %v9587 = vunpack.c.h.b16 %v9441
  %v9588 = vunpack.c.l.b16 %v9442
  %v9589 = vunpack.c.h.b16 %v9442
  %v9590 = vunpack.c.l.b16 %v9443
  %v9591 = vunpack.c.h.b16 %v9443
  %v9592 = vunpack.c.l.b16 %v9444
  %v9593 = vunpack.c.h.b16 %v9444
  %v9594 = vunpack.c.l.b16 %v9445
  %v9595 = vunpack.c.h.b16 %v9445
  %v9596 = vunpack.c.l.b16 %v9446
  %v9597 = vunpack.c.h.b16 %v9446
  %v9598 = vunpack.c.l.b16 %v9447
  %v9599 = vunpack.c.h.b16 %v9447
  %v9600 = vunpack.c.l.b16 %v9448
  %v9601 = vunpack.c.h.b16 %v9448
  %v9602 = vunpack.c.l.b16 %v9449
  %v9603 = vunpack.c.h.b16 %v9449
  %v9604 = vunpack.c.l.b16 %v9450
  %v9605 = vunpack.c.h.b16 %v9450
  %v9606 = vunpack.c.l.b16 %v9451
  %v9607 = vunpack.c.h.b16 %v9451
  %v9608 = vunpack.c.l.b16 %v9452
  %v9609 = vunpack.c.h.b16 %v9452
  %v9610 = vunpack.c.l.b16 %v9453
  %v9611 = vunpack.c.h.b16 %v9453
  %v9612 = vunpack.c.l.b16 %v9454
  %v9613 = vunpack.c.h.b16 %v9454
  %v9614 = vunpack.c.l.b16 %v9455
  %v9615 = vunpack.c.h.b16 %v9455
  %v9616 = vunpack.c.l.b16 %v9456
  %v9617 = vunpack.c.h.b16 %v9456
  %v9618 = vunpack.c.l.b16 %v9457
  %v9619 = vunpack.c.h.b16 %v9457
  %v9620 = vunpack.c.l.b16 %v9458
  %v9621 = vunpack.c.h.b16 %v9458
  %v9622 = vunpack.c.l.b16 %v9459
  %v9623 = vunpack.c.h.b16 %v9459
  %v9624 = vunpack.c.l.b16 %v9460
  %v9625 = vunpack.c.h.b16 %v9460
  %v9626 = vunpack.c.l.b16 %v9461
  %v9627 = vunpack.c.h.b16 %v9461
  %v9628 = vunpack.c.l.b16 %v9462
  %v9629 = vunpack.c.h.b16 %v9462
  %v9630 = vunpack.c.l.b16 %v9463
  %v9631 = vunpack.c.h.b16 %v9463
  %v9632 = vunpack.c.l.b16 %v9464
  %v9633 = vunpack.c.h.b16 %v9464
  %v9634 = vunpack.c.l.b16 %v9465
  %v9635 = vunpack.c.h.b16 %v9465
  %v9636 = vunpack.c.l.b16 %v9466
  %v9637 = vunpack.c.h.b16 %v9466
  %v9638 = vunpack.c.l.b16 %v9467
  %v9639 = vunpack.c.h.b16 %v9467
  %v9640 = vunpack.c.l.b16 %v9468
  %v9641 = vunpack.c.h.b16 %v9468
  %v9642 = vunpack.c.l.b16 %v9469
  %v9643 = vunpack.c.h.b16 %v9469
  %v9644 = vunpack.c.l.b16 %v9470
  %v9645 = vunpack.c.h.b16 %v9470
  %v9646 = vunpack.c.l.b16 %v9471
  %v9647 = vunpack.c.h.b16 %v9471
  %v9648 = vunpack.c.l.b16 %v9472
  %v9649 = vunpack.c.h.b16 %v9472
  %v9650 = vunpack.c.l.b16 %v9473
  %v9651 = vunpack.c.h.b16 %v9473
  %v9652 = vunpack.c.l.b16 %v9474
  %v9653 = vunpack.c.h.b16 %v9474
  %v9654 = vunpack.c.l.b16 %v9475
  %v9655 = vunpack.c.h.b16 %v9475
  %v9656 = vunpack.c.l.b16 %v9476
  %v9657 = vunpack.c.h.b16 %v9476
  %v9658 = vunpack.c.l.b16 %v9477
  %v9659 = vunpack.c.h.b16 %v9477
  %v9660 = vunpack.c.l.b16 %v9478
  %v9661 = vunpack.c.h.b16 %v9478
  %v9662 = vunpack.c.l.b16 %v9479
  %v9663 = vunpack.c.h.b16 %v9479
  %v9664 = vunpack.c.l.b16 %v9480
  %v9665 = vunpack.c.h.b16 %v9480
  %v9666 = vunpack.c.l.b16 %v9481
  %v9667 = vunpack.c.h.b16 %v9481
  %v9668 = vunpack.c.l.b16 %v9482
  %v9669 = vunpack.c.h.b16 %v9482
  %v9670 = vunpack.c.l.b16 %v9483
  %v9671 = vunpack.c.h.b16 %v9483
  %v9672 = vunpack.c.l.b16 %v9484
  %v9673 = vunpack.c.h.b16 %v9484
  %v9674 = vunpack.c.l.b16 %v9485
  %v9675 = vunpack.c.h.b16 %v9485
  %v9676 = vunpack.c.l.b16 %v9486
  %v9677 = vunpack.c.h.b16 %v9486
  %v9678 = vunpack.c.l.b16 %v9487
  %v9679 = vunpack.c.h.b16 %v9487
  %v9680 = vunpack.c.l.b16 %v9488
  %v9681 = vunpack.c.h.b16 %v9488
  %v9682 = vunpack.c.l.b16 %v9489
  %v9683 = vunpack.c.h.b16 %v9489
  %v9684 = vunpack.c.l.b16 %v9490
  %v9685 = vunpack.c.h.b16 %v9490
  %v9686 = vunpack.c.l.b16 %v9491
  %v9687 = vunpack.c.h.b16 %v9491
  %v9688 = vunpack.c.l.b16 %v9492
  %v9689 = vunpack.c.h.b16 %v9492
  %v9690 = vunpack.c.l.b16 %v9493
  %v9691 = vunpack.c.h.b16 %v9493
  %v9692 = vunpack.c.l.b16 %v9494
  %v9693 = vunpack.c.h.b16 %v9494
  %v9694 = vunpack.c.l.b16 %v9495
  %v9695 = vunpack.c.h.b16 %v9495
  %v9696 = vunpack.c.l.b16 %v9496
  %v9697 = vunpack.c.h.b16 %v9496
  %v9698 = vunpack.c.l.b16 %v9497
  %v9699 = vunpack.c.h.b16 %v9497
  %v9700 = vpack.c.b16 %v9576, %v9572
  %v9701 = vpack.c.b16 %v9577, %v9573
  %v9702 = vpack.c.b16 %v9578, %v9574
  %v9703 = vpack.c.b16 %v9579, %v9575
  %v9704 = vpack.c.b16 %v9584, %v9580
  %v9705 = vpack.c.b16 %v9585, %v9581
  %v9706 = vpack.c.b16 %v9586, %v9582
  %v9707 = vpack.c.b16 %v9587, %v9583
  %v9708 = vpack.c.b16 %v9592, %v9588
  %v9709 = vpack.c.b16 %v9593, %v9589
  %v9710 = vpack.c.b16 %v9594, %v9590
  %v9711 = vpack.c.b16 %v9595, %v9591
  %v9712 = vpack.c.b16 %v9600, %v9596
  %v9713 = vpack.c.b16 %v9601, %v9597
  %v9714 = vpack.c.b16 %v9602, %v9598
  %v9715 = vpack.c.b16 %v9603, %v9599
  %v9716 = vpack.c.b16 %v9608, %v9604
  %v9717 = vpack.c.b16 %v9609, %v9605
  %v9718 = vpack.c.b16 %v9610, %v9606
  %v9719 = vpack.c.b16 %v9611, %v9607
  %v9720 = vpack.c.b16 %v9616, %v9612
  %v9721 = vpack.c.b16 %v9617, %v9613
  %v9722 = vpack.c.b16 %v9618, %v9614
  %v9723 = vpack.c.b16 %v9619, %v9615
  %v9724 = vpack.c.b16 %v9624, %v9620
  %v9725 = vpack.c.b16 %v9625, %v9621
  %v9726 = vpack.c.b16 %v9626, %v9622
  %v9727 = vpack.c.b16 %v9627, %v9623
  %v9728 = vpack.c.b16 %v9632, %v9628
  %v9729 = vpack.c.b16 %v9633, %v9629
  %v9730 = vpack.c.b16 %v9634, %v9630
  %v9731 = vpack.c.b16 %v9635, %v9631
  %v9732 = vpack.c.b16 %v9640, %v9636
  %v9733 = vpack.c.b16 %v9641, %v9637
  %v9734 = vpack.c.b16 %v9642, %v9638
  %v9735 = vpack.c.b16 %v9643, %v9639
  %v9736 = vpack.c.b16 %v9648, %v9644
  %v9737 = vpack.c.b16 %v9649, %v9645
  %v9738 = vpack.c.b16 %v9650, %v9646
  %v9739 = vpack.c.b16 %v9651, %v9647
  %v9740 = vpack.c.b16 %v9656, %v9652
  %v9741 = vpack.c.b16 %v9657, %v9653
  %v9742 = vpack.c.b16 %v9658, %v9654
  %v9743 = vpack.c.b16 %v9659, %v9655
  %v9744 = vpack.c.b16 %v9664, %v9660
  %v9745 = vpack.c.b16 %v9665, %v9661
  %v9746 = vpack.c.b16 %v9666, %v9662
  %v9747 = vpack.c.b16 %v9667, %v9663
  %v9748 = vpack.c.b16 %v9672, %v9668
  %v9749 = vpack.c.b16 %v9673, %v9669
  %v9750 = vpack.c.b16 %v9674, %v9670
  %v9751 = vpack.c.b16 %v9675, %v9671
  %v9752 = vpack.c.b16 %v9680, %v9676
  %v9753 = vpack.c.b16 %v9681, %v9677
  %v9754 = vpack.c.b16 %v9682, %v9678
  %v9755 = vpack.c.b16 %v9683, %v9679
  %v9756 = vpack.c.b16 %v9688, %v9684
  %v9757 = vpack.c.b16 %v9689, %v9685
  %v9758 = vpack.c.b16 %v9690, %v9686
  %v9759 = vpack.c.b16 %v9691, %v9687
  %v9760 = vpack.c.b16 %v9696, %v9692
  %v9761 = vpack.c.b16 %v9697, %v9693
  %v9762 = vpack.c.b16 %v9698, %v9694
  %v9763 = vpack.c.b16 %v9699, %v9695
  %9828 = vmatpush.bf16.msra.mxu0 %v9728
  %9829 = vmatpush.bf16.msra.mxu0 %v9724
  %9830 = vmatpush.bf16.msra.mxu0 %v9720
  %9831 = vmatpush.bf16.msra.mxu0 %v9716
  %9832 = vmatpush.bf16.msra.mxu0 %v9712
  %9833 = vmatpush.bf16.msra.mxu0 %v9708
  %9834 = vmatpush.bf16.msra.mxu0 %v9704
  %9835 = vmatpush.bf16.msra.mxu0 %v9700
  %9836 = vmatmul.bf16.gmra.mxu0 %v9426
  %v9837 = vpop.f32.mrf.mxu0
  %v9838 = vadd.f32 %v9500, %v9837
  %v9839 = vpop.f32.mrf.mxu0
  %v9840 = vadd.f32 %v9500, %v9839
  %9841 = vmatmul.bf16.gmra.mxu0 %v9428
  %v9842 = vpop.f32.mrf.mxu0
  %v9843 = vadd.f32 %v9500, %v9842
  %v9844 = vpop.f32.mrf.mxu0
  %v9845 = vadd.f32 %v9500, %v9844
  %9846 = vmatmul.bf16.gmra.mxu0 %v9430
  %v9847 = vpop.f32.mrf.mxu0
  %v9848 = vadd.f32 %v9500, %v9847
  %v9849 = vpop.f32.mrf.mxu0
  %v9850 = vadd.f32 %v9500, %v9849
  %9851 = vmatmul.bf16.gmra.mxu0 %v9432
  %v9852 = vpop.f32.mrf.mxu0
  %v9853 = vadd.f32 %v9500, %v9852
  %v9854 = vpop.f32.mrf.mxu0
  %v9855 = vadd.f32 %v9500, %v9854
  %9856 = vdwg.mxu0
  %9857 = vmatpush.bf16.msra.mxu0 %v9760
  %9858 = vmatpush.bf16.msra.mxu0 %v9756
  %9859 = vmatpush.bf16.msra.mxu0 %v9752
  %9860 = vmatpush.bf16.msra.mxu0 %v9748
  %9861 = vmatpush.bf16.msra.mxu0 %v9744
  %9862 = vmatpush.bf16.msra.mxu0 %v9740
  %9863 = vmatpush.bf16.msra.mxu0 %v9736
  %9864 = vmatpush.bf16.msra.mxu0 %v9732
  %9865 = vmatmul.bf16.gmra.mxu0 %v9427
  %v9866 = vpop.f32.mrf.mxu0
  %v9867 = vadd.f32 %v9838, %v9866
  %v9868 = vpop.f32.mrf.mxu0
  %v9869 = vadd.f32 %v9840, %v9868
  %9870 = vmatmul.bf16.gmra.mxu0 %v9429
  %v9871 = vpop.f32.mrf.mxu0
  %v9872 = vadd.f32 %v9843, %v9871
  %v9873 = vpop.f32.mrf.mxu0
  %v9874 = vadd.f32 %v9845, %v9873
  %9875 = vmatmul.bf16.gmra.mxu0 %v9431
  %v9876 = vpop.f32.mrf.mxu0
  %v9877 = vadd.f32 %v9848, %v9876
  %v9878 = vpop.f32.mrf.mxu0
  %v9879 = vadd.f32 %v9850, %v9878
  %9880 = vmatmul.bf16.gmra.mxu0 %v9433
  %v9881 = vpop.f32.mrf.mxu0
  %v9882 = vadd.f32 %v9853, %v9881
  %v9883 = vpop.f32.mrf.mxu0
  %v9884 = vadd.f32 %v9855, %v9883
  %9885 = vdwg.mxu0
  %9886 = vmatpush.bf16.msra.mxu0 %v9729
  %9887 = vmatpush.bf16.msra.mxu0 %v9725
  %9888 = vmatpush.bf16.msra.mxu0 %v9721
  %9889 = vmatpush.bf16.msra.mxu0 %v9717
  %9890 = vmatpush.bf16.msra.mxu0 %v9713
  %9891 = vmatpush.bf16.msra.mxu0 %v9709
  %9892 = vmatpush.bf16.msra.mxu0 %v9705
  %9893 = vmatpush.bf16.msra.mxu0 %v9701
  %9894 = vmatmul.bf16.gmra.mxu0 %v9426
  %v9895 = vpop.f32.mrf.mxu0
  %v9896 = vadd.f32 %v9501, %v9895
  %v9897 = vpop.f32.mrf.mxu0
  %v9898 = vadd.f32 %v9501, %v9897
  %9899 = vmatmul.bf16.gmra.mxu0 %v9428
  %v9900 = vpop.f32.mrf.mxu0
  %v9901 = vadd.f32 %v9501, %v9900
  %v9902 = vpop.f32.mrf.mxu0
  %v9903 = vadd.f32 %v9501, %v9902
  %9904 = vmatmul.bf16.gmra.mxu0 %v9430
  %v9905 = vpop.f32.mrf.mxu0
  %v9906 = vadd.f32 %v9501, %v9905
  %v9907 = vpop.f32.mrf.mxu0
  %v9908 = vadd.f32 %v9501, %v9907
  %9909 = vmatmul.bf16.gmra.mxu0 %v9432
  %v9910 = vpop.f32.mrf.mxu0
  %v9911 = vadd.f32 %v9501, %v9910
  %v9912 = vpop.f32.mrf.mxu0
  %v9913 = vadd.f32 %v9501, %v9912
  %9914 = vdwg.mxu0
  %9915 = vmatpush.bf16.msra.mxu0 %v9761
  %9916 = vmatpush.bf16.msra.mxu0 %v9757
  %9917 = vmatpush.bf16.msra.mxu0 %v9753
  %9918 = vmatpush.bf16.msra.mxu0 %v9749
  %9919 = vmatpush.bf16.msra.mxu0 %v9745
  %9920 = vmatpush.bf16.msra.mxu0 %v9741
  %9921 = vmatpush.bf16.msra.mxu0 %v9737
  %9922 = vmatpush.bf16.msra.mxu0 %v9733
  %9923 = vmatmul.bf16.gmra.mxu0 %v9427
  %v9924 = vpop.f32.mrf.mxu0
  %v9925 = vadd.f32 %v9896, %v9924
  %v9926 = vpop.f32.mrf.mxu0
  %v9927 = vadd.f32 %v9898, %v9926
  %9928 = vmatmul.bf16.gmra.mxu0 %v9429
  %v9929 = vpop.f32.mrf.mxu0
  %v9930 = vadd.f32 %v9901, %v9929
  %v9931 = vpop.f32.mrf.mxu0
  %v9932 = vadd.f32 %v9903, %v9931
  %9933 = vmatmul.bf16.gmra.mxu0 %v9431
  %v9934 = vpop.f32.mrf.mxu0
  %v9935 = vadd.f32 %v9906, %v9934
  %v9936 = vpop.f32.mrf.mxu0
  %v9937 = vadd.f32 %v9908, %v9936
  %9938 = vmatmul.bf16.gmra.mxu0 %v9433
  %v9939 = vpop.f32.mrf.mxu0
  %v9940 = vadd.f32 %v9911, %v9939
  %v9941 = vpop.f32.mrf.mxu0
  %v9942 = vadd.f32 %v9913, %v9941
  %9943 = vdwg.mxu0
  %9944 = vmatpush.bf16.msra.mxu0 %v9730
  %9945 = vmatpush.bf16.msra.mxu0 %v9726
  %9946 = vmatpush.bf16.msra.mxu0 %v9722
  %9947 = vmatpush.bf16.msra.mxu0 %v9718
  %9948 = vmatpush.bf16.msra.mxu0 %v9714
  %9949 = vmatpush.bf16.msra.mxu0 %v9710
  %9950 = vmatpush.bf16.msra.mxu0 %v9706
  %9951 = vmatpush.bf16.msra.mxu0 %v9702
  %9952 = vmatmul.bf16.gmra.mxu0 %v9426
  %v9953 = vpop.f32.mrf.mxu0
  %v9954 = vadd.f32 %v9502, %v9953
  %v9955 = vpop.f32.mrf.mxu0
  %v9956 = vadd.f32 %v9502, %v9955
  %9957 = vmatmul.bf16.gmra.mxu0 %v9428
  %v9958 = vpop.f32.mrf.mxu0
  %v9959 = vadd.f32 %v9502, %v9958
  %v9960 = vpop.f32.mrf.mxu0
  %v9961 = vadd.f32 %v9502, %v9960
  %9962 = vmatmul.bf16.gmra.mxu0 %v9430
  %v9963 = vpop.f32.mrf.mxu0
  %v9964 = vadd.f32 %v9502, %v9963
  %v9965 = vpop.f32.mrf.mxu0
  %v9966 = vadd.f32 %v9502, %v9965
  %9967 = vmatmul.bf16.gmra.mxu0 %v9432
  %v9968 = vpop.f32.mrf.mxu0
  %v9969 = vadd.f32 %v9502, %v9968
  %v9970 = vpop.f32.mrf.mxu0
  %v9971 = vadd.f32 %v9502, %v9970
  %9972 = vdwg.mxu0
  %9973 = vmatpush.bf16.msra.mxu0 %v9762
  %9974 = vmatpush.bf16.msra.mxu0 %v9758
  %9975 = vmatpush.bf16.msra.mxu0 %v9754
  %9976 = vmatpush.bf16.msra.mxu0 %v9750
  %9977 = vmatpush.bf16.msra.mxu0 %v9746
  %9978 = vmatpush.bf16.msra.mxu0 %v9742
  %9979 = vmatpush.bf16.msra.mxu0 %v9738
  %9980 = vmatpush.bf16.msra.mxu0 %v9734
  %9981 = vmatmul.bf16.gmra.mxu0 %v9427
  %v9982 = vpop.f32.mrf.mxu0
  %v9983 = vadd.f32 %v9954, %v9982
  %v9984 = vpop.f32.mrf.mxu0
  %v9985 = vadd.f32 %v9956, %v9984
  %9986 = vmatmul.bf16.gmra.mxu0 %v9429
  %v9987 = vpop.f32.mrf.mxu0
  %v9988 = vadd.f32 %v9959, %v9987
  %v9989 = vpop.f32.mrf.mxu0
  %v9990 = vadd.f32 %v9961, %v9989
  %9991 = vmatmul.bf16.gmra.mxu0 %v9431
  %v9992 = vpop.f32.mrf.mxu0
  %v9993 = vadd.f32 %v9964, %v9992
  %v9994 = vpop.f32.mrf.mxu0
  %v9995 = vadd.f32 %v9966, %v9994
  %9996 = vmatmul.bf16.gmra.mxu0 %v9433
  %v9997 = vpop.f32.mrf.mxu0
  %v9998 = vadd.f32 %v9969, %v9997
  %v9999 = vpop.f32.mrf.mxu0
  %v10000 = vadd.f32 %v9971, %v9999
  %10001 = vdwg.mxu0
  %10002 = vmatpush.bf16.msra.mxu0 %v9731
  %10003 = vmatpush.bf16.msra.mxu0 %v9727
  %10004 = vmatpush.bf16.msra.mxu0 %v9723
  %10005 = vmatpush.bf16.msra.mxu0 %v9719
  %10006 = vmatpush.bf16.msra.mxu0 %v9715
  %10007 = vmatpush.bf16.msra.mxu0 %v9711
  %10008 = vmatpush.bf16.msra.mxu0 %v9707
  %10009 = vmatpush.bf16.msra.mxu0 %v9703
  %10010 = vmatmul.bf16.gmra.mxu0 %v9426
  %v10011 = vpop.f32.mrf.mxu0
  %v10012 = vadd.f32 %v9503, %v10011
  %v10013 = vpop.f32.mrf.mxu0
  %v10014 = vadd.f32 %v9503, %v10013
  %10015 = vmatmul.bf16.gmra.mxu0 %v9428
  %v10016 = vpop.f32.mrf.mxu0
  %v10017 = vadd.f32 %v9503, %v10016
  %v10018 = vpop.f32.mrf.mxu0
  %v10019 = vadd.f32 %v9503, %v10018
  %10020 = vmatmul.bf16.gmra.mxu0 %v9430
  %v10021 = vpop.f32.mrf.mxu0
  %v10022 = vadd.f32 %v9503, %v10021
  %v10023 = vpop.f32.mrf.mxu0
  %v10024 = vadd.f32 %v9503, %v10023
  %10025 = vmatmul.bf16.gmra.mxu0 %v9432
  %v10026 = vpop.f32.mrf.mxu0
  %v10027 = vadd.f32 %v9503, %v10026
  %v10028 = vpop.f32.mrf.mxu0
  %v10029 = vadd.f32 %v9503, %v10028
  %10030 = vdwg.mxu0
  %10031 = vmatpush.bf16.msra.mxu0 %v9763
  %10032 = vmatpush.bf16.msra.mxu0 %v9759
  %10033 = vmatpush.bf16.msra.mxu0 %v9755
  %10034 = vmatpush.bf16.msra.mxu0 %v9751
  %10035 = vmatpush.bf16.msra.mxu0 %v9747
  %10036 = vmatpush.bf16.msra.mxu0 %v9743
  %10037 = vmatpush.bf16.msra.mxu0 %v9739
  %10038 = vmatpush.bf16.msra.mxu0 %v9735
  %10039 = vmatmul.bf16.gmra.mxu0 %v9427
  %v10040 = vpop.f32.mrf.mxu0
  %v10041 = vadd.f32 %v10012, %v10040
  %v10042 = vpop.f32.mrf.mxu0
  %v10043 = vadd.f32 %v10014, %v10042
  %10044 = vmatmul.bf16.gmra.mxu0 %v9429
  %v10045 = vpop.f32.mrf.mxu0
  %v10046 = vadd.f32 %v10017, %v10045
  %v10047 = vpop.f32.mrf.mxu0
  %v10048 = vadd.f32 %v10019, %v10047
  %10049 = vmatmul.bf16.gmra.mxu0 %v9431
  %v10050 = vpop.f32.mrf.mxu0
  %v10051 = vadd.f32 %v10022, %v10050
  %v10052 = vpop.f32.mrf.mxu0
  %v10053 = vadd.f32 %v10024, %v10052
  %10054 = vmatmul.bf16.gmra.mxu0 %v9433
  %v10055 = vpop.f32.mrf.mxu0
  %v10056 = vadd.f32 %v10027, %v10055
  %v10057 = vpop.f32.mrf.mxu0
  %v10058 = vadd.f32 %v10029, %v10057
  %10059 = vdwg.mxu0
  %10060 = vst [vmem:[#allocation4] sm:$0xff] %v9867
  %10061 = vst [vmem:[#allocation4 + $0x8] sm:$0xff] %v9925
  %10062 = vst [vmem:[#allocation4 + $0x10] sm:$0xff] %v9983
  %10063 = vst [vmem:[#allocation4 + $0x18] sm:$0xff] %v10041
  %10064 = vst [vmem:[#allocation4 + $0x20] sm:$0xff] %v9869
  %10065 = vst [vmem:[#allocation4 + $0x28] sm:$0xff] %v9927
  %10066 = vst [vmem:[#allocation4 + $0x30] sm:$0xff] %v9985
  %10067 = vst [vmem:[#allocation4 + $0x38] sm:$0xff] %v10043
  %10068 = vst [vmem:[#allocation4 + $0x40] sm:$0xff] %v9872
  %10069 = vst [vmem:[#allocation4 + $0x48] sm:$0xff] %v9930
  %10070 = vst [vmem:[#allocation4 + $0x50] sm:$0xff] %v9988
  %10071 = vst [vmem:[#allocation4 + $0x58] sm:$0xff] %v10046
  %10072 = vst [vmem:[#allocation4 + $0x60] sm:$0xff] %v9874
  %10073 = vst [vmem:[#allocation4 + $0x68] sm:$0xff] %v9932
  %10074 = vst [vmem:[#allocation4 + $0x70] sm:$0xff] %v9990
  %10075 = vst [vmem:[#allocation4 + $0x78] sm:$0xff] %v10048
  %10076 = vst [vmem:[#allocation4 + $0x80] sm:$0xff] %v9877
  %10077 = vst [vmem:[#allocation4 + $0x88] sm:$0xff] %v9935
  %10078 = vst [vmem:[#allocation4 + $0x90] sm:$0xff] %v9993
  %10079 = vst [vmem:[#allocation4 + $0x98] sm:$0xff] %v10051
  %10080 = vst [vmem:[#allocation4 + $0xa0] sm:$0xff] %v9879
  %10081 = vst [vmem:[#allocation4 + $0xa8] sm:$0xff] %v9937
  %10082 = vst [vmem:[#allocation4 + $0xb0] sm:$0xff] %v9995
  %10083 = vst [vmem:[#allocation4 + $0xb8] sm:$0xff] %v10053
  %10084 = vst [vmem:[#allocation4 + $0xc0] sm:$0xff] %v9882
  %10085 = vst [vmem:[#allocation4 + $0xc8] sm:$0xff] %v9940
  %10086 = vst [vmem:[#allocation4 + $0xd0] sm:$0xff] %v9998
  %10087 = vst [vmem:[#allocation4 + $0xd8] sm:$0xff] %v10056
  %10088 = vst [vmem:[#allocation4 + $0xe0] sm:$0xff] %v9884
  %10089 = vst [vmem:[#allocation4 + $0xe8] sm:$0xff] %v9942
  %10090 = vst [vmem:[#allocation4 + $0xf0] sm:$0xff] %v10000
  %10091 = vst [vmem:[#allocation4 + $0xf8] sm:$0xff] %v10058
  %v10092 = vld [vmem:[#allocation4] sm:$0xff]
  %v10093 = vld [vmem:[#allocation4 + $0x8] sm:$0xff]
  %v10094 = vld [vmem:[#allocation4 + $0x10] sm:$0xff]
  %v10095 = vld [vmem:[#allocation4 + $0x18] sm:$0xff]
  %v10096 = vld [vmem:[%s7] sm:$0xff]
  %v10097 = vld [vmem:[%s7 + $0x8] sm:$0xff]
  %v10098 = vld [vmem:[%s7 + $0x10] sm:$0xff]
  %v10099 = vld [vmem:[%s7 + $0x18] sm:$0xff]
  %v10100 = vld [vmem:[%s7 + $0x20] sm:$0xff]
  %v10101 = vld [vmem:[%s7 + $0x28] sm:$0xff]
  %v10102 = vld [vmem:[%s7 + $0x30] sm:$0xff]
  %v10103 = vld [vmem:[%s7 + $0x38] sm:$0xff]
  %v10104 = vld [vmem:[%s7 + $0x40] sm:$0xff]
  %v10105 = vld [vmem:[%s7 + $0x48] sm:$0xff]
  %v10106 = vld [vmem:[%s7 + $0x50] sm:$0xff]
  %v10107 = vld [vmem:[%s7 + $0x58] sm:$0xff]
  %v10108 = vld [vmem:[%s7 + $0x60] sm:$0xff]
  %v10109 = vld [vmem:[%s7 + $0x68] sm:$0xff]
  %v10110 = vld [vmem:[%s7 + $0x70] sm:$0xff]
  %v10111 = vld [vmem:[%s7 + $0x78] sm:$0xff]
  %v10112 = vld [vmem:[%s7 + $0x80] sm:$0xff]
  %v10113 = vld [vmem:[%s7 + $0x88] sm:$0xff]
  %v10114 = vld [vmem:[%s7 + $0x90] sm:$0xff]
  %v10115 = vld [vmem:[%s7 + $0x98] sm:$0xff]
  %v10116 = vld [vmem:[%s7 + $0xa0] sm:$0xff]
  %v10117 = vld [vmem:[%s7 + $0xa8] sm:$0xff]
  %v10118 = vld [vmem:[%s7 + $0xb0] sm:$0xff]
  %v10119 = vld [vmem:[%s7 + $0xb8] sm:$0xff]
  %v10120 = vld [vmem:[%s7 + $0xc0] sm:$0xff]
  %v10121 = vld [vmem:[%s7 + $0xc8] sm:$0xff]
  %v10122 = vld [vmem:[%s7 + $0xd0] sm:$0xff]
  %v10123 = vld [vmem:[%s7 + $0xd8] sm:$0xff]
  %v10124 = vld [vmem:[%s7 + $0xe0] sm:$0xff]
  %v10125 = vld [vmem:[%s7 + $0xe8] sm:$0xff]
  %v10126 = vld [vmem:[%s7 + $0xf0] sm:$0xff]
  %v10127 = vld [vmem:[%s7 + $0xf8] sm:$0xff]
  %v10160 = vunpack.c.l.b16 %v10096
  %v10161 = vunpack.c.h.b16 %v10096
  %v10162 = vunpack.c.l.b16 %v10097
  %v10163 = vunpack.c.h.b16 %v10097
  %v10164 = vunpack.c.l.b16 %v10098
  %v10165 = vunpack.c.h.b16 %v10098
  %v10166 = vunpack.c.l.b16 %v10099
  %v10167 = vunpack.c.h.b16 %v10099
  %v10168 = vunpack.c.l.b16 %v10100
  %v10169 = vunpack.c.h.b16 %v10100
  %v10170 = vunpack.c.l.b16 %v10101
  %v10171 = vunpack.c.h.b16 %v10101
  %v10172 = vunpack.c.l.b16 %v10102
  %v10173 = vunpack.c.h.b16 %v10102
  %v10174 = vunpack.c.l.b16 %v10103
  %v10175 = vunpack.c.h.b16 %v10103
  %v10176 = vunpack.c.l.b16 %v10104
  %v10177 = vunpack.c.h.b16 %v10104
  %v10178 = vunpack.c.l.b16 %v10105
  %v10179 = vunpack.c.h.b16 %v10105
  %v10180 = vunpack.c.l.b16 %v10106
  %v10181 = vunpack.c.h.b16 %v10106
  %v10182 = vunpack.c.l.b16 %v10107
  %v10183 = vunpack.c.h.b16 %v10107
  %v10184 = vunpack.c.l.b16 %v10108
  %v10185 = vunpack.c.h.b16 %v10108
  %v10186 = vunpack.c.l.b16 %v10109
  %v10187 = vunpack.c.h.b16 %v10109
  %v10188 = vunpack.c.l.b16 %v10110
  %v10189 = vunpack.c.h.b16 %v10110
  %v10190 = vunpack.c.l.b16 %v10111
  %v10191 = vunpack.c.h.b16 %v10111
  %v10192 = vunpack.c.l.b16 %v10112
  %v10193 = vunpack.c.h.b16 %v10112
  %v10194 = vunpack.c.l.b16 %v10113
  %v10195 = vunpack.c.h.b16 %v10113
  %v10196 = vunpack.c.l.b16 %v10114
  %v10197 = vunpack.c.h.b16 %v10114
  %v10198 = vunpack.c.l.b16 %v10115
  %v10199 = vunpack.c.h.b16 %v10115
  %v10200 = vunpack.c.l.b16 %v10116
  %v10201 = vunpack.c.h.b16 %v10116
  %v10202 = vunpack.c.l.b16 %v10117
  %v10203 = vunpack.c.h.b16 %v10117
  %v10204 = vunpack.c.l.b16 %v10118
  %v10205 = vunpack.c.h.b16 %v10118
  %v10206 = vunpack.c.l.b16 %v10119
  %v10207 = vunpack.c.h.b16 %v10119
  %v10208 = vunpack.c.l.b16 %v10120
  %v10209 = vunpack.c.h.b16 %v10120
  %v10210 = vunpack.c.l.b16 %v10121
  %v10211 = vunpack.c.h.b16 %v10121
  %v10212 = vunpack.c.l.b16 %v10122
  %v10213 = vunpack.c.h.b16 %v10122
  %v10214 = vunpack.c.l.b16 %v10123
  %v10215 = vunpack.c.h.b16 %v10123
  %v10216 = vunpack.c.l.b16 %v10124
  %v10217 = vunpack.c.h.b16 %v10124
  %v10218 = vunpack.c.l.b16 %v10125
  %v10219 = vunpack.c.h.b16 %v10125
  %v10220 = vunpack.c.l.b16 %v10126
  %v10221 = vunpack.c.h.b16 %v10126
  %v10222 = vunpack.c.l.b16 %v10127
  %v10223 = vunpack.c.h.b16 %v10127
  %v10224 = vpack.c.b16 %v10164, %v10160
  %v10225 = vpack.c.b16 %v10165, %v10161
  %v10226 = vpack.c.b16 %v10166, %v10162
  %v10227 = vpack.c.b16 %v10167, %v10163
  %v10228 = vpack.c.b16 %v10172, %v10168
  %v10229 = vpack.c.b16 %v10173, %v10169
  %v10230 = vpack.c.b16 %v10174, %v10170
  %v10231 = vpack.c.b16 %v10175, %v10171
  %v10232 = vpack.c.b16 %v10180, %v10176
  %v10233 = vpack.c.b16 %v10181, %v10177
  %v10234 = vpack.c.b16 %v10182, %v10178
  %v10235 = vpack.c.b16 %v10183, %v10179
  %v10236 = vpack.c.b16 %v10188, %v10184
  %v10237 = vpack.c.b16 %v10189, %v10185
  %v10238 = vpack.c.b16 %v10190, %v10186
  %v10239 = vpack.c.b16 %v10191, %v10187
  %v10240 = vpack.c.b16 %v10196, %v10192
  %v10241 = vpack.c.b16 %v10197, %v10193
  %v10242 = vpack.c.b16 %v10198, %v10194
  %v10243 = vpack.c.b16 %v10199, %v10195
  %v10244 = vpack.c.b16 %v10204, %v10200
  %v10245 = vpack.c.b16 %v10205, %v10201
  %v10246 = vpack.c.b16 %v10206, %v10202
  %v10247 = vpack.c.b16 %v10207, %v10203
  %v10248 = vpack.c.b16 %v10212, %v10208
  %v10249 = vpack.c.b16 %v10213, %v10209
  %v10250 = vpack.c.b16 %v10214, %v10210
  %v10251 = vpack.c.b16 %v10215, %v10211
  %v10252 = vpack.c.b16 %v10220, %v10216
  %v10253 = vpack.c.b16 %v10221, %v10217
  %v10254 = vpack.c.b16 %v10222, %v10218
  %v10255 = vpack.c.b16 %v10223, %v10219
  %10288 = vmatpush.bf16.msra.mxu0 %v10252
  %10289 = vmatpush.bf16.msra.mxu0 %v10248
  %10290 = vmatpush.bf16.msra.mxu0 %v10244
  %10291 = vmatpush.bf16.msra.mxu0 %v10240
  %10292 = vmatpush.bf16.msra.mxu0 %v10236
  %10293 = vmatpush.bf16.msra.mxu0 %v10232
  %10294 = vmatpush.bf16.msra.mxu0 %v10228
  %10295 = vmatpush.bf16.msra.mxu0 %v10224
  %10296 = vmatmul.bf16.gmra.mxu0 0
  %v10297 = vpop.f32.mrf.mxu0
  %v10298 = vadd.f32 0.0, %v10297
  %v10299 = vpop.f32.mrf.mxu0
  %10300 = vdwg.mxu0
  %10301 = vmatpush.bf16.msra.mxu0 %v10253
  %10302 = vmatpush.bf16.msra.mxu0 %v10249
  %10303 = vmatpush.bf16.msra.mxu0 %v10245
  %10304 = vmatpush.bf16.msra.mxu0 %v10241
  %10305 = vmatpush.bf16.msra.mxu0 %v10237
  %10306 = vmatpush.bf16.msra.mxu0 %v10233
  %10307 = vmatpush.bf16.msra.mxu0 %v10229
  %10308 = vmatpush.bf16.msra.mxu0 %v10225
  %10309 = vmatmul.bf16.gmra.mxu0 0
  %v10310 = vpop.f32.mrf.mxu0
  %v10311 = vadd.f32 0.0, %v10310
  %v10312 = vpop.f32.mrf.mxu0
  %10313 = vdwg.mxu0
  %10314 = vmatpush.bf16.msra.mxu0 %v10254
  %10315 = vmatpush.bf16.msra.mxu0 %v10250
  %10316 = vmatpush.bf16.msra.mxu0 %v10246
  %10317 = vmatpush.bf16.msra.mxu0 %v10242
  %10318 = vmatpush.bf16.msra.mxu0 %v10238
  %10319 = vmatpush.bf16.msra.mxu0 %v10234
  %10320 = vmatpush.bf16.msra.mxu0 %v10230
  %10321 = vmatpush.bf16.msra.mxu0 %v10226
  %10322 = vmatmul.bf16.gmra.mxu0 0
  %v10323 = vpop.f32.mrf.mxu0
  %v10324 = vadd.f32 0.0, %v10323
  %v10325 = vpop.f32.mrf.mxu0
  %10326 = vdwg.mxu0
  %10327 = vmatpush.bf16.msra.mxu0 %v10255
  %10328 = vmatpush.bf16.msra.mxu0 %v10251
  %10329 = vmatpush.bf16.msra.mxu0 %v10247
  %10330 = vmatpush.bf16.msra.mxu0 %v10243
  %10331 = vmatpush.bf16.msra.mxu0 %v10239
  %10332 = vmatpush.bf16.msra.mxu0 %v10235
  %10333 = vmatpush.bf16.msra.mxu0 %v10231
  %10334 = vmatpush.bf16.msra.mxu0 %v10227
  %10335 = vmatmul.bf16.gmra.mxu0 0
  %v10336 = vpop.f32.mrf.mxu0
  %v10337 = vadd.f32 0.0, %v10336
  %v10338 = vpop.f32.mrf.mxu0
  %10339 = vdwg.mxu0
  %v10340 = vadd.f32 %v10092, %v10298
  %v10341 = vadd.f32 %v10093, %v10311
  %v10342 = vadd.f32 %v10094, %v10324
  %v10343 = vadd.f32 %v10095, %v10337
  %v10344 = vxor.u32 %v10340, 2147483648
  %v10345 = vmul.f32 %v10344, 1.442695
  %v10346 = vpow.pop %v10345
  %v10347 = vadd.f32 %v10346, 1.0
  %v10348 = vrcp.pop %v10347
  %v10349 = vmul.f32 %v10347, %v10348
  %v10350 = vsub.f32 1.0, %v10349
  %v10351 = vmul.f32 %v10348, %v10350
  %v10352 = vadd.f32 %v10348, %v10351
  %vm10353 = vweird.f32 %v10347
  %vm10354 = vweird.f32 %v10348
  %vm10355 = vmor %vm10353, %vm10354
  %v10356 = vsel %vm10355, %v10348, %v10352
  %v10357 = vand.u32 2147483647, %v10347
  %vm10358 = vcmp.eq.f32.partialorder %v10357, 8.507059e+37
  %v10359 = vand.u32 %v10347, 2147483648
  %v10360 = vor.u32 1.1754944e-38, %v10359
  %v10361 = vsel %vm10358, %v10360, %v10356
  %v10362 = vmul.f32 1.0, %v10361
  %v10363 = vxor.u32 %v10341, 2147483648
  %v10364 = vmul.f32 %v10363, 1.442695
  %v10365 = vpow.pop %v10364
  %v10366 = vadd.f32 %v10365, 1.0
  %v10367 = vrcp.pop %v10366
  %v10368 = vmul.f32 %v10366, %v10367
  %v10369 = vsub.f32 1.0, %v10368
  %v10370 = vmul.f32 %v10367, %v10369
  %v10371 = vadd.f32 %v10367, %v10370
  %vm10372 = vweird.f32 %v10366
  %vm10373 = vweird.f32 %v10367
  %vm10374 = vmor %vm10372, %vm10373
  %v10375 = vsel %vm10374, %v10367, %v10371
  %v10376 = vand.u32 2147483647, %v10366
  %vm10377 = vcmp.eq.f32.partialorder %v10376, 8.507059e+37
  %v10378 = vand.u32 %v10366, 2147483648
  %v10379 = vor.u32 1.1754944e-38, %v10378
  %v10380 = vsel %vm10377, %v10379, %v10375
  %v10381 = vmul.f32 1.0, %v10380
  %v10382 = vtanh.pop %v10342
  %v10383 = vxor.u32 %v10343, 2147483648
  %v10384 = vmul.f32 %v10383, 1.442695
  %v10385 = vpow.pop %v10384
  %v10386 = vadd.f32 %v10385, 1.0
  %v10387 = vrcp.pop %v10386
  %v10388 = vmul.f32 %v10386, %v10387
  %v10389 = vsub.f32 1.0, %v10388
  %v10390 = vmul.f32 %v10387, %v10389
  %v10391 = vadd.f32 %v10387, %v10390
  %vm10392 = vweird.f32 %v10386
  %vm10393 = vweird.f32 %v10387
  %vm10394 = vmor %vm10392, %vm10393
  %v10395 = vsel %vm10394, %v10387, %v10391
  %v10396 = vand.u32 2147483647, %v10386
  %vm10397 = vcmp.eq.f32.partialorder %v10396, 8.507059e+37
  %v10398 = vand.u32 %v10386, 2147483648
  %v10399 = vor.u32 1.1754944e-38, %v10398
  %v10400 = vsel %vm10397, %v10399, %v10395
  %v10401 = vmul.f32 1.0, %v10400
  %v10402 = vmul.f32 %v10381, 0.0
  %v10403 = vmul.f32 %v10362, %v10382
  %v10404 = vadd.f32 %v10402, %v10403
  %v10405 = vtanh.pop %v10404
  %v10406 = vmul.f32 %v10401, %v10405
  %v10407 = vld [vmem:[#allocation4 + $0x20] sm:$0xff]
  %v10408 = vld [vmem:[#allocation4 + $0x28] sm:$0xff]
  %v10409 = vld [vmem:[#allocation4 + $0x30] sm:$0xff]
  %v10410 = vld [vmem:[#allocation4 + $0x38] sm:$0xff]
  %v10411 = vpack.c.bf16 %v10406, %v10406
  %10412 = vmatpush.bf16.msra.mxu0 %v10252
  %10413 = vmatpush.bf16.msra.mxu0 %v10248
  %10414 = vmatpush.bf16.msra.mxu0 %v10244
  %10415 = vmatpush.bf16.msra.mxu0 %v10240
  %10416 = vmatpush.bf16.msra.mxu0 %v10236
  %10417 = vmatpush.bf16.msra.mxu0 %v10232
  %10418 = vmatpush.bf16.msra.mxu0 %v10228
  %10419 = vmatpush.bf16.msra.mxu0 %v10224
  %10420 = vmatmul.bf16.gmra.mxu0 %v10411
  %v10421 = vpop.f32.mrf.mxu0
  %v10422 = vadd.f32 0.0, %v10421
  %v10423 = vpop.f32.mrf.mxu0
  %10424 = vdwg.mxu0
  %10425 = vmatpush.bf16.msra.mxu0 %v10253
  %10426 = vmatpush.bf16.msra.mxu0 %v10249
  %10427 = vmatpush.bf16.msra.mxu0 %v10245
  %10428 = vmatpush.bf16.msra.mxu0 %v10241
  %10429 = vmatpush.bf16.msra.mxu0 %v10237
  %10430 = vmatpush.bf16.msra.mxu0 %v10233
  %10431 = vmatpush.bf16.msra.mxu0 %v10229
  %10432 = vmatpush.bf16.msra.mxu0 %v10225
  %10433 = vmatmul.bf16.gmra.mxu0 %v10411
  %v10434 = vpop.f32.mrf.mxu0
  %v10435 = vadd.f32 0.0, %v10434
  %v10436 = vpop.f32.mrf.mxu0
  %10437 = vdwg.mxu0
  %10438 = vmatpush.bf16.msra.mxu0 %v10254
  %10439 = vmatpush.bf16.msra.mxu0 %v10250
  %10440 = vmatpush.bf16.msra.mxu0 %v10246
  %10441 = vmatpush.bf16.msra.mxu0 %v10242
  %10442 = vmatpush.bf16.msra.mxu0 %v10238
  %10443 = vmatpush.bf16.msra.mxu0 %v10234
  %10444 = vmatpush.bf16.msra.mxu0 %v10230
  %10445 = vmatpush.bf16.msra.mxu0 %v10226
  %10446 = vmatmul.bf16.gmra.mxu0 %v10411
  %v10447 = vpop.f32.mrf.mxu0
  %v10448 = vadd.f32 0.0, %v10447
  %v10449 = vpop.f32.mrf.mxu0
  %10450 = vdwg.mxu0
  %10451 = vmatpush.bf16.msra.mxu0 %v10255
  %10452 = vmatpush.bf16.msra.mxu0 %v10251
  %10453 = vmatpush.bf16.msra.mxu0 %v10247
  %10454 = vmatpush.bf16.msra.mxu0 %v10243
  %10455 = vmatpush.bf16.msra.mxu0 %v10239
  %10456 = vmatpush.bf16.msra.mxu0 %v10235
  %10457 = vmatpush.bf16.msra.mxu0 %v10231
  %10458 = vmatpush.bf16.msra.mxu0 %v10227
  %10459 = vmatmul.bf16.gmra.mxu0 %v10411
  %v10460 = vpop.f32.mrf.mxu0
  %v10461 = vadd.f32 0.0, %v10460
  %v10462 = vpop.f32.mrf.mxu0
  %10463 = vdwg.mxu0
  %v10464 = vadd.f32 %v10407, %v10422
  %v10465 = vadd.f32 %v10408, %v10435
  %v10466 = vadd.f32 %v10409, %v10448
  %v10467 = vadd.f32 %v10410, %v10461
  %v10468 = vxor.u32 %v10464, 2147483648
  %v10469 = vmul.f32 %v10468, 1.442695
  %v10470 = vpow.pop %v10469
  %v10471 = vadd.f32 %v10470, 1.0
  %v10472 = vrcp.pop %v10471
  %v10473 = vmul.f32 %v10471, %v10472
  %v10474 = vsub.f32 1.0, %v10473
  %v10475 = vmul.f32 %v10472, %v10474
  %v10476 = vadd.f32 %v10472, %v10475
  %vm10477 = vweird.f32 %v10471
  %vm10478 = vweird.f32 %v10472
  %vm10479 = vmor %vm10477, %vm10478
  %v10480 = vsel %vm10479, %v10472, %v10476
  %v10481 = vand.u32 2147483647, %v10471
  %vm10482 = vcmp.eq.f32.partialorder %v10481, 8.507059e+37
  %v10483 = vand.u32 %v10471, 2147483648
  %v10484 = vor.u32 1.1754944e-38, %v10483
  %v10485 = vsel %vm10482, %v10484, %v10480
  %v10486 = vmul.f32 1.0, %v10485
  %v10487 = vxor.u32 %v10465, 2147483648
  %v10488 = vmul.f32 %v10487, 1.442695
  %v10489 = vpow.pop %v10488
  %v10490 = vadd.f32 %v10489, 1.0
  %v10491 = vrcp.pop %v10490
  %v10492 = vmul.f32 %v10490, %v10491
  %v10493 = vsub.f32 1.0, %v10492
  %v10494 = vmul.f32 %v10491, %v10493
  %v10495 = vadd.f32 %v10491, %v10494
  %vm10496 = vweird.f32 %v10490
  %vm10497 = vweird.f32 %v10491
  %vm10498 = vmor %vm10496, %vm10497
  %v10499 = vsel %vm10498, %v10491, %v10495
  %v10500 = vand.u32 2147483647, %v10490
  %vm10501 = vcmp.eq.f32.partialorder %v10500, 8.507059e+37
  %v10502 = vand.u32 %v10490, 2147483648
  %v10503 = vor.u32 1.1754944e-38, %v10502
  %v10504 = vsel %vm10501, %v10503, %v10499
  %v10505 = vmul.f32 1.0, %v10504
  %v10506 = vtanh.pop %v10466
  %v10507 = vxor.u32 %v10467, 2147483648
  %v10508 = vmul.f32 %v10507, 1.442695
  %v10509 = vpow.pop %v10508
  %v10510 = vadd.f32 %v10509, 1.0
  %v10511 = vrcp.pop %v10510
  %v10512 = vmul.f32 %v10510, %v10511
  %v10513 = vsub.f32 1.0, %v10512
  %v10514 = vmul.f32 %v10511, %v10513
  %v10515 = vadd.f32 %v10511, %v10514
  %vm10516 = vweird.f32 %v10510
  %vm10517 = vweird.f32 %v10511
  %vm10518 = vmor %vm10516, %vm10517
  %v10519 = vsel %vm10518, %v10511, %v10515
  %v10520 = vand.u32 2147483647, %v10510
  %vm10521 = vcmp.eq.f32.partialorder %v10520, 8.507059e+37
  %v10522 = vand.u32 %v10510, 2147483648
  %v10523 = vor.u32 1.1754944e-38, %v10522
  %v10524 = vsel %vm10521, %v10523, %v10519
  %v10525 = vmul.f32 1.0, %v10524
  %v10526 = vmul.f32 %v10505, %v10404
  %v10527 = vmul.f32 %v10486, %v10506
  %v10528 = vadd.f32 %v10526, %v10527
  %v10529 = vtanh.pop %v10528
  %v10530 = vmul.f32 %v10525, %v10529
  %v10531 = vld [vmem:[#allocation4 + $0x40] sm:$0xff]
  %v10532 = vld [vmem:[#allocation4 + $0x48] sm:$0xff]
  %v10533 = vld [vmem:[#allocation4 + $0x50] sm:$0xff]
  %v10534 = vld [vmem:[#allocation4 + $0x58] sm:$0xff]
  %v10535 = vpack.c.bf16 %v10530, %v10530
  %10536 = vmatpush.bf16.msra.mxu0 %v10252
  %10537 = vmatpush.bf16.msra.mxu0 %v10248
  %10538 = vmatpush.bf16.msra.mxu0 %v10244
  %10539 = vmatpush.bf16.msra.mxu0 %v10240
  %10540 = vmatpush.bf16.msra.mxu0 %v10236
  %10541 = vmatpush.bf16.msra.mxu0 %v10232
  %10542 = vmatpush.bf16.msra.mxu0 %v10228
  %10543 = vmatpush.bf16.msra.mxu0 %v10224
  %10544 = vmatmul.bf16.gmra.mxu0 %v10535
  %v10545 = vpop.f32.mrf.mxu0
  %v10546 = vadd.f32 0.0, %v10545
  %v10547 = vpop.f32.mrf.mxu0
  %10548 = vdwg.mxu0
  %10549 = vmatpush.bf16.msra.mxu0 %v10253
  %10550 = vmatpush.bf16.msra.mxu0 %v10249
  %10551 = vmatpush.bf16.msra.mxu0 %v10245
  %10552 = vmatpush.bf16.msra.mxu0 %v10241
  %10553 = vmatpush.bf16.msra.mxu0 %v10237
  %10554 = vmatpush.bf16.msra.mxu0 %v10233
  %10555 = vmatpush.bf16.msra.mxu0 %v10229
  %10556 = vmatpush.bf16.msra.mxu0 %v10225
  %10557 = vmatmul.bf16.gmra.mxu0 %v10535
  %v10558 = vpop.f32.mrf.mxu0
  %v10559 = vadd.f32 0.0, %v10558
  %v10560 = vpop.f32.mrf.mxu0
  %10561 = vdwg.mxu0
  %10562 = vmatpush.bf16.msra.mxu0 %v10254
  %10563 = vmatpush.bf16.msra.mxu0 %v10250
  %10564 = vmatpush.bf16.msra.mxu0 %v10246
  %10565 = vmatpush.bf16.msra.mxu0 %v10242
  %10566 = vmatpush.bf16.msra.mxu0 %v10238
  %10567 = vmatpush.bf16.msra.mxu0 %v10234
  %10568 = vmatpush.bf16.msra.mxu0 %v10230
  %10569 = vmatpush.bf16.msra.mxu0 %v10226
  %10570 = vmatmul.bf16.gmra.mxu0 %v10535
  %v10571 = vpop.f32.mrf.mxu0
  %v10572 = vadd.f32 0.0, %v10571
  %v10573 = vpop.f32.mrf.mxu0
  %10574 = vdwg.mxu0
  %10575 = vmatpush.bf16.msra.mxu0 %v10255
  %10576 = vmatpush.bf16.msra.mxu0 %v10251
  %10577 = vmatpush.bf16.msra.mxu0 %v10247
  %10578 = vmatpush.bf16.msra.mxu0 %v10243
  %10579 = vmatpush.bf16.msra.mxu0 %v10239
  %10580 = vmatpush.bf16.msra.mxu0 %v10235
  %10581 = vmatpush.bf16.msra.mxu0 %v10231
  %10582 = vmatpush.bf16.msra.mxu0 %v10227
  %10583 = vmatmul.bf16.gmra.mxu0 %v10535
  %v10584 = vpop.f32.mrf.mxu0
  %v10585 = vadd.f32 0.0, %v10584
  %v10586 = vpop.f32.mrf.mxu0
  %10587 = vdwg.mxu0
  %v10588 = vadd.f32 %v10531, %v10546
  %v10589 = vadd.f32 %v10532, %v10559
  %v10590 = vadd.f32 %v10533, %v10572
  %v10591 = vadd.f32 %v10534, %v10585
  %v10592 = vxor.u32 %v10588, 2147483648
  %v10593 = vmul.f32 %v10592, 1.442695
  %v10594 = vpow.pop %v10593
  %v10595 = vadd.f32 %v10594, 1.0
  %v10596 = vrcp.pop %v10595
  %v10597 = vmul.f32 %v10595, %v10596
  %v10598 = vsub.f32 1.0, %v10597
  %v10599 = vmul.f32 %v10596, %v10598
  %v10600 = vadd.f32 %v10596, %v10599
  %vm10601 = vweird.f32 %v10595
  %vm10602 = vweird.f32 %v10596
  %vm10603 = vmor %vm10601, %vm10602
  %v10604 = vsel %vm10603, %v10596, %v10600
  %v10605 = vand.u32 2147483647, %v10595
  %vm10606 = vcmp.eq.f32.partialorder %v10605, 8.507059e+37
  %v10607 = vand.u32 %v10595, 2147483648
  %v10608 = vor.u32 1.1754944e-38, %v10607
  %v10609 = vsel %vm10606, %v10608, %v10604
  %v10610 = vmul.f32 1.0, %v10609
  %v10611 = vxor.u32 %v10589, 2147483648
  %v10612 = vmul.f32 %v10611, 1.442695
  %v10613 = vpow.pop %v10612
  %v10614 = vadd.f32 %v10613, 1.0
  %v10615 = vrcp.pop %v10614
  %v10616 = vmul.f32 %v10614, %v10615
  %v10617 = vsub.f32 1.0, %v10616
  %v10618 = vmul.f32 %v10615, %v10617
  %v10619 = vadd.f32 %v10615, %v10618
  %vm10620 = vweird.f32 %v10614
  %vm10621 = vweird.f32 %v10615
  %vm10622 = vmor %vm10620, %vm10621
  %v10623 = vsel %vm10622, %v10615, %v10619
  %v10624 = vand.u32 2147483647, %v10614
  %vm10625 = vcmp.eq.f32.partialorder %v10624, 8.507059e+37
  %v10626 = vand.u32 %v10614, 2147483648
  %v10627 = vor.u32 1.1754944e-38, %v10626
  %v10628 = vsel %vm10625, %v10627, %v10623
  %v10629 = vmul.f32 1.0, %v10628
  %v10630 = vtanh.pop %v10590
  %v10631 = vxor.u32 %v10591, 2147483648
  %v10632 = vmul.f32 %v10631, 1.442695
  %v10633 = vpow.pop %v10632
  %v10634 = vadd.f32 %v10633, 1.0
  %v10635 = vrcp.pop %v10634
  %v10636 = vmul.f32 %v10634, %v10635
  %v10637 = vsub.f32 1.0, %v10636
  %v10638 = vmul.f32 %v10635, %v10637
  %v10639 = vadd.f32 %v10635, %v10638
  %vm10640 = vweird.f32 %v10634
  %vm10641 = vweird.f32 %v10635
  %vm10642 = vmor %vm10640, %vm10641
  %v10643 = vsel %vm10642, %v10635, %v10639
  %v10644 = vand.u32 2147483647, %v10634
  %vm10645 = vcmp.eq.f32.partialorder %v10644, 8.507059e+37
  %v10646 = vand.u32 %v10634, 2147483648
  %v10647 = vor.u32 1.1754944e-38, %v10646
  %v10648 = vsel %vm10645, %v10647, %v10643
  %v10649 = vmul.f32 1.0, %v10648
  %v10650 = vmul.f32 %v10629, %v10528
  %v10651 = vmul.f32 %v10610, %v10630
  %v10652 = vadd.f32 %v10650, %v10651
  %v10653 = vtanh.pop %v10652
  %v10654 = vmul.f32 %v10649, %v10653
  %v10655 = vld [vmem:[#allocation4 + $0x60] sm:$0xff]
  %v10656 = vld [vmem:[#allocation4 + $0x68] sm:$0xff]
  %v10657 = vld [vmem:[#allocation4 + $0x70] sm:$0xff]
  %v10658 = vld [vmem:[#allocation4 + $0x78] sm:$0xff]
  %v10659 = vpack.c.bf16 %v10654, %v10654
  %10660 = vmatpush.bf16.msra.mxu0 %v10252
  %10661 = vmatpush.bf16.msra.mxu0 %v10248
  %10662 = vmatpush.bf16.msra.mxu0 %v10244
  %10663 = vmatpush.bf16.msra.mxu0 %v10240
  %10664 = vmatpush.bf16.msra.mxu0 %v10236
  %10665 = vmatpush.bf16.msra.mxu0 %v10232
  %10666 = vmatpush.bf16.msra.mxu0 %v10228
  %10667 = vmatpush.bf16.msra.mxu0 %v10224
  %10668 = vmatmul.bf16.gmra.mxu0 %v10659
  %v10669 = vpop.f32.mrf.mxu0
  %v10670 = vadd.f32 0.0, %v10669
  %v10671 = vpop.f32.mrf.mxu0
  %10672 = vdwg.mxu0
  %10673 = vmatpush.bf16.msra.mxu0 %v10253
  %10674 = vmatpush.bf16.msra.mxu0 %v10249
  %10675 = vmatpush.bf16.msra.mxu0 %v10245
  %10676 = vmatpush.bf16.msra.mxu0 %v10241
  %10677 = vmatpush.bf16.msra.mxu0 %v10237
  %10678 = vmatpush.bf16.msra.mxu0 %v10233
  %10679 = vmatpush.bf16.msra.mxu0 %v10229
  %10680 = vmatpush.bf16.msra.mxu0 %v10225
  %10681 = vmatmul.bf16.gmra.mxu0 %v10659
  %v10682 = vpop.f32.mrf.mxu0
  %v10683 = vadd.f32 0.0, %v10682
  %v10684 = vpop.f32.mrf.mxu0
  %10685 = vdwg.mxu0
  %10686 = vmatpush.bf16.msra.mxu0 %v10254
  %10687 = vmatpush.bf16.msra.mxu0 %v10250
  %10688 = vmatpush.bf16.msra.mxu0 %v10246
  %10689 = vmatpush.bf16.msra.mxu0 %v10242
  %10690 = vmatpush.bf16.msra.mxu0 %v10238
  %10691 = vmatpush.bf16.msra.mxu0 %v10234
  %10692 = vmatpush.bf16.msra.mxu0 %v10230
  %10693 = vmatpush.bf16.msra.mxu0 %v10226
  %10694 = vmatmul.bf16.gmra.mxu0 %v10659
  %v10695 = vpop.f32.mrf.mxu0
  %v10696 = vadd.f32 0.0, %v10695
  %v10697 = vpop.f32.mrf.mxu0
  %10698 = vdwg.mxu0
  %10699 = vmatpush.bf16.msra.mxu0 %v10255
  %10700 = vmatpush.bf16.msra.mxu0 %v10251
  %10701 = vmatpush.bf16.msra.mxu0 %v10247
  %10702 = vmatpush.bf16.msra.mxu0 %v10243
  %10703 = vmatpush.bf16.msra.mxu0 %v10239
  %10704 = vmatpush.bf16.msra.mxu0 %v10235
  %10705 = vmatpush.bf16.msra.mxu0 %v10231
  %10706 = vmatpush.bf16.msra.mxu0 %v10227
  %10707 = vmatmul.bf16.gmra.mxu0 %v10659
  %v10708 = vpop.f32.mrf.mxu0
  %v10709 = vadd.f32 0.0, %v10708
  %v10710 = vpop.f32.mrf.mxu0
  %10711 = vdwg.mxu0
  %v10712 = vadd.f32 %v10655, %v10670
  %v10713 = vadd.f32 %v10656, %v10683
  %v10714 = vadd.f32 %v10657, %v10696
  %v10715 = vadd.f32 %v10658, %v10709
  %v10716 = vxor.u32 %v10712, 2147483648
  %v10717 = vmul.f32 %v10716, 1.442695
  %v10718 = vpow.pop %v10717
  %v10719 = vadd.f32 %v10718, 1.0
  %v10720 = vrcp.pop %v10719
  %v10721 = vmul.f32 %v10719, %v10720
  %v10722 = vsub.f32 1.0, %v10721
  %v10723 = vmul.f32 %v10720, %v10722
  %v10724 = vadd.f32 %v10720, %v10723
  %vm10725 = vweird.f32 %v10719
  %vm10726 = vweird.f32 %v10720
  %vm10727 = vmor %vm10725, %vm10726
  %v10728 = vsel %vm10727, %v10720, %v10724
  %v10729 = vand.u32 2147483647, %v10719
  %vm10730 = vcmp.eq.f32.partialorder %v10729, 8.507059e+37
  %v10731 = vand.u32 %v10719, 2147483648
  %v10732 = vor.u32 1.1754944e-38, %v10731
  %v10733 = vsel %vm10730, %v10732, %v10728
  %v10734 = vmul.f32 1.0, %v10733
  %v10735 = vxor.u32 %v10713, 2147483648
  %v10736 = vmul.f32 %v10735, 1.442695
  %v10737 = vpow.pop %v10736
  %v10738 = vadd.f32 %v10737, 1.0
  %v10739 = vrcp.pop %v10738
  %v10740 = vmul.f32 %v10738, %v10739
  %v10741 = vsub.f32 1.0, %v10740
  %v10742 = vmul.f32 %v10739, %v10741
  %v10743 = vadd.f32 %v10739, %v10742
  %vm10744 = vweird.f32 %v10738
  %vm10745 = vweird.f32 %v10739
  %vm10746 = vmor %vm10744, %vm10745
  %v10747 = vsel %vm10746, %v10739, %v10743
  %v10748 = vand.u32 2147483647, %v10738
  %vm10749 = vcmp.eq.f32.partialorder %v10748, 8.507059e+37
  %v10750 = vand.u32 %v10738, 2147483648
  %v10751 = vor.u32 1.1754944e-38, %v10750
  %v10752 = vsel %vm10749, %v10751, %v10747
  %v10753 = vmul.f32 1.0, %v10752
  %v10754 = vtanh.pop %v10714
  %v10755 = vxor.u32 %v10715, 2147483648
  %v10756 = vmul.f32 %v10755, 1.442695
  %v10757 = vpow.pop %v10756
  %v10758 = vadd.f32 %v10757, 1.0
  %v10759 = vrcp.pop %v10758
  %v10760 = vmul.f32 %v10758, %v10759
  %v10761 = vsub.f32 1.0, %v10760
  %v10762 = vmul.f32 %v10759, %v10761
  %v10763 = vadd.f32 %v10759, %v10762
  %vm10764 = vweird.f32 %v10758
  %vm10765 = vweird.f32 %v10759
  %vm10766 = vmor %vm10764, %vm10765
  %v10767 = vsel %vm10766, %v10759, %v10763
  %v10768 = vand.u32 2147483647, %v10758
  %vm10769 = vcmp.eq.f32.partialorder %v10768, 8.507059e+37
  %v10770 = vand.u32 %v10758, 2147483648
  %v10771 = vor.u32 1.1754944e-38, %v10770
  %v10772 = vsel %vm10769, %v10771, %v10767
  %v10773 = vmul.f32 1.0, %v10772
  %v10774 = vmul.f32 %v10753, %v10652
  %v10775 = vmul.f32 %v10734, %v10754
  %v10776 = vadd.f32 %v10774, %v10775
  %v10777 = vtanh.pop %v10776
  %v10778 = vmul.f32 %v10773, %v10777
  %v10779 = vld [vmem:[#allocation4 + $0x80] sm:$0xff]
  %v10780 = vld [vmem:[#allocation4 + $0x88] sm:$0xff]
  %v10781 = vld [vmem:[#allocation4 + $0x90] sm:$0xff]
  %v10782 = vld [vmem:[#allocation4 + $0x98] sm:$0xff]
  %v10783 = vpack.c.bf16 %v10778, %v10778
  %10784 = vmatpush.bf16.msra.mxu0 %v10252
  %10785 = vmatpush.bf16.msra.mxu0 %v10248
  %10786 = vmatpush.bf16.msra.mxu0 %v10244
  %10787 = vmatpush.bf16.msra.mxu0 %v10240
  %10788 = vmatpush.bf16.msra.mxu0 %v10236
  %10789 = vmatpush.bf16.msra.mxu0 %v10232
  %10790 = vmatpush.bf16.msra.mxu0 %v10228
  %10791 = vmatpush.bf16.msra.mxu0 %v10224
  %10792 = vmatmul.bf16.gmra.mxu0 %v10783
  %v10793 = vpop.f32.mrf.mxu0
  %v10794 = vadd.f32 0.0, %v10793
  %v10795 = vpop.f32.mrf.mxu0
  %10796 = vdwg.mxu0
  %10797 = vmatpush.bf16.msra.mxu0 %v10253
  %10798 = vmatpush.bf16.msra.mxu0 %v10249
  %10799 = vmatpush.bf16.msra.mxu0 %v10245
  %10800 = vmatpush.bf16.msra.mxu0 %v10241
  %10801 = vmatpush.bf16.msra.mxu0 %v10237
  %10802 = vmatpush.bf16.msra.mxu0 %v10233
  %10803 = vmatpush.bf16.msra.mxu0 %v10229
  %10804 = vmatpush.bf16.msra.mxu0 %v10225
  %10805 = vmatmul.bf16.gmra.mxu0 %v10783
  %v10806 = vpop.f32.mrf.mxu0
  %v10807 = vadd.f32 0.0, %v10806
  %v10808 = vpop.f32.mrf.mxu0
  %10809 = vdwg.mxu0
  %10810 = vmatpush.bf16.msra.mxu0 %v10254
  %10811 = vmatpush.bf16.msra.mxu0 %v10250
  %10812 = vmatpush.bf16.msra.mxu0 %v10246
  %10813 = vmatpush.bf16.msra.mxu0 %v10242
  %10814 = vmatpush.bf16.msra.mxu0 %v10238
  %10815 = vmatpush.bf16.msra.mxu0 %v10234
  %10816 = vmatpush.bf16.msra.mxu0 %v10230
  %10817 = vmatpush.bf16.msra.mxu0 %v10226
  %10818 = vmatmul.bf16.gmra.mxu0 %v10783
  %v10819 = vpop.f32.mrf.mxu0
  %v10820 = vadd.f32 0.0, %v10819
  %v10821 = vpop.f32.mrf.mxu0
  %10822 = vdwg.mxu0
  %10823 = vmatpush.bf16.msra.mxu0 %v10255
  %10824 = vmatpush.bf16.msra.mxu0 %v10251
  %10825 = vmatpush.bf16.msra.mxu0 %v10247
  %10826 = vmatpush.bf16.msra.mxu0 %v10243
  %10827 = vmatpush.bf16.msra.mxu0 %v10239
  %10828 = vmatpush.bf16.msra.mxu0 %v10235
  %10829 = vmatpush.bf16.msra.mxu0 %v10231
  %10830 = vmatpush.bf16.msra.mxu0 %v10227
  %10831 = vmatmul.bf16.gmra.mxu0 %v10783
  %v10832 = vpop.f32.mrf.mxu0
  %v10833 = vadd.f32 0.0, %v10832
  %v10834 = vpop.f32.mrf.mxu0
  %10835 = vdwg.mxu0
  %v10836 = vadd.f32 %v10779, %v10794
  %v10837 = vadd.f32 %v10780, %v10807
  %v10838 = vadd.f32 %v10781, %v10820
  %v10839 = vadd.f32 %v10782, %v10833
  %v10840 = vxor.u32 %v10836, 2147483648
  %v10841 = vmul.f32 %v10840, 1.442695
  %v10842 = vpow.pop %v10841
  %v10843 = vadd.f32 %v10842, 1.0
  %v10844 = vrcp.pop %v10843
  %v10845 = vmul.f32 %v10843, %v10844
  %v10846 = vsub.f32 1.0, %v10845
  %v10847 = vmul.f32 %v10844, %v10846
  %v10848 = vadd.f32 %v10844, %v10847
  %vm10849 = vweird.f32 %v10843
  %vm10850 = vweird.f32 %v10844
  %vm10851 = vmor %vm10849, %vm10850
  %v10852 = vsel %vm10851, %v10844, %v10848
  %v10853 = vand.u32 2147483647, %v10843
  %vm10854 = vcmp.eq.f32.partialorder %v10853, 8.507059e+37
  %v10855 = vand.u32 %v10843, 2147483648
  %v10856 = vor.u32 1.1754944e-38, %v10855
  %v10857 = vsel %vm10854, %v10856, %v10852
  %v10858 = vmul.f32 1.0, %v10857
  %v10859 = vxor.u32 %v10837, 2147483648
  %v10860 = vmul.f32 %v10859, 1.442695
  %v10861 = vpow.pop %v10860
  %v10862 = vadd.f32 %v10861, 1.0
  %v10863 = vrcp.pop %v10862
  %v10864 = vmul.f32 %v10862, %v10863
  %v10865 = vsub.f32 1.0, %v10864
  %v10866 = vmul.f32 %v10863, %v10865
  %v10867 = vadd.f32 %v10863, %v10866
  %vm10868 = vweird.f32 %v10862
  %vm10869 = vweird.f32 %v10863
  %vm10870 = vmor %vm10868, %vm10869
  %v10871 = vsel %vm10870, %v10863, %v10867
  %v10872 = vand.u32 2147483647, %v10862
  %vm10873 = vcmp.eq.f32.partialorder %v10872, 8.507059e+37
  %v10874 = vand.u32 %v10862, 2147483648
  %v10875 = vor.u32 1.1754944e-38, %v10874
  %v10876 = vsel %vm10873, %v10875, %v10871
  %v10877 = vmul.f32 1.0, %v10876
  %v10878 = vtanh.pop %v10838
  %v10879 = vxor.u32 %v10839, 2147483648
  %v10880 = vmul.f32 %v10879, 1.442695
  %v10881 = vpow.pop %v10880
  %v10882 = vadd.f32 %v10881, 1.0
  %v10883 = vrcp.pop %v10882
  %v10884 = vmul.f32 %v10882, %v10883
  %v10885 = vsub.f32 1.0, %v10884
  %v10886 = vmul.f32 %v10883, %v10885
  %v10887 = vadd.f32 %v10883, %v10886
  %vm10888 = vweird.f32 %v10882
  %vm10889 = vweird.f32 %v10883
  %vm10890 = vmor %vm10888, %vm10889
  %v10891 = vsel %vm10890, %v10883, %v10887
  %v10892 = vand.u32 2147483647, %v10882
  %vm10893 = vcmp.eq.f32.partialorder %v10892, 8.507059e+37
  %v10894 = vand.u32 %v10882, 2147483648
  %v10895 = vor.u32 1.1754944e-38, %v10894
  %v10896 = vsel %vm10893, %v10895, %v10891
  %v10897 = vmul.f32 1.0, %v10896
  %v10898 = vmul.f32 %v10877, %v10776
  %v10899 = vmul.f32 %v10858, %v10878
  %v10900 = vadd.f32 %v10898, %v10899
  %v10901 = vtanh.pop %v10900
  %v10902 = vmul.f32 %v10897, %v10901
  %v10903 = vld [vmem:[#allocation4 + $0xa0] sm:$0xff]
  %v10904 = vld [vmem:[#allocation4 + $0xa8] sm:$0xff]
  %v10905 = vld [vmem:[#allocation4 + $0xb0] sm:$0xff]
  %v10906 = vld [vmem:[#allocation4 + $0xb8] sm:$0xff]
  %v10907 = vpack.c.bf16 %v10902, %v10902
  %10908 = vmatpush.bf16.msra.mxu0 %v10252
  %10909 = vmatpush.bf16.msra.mxu0 %v10248
  %10910 = vmatpush.bf16.msra.mxu0 %v10244
  %10911 = vmatpush.bf16.msra.mxu0 %v10240
  %10912 = vmatpush.bf16.msra.mxu0 %v10236
  %10913 = vmatpush.bf16.msra.mxu0 %v10232
  %10914 = vmatpush.bf16.msra.mxu0 %v10228
  %10915 = vmatpush.bf16.msra.mxu0 %v10224
  %10916 = vmatmul.bf16.gmra.mxu0 %v10907
  %v10917 = vpop.f32.mrf.mxu0
  %v10918 = vadd.f32 0.0, %v10917
  %v10919 = vpop.f32.mrf.mxu0
  %10920 = vdwg.mxu0
  %10921 = vmatpush.bf16.msra.mxu0 %v10253
  %10922 = vmatpush.bf16.msra.mxu0 %v10249
  %10923 = vmatpush.bf16.msra.mxu0 %v10245
  %10924 = vmatpush.bf16.msra.mxu0 %v10241
  %10925 = vmatpush.bf16.msra.mxu0 %v10237
  %10926 = vmatpush.bf16.msra.mxu0 %v10233
  %10927 = vmatpush.bf16.msra.mxu0 %v10229
  %10928 = vmatpush.bf16.msra.mxu0 %v10225
  %10929 = vmatmul.bf16.gmra.mxu0 %v10907
  %v10930 = vpop.f32.mrf.mxu0
  %v10931 = vadd.f32 0.0, %v10930
  %v10932 = vpop.f32.mrf.mxu0
  %10933 = vdwg.mxu0
  %10934 = vmatpush.bf16.msra.mxu0 %v10254
  %10935 = vmatpush.bf16.msra.mxu0 %v10250
  %10936 = vmatpush.bf16.msra.mxu0 %v10246
  %10937 = vmatpush.bf16.msra.mxu0 %v10242
  %10938 = vmatpush.bf16.msra.mxu0 %v10238
  %10939 = vmatpush.bf16.msra.mxu0 %v10234
  %10940 = vmatpush.bf16.msra.mxu0 %v10230
  %10941 = vmatpush.bf16.msra.mxu0 %v10226
  %10942 = vmatmul.bf16.gmra.mxu0 %v10907
  %v10943 = vpop.f32.mrf.mxu0
  %v10944 = vadd.f32 0.0, %v10943
  %v10945 = vpop.f32.mrf.mxu0
  %10946 = vdwg.mxu0
  %10947 = vmatpush.bf16.msra.mxu0 %v10255
  %10948 = vmatpush.bf16.msra.mxu0 %v10251
  %10949 = vmatpush.bf16.msra.mxu0 %v10247
  %10950 = vmatpush.bf16.msra.mxu0 %v10243
  %10951 = vmatpush.bf16.msra.mxu0 %v10239
  %10952 = vmatpush.bf16.msra.mxu0 %v10235
  %10953 = vmatpush.bf16.msra.mxu0 %v10231
  %10954 = vmatpush.bf16.msra.mxu0 %v10227
  %10955 = vmatmul.bf16.gmra.mxu0 %v10907
  %v10956 = vpop.f32.mrf.mxu0
  %v10957 = vadd.f32 0.0, %v10956
  %v10958 = vpop.f32.mrf.mxu0
  %10959 = vdwg.mxu0
  %v10960 = vadd.f32 %v10903, %v10918
  %v10961 = vadd.f32 %v10904, %v10931
  %v10962 = vadd.f32 %v10905, %v10944
  %v10963 = vadd.f32 %v10906, %v10957
  %v10964 = vxor.u32 %v10960, 2147483648
  %v10965 = vmul.f32 %v10964, 1.442695
  %v10966 = vpow.pop %v10965
  %v10967 = vadd.f32 %v10966, 1.0
  %v10968 = vrcp.pop %v10967
  %v10969 = vmul.f32 %v10967, %v10968
  %v10970 = vsub.f32 1.0, %v10969
  %v10971 = vmul.f32 %v10968, %v10970
  %v10972 = vadd.f32 %v10968, %v10971
  %vm10973 = vweird.f32 %v10967
  %vm10974 = vweird.f32 %v10968
  %vm10975 = vmor %vm10973, %vm10974
  %v10976 = vsel %vm10975, %v10968, %v10972
  %v10977 = vand.u32 2147483647, %v10967
  %vm10978 = vcmp.eq.f32.partialorder %v10977, 8.507059e+37
  %v10979 = vand.u32 %v10967, 2147483648
  %v10980 = vor.u32 1.1754944e-38, %v10979
  %v10981 = vsel %vm10978, %v10980, %v10976
  %v10982 = vmul.f32 1.0, %v10981
  %v10983 = vxor.u32 %v10961, 2147483648
  %v10984 = vmul.f32 %v10983, 1.442695
  %v10985 = vpow.pop %v10984
  %v10986 = vadd.f32 %v10985, 1.0
  %v10987 = vrcp.pop %v10986
  %v10988 = vmul.f32 %v10986, %v10987
  %v10989 = vsub.f32 1.0, %v10988
  %v10990 = vmul.f32 %v10987, %v10989
  %v10991 = vadd.f32 %v10987, %v10990
  %vm10992 = vweird.f32 %v10986
  %vm10993 = vweird.f32 %v10987
  %vm10994 = vmor %vm10992, %vm10993
  %v10995 = vsel %vm10994, %v10987, %v10991
  %v10996 = vand.u32 2147483647, %v10986
  %vm10997 = vcmp.eq.f32.partialorder %v10996, 8.507059e+37
  %v10998 = vand.u32 %v10986, 2147483648
  %v10999 = vor.u32 1.1754944e-38, %v10998
  %v11000 = vsel %vm10997, %v10999, %v10995
  %v11001 = vmul.f32 1.0, %v11000
  %v11002 = vtanh.pop %v10962
  %v11003 = vxor.u32 %v10963, 2147483648
  %v11004 = vmul.f32 %v11003, 1.442695
  %v11005 = vpow.pop %v11004
  %v11006 = vadd.f32 %v11005, 1.0
  %v11007 = vrcp.pop %v11006
  %v11008 = vmul.f32 %v11006, %v11007
  %v11009 = vsub.f32 1.0, %v11008
  %v11010 = vmul.f32 %v11007, %v11009
  %v11011 = vadd.f32 %v11007, %v11010
  %vm11012 = vweird.f32 %v11006
  %vm11013 = vweird.f32 %v11007
  %vm11014 = vmor %vm11012, %vm11013
  %v11015 = vsel %vm11014, %v11007, %v11011
  %v11016 = vand.u32 2147483647, %v11006
  %vm11017 = vcmp.eq.f32.partialorder %v11016, 8.507059e+37
  %v11018 = vand.u32 %v11006, 2147483648
  %v11019 = vor.u32 1.1754944e-38, %v11018
  %v11020 = vsel %vm11017, %v11019, %v11015
  %v11021 = vmul.f32 1.0, %v11020
  %v11022 = vmul.f32 %v11001, %v10900
  %v11023 = vmul.f32 %v10982, %v11002
  %v11024 = vadd.f32 %v11022, %v11023
  %v11025 = vtanh.pop %v11024
  %v11026 = vmul.f32 %v11021, %v11025
  %v11027 = vld [vmem:[#allocation4 + $0xc0] sm:$0xff]
  %v11028 = vld [vmem:[#allocation4 + $0xc8] sm:$0xff]
  %v11029 = vld [vmem:[#allocation4 + $0xd0] sm:$0xff]
  %v11030 = vld [vmem:[#allocation4 + $0xd8] sm:$0xff]
  %v11031 = vpack.c.bf16 %v11026, %v11026
  %11032 = vmatpush.bf16.msra.mxu0 %v10252
  %11033 = vmatpush.bf16.msra.mxu0 %v10248
  %11034 = vmatpush.bf16.msra.mxu0 %v10244
  %11035 = vmatpush.bf16.msra.mxu0 %v10240
  %11036 = vmatpush.bf16.msra.mxu0 %v10236
  %11037 = vmatpush.bf16.msra.mxu0 %v10232
  %11038 = vmatpush.bf16.msra.mxu0 %v10228
  %11039 = vmatpush.bf16.msra.mxu0 %v10224
  %11040 = vmatmul.bf16.gmra.mxu0 %v11031
  %v11041 = vpop.f32.mrf.mxu0
  %v11042 = vadd.f32 0.0, %v11041
  %v11043 = vpop.f32.mrf.mxu0
  %11044 = vdwg.mxu0
  %11045 = vmatpush.bf16.msra.mxu0 %v10253
  %11046 = vmatpush.bf16.msra.mxu0 %v10249
  %11047 = vmatpush.bf16.msra.mxu0 %v10245
  %11048 = vmatpush.bf16.msra.mxu0 %v10241
  %11049 = vmatpush.bf16.msra.mxu0 %v10237
  %11050 = vmatpush.bf16.msra.mxu0 %v10233
  %11051 = vmatpush.bf16.msra.mxu0 %v10229
  %11052 = vmatpush.bf16.msra.mxu0 %v10225
  %11053 = vmatmul.bf16.gmra.mxu0 %v11031
  %v11054 = vpop.f32.mrf.mxu0
  %v11055 = vadd.f32 0.0, %v11054
  %v11056 = vpop.f32.mrf.mxu0
  %11057 = vdwg.mxu0
  %11058 = vmatpush.bf16.msra.mxu0 %v10254
  %11059 = vmatpush.bf16.msra.mxu0 %v10250
  %11060 = vmatpush.bf16.msra.mxu0 %v10246
  %11061 = vmatpush.bf16.msra.mxu0 %v10242
  %11062 = vmatpush.bf16.msra.mxu0 %v10238
  %11063 = vmatpush.bf16.msra.mxu0 %v10234
  %11064 = vmatpush.bf16.msra.mxu0 %v10230
  %11065 = vmatpush.bf16.msra.mxu0 %v10226
  %11066 = vmatmul.bf16.gmra.mxu0 %v11031
  %v11067 = vpop.f32.mrf.mxu0
  %v11068 = vadd.f32 0.0, %v11067
  %v11069 = vpop.f32.mrf.mxu0
  %11070 = vdwg.mxu0
  %11071 = vmatpush.bf16.msra.mxu0 %v10255
  %11072 = vmatpush.bf16.msra.mxu0 %v10251
  %11073 = vmatpush.bf16.msra.mxu0 %v10247
  %11074 = vmatpush.bf16.msra.mxu0 %v10243
  %11075 = vmatpush.bf16.msra.mxu0 %v10239
  %11076 = vmatpush.bf16.msra.mxu0 %v10235
  %11077 = vmatpush.bf16.msra.mxu0 %v10231
  %11078 = vmatpush.bf16.msra.mxu0 %v10227
  %11079 = vmatmul.bf16.gmra.mxu0 %v11031
  %v11080 = vpop.f32.mrf.mxu0
  %v11081 = vadd.f32 0.0, %v11080
  %v11082 = vpop.f32.mrf.mxu0
  %11083 = vdwg.mxu0
  %v11084 = vadd.f32 %v11027, %v11042
  %v11085 = vadd.f32 %v11028, %v11055
  %v11086 = vadd.f32 %v11029, %v11068
  %v11087 = vadd.f32 %v11030, %v11081
  %v11088 = vxor.u32 %v11084, 2147483648
  %v11089 = vmul.f32 %v11088, 1.442695
  %v11090 = vpow.pop %v11089
  %v11091 = vadd.f32 %v11090, 1.0
  %v11092 = vrcp.pop %v11091
  %v11093 = vmul.f32 %v11091, %v11092
  %v11094 = vsub.f32 1.0, %v11093
  %v11095 = vmul.f32 %v11092, %v11094
  %v11096 = vadd.f32 %v11092, %v11095
  %vm11097 = vweird.f32 %v11091
  %vm11098 = vweird.f32 %v11092
  %vm11099 = vmor %vm11097, %vm11098
  %v11100 = vsel %vm11099, %v11092, %v11096
  %v11101 = vand.u32 2147483647, %v11091
  %vm11102 = vcmp.eq.f32.partialorder %v11101, 8.507059e+37
  %v11103 = vand.u32 %v11091, 2147483648
  %v11104 = vor.u32 1.1754944e-38, %v11103
  %v11105 = vsel %vm11102, %v11104, %v11100
  %v11106 = vmul.f32 1.0, %v11105
  %v11107 = vxor.u32 %v11085, 2147483648
  %v11108 = vmul.f32 %v11107, 1.442695
  %v11109 = vpow.pop %v11108
  %v11110 = vadd.f32 %v11109, 1.0
  %v11111 = vrcp.pop %v11110
  %v11112 = vmul.f32 %v11110, %v11111
  %v11113 = vsub.f32 1.0, %v11112
  %v11114 = vmul.f32 %v11111, %v11113
  %v11115 = vadd.f32 %v11111, %v11114
  %vm11116 = vweird.f32 %v11110
  %vm11117 = vweird.f32 %v11111
  %vm11118 = vmor %vm11116, %vm11117
  %v11119 = vsel %vm11118, %v11111, %v11115
  %v11120 = vand.u32 2147483647, %v11110
  %vm11121 = vcmp.eq.f32.partialorder %v11120, 8.507059e+37
  %v11122 = vand.u32 %v11110, 2147483648
  %v11123 = vor.u32 1.1754944e-38, %v11122
  %v11124 = vsel %vm11121, %v11123, %v11119
  %v11125 = vmul.f32 1.0, %v11124
  %v11126 = vtanh.pop %v11086
  %v11127 = vxor.u32 %v11087, 2147483648
  %v11128 = vmul.f32 %v11127, 1.442695
  %v11129 = vpow.pop %v11128
  %v11130 = vadd.f32 %v11129, 1.0
  %v11131 = vrcp.pop %v11130
  %v11132 = vmul.f32 %v11130, %v11131
  %v11133 = vsub.f32 1.0, %v11132
  %v11134 = vmul.f32 %v11131, %v11133
  %v11135 = vadd.f32 %v11131, %v11134
  %vm11136 = vweird.f32 %v11130
  %vm11137 = vweird.f32 %v11131
  %vm11138 = vmor %vm11136, %vm11137
  %v11139 = vsel %vm11138, %v11131, %v11135
  %v11140 = vand.u32 2147483647, %v11130
  %vm11141 = vcmp.eq.f32.partialorder %v11140, 8.507059e+37
  %v11142 = vand.u32 %v11130, 2147483648
  %v11143 = vor.u32 1.1754944e-38, %v11142
  %v11144 = vsel %vm11141, %v11143, %v11139
  %v11145 = vmul.f32 1.0, %v11144
  %v11146 = vmul.f32 %v11125, %v11024
  %v11147 = vmul.f32 %v11106, %v11126
  %v11148 = vadd.f32 %v11146, %v11147
  %v11149 = vtanh.pop %v11148
  %v11150 = vmul.f32 %v11145, %v11149
  %v11151 = vld [vmem:[#allocation4 + $0xe0] sm:$0xff]
  %v11152 = vld [vmem:[#allocation4 + $0xe8] sm:$0xff]
  %v11153 = vld [vmem:[#allocation4 + $0xf0] sm:$0xff]
  %v11154 = vld [vmem:[#allocation4 + $0xf8] sm:$0xff]
  %v11155 = vpack.c.bf16 %v11150, %v11150
  %11156 = vmatpush.bf16.msra.mxu0 %v10252
  %11157 = vmatpush.bf16.msra.mxu0 %v10248
  %11158 = vmatpush.bf16.msra.mxu0 %v10244
  %11159 = vmatpush.bf16.msra.mxu0 %v10240
  %11160 = vmatpush.bf16.msra.mxu0 %v10236
  %11161 = vmatpush.bf16.msra.mxu0 %v10232
  %11162 = vmatpush.bf16.msra.mxu0 %v10228
  %11163 = vmatpush.bf16.msra.mxu0 %v10224
  %11164 = vmatmul.bf16.gmra.mxu0 %v11155
  %v11165 = vpop.f32.mrf.mxu0
  %v11166 = vadd.f32 0.0, %v11165
  %v11167 = vpop.f32.mrf.mxu0
  %11168 = vdwg.mxu0
  %11169 = vmatpush.bf16.msra.mxu0 %v10253
  %11170 = vmatpush.bf16.msra.mxu0 %v10249
  %11171 = vmatpush.bf16.msra.mxu0 %v10245
  %11172 = vmatpush.bf16.msra.mxu0 %v10241
  %11173 = vmatpush.bf16.msra.mxu0 %v10237
  %11174 = vmatpush.bf16.msra.mxu0 %v10233
  %11175 = vmatpush.bf16.msra.mxu0 %v10229
  %11176 = vmatpush.bf16.msra.mxu0 %v10225
  %11177 = vmatmul.bf16.gmra.mxu0 %v11155
  %v11178 = vpop.f32.mrf.mxu0
  %v11179 = vadd.f32 0.0, %v11178
  %v11180 = vpop.f32.mrf.mxu0
  %11181 = vdwg.mxu0
  %11182 = vmatpush.bf16.msra.mxu0 %v10254
  %11183 = vmatpush.bf16.msra.mxu0 %v10250
  %11184 = vmatpush.bf16.msra.mxu0 %v10246
  %11185 = vmatpush.bf16.msra.mxu0 %v10242
  %11186 = vmatpush.bf16.msra.mxu0 %v10238
  %11187 = vmatpush.bf16.msra.mxu0 %v10234
  %11188 = vmatpush.bf16.msra.mxu0 %v10230
  %11189 = vmatpush.bf16.msra.mxu0 %v10226
  %11190 = vmatmul.bf16.gmra.mxu0 %v11155
  %v11191 = vpop.f32.mrf.mxu0
  %v11192 = vadd.f32 0.0, %v11191
  %v11193 = vpop.f32.mrf.mxu0
  %11194 = vdwg.mxu0
  %11195 = vmatpush.bf16.msra.mxu0 %v10255
  %11196 = vmatpush.bf16.msra.mxu0 %v10251
  %11197 = vmatpush.bf16.msra.mxu0 %v10247
  %11198 = vmatpush.bf16.msra.mxu0 %v10243
  %11199 = vmatpush.bf16.msra.mxu0 %v10239
  %11200 = vmatpush.bf16.msra.mxu0 %v10235
  %11201 = vmatpush.bf16.msra.mxu0 %v10231
  %11202 = vmatpush.bf16.msra.mxu0 %v10227
  %11203 = vmatmul.bf16.gmra.mxu0 %v11155
  %v11204 = vpop.f32.mrf.mxu0
  %v11205 = vadd.f32 0.0, %v11204
  %v11206 = vpop.f32.mrf.mxu0
  %11207 = vdwg.mxu0
  %v11208 = vadd.f32 %v11151, %v11166
  %v11209 = vadd.f32 %v11152, %v11179
  %v11210 = vadd.f32 %v11153, %v11192
  %v11211 = vadd.f32 %v11154, %v11205
  %v11212 = vxor.u32 %v11208, 2147483648
  %v11213 = vmul.f32 %v11212, 1.442695
  %v11214 = vpow.pop %v11213
  %v11215 = vadd.f32 %v11214, 1.0
  %v11216 = vrcp.pop %v11215
  %v11217 = vmul.f32 %v11215, %v11216
  %v11218 = vsub.f32 1.0, %v11217
  %v11219 = vmul.f32 %v11216, %v11218
  %v11220 = vadd.f32 %v11216, %v11219
  %vm11221 = vweird.f32 %v11215
  %vm11222 = vweird.f32 %v11216
  %vm11223 = vmor %vm11221, %vm11222
  %v11224 = vsel %vm11223, %v11216, %v11220
  %v11225 = vand.u32 2147483647, %v11215
  %vm11226 = vcmp.eq.f32.partialorder %v11225, 8.507059e+37
  %v11227 = vand.u32 %v11215, 2147483648
  %v11228 = vor.u32 1.1754944e-38, %v11227
  %v11229 = vsel %vm11226, %v11228, %v11224
  %v11230 = vmul.f32 1.0, %v11229
  %v11231 = vxor.u32 %v11209, 2147483648
  %v11232 = vmul.f32 %v11231, 1.442695
  %v11233 = vpow.pop %v11232
  %v11234 = vadd.f32 %v11233, 1.0
  %v11235 = vrcp.pop %v11234
  %v11236 = vmul.f32 %v11234, %v11235
  %v11237 = vsub.f32 1.0, %v11236
  %v11238 = vmul.f32 %v11235, %v11237
  %v11239 = vadd.f32 %v11235, %v11238
  %vm11240 = vweird.f32 %v11234
  %vm11241 = vweird.f32 %v11235
  %vm11242 = vmor %vm11240, %vm11241
  %v11243 = vsel %vm11242, %v11235, %v11239
  %v11244 = vand.u32 2147483647, %v11234
  %vm11245 = vcmp.eq.f32.partialorder %v11244, 8.507059e+37
  %v11246 = vand.u32 %v11234, 2147483648
  %v11247 = vor.u32 1.1754944e-38, %v11246
  %v11248 = vsel %vm11245, %v11247, %v11243
  %v11249 = vmul.f32 1.0, %v11248
  %v11250 = vtanh.pop %v11210
  %v11251 = vxor.u32 %v11211, 2147483648
  %v11252 = vmul.f32 %v11251, 1.442695
  %v11253 = vpow.pop %v11252
  %v11254 = vadd.f32 %v11253, 1.0
  %v11255 = vrcp.pop %v11254
  %v11256 = vmul.f32 %v11254, %v11255
  %v11257 = vsub.f32 1.0, %v11256
  %v11258 = vmul.f32 %v11255, %v11257
  %v11259 = vadd.f32 %v11255, %v11258
  %vm11260 = vweird.f32 %v11254
  %vm11261 = vweird.f32 %v11255
  %vm11262 = vmor %vm11260, %vm11261
  %v11263 = vsel %vm11262, %v11255, %v11259
  %v11264 = vand.u32 2147483647, %v11254
  %vm11265 = vcmp.eq.f32.partialorder %v11264, 8.507059e+37
  %v11266 = vand.u32 %v11254, 2147483648
  %v11267 = vor.u32 1.1754944e-38, %v11266
  %v11268 = vsel %vm11265, %v11267, %v11263
  %v11269 = vmul.f32 1.0, %v11268
  %v11270 = vmul.f32 %v11249, %v11148
  %v11271 = vmul.f32 %v11230, %v11250
  %v11272 = vadd.f32 %v11270, %v11271
  %v11273 = vtanh.pop %v11272
  %v11274 = vmul.f32 %v11269, %v11273
  %v11275 = vpack.c.bf16 %v9344, %v9344
  %v11276 = vld [vmem:[%s9] sm:$0xff]
  %v11277 = vld [vmem:[%s9 + $0x8] sm:$0xff]
  %v11278 = vld [vmem:[%s9 + $0x10] sm:$0xff]
  %v11279 = vld [vmem:[%s9 + $0x18] sm:$0xff]
  %v11280 = vld [vmem:[%s9 + $0x20] sm:$0xff]
  %v11281 = vld [vmem:[%s9 + $0x28] sm:$0xff]
  %v11282 = vld [vmem:[%s9 + $0x30] sm:$0xff]
  %v11283 = vld [vmem:[%s9 + $0x38] sm:$0xff]
  %v11284 = vld [vmem:[%s9 + $0x40] sm:$0xff]
  %v11285 = vld [vmem:[%s9 + $0x48] sm:$0xff]
  %v11286 = vld [vmem:[%s9 + $0x50] sm:$0xff]
  %v11287 = vld [vmem:[%s9 + $0x58] sm:$0xff]
  %v11288 = vld [vmem:[%s9 + $0x60] sm:$0xff]
  %v11289 = vld [vmem:[%s9 + $0x68] sm:$0xff]
  %v11290 = vld [vmem:[%s9 + $0x70] sm:$0xff]
  %v11291 = vld [vmem:[%s9 + $0x78] sm:$0xff]
  %v11292 = vld [vmem:[%s9 + $0x80] sm:$0xff]
  %v11293 = vld [vmem:[%s9 + $0x88] sm:$0xff]
  %v11294 = vld [vmem:[%s9 + $0x90] sm:$0xff]
  %v11295 = vld [vmem:[%s9 + $0x98] sm:$0xff]
  %v11296 = vld [vmem:[%s9 + $0xa0] sm:$0xff]
  %v11297 = vld [vmem:[%s9 + $0xa8] sm:$0xff]
  %v11298 = vld [vmem:[%s9 + $0xb0] sm:$0xff]
  %v11299 = vld [vmem:[%s9 + $0xb8] sm:$0xff]
  %v11300 = vld [vmem:[%s9 + $0xc0] sm:$0xff]
  %v11301 = vld [vmem:[%s9 + $0xc8] sm:$0xff]
  %v11302 = vld [vmem:[%s9 + $0xd0] sm:$0xff]
  %v11303 = vld [vmem:[%s9 + $0xd8] sm:$0xff]
  %v11304 = vld [vmem:[%s9 + $0xe0] sm:$0xff]
  %v11305 = vld [vmem:[%s9 + $0xe8] sm:$0xff]
  %v11306 = vld [vmem:[%s9 + $0xf0] sm:$0xff]
  %v11307 = vld [vmem:[%s9 + $0xf8] sm:$0xff]
  %v11308 = vld [vmem:[%s9 + $0x100] sm:$0xff]
  %v11309 = vld [vmem:[%s9 + $0x108] sm:$0xff]
  %v11310 = vld [vmem:[%s9 + $0x110] sm:$0xff]
  %v11311 = vld [vmem:[%s9 + $0x118] sm:$0xff]
  %v11312 = vld [vmem:[%s9 + $0x120] sm:$0xff]
  %v11313 = vld [vmem:[%s9 + $0x128] sm:$0xff]
  %v11314 = vld [vmem:[%s9 + $0x130] sm:$0xff]
  %v11315 = vld [vmem:[%s9 + $0x138] sm:$0xff]
  %v11316 = vld [vmem:[%s9 + $0x140] sm:$0xff]
  %v11317 = vld [vmem:[%s9 + $0x148] sm:$0xff]
  %v11318 = vld [vmem:[%s9 + $0x150] sm:$0xff]
  %v11319 = vld [vmem:[%s9 + $0x158] sm:$0xff]
  %v11320 = vld [vmem:[%s9 + $0x160] sm:$0xff]
  %v11321 = vld [vmem:[%s9 + $0x168] sm:$0xff]
  %v11322 = vld [vmem:[%s9 + $0x170] sm:$0xff]
  %v11323 = vld [vmem:[%s9 + $0x178] sm:$0xff]
  %v11324 = vld [vmem:[%s9 + $0x180] sm:$0xff]
  %v11325 = vld [vmem:[%s9 + $0x188] sm:$0xff]
  %v11326 = vld [vmem:[%s9 + $0x190] sm:$0xff]
  %v11327 = vld [vmem:[%s9 + $0x198] sm:$0xff]
  %v11328 = vld [vmem:[%s9 + $0x1a0] sm:$0xff]
  %v11329 = vld [vmem:[%s9 + $0x1a8] sm:$0xff]
  %v11330 = vld [vmem:[%s9 + $0x1b0] sm:$0xff]
  %v11331 = vld [vmem:[%s9 + $0x1b8] sm:$0xff]
  %v11332 = vld [vmem:[%s9 + $0x1c0] sm:$0xff]
  %v11333 = vld [vmem:[%s9 + $0x1c8] sm:$0xff]
  %v11334 = vld [vmem:[%s9 + $0x1d0] sm:$0xff]
  %v11335 = vld [vmem:[%s9 + $0x1d8] sm:$0xff]
  %v11336 = vld [vmem:[%s9 + $0x1e0] sm:$0xff]
  %v11337 = vld [vmem:[%s9 + $0x1e8] sm:$0xff]
  %v11338 = vld [vmem:[%s9 + $0x1f0] sm:$0xff]
  %v11339 = vld [vmem:[%s9 + $0x1f8] sm:$0xff]
  %v11340 = vld [vmem:[%s10] sm:$0xf]
  %v11342 = vperm.slane %v11340, 0
  %v11343 = vperm.slane %v11340, 1
  %v11344 = vperm.slane %v11340, 2
  %v11345 = vperm.slane %v11340, 3
  %v11414 = vunpack.c.l.b16 %v11276
  %v11415 = vunpack.c.h.b16 %v11276
  %v11416 = vunpack.c.l.b16 %v11277
  %v11417 = vunpack.c.h.b16 %v11277
  %v11418 = vunpack.c.l.b16 %v11278
  %v11419 = vunpack.c.h.b16 %v11278
  %v11420 = vunpack.c.l.b16 %v11279
  %v11421 = vunpack.c.h.b16 %v11279
  %v11422 = vunpack.c.l.b16 %v11280
  %v11423 = vunpack.c.h.b16 %v11280
  %v11424 = vunpack.c.l.b16 %v11281
  %v11425 = vunpack.c.h.b16 %v11281
  %v11426 = vunpack.c.l.b16 %v11282
  %v11427 = vunpack.c.h.b16 %v11282
  %v11428 = vunpack.c.l.b16 %v11283
  %v11429 = vunpack.c.h.b16 %v11283
  %v11430 = vunpack.c.l.b16 %v11284
  %v11431 = vunpack.c.h.b16 %v11284
  %v11432 = vunpack.c.l.b16 %v11285
  %v11433 = vunpack.c.h.b16 %v11285
  %v11434 = vunpack.c.l.b16 %v11286
  %v11435 = vunpack.c.h.b16 %v11286
  %v11436 = vunpack.c.l.b16 %v11287
  %v11437 = vunpack.c.h.b16 %v11287
  %v11438 = vunpack.c.l.b16 %v11288
  %v11439 = vunpack.c.h.b16 %v11288
  %v11440 = vunpack.c.l.b16 %v11289
  %v11441 = vunpack.c.h.b16 %v11289
  %v11442 = vunpack.c.l.b16 %v11290
  %v11443 = vunpack.c.h.b16 %v11290
  %v11444 = vunpack.c.l.b16 %v11291
  %v11445 = vunpack.c.h.b16 %v11291
  %v11446 = vunpack.c.l.b16 %v11292
  %v11447 = vunpack.c.h.b16 %v11292
  %v11448 = vunpack.c.l.b16 %v11293
  %v11449 = vunpack.c.h.b16 %v11293
  %v11450 = vunpack.c.l.b16 %v11294
  %v11451 = vunpack.c.h.b16 %v11294
  %v11452 = vunpack.c.l.b16 %v11295
  %v11453 = vunpack.c.h.b16 %v11295
  %v11454 = vunpack.c.l.b16 %v11296
  %v11455 = vunpack.c.h.b16 %v11296
  %v11456 = vunpack.c.l.b16 %v11297
  %v11457 = vunpack.c.h.b16 %v11297
  %v11458 = vunpack.c.l.b16 %v11298
  %v11459 = vunpack.c.h.b16 %v11298
  %v11460 = vunpack.c.l.b16 %v11299
  %v11461 = vunpack.c.h.b16 %v11299
  %v11462 = vunpack.c.l.b16 %v11300
  %v11463 = vunpack.c.h.b16 %v11300
  %v11464 = vunpack.c.l.b16 %v11301
  %v11465 = vunpack.c.h.b16 %v11301
  %v11466 = vunpack.c.l.b16 %v11302
  %v11467 = vunpack.c.h.b16 %v11302
  %v11468 = vunpack.c.l.b16 %v11303
  %v11469 = vunpack.c.h.b16 %v11303
  %v11470 = vunpack.c.l.b16 %v11304
  %v11471 = vunpack.c.h.b16 %v11304
  %v11472 = vunpack.c.l.b16 %v11305
  %v11473 = vunpack.c.h.b16 %v11305
  %v11474 = vunpack.c.l.b16 %v11306
  %v11475 = vunpack.c.h.b16 %v11306
  %v11476 = vunpack.c.l.b16 %v11307
  %v11477 = vunpack.c.h.b16 %v11307
  %v11478 = vunpack.c.l.b16 %v11308
  %v11479 = vunpack.c.h.b16 %v11308
  %v11480 = vunpack.c.l.b16 %v11309
  %v11481 = vunpack.c.h.b16 %v11309
  %v11482 = vunpack.c.l.b16 %v11310
  %v11483 = vunpack.c.h.b16 %v11310
  %v11484 = vunpack.c.l.b16 %v11311
  %v11485 = vunpack.c.h.b16 %v11311
  %v11486 = vunpack.c.l.b16 %v11312
  %v11487 = vunpack.c.h.b16 %v11312
  %v11488 = vunpack.c.l.b16 %v11313
  %v11489 = vunpack.c.h.b16 %v11313
  %v11490 = vunpack.c.l.b16 %v11314
  %v11491 = vunpack.c.h.b16 %v11314
  %v11492 = vunpack.c.l.b16 %v11315
  %v11493 = vunpack.c.h.b16 %v11315
  %v11494 = vunpack.c.l.b16 %v11316
  %v11495 = vunpack.c.h.b16 %v11316
  %v11496 = vunpack.c.l.b16 %v11317
  %v11497 = vunpack.c.h.b16 %v11317
  %v11498 = vunpack.c.l.b16 %v11318
  %v11499 = vunpack.c.h.b16 %v11318
  %v11500 = vunpack.c.l.b16 %v11319
  %v11501 = vunpack.c.h.b16 %v11319
  %v11502 = vunpack.c.l.b16 %v11320
  %v11503 = vunpack.c.h.b16 %v11320
  %v11504 = vunpack.c.l.b16 %v11321
  %v11505 = vunpack.c.h.b16 %v11321
  %v11506 = vunpack.c.l.b16 %v11322
  %v11507 = vunpack.c.h.b16 %v11322
  %v11508 = vunpack.c.l.b16 %v11323
  %v11509 = vunpack.c.h.b16 %v11323
  %v11510 = vunpack.c.l.b16 %v11324
  %v11511 = vunpack.c.h.b16 %v11324
  %v11512 = vunpack.c.l.b16 %v11325
  %v11513 = vunpack.c.h.b16 %v11325
  %v11514 = vunpack.c.l.b16 %v11326
  %v11515 = vunpack.c.h.b16 %v11326
  %v11516 = vunpack.c.l.b16 %v11327
  %v11517 = vunpack.c.h.b16 %v11327
  %v11518 = vunpack.c.l.b16 %v11328
  %v11519 = vunpack.c.h.b16 %v11328
  %v11520 = vunpack.c.l.b16 %v11329
  %v11521 = vunpack.c.h.b16 %v11329
  %v11522 = vunpack.c.l.b16 %v11330
  %v11523 = vunpack.c.h.b16 %v11330
  %v11524 = vunpack.c.l.b16 %v11331
  %v11525 = vunpack.c.h.b16 %v11331
  %v11526 = vunpack.c.l.b16 %v11332
  %v11527 = vunpack.c.h.b16 %v11332
  %v11528 = vunpack.c.l.b16 %v11333
  %v11529 = vunpack.c.h.b16 %v11333
  %v11530 = vunpack.c.l.b16 %v11334
  %v11531 = vunpack.c.h.b16 %v11334
  %v11532 = vunpack.c.l.b16 %v11335
  %v11533 = vunpack.c.h.b16 %v11335
  %v11534 = vunpack.c.l.b16 %v11336
  %v11535 = vunpack.c.h.b16 %v11336
  %v11536 = vunpack.c.l.b16 %v11337
  %v11537 = vunpack.c.h.b16 %v11337
  %v11538 = vunpack.c.l.b16 %v11338
  %v11539 = vunpack.c.h.b16 %v11338
  %v11540 = vunpack.c.l.b16 %v11339
  %v11541 = vunpack.c.h.b16 %v11339
  %v11542 = vpack.c.b16 %v11418, %v11414
  %v11543 = vpack.c.b16 %v11419, %v11415
  %v11544 = vpack.c.b16 %v11420, %v11416
  %v11545 = vpack.c.b16 %v11421, %v11417
  %v11546 = vpack.c.b16 %v11426, %v11422
  %v11547 = vpack.c.b16 %v11427, %v11423
  %v11548 = vpack.c.b16 %v11428, %v11424
  %v11549 = vpack.c.b16 %v11429, %v11425
  %v11550 = vpack.c.b16 %v11434, %v11430
  %v11551 = vpack.c.b16 %v11435, %v11431
  %v11552 = vpack.c.b16 %v11436, %v11432
  %v11553 = vpack.c.b16 %v11437, %v11433
  %v11554 = vpack.c.b16 %v11442, %v11438
  %v11555 = vpack.c.b16 %v11443, %v11439
  %v11556 = vpack.c.b16 %v11444, %v11440
  %v11557 = vpack.c.b16 %v11445, %v11441
  %v11558 = vpack.c.b16 %v11450, %v11446
  %v11559 = vpack.c.b16 %v11451, %v11447
  %v11560 = vpack.c.b16 %v11452, %v11448
  %v11561 = vpack.c.b16 %v11453, %v11449
  %v11562 = vpack.c.b16 %v11458, %v11454
  %v11563 = vpack.c.b16 %v11459, %v11455
  %v11564 = vpack.c.b16 %v11460, %v11456
  %v11565 = vpack.c.b16 %v11461, %v11457
  %v11566 = vpack.c.b16 %v11466, %v11462
  %v11567 = vpack.c.b16 %v11467, %v11463
  %v11568 = vpack.c.b16 %v11468, %v11464
  %v11569 = vpack.c.b16 %v11469, %v11465
  %v11570 = vpack.c.b16 %v11474, %v11470
  %v11571 = vpack.c.b16 %v11475, %v11471
  %v11572 = vpack.c.b16 %v11476, %v11472
  %v11573 = vpack.c.b16 %v11477, %v11473
  %v11574 = vpack.c.b16 %v11482, %v11478
  %v11575 = vpack.c.b16 %v11483, %v11479
  %v11576 = vpack.c.b16 %v11484, %v11480
  %v11577 = vpack.c.b16 %v11485, %v11481
  %v11578 = vpack.c.b16 %v11490, %v11486
  %v11579 = vpack.c.b16 %v11491, %v11487
  %v11580 = vpack.c.b16 %v11492, %v11488
  %v11581 = vpack.c.b16 %v11493, %v11489
  %v11582 = vpack.c.b16 %v11498, %v11494
  %v11583 = vpack.c.b16 %v11499, %v11495
  %v11584 = vpack.c.b16 %v11500, %v11496
  %v11585 = vpack.c.b16 %v11501, %v11497
  %v11586 = vpack.c.b16 %v11506, %v11502
  %v11587 = vpack.c.b16 %v11507, %v11503
  %v11588 = vpack.c.b16 %v11508, %v11504
  %v11589 = vpack.c.b16 %v11509, %v11505
  %v11590 = vpack.c.b16 %v11514, %v11510
  %v11591 = vpack.c.b16 %v11515, %v11511
  %v11592 = vpack.c.b16 %v11516, %v11512
  %v11593 = vpack.c.b16 %v11517, %v11513
  %v11594 = vpack.c.b16 %v11522, %v11518
  %v11595 = vpack.c.b16 %v11523, %v11519
  %v11596 = vpack.c.b16 %v11524, %v11520
  %v11597 = vpack.c.b16 %v11525, %v11521
  %v11598 = vpack.c.b16 %v11530, %v11526
  %v11599 = vpack.c.b16 %v11531, %v11527
  %v11600 = vpack.c.b16 %v11532, %v11528
  %v11601 = vpack.c.b16 %v11533, %v11529
  %v11602 = vpack.c.b16 %v11538, %v11534
  %v11603 = vpack.c.b16 %v11539, %v11535
  %v11604 = vpack.c.b16 %v11540, %v11536
  %v11605 = vpack.c.b16 %v11541, %v11537
  %11670 = vmatpush.bf16.msra.mxu0 %v11570
  %11671 = vmatpush.bf16.msra.mxu0 %v11566
  %11672 = vmatpush.bf16.msra.mxu0 %v11562
  %11673 = vmatpush.bf16.msra.mxu0 %v11558
  %11674 = vmatpush.bf16.msra.mxu0 %v11554
  %11675 = vmatpush.bf16.msra.mxu0 %v11550
  %11676 = vmatpush.bf16.msra.mxu0 %v11546
  %11677 = vmatpush.bf16.msra.mxu0 %v11542
  %11678 = vmatmul.bf16.gmra.mxu0 %v11275
  %v11679 = vpop.f32.mrf.mxu0
  %v11680 = vadd.f32 %v11342, %v11679
  %v11681 = vpop.f32.mrf.mxu0
  %11682 = vdwg.mxu0
  %11683 = vmatpush.bf16.msra.mxu0 %v11602
  %11684 = vmatpush.bf16.msra.mxu0 %v11598
  %11685 = vmatpush.bf16.msra.mxu0 %v11594
  %11686 = vmatpush.bf16.msra.mxu0 %v11590
  %11687 = vmatpush.bf16.msra.mxu0 %v11586
  %11688 = vmatpush.bf16.msra.mxu0 %v11582
  %11689 = vmatpush.bf16.msra.mxu0 %v11578
  %11690 = vmatpush.bf16.msra.mxu0 %v11574
  %11691 = vmatmul.bf16.gmra.mxu0 %v1557
  %v11692 = vpop.f32.mrf.mxu0
  %v11693 = vadd.f32 %v11680, %v11692
  %v11694 = vpop.f32.mrf.mxu0
  %11695 = vdwg.mxu0
  %11696 = vmatpush.bf16.msra.mxu0 %v11571
  %11697 = vmatpush.bf16.msra.mxu0 %v11567
  %11698 = vmatpush.bf16.msra.mxu0 %v11563
  %11699 = vmatpush.bf16.msra.mxu0 %v11559
  %11700 = vmatpush.bf16.msra.mxu0 %v11555
  %11701 = vmatpush.bf16.msra.mxu0 %v11551
  %11702 = vmatpush.bf16.msra.mxu0 %v11547
  %11703 = vmatpush.bf16.msra.mxu0 %v11543
  %11704 = vmatmul.bf16.gmra.mxu0 %v11275
  %v11705 = vpop.f32.mrf.mxu0
  %v11706 = vadd.f32 %v11343, %v11705
  %v11707 = vpop.f32.mrf.mxu0
  %11708 = vdwg.mxu0
  %11709 = vmatpush.bf16.msra.mxu0 %v11603
  %11710 = vmatpush.bf16.msra.mxu0 %v11599
  %11711 = vmatpush.bf16.msra.mxu0 %v11595
  %11712 = vmatpush.bf16.msra.mxu0 %v11591
  %11713 = vmatpush.bf16.msra.mxu0 %v11587
  %11714 = vmatpush.bf16.msra.mxu0 %v11583
  %11715 = vmatpush.bf16.msra.mxu0 %v11579
  %11716 = vmatpush.bf16.msra.mxu0 %v11575
  %11717 = vmatmul.bf16.gmra.mxu0 %v1557
  %v11718 = vpop.f32.mrf.mxu0
  %v11719 = vadd.f32 %v11706, %v11718
  %v11720 = vpop.f32.mrf.mxu0
  %11721 = vdwg.mxu0
  %11722 = vmatpush.bf16.msra.mxu0 %v11572
  %11723 = vmatpush.bf16.msra.mxu0 %v11568
  %11724 = vmatpush.bf16.msra.mxu0 %v11564
  %11725 = vmatpush.bf16.msra.mxu0 %v11560
  %11726 = vmatpush.bf16.msra.mxu0 %v11556
  %11727 = vmatpush.bf16.msra.mxu0 %v11552
  %11728 = vmatpush.bf16.msra.mxu0 %v11548
  %11729 = vmatpush.bf16.msra.mxu0 %v11544
  %11730 = vmatmul.bf16.gmra.mxu0 %v11275
  %v11731 = vpop.f32.mrf.mxu0
  %v11732 = vadd.f32 %v11344, %v11731
  %v11733 = vpop.f32.mrf.mxu0
  %11734 = vdwg.mxu0
  %11735 = vmatpush.bf16.msra.mxu0 %v11604
  %11736 = vmatpush.bf16.msra.mxu0 %v11600
  %11737 = vmatpush.bf16.msra.mxu0 %v11596
  %11738 = vmatpush.bf16.msra.mxu0 %v11592
  %11739 = vmatpush.bf16.msra.mxu0 %v11588
  %11740 = vmatpush.bf16.msra.mxu0 %v11584
  %11741 = vmatpush.bf16.msra.mxu0 %v11580
  %11742 = vmatpush.bf16.msra.mxu0 %v11576
  %11743 = vmatmul.bf16.gmra.mxu0 %v1557
  %v11744 = vpop.f32.mrf.mxu0
  %v11745 = vadd.f32 %v11732, %v11744
  %v11746 = vpop.f32.mrf.mxu0
  %11747 = vdwg.mxu0
  %11748 = vmatpush.bf16.msra.mxu0 %v11573
  %11749 = vmatpush.bf16.msra.mxu0 %v11569
  %11750 = vmatpush.bf16.msra.mxu0 %v11565
  %11751 = vmatpush.bf16.msra.mxu0 %v11561
  %11752 = vmatpush.bf16.msra.mxu0 %v11557
  %11753 = vmatpush.bf16.msra.mxu0 %v11553
  %11754 = vmatpush.bf16.msra.mxu0 %v11549
  %11755 = vmatpush.bf16.msra.mxu0 %v11545
  %11756 = vmatmul.bf16.gmra.mxu0 %v11275
  %v11757 = vpop.f32.mrf.mxu0
  %v11758 = vadd.f32 %v11345, %v11757
  %v11759 = vpop.f32.mrf.mxu0
  %11760 = vdwg.mxu0
  %11761 = vmatpush.bf16.msra.mxu0 %v11605
  %11762 = vmatpush.bf16.msra.mxu0 %v11601
  %11763 = vmatpush.bf16.msra.mxu0 %v11597
  %11764 = vmatpush.bf16.msra.mxu0 %v11593
  %11765 = vmatpush.bf16.msra.mxu0 %v11589
  %11766 = vmatpush.bf16.msra.mxu0 %v11585
  %11767 = vmatpush.bf16.msra.mxu0 %v11581
  %11768 = vmatpush.bf16.msra.mxu0 %v11577
  %11769 = vmatmul.bf16.gmra.mxu0 %v1557
  %v11770 = vpop.f32.mrf.mxu0
  %v11771 = vadd.f32 %v11758, %v11770
  %v11772 = vpop.f32.mrf.mxu0
  %11773 = vdwg.mxu0
  %v11774 = vxor.u32 %v11693, 2147483648
  %v11775 = vmul.f32 %v11774, 1.442695
  %v11776 = vpow.pop %v11775
  %v11777 = vadd.f32 %v11776, 1.0
  %v11778 = vrcp.pop %v11777
  %v11779 = vmul.f32 %v11777, %v11778
  %v11780 = vsub.f32 1.0, %v11779
  %v11781 = vmul.f32 %v11778, %v11780
  %v11782 = vadd.f32 %v11778, %v11781
  %vm11783 = vweird.f32 %v11777
  %vm11784 = vweird.f32 %v11778
  %vm11785 = vmor %vm11783, %vm11784
  %v11786 = vsel %vm11785, %v11778, %v11782
  %v11787 = vand.u32 2147483647, %v11777
  %vm11788 = vcmp.eq.f32.partialorder %v11787, 8.507059e+37
  %v11789 = vand.u32 %v11777, 2147483648
  %v11790 = vor.u32 1.1754944e-38, %v11789
  %v11791 = vsel %vm11788, %v11790, %v11786
  %v11792 = vmul.f32 1.0, %v11791
  %v11793 = vxor.u32 %v11719, 2147483648
  %v11794 = vmul.f32 %v11793, 1.442695
  %v11795 = vpow.pop %v11794
  %v11796 = vadd.f32 %v11795, 1.0
  %v11797 = vrcp.pop %v11796
  %v11798 = vmul.f32 %v11796, %v11797
  %v11799 = vsub.f32 1.0, %v11798
  %v11800 = vmul.f32 %v11797, %v11799
  %v11801 = vadd.f32 %v11797, %v11800
  %vm11802 = vweird.f32 %v11796
  %vm11803 = vweird.f32 %v11797
  %vm11804 = vmor %vm11802, %vm11803
  %v11805 = vsel %vm11804, %v11797, %v11801
  %v11806 = vand.u32 2147483647, %v11796
  %vm11807 = vcmp.eq.f32.partialorder %v11806, 8.507059e+37
  %v11808 = vand.u32 %v11796, 2147483648
  %v11809 = vor.u32 1.1754944e-38, %v11808
  %v11810 = vsel %vm11807, %v11809, %v11805
  %v11811 = vmul.f32 1.0, %v11810
  %v11812 = vtanh.pop %v11745
  %v11813 = vxor.u32 %v11771, 2147483648
  %v11814 = vmul.f32 %v11813, 1.442695
  %v11815 = vpow.pop %v11814
  %v11816 = vadd.f32 %v11815, 1.0
  %v11817 = vrcp.pop %v11816
  %v11818 = vmul.f32 %v11816, %v11817
  %v11819 = vsub.f32 1.0, %v11818
  %v11820 = vmul.f32 %v11817, %v11819
  %v11821 = vadd.f32 %v11817, %v11820
  %vm11822 = vweird.f32 %v11816
  %vm11823 = vweird.f32 %v11817
  %vm11824 = vmor %vm11822, %vm11823
  %v11825 = vsel %vm11824, %v11817, %v11821
  %v11826 = vand.u32 2147483647, %v11816
  %vm11827 = vcmp.eq.f32.partialorder %v11826, 8.507059e+37
  %v11828 = vand.u32 %v11816, 2147483648
  %v11829 = vor.u32 1.1754944e-38, %v11828
  %v11830 = vsel %vm11827, %v11829, %v11825
  %v11831 = vmul.f32 1.0, %v11830
  %v11832 = vmul.f32 %v11811, 0.0
  %v11833 = vmul.f32 %v11792, %v11812
  %v11834 = vadd.f32 %v11832, %v11833
  %v11835 = vtanh.pop %v11834
  %v11836 = vmul.f32 %v11831, %v11835
  %v11837 = vpack.c.bf16 %v11274, %v11274
  %v11838 = vpack.c.bf16 %v11836, %v11836
  %v11839 = vld [vmem:[%s11] sm:$0xf]
  %v11840 = vld [vmem:[%s11 + $0x4] sm:$0xf]
  %v11841 = vld [vmem:[%s11 + $0x8] sm:$0xf]
  %v11842 = vld [vmem:[%s11 + $0xc] sm:$0xf]
  %v11843 = vld [vmem:[%s11 + $0x10] sm:$0xf]
  %v11844 = vld [vmem:[%s11 + $0x14] sm:$0xf]
  %v11845 = vld [vmem:[%s11 + $0x18] sm:$0xf]
  %v11846 = vld [vmem:[%s11 + $0x1c] sm:$0xf]
  %v11847 = vld [vmem:[%s11 + $0x20] sm:$0xf]
  %v11848 = vld [vmem:[%s11 + $0x24] sm:$0xf]
  %v11849 = vld [vmem:[%s11 + $0x28] sm:$0xf]
  %v11850 = vld [vmem:[%s11 + $0x2c] sm:$0xf]
  %v11851 = vld [vmem:[%s11 + $0x30] sm:$0xf]
  %v11852 = vld [vmem:[%s11 + $0x34] sm:$0xf]
  %v11853 = vld [vmem:[%s11 + $0x38] sm:$0xf]
  %v11854 = vld [vmem:[%s11 + $0x3c] sm:$0xf]
  %v11855 = vld [vmem:[%s11 + $0x40] sm:$0xf]
  %v11856 = vld [vmem:[%s11 + $0x44] sm:$0xf]
  %v11857 = vld [vmem:[%s11 + $0x48] sm:$0xf]
  %v11858 = vld [vmem:[%s11 + $0x4c] sm:$0xf]
  %v11859 = vld [vmem:[%s11 + $0x50] sm:$0xf]
  %v11860 = vld [vmem:[%s11 + $0x54] sm:$0xf]
  %v11861 = vld [vmem:[%s11 + $0x58] sm:$0xf]
  %v11862 = vld [vmem:[%s11 + $0x5c] sm:$0xf]
  %v11863 = vld [vmem:[%s11 + $0x60] sm:$0xf]
  %v11864 = vld [vmem:[%s11 + $0x64] sm:$0xf]
  %v11865 = vld [vmem:[%s11 + $0x68] sm:$0xf]
  %v11866 = vld [vmem:[%s11 + $0x6c] sm:$0xf]
  %v11867 = vld [vmem:[%s11 + $0x70] sm:$0xf]
  %v11868 = vld [vmem:[%s11 + $0x74] sm:$0xf]
  %v11869 = vld [vmem:[%s11 + $0x78] sm:$0xf]
  %v11870 = vld [vmem:[%s11 + $0x7c] sm:$0xf]
  %v11871 = vld [vmem:[%s12] sm:$0x1]
  %v11873 = vperm.slane %v11871, 0
  %v11907 = vunpack.c.l.b16 %v11839
  %v11908 = vunpack.c.l.b16 %v11840
  %v11909 = vunpack.c.l.b16 %v11841
  %v11910 = vunpack.c.l.b16 %v11842
  %v11911 = vunpack.c.l.b16 %v11843
  %v11912 = vunpack.c.l.b16 %v11844
  %v11913 = vunpack.c.l.b16 %v11845
  %v11914 = vunpack.c.l.b16 %v11846
  %v11915 = vunpack.c.l.b16 %v11847
  %v11916 = vunpack.c.l.b16 %v11848
  %v11917 = vunpack.c.l.b16 %v11849
  %v11918 = vunpack.c.l.b16 %v11850
  %v11919 = vunpack.c.l.b16 %v11851
  %v11920 = vunpack.c.l.b16 %v11852
  %v11921 = vunpack.c.l.b16 %v11853
  %v11922 = vunpack.c.l.b16 %v11854
  %v11923 = vunpack.c.l.b16 %v11855
  %v11924 = vunpack.c.l.b16 %v11856
  %v11925 = vunpack.c.l.b16 %v11857
  %v11926 = vunpack.c.l.b16 %v11858
  %v11927 = vunpack.c.l.b16 %v11859
  %v11928 = vunpack.c.l.b16 %v11860
  %v11929 = vunpack.c.l.b16 %v11861
  %v11930 = vunpack.c.l.b16 %v11862
  %v11931 = vunpack.c.l.b16 %v11863
  %v11932 = vunpack.c.l.b16 %v11864
  %v11933 = vunpack.c.l.b16 %v11865
  %v11934 = vunpack.c.l.b16 %v11866
  %v11935 = vunpack.c.l.b16 %v11867
  %v11936 = vunpack.c.l.b16 %v11868
  %v11937 = vunpack.c.l.b16 %v11869
  %v11938 = vunpack.c.l.b16 %v11870
  %v11939 = vpack.c.b16 %v11908, %v11907
  %v11940 = vpack.c.b16 %v11910, %v11909
  %v11941 = vpack.c.b16 %v11912, %v11911
  %v11942 = vpack.c.b16 %v11914, %v11913
  %v11943 = vpack.c.b16 %v11916, %v11915
  %v11944 = vpack.c.b16 %v11918, %v11917
  %v11945 = vpack.c.b16 %v11920, %v11919
  %v11946 = vpack.c.b16 %v11922, %v11921
  %v11947 = vpack.c.b16 %v11924, %v11923
  %v11948 = vpack.c.b16 %v11926, %v11925
  %v11949 = vpack.c.b16 %v11928, %v11927
  %v11950 = vpack.c.b16 %v11930, %v11929
  %v11951 = vpack.c.b16 %v11932, %v11931
  %v11952 = vpack.c.b16 %v11934, %v11933
  %v11953 = vpack.c.b16 %v11936, %v11935
  %v11954 = vpack.c.b16 %v11938, %v11937
  %11971 = vmatpush.bf16.msra.mxu0 %v11946
  %11972 = vmatpush.bf16.msra.mxu0 %v11945
  %11973 = vmatpush.bf16.msra.mxu0 %v11944
  %11974 = vmatpush.bf16.msra.mxu0 %v11943
  %11975 = vmatpush.bf16.msra.mxu0 %v11942
  %11976 = vmatpush.bf16.msra.mxu0 %v11941
  %11977 = vmatpush.bf16.msra.mxu0 %v11940
  %11978 = vmatpush.bf16.msra.mxu0 %v11939
  %11979 = vmatmul.bf16.gmra.mxu0 %v11837
  %v11980 = vpop.f32.mrf.mxu0
  %v11981 = vadd.f32 %v11873, %v11980
  %v11982 = vpop.f32.mrf.mxu0
  %11983 = vdwg.mxu0
  %11984 = vmatpush.bf16.msra.mxu0 %v11954
  %11985 = vmatpush.bf16.msra.mxu0 %v11953
  %11986 = vmatpush.bf16.msra.mxu0 %v11952
  %11987 = vmatpush.bf16.msra.mxu0 %v11951
  %11988 = vmatpush.bf16.msra.mxu0 %v11950
  %11989 = vmatpush.bf16.msra.mxu0 %v11949
  %11990 = vmatpush.bf16.msra.mxu0 %v11948
  %11991 = vmatpush.bf16.msra.mxu0 %v11947
  %11992 = vmatmul.bf16.gmra.mxu0 %v11838
  %v11993 = vpop.f32.mrf.mxu0
  %v11994 = vadd.f32 %v11981, %v11993
  %v11995 = vpop.f32.mrf.mxu0
  %11996 = vdwg.mxu0
  %11997 = vst [vmem:[%s13] sm:$0xff] %v11994
  // Predicated region
  $region54: #{forward.1} parent=0 // pred_check
    _
  $region55: #{forward.1} parent=0 // pred_check_branch
    %11999 = sbr.rel (0) target = $region57
  $region56: #{forward.1} parent=0 // pred_region
    _
  $region57: #{forward.1} parent=0 // pred_fallthru
    _
  // Predicated region
  $region58: #{forward.1} parent=0 // pred_check
    _
  $region59: #{forward.1} parent=0 // pred_check_branch
    %12001 = sbr.rel (0) target = $region61
  $region60: #{forward.1} parent=0 // pred_region
    _
  $region61: #{forward.1} parent=0 // pred_fallthru
    _

</llo_original>
